<compile_context>
chip_gen: v6e
topology: v6e:2x2x1
jax: 0.10.0
libtpu: 0.0.40
codegen_flags: <defaults>
</compile_context>

<pallas_src>
import math

import numpy as np
import jax
import jax.numpy as jnp
from jax.experimental import pallas as pl
from jax.experimental.pallas import tpu as pltpu

# -----------------------------------------------------------------------------
# Config (small shapes consistent with the module)
# -----------------------------------------------------------------------------
IN_FEATURES = 2          # (x, y) trajectory input
OUT_FEATURES = 2
NUM_HEADS = 4
NUM_ENC_LAYERS = 1
NUM_DEC_LAYERS = 1
D_MODEL = 32             # embedding_size
HEAD_DIM = D_MODEL // NUM_HEADS
N_GAUSSIANS = 5
N_HIDDEN = 10
HIDDEN_HID = N_HIDDEN // 4          # = 2
DIM_FF = 2048            # hardcoded in the PyTorch module
MAX_LEN = 12
LN_EPS = 1e-5
NEG_INF = -1e30

# f32 FF weights by default (bit-parity with the f32 PyTorch reference).
# bf16 halves the only non-trivial DMA (~1 MiB -> ~0.5 MiB) at ~1e-2 rel error.
FF_WEIGHTS_BF16 = False

BATCH = 2
SEQ_SRC = 8
SEQ_TGT = 8


# -----------------------------------------------------------------------------
# Static slab layouts (shared by init-time packing and the kernel builder)
# -----------------------------------------------------------------------------
def _mat_layout():
    """Small f32 weight matrices, rows padded to D_MODEL, concatenated on lanes."""
    entries = [("enc_in_w", IN_FEATURES, D_MODEL),
               ("dec_in_w", OUT_FEATURES, D_MODEL)]
    for l in range(NUM_ENC_LAYERS):
        p = f"enc{l}_"
        entries += [(p + "w_qkv", D_MODEL, 3 * D_MODEL),
                    (p + "w_o", D_MODEL, D_MODEL)]
    for l in range(NUM_DEC_LAYERS):
        p = f"dec{l}_"
        entries += [(p + "w_qkv", D_MODEL, 3 * D_MODEL),
                    (p + "w_os", D_MODEL, D_MODEL),
                    (p + "w_qc", D_MODEL, D_MODEL),
                    (p + "w_kvc", D_MODEL, 2 * D_MODEL),
                    (p + "w_oc", D_MODEL, D_MODEL)]
    entries += [("mdn_w1", D_MODEL, 3 * N_HIDDEN),
                ("mdn_w2", 3 * N_HIDDEN, 3 * (N_HIDDEN // 2)),
                ("mdn_w3", 3 * (N_HIDDEN // 2), 3 * HIDDEN_HID),
                ("mdn_wh", 3 * HIDDEN_HID, 5 * N_GAUSSIANS)]
    layout, off = {}, 0
    for name, r, c in entries:
        layout[name] = (r, off, c)
        off += c
    return layout, off


def _vec_layout():
    """All (1, N) row vectors (biases, LayerNorm params) concatenated on lanes."""
    entries = [("enc_in_b", D_MODEL), ("dec_in_b", D_MODEL)]
    for l in range(NUM_ENC_LAYERS):
        p = f"enc{l}_"
        entries += [(p + "b_qkv", 3 * D_MODEL), (p + "b_o", D_MODEL),
                    (p + "ln1_g", D_MODEL), (p + "ln1_b", D_MODEL),
                    (p + "b_ff1", DIM_FF), (p + "b_ff2", D_MODEL),
                    (p + "ln2_g", D_MODEL), (p + "ln2_b", D_MODEL)]
    for l in range(NUM_DEC_LAYERS):
        p = f"dec{l}_"
        entries += [(p + "b_qkv", 3 * D_MODEL), (p + "b_os", D_MODEL),
                    (p + "ln1_g", D_MODEL), (p + "ln1_b", D_MODEL),
                    (p + "b_qc", D_MODEL), (p + "b_kvc", 2 * D_MODEL),
                    (p + "b_oc", D_MODEL),
                    (p + "ln2_g", D_MODEL), (p + "ln2_b", D_MODEL),
                    (p + "b_ff1", DIM_FF), (p + "b_ff2", D_MODEL),
                    (p + "ln3_g", D_MODEL), (p + "ln3_b", D_MODEL)]
    entries += [("mdn_b1", 3 * N_HIDDEN), ("mdn_b2", 3 * (N_HIDDEN // 2)),
                ("mdn_b3", 3 * HIDDEN_HID), ("mdn_bh", 5 * N_GAUSSIANS)]
    layout, off = {}, 0
    for name, c in entries:
        layout[name] = (off, c)
        off += c
    return layout, off


def _pack_mat_slab(mats):
    layout, total = _mat_layout()
    slab = np.zeros((D_MODEL, total), np.float32)
    for name, (r, off, c) in layout.items():
        w = np.asarray(mats[name], np.float32)
        assert w.shape == (r, c), (name, w.shape, (r, c))
        slab[:r, off:off + c] = w
    return jnp.asarray(slab)


def _pack_vec_slab(vecs):
    layout, total = _vec_layout()
    slab = np.zeros((1, total), np.float32)
    for name, (off, c) in layout.items():
        v = np.asarray(vecs[name], np.float32)
        assert v.shape == (1, c), (name, v.shape, (1, c))
        slab[:, off:off + c] = v
    return jnp.asarray(slab)


# -----------------------------------------------------------------------------
# The single fused kernel
# -----------------------------------------------------------------------------
def _make_fused_kernel(num_enc, num_dec):
    H, Dh, D, G = NUM_HEADS, HEAD_DIM, D_MODEL, N_GAUSSIANS
    scale_emb = math.sqrt(D_MODEL)
    inv_sqrt_dh = 1.0 / math.sqrt(Dh)
    mat_layout, _ = _mat_layout()
    vec_layout, _ = _vec_layout()

    def kernel(src_ref, tgt_ref, pe_src_ref, pe_tgt_ref,
               enc_mask_ref, self_mask_ref, cross_mask_ref,
               mat_ref, vec_ref, *rest):
        ff_refs = rest[:2 * (num_enc + num_dec)]
        dec_out_ref, heads_ref = rest[-2], rest[-1]

        def W(name):                         # static ref slice -> small load
            r, off, c = mat_layout[name]
            return mat_ref[0:r, off:off + c]

        def V(name):
            off, c = vec_layout[name]
            return vec_ref[:, off:off + c]

        def matmul(x, w, b=None):
            y = jnp.dot(x.astype(w.dtype), w, preferred_element_type=jnp.float32)
            if b is not None:
                y = y + b
            return y

        def layernorm(x, g, b):
            mean = jnp.mean(x, axis=-1, keepdims=True)
            c = x - mean
            var = jnp.mean(c * c, axis=-1, keepdims=True)
            return c * jax.lax.rsqrt(var + LN_EPS) * g + b

        def gelu(y):                         # exact (erf) GELU, PyTorch 'gelu'
            return 0.5 * y * (1.0 + jax.lax.erf(y * (1.0 / math.sqrt(2.0))))

        def elu(y):                          # alpha = 1
            return jnp.where(y > 0, y, jnp.exp(jnp.minimum(y, 0.0)) - 1.0)

        def mha(q, k, v, mask):
            # per-head (B*Sq, B*Sk) scores; batch-block validity and the user
            # mask are folded into the precomputed additive `mask`.
            outs = []
            for h in range(H):
                qh = q[:, h * Dh:(h + 1) * Dh]
                kh = k[:, h * Dh:(h + 1) * Dh]
                vh = v[:, h * Dh:(h + 1) * Dh]
                s = jax.lax.dot_general(qh, kh, (((1,), (1,)), ((), ())),
                                        preferred_element_type=jnp.float32)
                s = s * inv_sqrt_dh + mask
                m = jnp.max(s, axis=-1, keepdims=True)
                e = jnp.exp(s - m)
                p = e / jnp.sum(e, axis=-1, keepdims=True)
                outs.append(jnp.dot(p, vh, preferred_element_type=jnp.float32))
            return jnp.concatenate(outs, axis=1)

        def feed_forward(x, w1_ref, b1, w2_ref, b2):
            h = gelu(matmul(x, w1_ref[...], b1))   # (M, 2048) stays in VMEM
            return matmul(h, w2_ref[...], b2)

        # ---------------- encoder ----------------
        x = matmul(src_ref[...], W("enc_in_w"), V("enc_in_b")) * scale_emb
        x = x + pe_src_ref[...]
        enc_mask = enc_mask_ref[...]
        ff_idx = 0
        for l in range(num_enc):             # post-norm (PyTorch norm_first=False)
            p = f"enc{l}_"
            qkv = matmul(x, W(p + "w_qkv"), V(p + "b_qkv"))
            sa = mha(qkv[:, :D], qkv[:, D:2 * D], qkv[:, 2 * D:], enc_mask)
            sa = matmul(sa, W(p + "w_o"), V(p + "b_o"))
            x = layernorm(x + sa, V(p + "ln1_g"), V(p + "ln1_b"))
            ff = feed_forward(x, ff_refs[ff_idx], V(p + "b_ff1"),
                              ff_refs[ff_idx + 1], V(p + "b_ff2"))
            ff_idx += 2
            x = layernorm(x + ff, V(p + "ln2_g"), V(p + "ln2_b"))
        mem = x                              # never leaves VMEM

        # ---------------- decoder ----------------
        y = matmul(tgt_ref[...], W("dec_in_w"), V("dec_in_b")) * scale_emb
        y = y + pe_tgt_ref[...]
        self_mask = self_mask_ref[...]
        cross_mask = cross_mask_ref[...]
        for l in range(num_dec):
            p = f"dec{l}_"
            qkv = matmul(y, W(p + "w_qkv"), V(p + "b_qkv"))
            sa = mha(qkv[:, :D], qkv[:, D:2 * D], qkv[:, 2 * D:], self_mask)
            sa = matmul(sa, W(p + "w_os"), V(p + "b_os"))
            y = layernorm(y + sa, V(p + "ln1_g"), V(p + "ln1_b"))
            q = matmul(y, W(p + "w_qc"), V(p + "b_qc"))
            kv = matmul(mem, W(p + "w_kvc"), V(p + "b_kvc"))
            ca = mha(q, kv[:, :D], kv[:, D:], cross_mask)
            ca = matmul(ca, W(p + "w_oc"), V(p + "b_oc"))
            y = layernorm(y + ca, V(p + "ln2_g"), V(p + "ln2_b"))
            ff = feed_forward(y, ff_refs[ff_idx], V(p + "b_ff1"),
                              ff_refs[ff_idx + 1], V(p + "b_ff2"))
            ff_idx += 2
            y = layernorm(y + ff, V(p + "ln3_g"), V(p + "ln3_b"))

        dec_out_ref[...] = y

        # ---------------- MDN head (block-diagonal packed) ----------------
        h1 = elu(matmul(y, W("mdn_w1"), V("mdn_b1")))     # (M, 30)
        h2 = elu(matmul(h1, W("mdn_w2"), V("mdn_b2")))    # (M, 15)
        h3 = elu(matmul(h2, W("mdn_w3"), V("mdn_b3")))    # (M, 6)
        z = matmul(h3, W("mdn_wh"), V("mdn_bh"))          # (M, 25)
        logits = z[:, :G]
        m = jnp.max(logits, axis=-1, keepdims=True)
        e = jnp.exp(logits - m)
        pi = e / jnp.sum(e, axis=-1, keepdims=True)
        sigma = jnp.exp(z[:, G:3 * G])   # sigma_x | sigma_y (shared sigma_x weights)
        heads_ref[...] = jnp.concatenate([pi, sigma, z[:, 3 * G:]], axis=1)

    return kernel


# -----------------------------------------------------------------------------
# pallas_call wrapper (single launch, grid=(1,), everything VMEM resident)
# -----------------------------------------------------------------------------
def _full_spec(shape):
    zeros = (0,) * len(shape)
    return pl.BlockSpec(shape, lambda i, z=zeros: z)


def _batch_block_mask(B, Sq, Sk):
    r = np.arange(B * Sq)[:, None] // Sq
    c = np.arange(B * Sk)[None, :] // Sk
    return jnp.asarray(np.where(r == c, 0.0, NEG_INF).astype(np.float32))


def _to_additive(mask, shape):
    """PyTorch semantics: bool mask (True = masked) -> -1e30; float mask additive."""
    if mask is None:
        return jnp.zeros(shape, jnp.float32)
    mask = jnp.asarray(mask)
    if mask.dtype == jnp.bool_:
        return jnp.where(mask, NEG_INF, 0.0).astype(jnp.float32)
    return jnp.maximum(mask.astype(jnp.float32), NEG_INF)   # -inf -> -1e30 (no NaN)


def attention_gmm_forward(params, src, tgt, src_mask=None, tgt_mask=None):
    B, Ss, _ = src.shape
    _, St, _ = tgt.shape
    src2d = src.reshape(B * Ss, IN_FEATURES)
    tgt2d = tgt.reshape(B * St, OUT_FEATURES)
    pe = params["pe"]
    pe_src = jnp.tile(pe[:Ss], (B, 1))
    pe_tgt = jnp.tile(pe[:St], (B, 1))

    # fully tiled additive masks (user mask + batch-block validity), built once
    # at trace time; the kernel just adds them.
    enc_mask = _batch_block_mask(B, Ss, Ss)
    self_mask = (jnp.tile(_to_additive(tgt_mask, (St, St)), (B, B))
                 + _batch_block_mask(B, St, St))
    cross_mask = (jnp.tile(_to_additive(src_mask, (St, Ss)), (B, B))
                  + _batch_block_mask(B, St, Ss))

    inputs = [src2d, tgt2d, pe_src, pe_tgt, enc_mask, self_mask, cross_mask,
              params["mat_slab"], params["vec_slab"]] + list(params["ff_weights"])

    kernel = _make_fused_kernel(NUM_ENC_LAYERS, NUM_DEC_LAYERS)

    # TODO(synk): at larger B/S, add a "parallel" batch grid axis for v7x
    # megacore and chunk DIM_FF on a grid axis to overlap the FF-weight DMA;
    # at B=2 / ~5 MFLOP the per-step overhead outweighs the gain.
    dec2d, heads = pl.pallas_call(
        kernel,
        out_shape=(jax.ShapeDtypeStruct((B * St, D_MODEL), jnp.float32),
                   jax.ShapeDtypeStruct((B * St, 5 * N_GAUSSIANS), jnp.float32)),
        grid=(1,),
        in_specs=[_full_spec(x.shape) for x in inputs],
        out_specs=(_full_spec((B * St, D_MODEL)),
                   _full_spec((B * St, 5 * N_GAUSSIANS))),
        compiler_params=pltpu.CompilerParams(dimension_semantics=("arbitrary",)),
    )(*inputs)

    G = N_GAUSSIANS
    pi = heads[:, 0 * G:1 * G].reshape(B, St, G)
    sigma_x = heads[:, 1 * G:2 * G].reshape(B, St, G)
    sigma_y = heads[:, 2 * G:3 * G].reshape(B, St, G)
    mu_x = heads[:, 3 * G:4 * G].reshape(B, St, G)
    mu_y = heads[:, 4 * G:5 * G].reshape(B, St, G)
    return pi, sigma_x, sigma_y, mu_x, mu_y, dec2d.reshape(B, St, D_MODEL)


# -----------------------------------------------------------------------------
# Parameter init (deterministic, PyTorch-style uniform(-1/sqrt(fan_in), ...))
# -----------------------------------------------------------------------------
def make_positional_encoding(max_len, d_model):
    pos = np.arange(max_len, dtype=np.float32)[:, None]
    div = np.exp(np.arange(0, d_model, 2, dtype=np.float32)
                 * (-math.log(10000.0) / d_model))
    pe = np.zeros((max_len, d_model), np.float32)
    pe[:, 0::2] = np.sin(pos * div)
    pe[:, 1::2] = np.cos(pos * div)
    return jnp.asarray(pe)


def init_params(key):
    ks = iter(jax.random.split(key, 128))
    ff_dt = jnp.bfloat16 if FF_WEIGHTS_BF16 else jnp.float32

    def lin(fan_in, fan_out):
        k1, k2 = jax.random.split(next(ks))
        bound = 1.0 / math.sqrt(fan_in)
        w = jax.random.uniform(k1, (fan_in, fan_out), jnp.float32, -bound, bound)
        b = jax.random.uniform(k2, (1, fan_out), jnp.float32, -bound, bound)
        return w, b

    ones = jnp.ones((1, D_MODEL), jnp.float32)
    zeros = jnp.zeros((1, D_MODEL), jnp.float32)

    mats, vecs, ff_weights = {}, {}, []

    mats["enc_in_w"], vecs["enc_in_b"] = lin(IN_FEATURES, D_MODEL)
    mats["dec_in_w"], vecs["dec_in_b"] = lin(OUT_FEATURES, D_MODEL)

    for l in range(NUM_ENC_LAYERS):
        p = f"enc{l}_"
        mats[p + "w_qkv"], vecs[p + "b_qkv"] = lin(D_MODEL, 3 * D_MODEL)
        mats[p + "w_o"], vecs[p + "b_o"] = lin(D_MODEL, D_MODEL)
        vecs[p + "ln1_g"], vecs[p + "ln1_b"] = ones, zeros
        w1, b1 = lin(D_MODEL, DIM_FF)
        w2, b2 = lin(DIM_FF, D_MODEL)
        ff_weights += [w1.astype(ff_dt), w2.astype(ff_dt)]
        vecs[p + "b_ff1"], vecs[p + "b_ff2"] = b1, b2
        vecs[p + "ln2_g"], vecs[p + "ln2_b"] = ones, zeros

    for l in range(NUM_DEC_LAYERS):
        p = f"dec{l}_"
        mats[p + "w_qkv"], vecs[p + "b_qkv"] = lin(D_MODEL, 3 * D_MODEL)
        mats[p + "w_os"], vecs[p + "b_os"] = lin(D_MODEL, D_MODEL)
        vecs[p + "ln1_g"], vecs[p + "ln1_b"] = ones, zeros
        mats[p + "w_qc"], vecs[p + "b_qc"] = lin(D_MODEL, D_MODEL)
        mats[p + "w_kvc"], vecs[p + "b_kvc"] = lin(D_MODEL, 2 * D_MODEL)
        mats[p + "w_oc"], vecs[p + "b_oc"] = lin(D_MODEL, D_MODEL)
        vecs[p + "ln2_g"], vecs[p + "ln2_b"] = ones, zeros
        w1, b1 = lin(D_MODEL, DIM_FF)
        w2, b2 = lin(DIM_FF, D_MODEL)
        ff_weights += [w1.astype(ff_dt), w2.astype(ff_dt)]
        vecs[p + "b_ff1"], vecs[p + "b_ff2"] = b1, b2
        vecs[p + "ln3_g"], vecs[p + "ln3_b"] = ones, zeros

    # MDN raw params
    mlp_dims = [(D_MODEL, N_HIDDEN), (N_HIDDEN, N_HIDDEN // 2),
                (N_HIDDEN // 2, HIDDEN_HID)]
    sig = [lin(a, b) for a, b in mlp_dims]
    mue = [lin(a, b) for a, b in mlp_dims]
    pis = [lin(a, b) for a, b in mlp_dims]
    pis_out = lin(HIDDEN_HID, N_GAUSSIANS)
    sigma_x = lin(HIDDEN_HID, N_GAUSSIANS)
    _sigma_y = lin(HIDDEN_HID, N_GAUSSIANS)   # initialized but unused (ref bug parity)
    mu_x = lin(HIDDEN_HID, N_GAUSSIANS)
    mu_y = lin(HIDDEN_HID, N_GAUSSIANS)

    def blockdiag(blocks):
        rows = sum(b.shape[0] for b in blocks)
        cols = sum(b.shape[1] for b in blocks)
        out = np.zeros((rows, cols), np.float32)
        r = c = 0
        for b in blocks:
            out[r:r + b.shape[0], c:c + b.shape[1]] = np.asarray(b)
            r += b.shape[0]
            c += b.shape[1]
        return out

    G, H2 = N_GAUSSIANS, HIDDEN_HID
    # stage ordering in the packed lanes: [sigma | mue | pi]
    mats["mdn_w1"] = np.concatenate(
        [np.asarray(sig[0][0]), np.asarray(mue[0][0]), np.asarray(pis[0][0])], axis=1)
    vecs["mdn_b1"] = np.concatenate(
        [np.asarray(sig[0][1]), np.asarray(mue[0][1]), np.asarray(pis[0][1])], axis=1)
    mats["mdn_w2"] = blockdiag([sig[1][0], mue[1][0], pis[1][0]])
    vecs["mdn_b2"] = np.concatenate(
        [np.asarray(sig[1][1]), np.asarray(mue[1][1]), np.asarray(pis[1][1])], axis=1)
    mats["mdn_w3"] = blockdiag([sig[2][0], mue[2][0], pis[2][0]])
    vecs["mdn_b3"] = np.concatenate(
        [np.asarray(sig[2][1]), np.asarray(mue[2][1]), np.asarray(pis[2][1])], axis=1)

    wh = np.zeros((3 * H2, 5 * G), np.float32)
    wh[2 * H2:3 * H2, 0:G] = np.asarray(pis_out[0])        # pi       <- pi_emb
    wh[0:H2, G:2 * G] = np.asarray(sigma_x[0])             # sigma_x  <- sigma_emb
    wh[0:H2, 2 * G:3 * G] = np.asarray(sigma_x[0])         # sigma_y uses sigma_x weights (ref bug)
    wh[H2:2 * H2, 3 * G:4 * G] = np.asarray(mu_x[0])       # mu_x     <- mue_emb
    wh[H2:2 * H2, 4 * G:5 * G] = np.asarray(mu_y[0])       # mu_y     <- mue_emb
    mats["mdn_wh"] = wh
    vecs["mdn_bh"] = np.concatenate(
        [np.asarray(pis_out[1]), np.asarray(sigma_x[1]), np.asarray(sigma_x[1]),
         np.asarray(mu_x[1]), np.asarray(mu_y[1])], axis=1)

    return {
        "mat_slab": _pack_mat_slab(mats),      # (32, 524)  f32 — one DMA
        "vec_slab": _pack_vec_slab(vecs),      # (1, 5004)  f32 — one DMA
        "ff_weights": ff_weights,              # per layer: (32,2048), (2048,32)
        "pe": make_positional_encoding(MAX_LEN, D_MODEL),
    }


# -----------------------------------------------------------------------------
# Main
# -----------------------------------------------------------------------------
if __name__ == "__main__":
    root = jax.random.PRNGKey(0)
    k_params, k_src, k_tgt = jax.random.split(root, 3)

    params = init_params(k_params)
    src = jax.random.normal(k_src, (BATCH, SEQ_SRC, IN_FEATURES), jnp.float32)
    tgt = jax.random.normal(k_tgt, (BATCH, SEQ_TGT, OUT_FEATURES), jnp.float32)

    # TODO(synk): dropout layers run in inference mode (identity); no stochastic
    # training-mode dropout is implemented.
    fwd = jax.jit(attention_gmm_forward)
    pi, sigma_x, sigma_y, mu_x, mu_y, dec_out = jax.block_until_ready(
        fwd(params, src, tgt))

    assert pi.shape == (BATCH, SEQ_TGT, N_GAUSSIANS)
    assert sigma_x.shape == (BATCH, SEQ_TGT, N_GAUSSIANS)
    assert sigma_y.shape == (BATCH, SEQ_TGT, N_GAUSSIANS)
    assert mu_x.shape == (BATCH, SEQ_TGT, N_GAUSSIANS)
    assert mu_y.shape == (BATCH, SEQ_TGT, N_GAUSSIANS)
    assert dec_out.shape == (BATCH, SEQ_TGT, D_MODEL)
    assert bool(jnp.all(jnp.isfinite(pi)))
    assert bool(jnp.all(jnp.isfinite(sigma_x)))
    assert bool(jnp.all(jnp.isfinite(mu_x)))
    assert bool(jnp.all(jnp.isfinite(dec_out)))
    assert bool(jnp.all(sigma_x > 0))
    assert bool(jnp.allclose(jnp.sum(pi, axis=-1), 1.0, atol=1e-5))
    # reference bug parity: sigma_y is produced from the sigma_x head weights
    assert bool(jnp.allclose(sigma_x, sigma_y))
    print("KERNEL_OK")
</pallas_src>

<mosaic_0001>
module attributes {stable_mosaic.version = 11 : i64} {
  func.func @kernel(%arg0: i32, %arg1: memref<16x2xf32, #tpu.memory_space<vmem>>, %arg2: memref<16x2xf32, #tpu.memory_space<vmem>>, %arg3: memref<16x32xf32, #tpu.memory_space<vmem>>, %arg4: memref<16x32xf32, #tpu.memory_space<vmem>>, %arg5: memref<16x16xf32, #tpu.memory_space<vmem>>, %arg6: memref<16x16xf32, #tpu.memory_space<vmem>>, %arg7: memref<16x16xf32, #tpu.memory_space<vmem>>, %arg8: memref<32x524xf32, #tpu.memory_space<vmem>>, %arg9: memref<1x5004xf32, #tpu.memory_space<vmem>>, %arg10: memref<32x2048xf32, #tpu.memory_space<vmem>>, %arg11: memref<2048x32xf32, #tpu.memory_space<vmem>>, %arg12: memref<32x2048xf32, #tpu.memory_space<vmem>>, %arg13: memref<2048x32xf32, #tpu.memory_space<vmem>>, %arg14: memref<16x32xf32, #tpu.memory_space<vmem>>, %arg15: memref<16x25xf32, #tpu.memory_space<vmem>>) attributes {dimension_semantics = [#tpu.dimension_semantics<arbitrary>], iteration_bounds = array<i64: 1>, scalar_prefetch = 0 : i64, scratch_operands = 0 : i64, tpu.core_type = #tpu.core_type<tc>, window_params = [{pipeline_mode = #tpu.pipeline_mode<synchronous>, transform_indices = @transform_0, window_bounds = array<i64: 16, 2>}, {pipeline_mode = #tpu.pipeline_mode<synchronous>, transform_indices = @transform_1, window_bounds = array<i64: 16, 2>}, {pipeline_mode = #tpu.pipeline_mode<synchronous>, transform_indices = @transform_2, window_bounds = array<i64: 16, 32>}, {pipeline_mode = #tpu.pipeline_mode<synchronous>, transform_indices = @transform_3, window_bounds = array<i64: 16, 32>}, {pipeline_mode = #tpu.pipeline_mode<synchronous>, transform_indices = @transform_4, window_bounds = array<i64: 16, 16>}, {pipeline_mode = #tpu.pipeline_mode<synchronous>, transform_indices = @transform_5, window_bounds = array<i64: 16, 16>}, {pipeline_mode = #tpu.pipeline_mode<synchronous>, transform_indices = @transform_6, window_bounds = array<i64: 16, 16>}, {pipeline_mode = #tpu.pipeline_mode<synchronous>, transform_indices = @transform_7, window_bounds = array<i64: 32, 524>}, {pipeline_mode = #tpu.pipeline_mode<synchronous>, transform_indices = @transform_8, window_bounds = array<i64: 1, 5004>}, {pipeline_mode = #tpu.pipeline_mode<synchronous>, transform_indices = @transform_9, window_bounds = array<i64: 32, 2048>}, {pipeline_mode = #tpu.pipeline_mode<synchronous>, transform_indices = @transform_10, window_bounds = array<i64: 2048, 32>}, {pipeline_mode = #tpu.pipeline_mode<synchronous>, transform_indices = @transform_11, window_bounds = array<i64: 32, 2048>}, {pipeline_mode = #tpu.pipeline_mode<synchronous>, transform_indices = @transform_12, window_bounds = array<i64: 2048, 32>}, {pipeline_mode = #tpu.pipeline_mode<synchronous>, transform_indices = @transform_13, window_bounds = array<i64: 16, 32>}, {pipeline_mode = #tpu.pipeline_mode<synchronous>, transform_indices = @transform_14, window_bounds = array<i64: 16, 25>}]} {
    %c0 = arith.constant 0 : index
    %c0_0 = arith.constant 0 : index
    %0 = vector.load %arg1[%c0, %c0_0] : memref<16x2xf32, #tpu.memory_space<vmem>>, vector<16x2xf32>
    %c0_1 = arith.constant 0 : index
    %c0_2 = arith.constant 0 : index
    %1 = vector.load %arg8[%c0_1, %c0_2] : memref<32x524xf32, #tpu.memory_space<vmem>>, vector<2x32xf32>
    %c0_3 = arith.constant 0 : index
    %c0_4 = arith.constant 0 : index
    %2 = vector.load %arg9[%c0_3, %c0_4] : memref<1x5004xf32, #tpu.memory_space<vmem>>, vector<1x32xf32>
    %cst = arith.constant dense<0.000000e+00> : vector<16x32xf32>
    %3 = tpu.matmul %0, %1, %cst {dimension_numbers = #tpu.dot_dimension_numbers<[1], [0], [0], [1], [0, 0, 1, 1], [], []>} : vector<16x2xf32>, vector<2x32xf32>, vector<16x32xf32> -> vector<16x32xf32>
    %4 = vector.broadcast %2 : vector<1x32xf32> to vector<16x32xf32>
    %5 = arith.addf %3, %4 : vector<16x32xf32>
    %cst_5 = arith.constant 5.65685415 : f32
    %6 = vector.broadcast %cst_5 : f32 to vector<16x32xf32>
    %7 = arith.mulf %5, %6 : vector<16x32xf32>
    %c0_6 = arith.constant 0 : index
    %c0_7 = arith.constant 0 : index
    %8 = vector.load %arg3[%c0_6, %c0_7] : memref<16x32xf32, #tpu.memory_space<vmem>>, vector<16x32xf32>
    %9 = arith.addf %7, %8 : vector<16x32xf32>
    %c0_8 = arith.constant 0 : index
    %c0_9 = arith.constant 0 : index
    %10 = vector.load %arg5[%c0_8, %c0_9] : memref<16x16xf32, #tpu.memory_space<vmem>>, vector<16x16xf32>
    %c0_10 = arith.constant 0 : index
    %c64 = arith.constant 64 : index
    %11 = vector.load %arg8[%c0_10, %c64] : memref<32x524xf32, #tpu.memory_space<vmem>>, vector<32x96xf32>
    %c0_11 = arith.constant 0 : index
    %c64_12 = arith.constant 64 : index
    %12 = vector.load %arg9[%c0_11, %c64_12] : memref<1x5004xf32, #tpu.memory_space<vmem>>, vector<1x96xf32>
    %cst_13 = arith.constant dense<0.000000e+00> : vector<16x96xf32>
    %13 = tpu.matmul %9, %11, %cst_13 {dimension_numbers = #tpu.dot_dimension_numbers<[1], [0], [0], [1], [0, 0, 1, 1], [], []>} : vector<16x32xf32>, vector<32x96xf32>, vector<16x96xf32> -> vector<16x96xf32>
    %14 = vector.broadcast %12 : vector<1x96xf32> to vector<16x96xf32>
    %15 = arith.addf %13, %14 : vector<16x96xf32>
    %16 = vector.extract_strided_slice %15 {offsets = [0, 0], sizes = [16, 32], strides = [1, 1]} : vector<16x96xf32> to vector<16x32xf32>
    %17 = vector.extract_strided_slice %15 {offsets = [0, 32], sizes = [16, 32], strides = [1, 1]} : vector<16x96xf32> to vector<16x32xf32>
    %18 = vector.extract_strided_slice %15 {offsets = [0, 64], sizes = [16, 32], strides = [1, 1]} : vector<16x96xf32> to vector<16x32xf32>
    %19 = vector.extract_strided_slice %16 {offsets = [0, 0], sizes = [16, 8], strides = [1, 1]} : vector<16x32xf32> to vector<16x8xf32>
    %20 = vector.extract_strided_slice %17 {offsets = [0, 0], sizes = [16, 8], strides = [1, 1]} : vector<16x32xf32> to vector<16x8xf32>
    %21 = vector.extract_strided_slice %18 {offsets = [0, 0], sizes = [16, 8], strides = [1, 1]} : vector<16x32xf32> to vector<16x8xf32>
    %cst_14 = arith.constant dense<0.000000e+00> : vector<16x16xf32>
    %22 = tpu.matmul %19, %20, %cst_14 {dimension_numbers = #tpu.dot_dimension_numbers<[1], [1], [0], [0], [0, 0, 1, 0], [], []>} : vector<16x8xf32>, vector<16x8xf32>, vector<16x16xf32> -> vector<16x16xf32>
    %cst_15 = arith.constant 0.353553385 : f32
    %23 = vector.broadcast %cst_15 : f32 to vector<16x16xf32>
    %24 = arith.mulf %22, %23 : vector<16x16xf32>
    %25 = arith.addf %24, %10 : vector<16x16xf32>
    %cst_16 = arith.constant dense<0xFF800000> : vector<16xf32>
    %26 = vector.multi_reduction <maximumf>, %25, %cst_16 [1] : vector<16x16xf32> to vector<16xf32>
    %27 = vector.shape_cast %26 : vector<16xf32> to vector<16x1xf32>
    %28 = vector.broadcast %27 : vector<16x1xf32> to vector<16x16xf32>
    %29 = arith.subf %25, %28 : vector<16x16xf32>
    %30 = math.exp %29 : vector<16x16xf32>
    %cst_17 = arith.constant dense<0.000000e+00> : vector<16xf32>
    %31 = vector.multi_reduction <add>, %30, %cst_17 [1] : vector<16x16xf32> to vector<16xf32>
    %32 = vector.shape_cast %31 : vector<16xf32> to vector<16x1xf32>
    %33 = vector.broadcast %32 : vector<16x1xf32> to vector<16x16xf32>
    %34 = arith.divf %30, %33 : vector<16x16xf32>
    %cst_18 = arith.constant dense<0.000000e+00> : vector<16x8xf32>
    %35 = tpu.matmul %34, %21, %cst_18 {dimension_numbers = #tpu.dot_dimension_numbers<[1], [0], [0], [1], [0, 0, 1, 1], [], []>} : vector<16x16xf32>, vector<16x8xf32>, vector<16x8xf32> -> vector<16x8xf32>
    %36 = vector.extract_strided_slice %16 {offsets = [0, 8], sizes = [16, 8], strides = [1, 1]} : vector<16x32xf32> to vector<16x8xf32>
    %37 = vector.extract_strided_slice %17 {offsets = [0, 8], sizes = [16, 8], strides = [1, 1]} : vector<16x32xf32> to vector<16x8xf32>
    %38 = vector.extract_strided_slice %18 {offsets = [0, 8], sizes = [16, 8], strides = [1, 1]} : vector<16x32xf32> to vector<16x8xf32>
    %cst_19 = arith.constant dense<0.000000e+00> : vector<16x16xf32>
    %39 = tpu.matmul %36, %37, %cst_19 {dimension_numbers = #tpu.dot_dimension_numbers<[1], [1], [0], [0], [0, 0, 1, 0], [], []>} : vector<16x8xf32>, vector<16x8xf32>, vector<16x16xf32> -> vector<16x16xf32>
    %cst_20 = arith.constant 0.353553385 : f32
    %40 = vector.broadcast %cst_20 : f32 to vector<16x16xf32>
    %41 = arith.mulf %39, %40 : vector<16x16xf32>
    %42 = arith.addf %41, %10 : vector<16x16xf32>
    %cst_21 = arith.constant dense<0xFF800000> : vector<16xf32>
    %43 = vector.multi_reduction <maximumf>, %42, %cst_21 [1] : vector<16x16xf32> to vector<16xf32>
    %44 = vector.shape_cast %43 : vector<16xf32> to vector<16x1xf32>
    %45 = vector.broadcast %44 : vector<16x1xf32> to vector<16x16xf32>
    %46 = arith.subf %42, %45 : vector<16x16xf32>
    %47 = math.exp %46 : vector<16x16xf32>
    %cst_22 = arith.constant dense<0.000000e+00> : vector<16xf32>
    %48 = vector.multi_reduction <add>, %47, %cst_22 [1] : vector<16x16xf32> to vector<16xf32>
    %49 = vector.shape_cast %48 : vector<16xf32> to vector<16x1xf32>
    %50 = vector.broadcast %49 : vector<16x1xf32> to vector<16x16xf32>
    %51 = arith.divf %47, %50 : vector<16x16xf32>
    %cst_23 = arith.constant dense<0.000000e+00> : vector<16x8xf32>
    %52 = tpu.matmul %51, %38, %cst_23 {dimension_numbers = #tpu.dot_dimension_numbers<[1], [0], [0], [1], [0, 0, 1, 1], [], []>} : vector<16x16xf32>, vector<16x8xf32>, vector<16x8xf32> -> vector<16x8xf32>
    %53 = vector.extract_strided_slice %16 {offsets = [0, 16], sizes = [16, 8], strides = [1, 1]} : vector<16x32xf32> to vector<16x8xf32>
    %54 = vector.extract_strided_slice %17 {offsets = [0, 16], sizes = [16, 8], strides = [1, 1]} : vector<16x32xf32> to vector<16x8xf32>
    %55 = vector.extract_strided_slice %18 {offsets = [0, 16], sizes = [16, 8], strides = [1, 1]} : vector<16x32xf32> to vector<16x8xf32>
    %cst_24 = arith.constant dense<0.000000e+00> : vector<16x16xf32>
    %56 = tpu.matmul %53, %54, %cst_24 {dimension_numbers = #tpu.dot_dimension_numbers<[1], [1], [0], [0], [0, 0, 1, 0], [], []>} : vector<16x8xf32>, vector<16x8xf32>, vector<16x16xf32> -> vector<16x16xf32>
    %cst_25 = arith.constant 0.353553385 : f32
    %57 = vector.broadcast %cst_25 : f32 to vector<16x16xf32>
    %58 = arith.mulf %56, %57 : vector<16x16xf32>
    %59 = arith.addf %58, %10 : vector<16x16xf32>
    %cst_26 = arith.constant dense<0xFF800000> : vector<16xf32>
    %60 = vector.multi_reduction <maximumf>, %59, %cst_26 [1] : vector<16x16xf32> to vector<16xf32>
    %61 = vector.shape_cast %60 : vector<16xf32> to vector<16x1xf32>
    %62 = vector.broadcast %61 : vector<16x1xf32> to vector<16x16xf32>
    %63 = arith.subf %59, %62 : vector<16x16xf32>
    %64 = math.exp %63 : vector<16x16xf32>
    %cst_27 = arith.constant dense<0.000000e+00> : vector<16xf32>
    %65 = vector.multi_reduction <add>, %64, %cst_27 [1] : vector<16x16xf32> to vector<16xf32>
    %66 = vector.shape_cast %65 : vector<16xf32> to vector<16x1xf32>
    %67 = vector.broadcast %66 : vector<16x1xf32> to vector<16x16xf32>
    %68 = arith.divf %64, %67 : vector<16x16xf32>
    %cst_28 = arith.constant dense<0.000000e+00> : vector<16x8xf32>
    %69 = tpu.matmul %68, %55, %cst_28 {dimension_numbers = #tpu.dot_dimension_numbers<[1], [0], [0], [1], [0, 0, 1, 1], [], []>} : vector<16x16xf32>, vector<16x8xf32>, vector<16x8xf32> -> vector<16x8xf32>
    %70 = vector.extract_strided_slice %16 {offsets = [0, 24], sizes = [16, 8], strides = [1, 1]} : vector<16x32xf32> to vector<16x8xf32>
    %71 = vector.extract_strided_slice %17 {offsets = [0, 24], sizes = [16, 8], strides = [1, 1]} : vector<16x32xf32> to vector<16x8xf32>
    %72 = vector.extract_strided_slice %18 {offsets = [0, 24], sizes = [16, 8], strides = [1, 1]} : vector<16x32xf32> to vector<16x8xf32>
    %cst_29 = arith.constant dense<0.000000e+00> : vector<16x16xf32>
    %73 = tpu.matmul %70, %71, %cst_29 {dimension_numbers = #tpu.dot_dimension_numbers<[1], [1], [0], [0], [0, 0, 1, 0], [], []>} : vector<16x8xf32>, vector<16x8xf32>, vector<16x16xf32> -> vector<16x16xf32>
    %cst_30 = arith.constant 0.353553385 : f32
    %74 = vector.broadcast %cst_30 : f32 to vector<16x16xf32>
    %75 = arith.mulf %73, %74 : vector<16x16xf32>
    %76 = arith.addf %75, %10 : vector<16x16xf32>
    %cst_31 = arith.constant dense<0xFF800000> : vector<16xf32>
    %77 = vector.multi_reduction <maximumf>, %76, %cst_31 [1] : vector<16x16xf32> to vector<16xf32>
    %78 = vector.shape_cast %77 : vector<16xf32> to vector<16x1xf32>
    %79 = vector.broadcast %78 : vector<16x1xf32> to vector<16x16xf32>
    %80 = arith.subf %76, %79 : vector<16x16xf32>
    %81 = math.exp %80 : vector<16x16xf32>
    %cst_32 = arith.constant dense<0.000000e+00> : vector<16xf32>
    %82 = vector.multi_reduction <add>, %81, %cst_32 [1] : vector<16x16xf32> to vector<16xf32>
    %83 = vector.shape_cast %82 : vector<16xf32> to vector<16x1xf32>
    %84 = vector.broadcast %83 : vector<16x1xf32> to vector<16x16xf32>
    %85 = arith.divf %81, %84 : vector<16x16xf32>
    %cst_33 = arith.constant dense<0.000000e+00> : vector<16x8xf32>
    %86 = tpu.matmul %85, %72, %cst_33 {dimension_numbers = #tpu.dot_dimension_numbers<[1], [0], [0], [1], [0, 0, 1, 1], [], []>} : vector<16x16xf32>, vector<16x8xf32>, vector<16x8xf32> -> vector<16x8xf32>
    %87 = tpu.concatenate %35, %52, %69, %86 in 1 : vector<16x8xf32>, vector<16x8xf32>, vector<16x8xf32>, vector<16x8xf32> -> vector<16x32xf32>
    %c0_34 = arith.constant 0 : index
    %c160 = arith.constant 160 : index
    %88 = vector.load %arg8[%c0_34, %c160] : memref<32x524xf32, #tpu.memory_space<vmem>>, vector<32x32xf32>
    %c0_35 = arith.constant 0 : index
    %c160_36 = arith.constant 160 : index
    %89 = vector.load %arg9[%c0_35, %c160_36] : memref<1x5004xf32, #tpu.memory_space<vmem>>, vector<1x32xf32>
    %cst_37 = arith.constant dense<0.000000e+00> : vector<16x32xf32>
    %90 = tpu.matmul %87, %88, %cst_37 {dimension_numbers = #tpu.dot_dimension_numbers<[1], [0], [0], [1], [0, 0, 1, 1], [], []>} : vector<16x32xf32>, vector<32x32xf32>, vector<16x32xf32> -> vector<16x32xf32>
    %91 = vector.broadcast %89 : vector<1x32xf32> to vector<16x32xf32>
    %92 = arith.addf %90, %91 : vector<16x32xf32>
    %93 = arith.addf %9, %92 : vector<16x32xf32>
    %c0_38 = arith.constant 0 : index
    %c192 = arith.constant 192 : index
    %94 = vector.load %arg9[%c0_38, %c192] : memref<1x5004xf32, #tpu.memory_space<vmem>>, vector<1x32xf32>
    %c0_39 = arith.constant 0 : index
    %c224 = arith.constant 224 : index
    %95 = vector.load %arg9[%c0_39, %c224] : memref<1x5004xf32, #tpu.memory_space<vmem>>, vector<1x32xf32>
    %cst_40 = arith.constant dense<0.000000e+00> : vector<16xf32>
    %96 = vector.multi_reduction <add>, %93, %cst_40 [1] : vector<16x32xf32> to vector<16xf32>
    %97 = vector.shape_cast %96 : vector<16xf32> to vector<16x1xf32>
    %cst_41 = arith.constant 3.200000e+01 : f32
    %98 = vector.broadcast %cst_41 : f32 to vector<16x1xf32>
    %99 = arith.divf %97, %98 : vector<16x1xf32>
    %100 = vector.broadcast %99 : vector<16x1xf32> to vector<16x32xf32>
    %101 = arith.subf %93, %100 : vector<16x32xf32>
    %102 = arith.mulf %101, %101 : vector<16x32xf32>
    %cst_42 = arith.constant dense<0.000000e+00> : vector<16xf32>
    %103 = vector.multi_reduction <add>, %102, %cst_42 [1] : vector<16x32xf32> to vector<16xf32>
    %104 = vector.shape_cast %103 : vector<16xf32> to vector<16x1xf32>
    %cst_43 = arith.constant 3.200000e+01 : f32
    %105 = vector.broadcast %cst_43 : f32 to vector<16x1xf32>
    %106 = arith.divf %104, %105 : vector<16x1xf32>
    %cst_44 = arith.constant 9.99999974E-6 : f32
    %107 = vector.broadcast %cst_44 : f32 to vector<16x1xf32>
    %108 = arith.addf %106, %107 : vector<16x1xf32>
    %109 = math.rsqrt %108 : vector<16x1xf32>
    %110 = vector.broadcast %109 : vector<16x1xf32> to vector<16x32xf32>
    %111 = arith.mulf %101, %110 : vector<16x32xf32>
    %112 = vector.broadcast %94 : vector<1x32xf32> to vector<16x32xf32>
    %113 = arith.mulf %111, %112 : vector<16x32xf32>
    %114 = vector.broadcast %95 : vector<1x32xf32> to vector<16x32xf32>
    %115 = arith.addf %113, %114 : vector<16x32xf32>
    %c0_45 = arith.constant 0 : index
    %c256 = arith.constant 256 : index
    %116 = vector.load %arg9[%c0_45, %c256] : memref<1x5004xf32, #tpu.memory_space<vmem>>, vector<1x2048xf32>
    %c0_46 = arith.constant 0 : index
    %c2304 = arith.constant 2304 : index
    %117 = vector.load %arg9[%c0_46, %c2304] : memref<1x5004xf32, #tpu.memory_space<vmem>>, vector<1x32xf32>
    %c0_47 = arith.constant 0 : index
    %c0_48 = arith.constant 0 : index
    %118 = vector.load %arg10[%c0_47, %c0_48] : memref<32x2048xf32, #tpu.memory_space<vmem>>, vector<32x2048xf32>
    %cst_49 = arith.constant dense<0.000000e+00> : vector<16x2048xf32>
    %119 = tpu.matmul %115, %118, %cst_49 {dimension_numbers = #tpu.dot_dimension_numbers<[1], [0], [0], [1], [0, 0, 1, 1], [], []>} : vector<16x32xf32>, vector<32x2048xf32>, vector<16x2048xf32> -> vector<16x2048xf32>
    %120 = vector.broadcast %116 : vector<1x2048xf32> to vector<16x2048xf32>
    %121 = arith.addf %119, %120 : vector<16x2048xf32>
    %cst_50 = arith.constant 5.000000e-01 : f32
    %122 = vector.broadcast %cst_50 : f32 to vector<16x2048xf32>
    %123 = arith.mulf %122, %121 : vector<16x2048xf32>
    %cst_51 = arith.constant 0.707106769 : f32
    %124 = vector.broadcast %cst_51 : f32 to vector<16x2048xf32>
    %125 = arith.mulf %121, %124 : vector<16x2048xf32>
    %126 = math.erf %125 : vector<16x2048xf32>
    %cst_52 = arith.constant 1.000000e+00 : f32
    %127 = vector.broadcast %cst_52 : f32 to vector<16x2048xf32>
    %128 = arith.addf %127, %126 : vector<16x2048xf32>
    %129 = arith.mulf %123, %128 : vector<16x2048xf32>
    %c0_53 = arith.constant 0 : index
    %c0_54 = arith.constant 0 : index
    %130 = vector.load %arg11[%c0_53, %c0_54] : memref<2048x32xf32, #tpu.memory_space<vmem>>, vector<2048x32xf32>
    %cst_55 = arith.constant dense<0.000000e+00> : vector<16x32xf32>
    %131 = tpu.matmul %129, %130, %cst_55 {dimension_numbers = #tpu.dot_dimension_numbers<[1], [0], [0], [1], [0, 0, 1, 1], [], []>} : vector<16x2048xf32>, vector<2048x32xf32>, vector<16x32xf32> -> vector<16x32xf32>
    %132 = vector.broadcast %117 : vector<1x32xf32> to vector<16x32xf32>
    %133 = arith.addf %131, %132 : vector<16x32xf32>
    %134 = arith.addf %115, %133 : vector<16x32xf32>
    %c0_56 = arith.constant 0 : index
    %c2336 = arith.constant 2336 : index
    %135 = vector.load %arg9[%c0_56, %c2336] : memref<1x5004xf32, #tpu.memory_space<vmem>>, vector<1x32xf32>
    %c0_57 = arith.constant 0 : index
    %c2368 = arith.constant 2368 : index
    %136 = vector.load %arg9[%c0_57, %c2368] : memref<1x5004xf32, #tpu.memory_space<vmem>>, vector<1x32xf32>
    %cst_58 = arith.constant dense<0.000000e+00> : vector<16xf32>
    %137 = vector.multi_reduction <add>, %134, %cst_58 [1] : vector<16x32xf32> to vector<16xf32>
    %138 = vector.shape_cast %137 : vector<16xf32> to vector<16x1xf32>
    %cst_59 = arith.constant 3.200000e+01 : f32
    %139 = vector.broadcast %cst_59 : f32 to vector<16x1xf32>
    %140 = arith.divf %138, %139 : vector<16x1xf32>
    %141 = vector.broadcast %140 : vector<16x1xf32> to vector<16x32xf32>
    %142 = arith.subf %134, %141 : vector<16x32xf32>
    %143 = arith.mulf %142, %142 : vector<16x32xf32>
    %cst_60 = arith.constant dense<0.000000e+00> : vector<16xf32>
    %144 = vector.multi_reduction <add>, %143, %cst_60 [1] : vector<16x32xf32> to vector<16xf32>
    %145 = vector.shape_cast %144 : vector<16xf32> to vector<16x1xf32>
    %cst_61 = arith.constant 3.200000e+01 : f32
    %146 = vector.broadcast %cst_61 : f32 to vector<16x1xf32>
    %147 = arith.divf %145, %146 : vector<16x1xf32>
    %cst_62 = arith.constant 9.99999974E-6 : f32
    %148 = vector.broadcast %cst_62 : f32 to vector<16x1xf32>
    %149 = arith.addf %147, %148 : vector<16x1xf32>
    %150 = math.rsqrt %149 : vector<16x1xf32>
    %151 = vector.broadcast %150 : vector<16x1xf32> to vector<16x32xf32>
    %152 = arith.mulf %142, %151 : vector<16x32xf32>
    %153 = vector.broadcast %135 : vector<1x32xf32> to vector<16x32xf32>
    %154 = arith.mulf %152, %153 : vector<16x32xf32>
    %155 = vector.broadcast %136 : vector<1x32xf32> to vector<16x32xf32>
    %156 = arith.addf %154, %155 : vector<16x32xf32>
    %c0_63 = arith.constant 0 : index
    %c0_64 = arith.constant 0 : index
    %157 = vector.load %arg2[%c0_63, %c0_64] : memref<16x2xf32, #tpu.memory_space<vmem>>, vector<16x2xf32>
    %c0_65 = arith.constant 0 : index
    %c32 = arith.constant 32 : index
    %158 = vector.load %arg8[%c0_65, %c32] : memref<32x524xf32, #tpu.memory_space<vmem>>, vector<2x32xf32>
    %c0_66 = arith.constant 0 : index
    %c32_67 = arith.constant 32 : index
    %159 = vector.load %arg9[%c0_66, %c32_67] : memref<1x5004xf32, #tpu.memory_space<vmem>>, vector<1x32xf32>
    %cst_68 = arith.constant dense<0.000000e+00> : vector<16x32xf32>
    %160 = tpu.matmul %157, %158, %cst_68 {dimension_numbers = #tpu.dot_dimension_numbers<[1], [0], [0], [1], [0, 0, 1, 1], [], []>} : vector<16x2xf32>, vector<2x32xf32>, vector<16x32xf32> -> vector<16x32xf32>
    %161 = vector.broadcast %159 : vector<1x32xf32> to vector<16x32xf32>
    %162 = arith.addf %160, %161 : vector<16x32xf32>
    %cst_69 = arith.constant 5.65685415 : f32
    %163 = vector.broadcast %cst_69 : f32 to vector<16x32xf32>
    %164 = arith.mulf %162, %163 : vector<16x32xf32>
    %c0_70 = arith.constant 0 : index
    %c0_71 = arith.constant 0 : index
    %165 = vector.load %arg4[%c0_70, %c0_71] : memref<16x32xf32, #tpu.memory_space<vmem>>, vector<16x32xf32>
    %166 = arith.addf %164, %165 : vector<16x32xf32>
    %c0_72 = arith.constant 0 : index
    %c0_73 = arith.constant 0 : index
    %167 = vector.load %arg6[%c0_72, %c0_73] : memref<16x16xf32, #tpu.memory_space<vmem>>, vector<16x16xf32>
    %c0_74 = arith.constant 0 : index
    %c0_75 = arith.constant 0 : index
    %168 = vector.load %arg7[%c0_74, %c0_75] : memref<16x16xf32, #tpu.memory_space<vmem>>, vector<16x16xf32>
    %c0_76 = arith.constant 0 : index
    %c192_77 = arith.constant 192 : index
    %169 = vector.load %arg8[%c0_76, %c192_77] : memref<32x524xf32, #tpu.memory_space<vmem>>, vector<32x96xf32>
    %c0_78 = arith.constant 0 : index
    %c2400 = arith.constant 2400 : index
    %170 = vector.load %arg9[%c0_78, %c2400] : memref<1x5004xf32, #tpu.memory_space<vmem>>, vector<1x96xf32>
    %cst_79 = arith.constant dense<0.000000e+00> : vector<16x96xf32>
    %171 = tpu.matmul %166, %169, %cst_79 {dimension_numbers = #tpu.dot_dimension_numbers<[1], [0], [0], [1], [0, 0, 1, 1], [], []>} : vector<16x32xf32>, vector<32x96xf32>, vector<16x96xf32> -> vector<16x96xf32>
    %172 = vector.broadcast %170 : vector<1x96xf32> to vector<16x96xf32>
    %173 = arith.addf %171, %172 : vector<16x96xf32>
    %174 = vector.extract_strided_slice %173 {offsets = [0, 0], sizes = [16, 32], strides = [1, 1]} : vector<16x96xf32> to vector<16x32xf32>
    %175 = vector.extract_strided_slice %173 {offsets = [0, 32], sizes = [16, 32], strides = [1, 1]} : vector<16x96xf32> to vector<16x32xf32>
    %176 = vector.extract_strided_slice %173 {offsets = [0, 64], sizes = [16, 32], strides = [1, 1]} : vector<16x96xf32> to vector<16x32xf32>
    %177 = vector.extract_strided_slice %174 {offsets = [0, 0], sizes = [16, 8], strides = [1, 1]} : vector<16x32xf32> to vector<16x8xf32>
    %178 = vector.extract_strided_slice %175 {offsets = [0, 0], sizes = [16, 8], strides = [1, 1]} : vector<16x32xf32> to vector<16x8xf32>
    %179 = vector.extract_strided_slice %176 {offsets = [0, 0], sizes = [16, 8], strides = [1, 1]} : vector<16x32xf32> to vector<16x8xf32>
    %cst_80 = arith.constant dense<0.000000e+00> : vector<16x16xf32>
    %180 = tpu.matmul %177, %178, %cst_80 {dimension_numbers = #tpu.dot_dimension_numbers<[1], [1], [0], [0], [0, 0, 1, 0], [], []>} : vector<16x8xf32>, vector<16x8xf32>, vector<16x16xf32> -> vector<16x16xf32>
    %cst_81 = arith.constant 0.353553385 : f32
    %181 = vector.broadcast %cst_81 : f32 to vector<16x16xf32>
    %182 = arith.mulf %180, %181 : vector<16x16xf32>
    %183 = arith.addf %182, %167 : vector<16x16xf32>
    %cst_82 = arith.constant dense<0xFF800000> : vector<16xf32>
    %184 = vector.multi_reduction <maximumf>, %183, %cst_82 [1] : vector<16x16xf32> to vector<16xf32>
    %185 = vector.shape_cast %184 : vector<16xf32> to vector<16x1xf32>
    %186 = vector.broadcast %185 : vector<16x1xf32> to vector<16x16xf32>
    %187 = arith.subf %183, %186 : vector<16x16xf32>
    %188 = math.exp %187 : vector<16x16xf32>
    %cst_83 = arith.constant dense<0.000000e+00> : vector<16xf32>
    %189 = vector.multi_reduction <add>, %188, %cst_83 [1] : vector<16x16xf32> to vector<16xf32>
    %190 = vector.shape_cast %189 : vector<16xf32> to vector<16x1xf32>
    %191 = vector.broadcast %190 : vector<16x1xf32> to vector<16x16xf32>
    %192 = arith.divf %188, %191 : vector<16x16xf32>
    %cst_84 = arith.constant dense<0.000000e+00> : vector<16x8xf32>
    %193 = tpu.matmul %192, %179, %cst_84 {dimension_numbers = #tpu.dot_dimension_numbers<[1], [0], [0], [1], [0, 0, 1, 1], [], []>} : vector<16x16xf32>, vector<16x8xf32>, vector<16x8xf32> -> vector<16x8xf32>
    %194 = vector.extract_strided_slice %174 {offsets = [0, 8], sizes = [16, 8], strides = [1, 1]} : vector<16x32xf32> to vector<16x8xf32>
    %195 = vector.extract_strided_slice %175 {offsets = [0, 8], sizes = [16, 8], strides = [1, 1]} : vector<16x32xf32> to vector<16x8xf32>
    %196 = vector.extract_strided_slice %176 {offsets = [0, 8], sizes = [16, 8], strides = [1, 1]} : vector<16x32xf32> to vector<16x8xf32>
    %cst_85 = arith.constant dense<0.000000e+00> : vector<16x16xf32>
    %197 = tpu.matmul %194, %195, %cst_85 {dimension_numbers = #tpu.dot_dimension_numbers<[1], [1], [0], [0], [0, 0, 1, 0], [], []>} : vector<16x8xf32>, vector<16x8xf32>, vector<16x16xf32> -> vector<16x16xf32>
    %cst_86 = arith.constant 0.353553385 : f32
    %198 = vector.broadcast %cst_86 : f32 to vector<16x16xf32>
    %199 = arith.mulf %197, %198 : vector<16x16xf32>
    %200 = arith.addf %199, %167 : vector<16x16xf32>
    %cst_87 = arith.constant dense<0xFF800000> : vector<16xf32>
    %201 = vector.multi_reduction <maximumf>, %200, %cst_87 [1] : vector<16x16xf32> to vector<16xf32>
    %202 = vector.shape_cast %201 : vector<16xf32> to vector<16x1xf32>
    %203 = vector.broadcast %202 : vector<16x1xf32> to vector<16x16xf32>
    %204 = arith.subf %200, %203 : vector<16x16xf32>
    %205 = math.exp %204 : vector<16x16xf32>
    %cst_88 = arith.constant dense<0.000000e+00> : vector<16xf32>
    %206 = vector.multi_reduction <add>, %205, %cst_88 [1] : vector<16x16xf32> to vector<16xf32>
    %207 = vector.shape_cast %206 : vector<16xf32> to vector<16x1xf32>
    %208 = vector.broadcast %207 : vector<16x1xf32> to vector<16x16xf32>
    %209 = arith.divf %205, %208 : vector<16x16xf32>
    %cst_89 = arith.constant dense<0.000000e+00> : vector<16x8xf32>
    %210 = tpu.matmul %209, %196, %cst_89 {dimension_numbers = #tpu.dot_dimension_numbers<[1], [0], [0], [1], [0, 0, 1, 1], [], []>} : vector<16x16xf32>, vector<16x8xf32>, vector<16x8xf32> -> vector<16x8xf32>
    %211 = vector.extract_strided_slice %174 {offsets = [0, 16], sizes = [16, 8], strides = [1, 1]} : vector<16x32xf32> to vector<16x8xf32>
    %212 = vector.extract_strided_slice %175 {offsets = [0, 16], sizes = [16, 8], strides = [1, 1]} : vector<16x32xf32> to vector<16x8xf32>
    %213 = vector.extract_strided_slice %176 {offsets = [0, 16], sizes = [16, 8], strides = [1, 1]} : vector<16x32xf32> to vector<16x8xf32>
    %cst_90 = arith.constant dense<0.000000e+00> : vector<16x16xf32>
    %214 = tpu.matmul %211, %212, %cst_90 {dimension_numbers = #tpu.dot_dimension_numbers<[1], [1], [0], [0], [0, 0, 1, 0], [], []>} : vector<16x8xf32>, vector<16x8xf32>, vector<16x16xf32> -> vector<16x16xf32>
    %cst_91 = arith.constant 0.353553385 : f32
    %215 = vector.broadcast %cst_91 : f32 to vector<16x16xf32>
    %216 = arith.mulf %214, %215 : vector<16x16xf32>
    %217 = arith.addf %216, %167 : vector<16x16xf32>
    %cst_92 = arith.constant dense<0xFF800000> : vector<16xf32>
    %218 = vector.multi_reduction <maximumf>, %217, %cst_92 [1] : vector<16x16xf32> to vector<16xf32>
    %219 = vector.shape_cast %218 : vector<16xf32> to vector<16x1xf32>
    %220 = vector.broadcast %219 : vector<16x1xf32> to vector<16x16xf32>
    %221 = arith.subf %217, %220 : vector<16x16xf32>
    %222 = math.exp %221 : vector<16x16xf32>
    %cst_93 = arith.constant dense<0.000000e+00> : vector<16xf32>
    %223 = vector.multi_reduction <add>, %222, %cst_93 [1] : vector<16x16xf32> to vector<16xf32>
    %224 = vector.shape_cast %223 : vector<16xf32> to vector<16x1xf32>
    %225 = vector.broadcast %224 : vector<16x1xf32> to vector<16x16xf32>
    %226 = arith.divf %222, %225 : vector<16x16xf32>
    %cst_94 = arith.constant dense<0.000000e+00> : vector<16x8xf32>
    %227 = tpu.matmul %226, %213, %cst_94 {dimension_numbers = #tpu.dot_dimension_numbers<[1], [0], [0], [1], [0, 0, 1, 1], [], []>} : vector<16x16xf32>, vector<16x8xf32>, vector<16x8xf32> -> vector<16x8xf32>
    %228 = vector.extract_strided_slice %174 {offsets = [0, 24], sizes = [16, 8], strides = [1, 1]} : vector<16x32xf32> to vector<16x8xf32>
    %229 = vector.extract_strided_slice %175 {offsets = [0, 24], sizes = [16, 8], strides = [1, 1]} : vector<16x32xf32> to vector<16x8xf32>
    %230 = vector.extract_strided_slice %176 {offsets = [0, 24], sizes = [16, 8], strides = [1, 1]} : vector<16x32xf32> to vector<16x8xf32>
    %cst_95 = arith.constant dense<0.000000e+00> : vector<16x16xf32>
    %231 = tpu.matmul %228, %229, %cst_95 {dimension_numbers = #tpu.dot_dimension_numbers<[1], [1], [0], [0], [0, 0, 1, 0], [], []>} : vector<16x8xf32>, vector<16x8xf32>, vector<16x16xf32> -> vector<16x16xf32>
    %cst_96 = arith.constant 0.353553385 : f32
    %232 = vector.broadcast %cst_96 : f32 to vector<16x16xf32>
    %233 = arith.mulf %231, %232 : vector<16x16xf32>
    %234 = arith.addf %233, %167 : vector<16x16xf32>
    %cst_97 = arith.constant dense<0xFF800000> : vector<16xf32>
    %235 = vector.multi_reduction <maximumf>, %234, %cst_97 [1] : vector<16x16xf32> to vector<16xf32>
    %236 = vector.shape_cast %235 : vector<16xf32> to vector<16x1xf32>
    %237 = vector.broadcast %236 : vector<16x1xf32> to vector<16x16xf32>
    %238 = arith.subf %234, %237 : vector<16x16xf32>
    %239 = math.exp %238 : vector<16x16xf32>
    %cst_98 = arith.constant dense<0.000000e+00> : vector<16xf32>
    %240 = vector.multi_reduction <add>, %239, %cst_98 [1] : vector<16x16xf32> to vector<16xf32>
    %241 = vector.shape_cast %240 : vector<16xf32> to vector<16x1xf32>
    %242 = vector.broadcast %241 : vector<16x1xf32> to vector<16x16xf32>
    %243 = arith.divf %239, %242 : vector<16x16xf32>
    %cst_99 = arith.constant dense<0.000000e+00> : vector<16x8xf32>
    %244 = tpu.matmul %243, %230, %cst_99 {dimension_numbers = #tpu.dot_dimension_numbers<[1], [0], [0], [1], [0, 0, 1, 1], [], []>} : vector<16x16xf32>, vector<16x8xf32>, vector<16x8xf32> -> vector<16x8xf32>
    %245 = tpu.concatenate %193, %210, %227, %244 in 1 : vector<16x8xf32>, vector<16x8xf32>, vector<16x8xf32>, vector<16x8xf32> -> vector<16x32xf32>
    %c0_100 = arith.constant 0 : index
    %c288 = arith.constant 288 : index
    %246 = vector.load %arg8[%c0_100, %c288] : memref<32x524xf32, #tpu.memory_space<vmem>>, vector<32x32xf32>
    %c0_101 = arith.constant 0 : index
    %c2496 = arith.constant 2496 : index
    %247 = vector.load %arg9[%c0_101, %c2496] : memref<1x5004xf32, #tpu.memory_space<vmem>>, vector<1x32xf32>
    %cst_102 = arith.constant dense<0.000000e+00> : vector<16x32xf32>
    %248 = tpu.matmul %245, %246, %cst_102 {dimension_numbers = #tpu.dot_dimension_numbers<[1], [0], [0], [1], [0, 0, 1, 1], [], []>} : vector<16x32xf32>, vector<32x32xf32>, vector<16x32xf32> -> vector<16x32xf32>
    %249 = vector.broadcast %247 : vector<1x32xf32> to vector<16x32xf32>
    %250 = arith.addf %248, %249 : vector<16x32xf32>
    %251 = arith.addf %166, %250 : vector<16x32xf32>
    %c0_103 = arith.constant 0 : index
    %c2528 = arith.constant 2528 : index
    %252 = vector.load %arg9[%c0_103, %c2528] : memref<1x5004xf32, #tpu.memory_space<vmem>>, vector<1x32xf32>
    %c0_104 = arith.constant 0 : index
    %c2560 = arith.constant 2560 : index
    %253 = vector.load %arg9[%c0_104, %c2560] : memref<1x5004xf32, #tpu.memory_space<vmem>>, vector<1x32xf32>
    %cst_105 = arith.constant dense<0.000000e+00> : vector<16xf32>
    %254 = vector.multi_reduction <add>, %251, %cst_105 [1] : vector<16x32xf32> to vector<16xf32>
    %255 = vector.shape_cast %254 : vector<16xf32> to vector<16x1xf32>
    %cst_106 = arith.constant 3.200000e+01 : f32
    %256 = vector.broadcast %cst_106 : f32 to vector<16x1xf32>
    %257 = arith.divf %255, %256 : vector<16x1xf32>
    %258 = vector.broadcast %257 : vector<16x1xf32> to vector<16x32xf32>
    %259 = arith.subf %251, %258 : vector<16x32xf32>
    %260 = arith.mulf %259, %259 : vector<16x32xf32>
    %cst_107 = arith.constant dense<0.000000e+00> : vector<16xf32>
    %261 = vector.multi_reduction <add>, %260, %cst_107 [1] : vector<16x32xf32> to vector<16xf32>
    %262 = vector.shape_cast %261 : vector<16xf32> to vector<16x1xf32>
    %cst_108 = arith.constant 3.200000e+01 : f32
    %263 = vector.broadcast %cst_108 : f32 to vector<16x1xf32>
    %264 = arith.divf %262, %263 : vector<16x1xf32>
    %cst_109 = arith.constant 9.99999974E-6 : f32
    %265 = vector.broadcast %cst_109 : f32 to vector<16x1xf32>
    %266 = arith.addf %264, %265 : vector<16x1xf32>
    %267 = math.rsqrt %266 : vector<16x1xf32>
    %268 = vector.broadcast %267 : vector<16x1xf32> to vector<16x32xf32>
    %269 = arith.mulf %259, %268 : vector<16x32xf32>
    %270 = vector.broadcast %252 : vector<1x32xf32> to vector<16x32xf32>
    %271 = arith.mulf %269, %270 : vector<16x32xf32>
    %272 = vector.broadcast %253 : vector<1x32xf32> to vector<16x32xf32>
    %273 = arith.addf %271, %272 : vector<16x32xf32>
    %c0_110 = arith.constant 0 : index
    %c320 = arith.constant 320 : index
    %274 = vector.load %arg8[%c0_110, %c320] : memref<32x524xf32, #tpu.memory_space<vmem>>, vector<32x32xf32>
    %c0_111 = arith.constant 0 : index
    %c2592 = arith.constant 2592 : index
    %275 = vector.load %arg9[%c0_111, %c2592] : memref<1x5004xf32, #tpu.memory_space<vmem>>, vector<1x32xf32>
    %cst_112 = arith.constant dense<0.000000e+00> : vector<16x32xf32>
    %276 = tpu.matmul %273, %274, %cst_112 {dimension_numbers = #tpu.dot_dimension_numbers<[1], [0], [0], [1], [0, 0, 1, 1], [], []>} : vector<16x32xf32>, vector<32x32xf32>, vector<16x32xf32> -> vector<16x32xf32>
    %277 = vector.broadcast %275 : vector<1x32xf32> to vector<16x32xf32>
    %278 = arith.addf %276, %277 : vector<16x32xf32>
    %c0_113 = arith.constant 0 : index
    %c352 = arith.constant 352 : index
    %279 = vector.load %arg8[%c0_113, %c352] : memref<32x524xf32, #tpu.memory_space<vmem>>, vector<32x64xf32>
    %c0_114 = arith.constant 0 : index
    %c2624 = arith.constant 2624 : index
    %280 = vector.load %arg9[%c0_114, %c2624] : memref<1x5004xf32, #tpu.memory_space<vmem>>, vector<1x64xf32>
    %cst_115 = arith.constant dense<0.000000e+00> : vector<16x64xf32>
    %281 = tpu.matmul %156, %279, %cst_115 {dimension_numbers = #tpu.dot_dimension_numbers<[1], [0], [0], [1], [0, 0, 1, 1], [], []>} : vector<16x32xf32>, vector<32x64xf32>, vector<16x64xf32> -> vector<16x64xf32>
    %282 = vector.broadcast %280 : vector<1x64xf32> to vector<16x64xf32>
    %283 = arith.addf %281, %282 : vector<16x64xf32>
    %284 = vector.extract_strided_slice %283 {offsets = [0, 0], sizes = [16, 32], strides = [1, 1]} : vector<16x64xf32> to vector<16x32xf32>
    %285 = vector.extract_strided_slice %283 {offsets = [0, 32], sizes = [16, 32], strides = [1, 1]} : vector<16x64xf32> to vector<16x32xf32>
    %286 = vector.extract_strided_slice %278 {offsets = [0, 0], sizes = [16, 8], strides = [1, 1]} : vector<16x32xf32> to vector<16x8xf32>
    %287 = vector.extract_strided_slice %284 {offsets = [0, 0], sizes = [16, 8], strides = [1, 1]} : vector<16x32xf32> to vector<16x8xf32>
    %288 = vector.extract_strided_slice %285 {offsets = [0, 0], sizes = [16, 8], strides = [1, 1]} : vector<16x32xf32> to vector<16x8xf32>
    %cst_116 = arith.constant dense<0.000000e+00> : vector<16x16xf32>
    %289 = tpu.matmul %286, %287, %cst_116 {dimension_numbers = #tpu.dot_dimension_numbers<[1], [1], [0], [0], [0, 0, 1, 0], [], []>} : vector<16x8xf32>, vector<16x8xf32>, vector<16x16xf32> -> vector<16x16xf32>
    %cst_117 = arith.constant 0.353553385 : f32
    %290 = vector.broadcast %cst_117 : f32 to vector<16x16xf32>
    %291 = arith.mulf %289, %290 : vector<16x16xf32>
    %292 = arith.addf %291, %168 : vector<16x16xf32>
    %cst_118 = arith.constant dense<0xFF800000> : vector<16xf32>
    %293 = vector.multi_reduction <maximumf>, %292, %cst_118 [1] : vector<16x16xf32> to vector<16xf32>
    %294 = vector.shape_cast %293 : vector<16xf32> to vector<16x1xf32>
    %295 = vector.broadcast %294 : vector<16x1xf32> to vector<16x16xf32>
    %296 = arith.subf %292, %295 : vector<16x16xf32>
    %297 = math.exp %296 : vector<16x16xf32>
    %cst_119 = arith.constant dense<0.000000e+00> : vector<16xf32>
    %298 = vector.multi_reduction <add>, %297, %cst_119 [1] : vector<16x16xf32> to vector<16xf32>
    %299 = vector.shape_cast %298 : vector<16xf32> to vector<16x1xf32>
    %300 = vector.broadcast %299 : vector<16x1xf32> to vector<16x16xf32>
    %301 = arith.divf %297, %300 : vector<16x16xf32>
    %cst_120 = arith.constant dense<0.000000e+00> : vector<16x8xf32>
    %302 = tpu.matmul %301, %288, %cst_120 {dimension_numbers = #tpu.dot_dimension_numbers<[1], [0], [0], [1], [0, 0, 1, 1], [], []>} : vector<16x16xf32>, vector<16x8xf32>, vector<16x8xf32> -> vector<16x8xf32>
    %303 = vector.extract_strided_slice %278 {offsets = [0, 8], sizes = [16, 8], strides = [1, 1]} : vector<16x32xf32> to vector<16x8xf32>
    %304 = vector.extract_strided_slice %284 {offsets = [0, 8], sizes = [16, 8], strides = [1, 1]} : vector<16x32xf32> to vector<16x8xf32>
    %305 = vector.extract_strided_slice %285 {offsets = [0, 8], sizes = [16, 8], strides = [1, 1]} : vector<16x32xf32> to vector<16x8xf32>
    %cst_121 = arith.constant dense<0.000000e+00> : vector<16x16xf32>
    %306 = tpu.matmul %303, %304, %cst_121 {dimension_numbers = #tpu.dot_dimension_numbers<[1], [1], [0], [0], [0, 0, 1, 0], [], []>} : vector<16x8xf32>, vector<16x8xf32>, vector<16x16xf32> -> vector<16x16xf32>
    %cst_122 = arith.constant 0.353553385 : f32
    %307 = vector.broadcast %cst_122 : f32 to vector<16x16xf32>
    %308 = arith.mulf %306, %307 : vector<16x16xf32>
    %309 = arith.addf %308, %168 : vector<16x16xf32>
    %cst_123 = arith.constant dense<0xFF800000> : vector<16xf32>
    %310 = vector.multi_reduction <maximumf>, %309, %cst_123 [1] : vector<16x16xf32> to vector<16xf32>
    %311 = vector.shape_cast %310 : vector<16xf32> to vector<16x1xf32>
    %312 = vector.broadcast %311 : vector<16x1xf32> to vector<16x16xf32>
    %313 = arith.subf %309, %312 : vector<16x16xf32>
    %314 = math.exp %313 : vector<16x16xf32>
    %cst_124 = arith.constant dense<0.000000e+00> : vector<16xf32>
    %315 = vector.multi_reduction <add>, %314, %cst_124 [1] : vector<16x16xf32> to vector<16xf32>
    %316 = vector.shape_cast %315 : vector<16xf32> to vector<16x1xf32>
    %317 = vector.broadcast %316 : vector<16x1xf32> to vector<16x16xf32>
    %318 = arith.divf %314, %317 : vector<16x16xf32>
    %cst_125 = arith.constant dense<0.000000e+00> : vector<16x8xf32>
    %319 = tpu.matmul %318, %305, %cst_125 {dimension_numbers = #tpu.dot_dimension_numbers<[1], [0], [0], [1], [0, 0, 1, 1], [], []>} : vector<16x16xf32>, vector<16x8xf32>, vector<16x8xf32> -> vector<16x8xf32>
    %320 = vector.extract_strided_slice %278 {offsets = [0, 16], sizes = [16, 8], strides = [1, 1]} : vector<16x32xf32> to vector<16x8xf32>
    %321 = vector.extract_strided_slice %284 {offsets = [0, 16], sizes = [16, 8], strides = [1, 1]} : vector<16x32xf32> to vector<16x8xf32>
    %322 = vector.extract_strided_slice %285 {offsets = [0, 16], sizes = [16, 8], strides = [1, 1]} : vector<16x32xf32> to vector<16x8xf32>
    %cst_126 = arith.constant dense<0.000000e+00> : vector<16x16xf32>
    %323 = tpu.matmul %320, %321, %cst_126 {dimension_numbers = #tpu.dot_dimension_numbers<[1], [1], [0], [0], [0, 0, 1, 0], [], []>} : vector<16x8xf32>, vector<16x8xf32>, vector<16x16xf32> -> vector<16x16xf32>
    %cst_127 = arith.constant 0.353553385 : f32
    %324 = vector.broadcast %cst_127 : f32 to vector<16x16xf32>
    %325 = arith.mulf %323, %324 : vector<16x16xf32>
    %326 = arith.addf %325, %168 : vector<16x16xf32>
    %cst_128 = arith.constant dense<0xFF800000> : vector<16xf32>
    %327 = vector.multi_reduction <maximumf>, %326, %cst_128 [1] : vector<16x16xf32> to vector<16xf32>
    %328 = vector.shape_cast %327 : vector<16xf32> to vector<16x1xf32>
    %329 = vector.broadcast %328 : vector<16x1xf32> to vector<16x16xf32>
    %330 = arith.subf %326, %329 : vector<16x16xf32>
    %331 = math.exp %330 : vector<16x16xf32>
    %cst_129 = arith.constant dense<0.000000e+00> : vector<16xf32>
    %332 = vector.multi_reduction <add>, %331, %cst_129 [1] : vector<16x16xf32> to vector<16xf32>
    %333 = vector.shape_cast %332 : vector<16xf32> to vector<16x1xf32>
    %334 = vector.broadcast %333 : vector<16x1xf32> to vector<16x16xf32>
    %335 = arith.divf %331, %334 : vector<16x16xf32>
    %cst_130 = arith.constant dense<0.000000e+00> : vector<16x8xf32>
    %336 = tpu.matmul %335, %322, %cst_130 {dimension_numbers = #tpu.dot_dimension_numbers<[1], [0], [0], [1], [0, 0, 1, 1], [], []>} : vector<16x16xf32>, vector<16x8xf32>, vector<16x8xf32> -> vector<16x8xf32>
    %337 = vector.extract_strided_slice %278 {offsets = [0, 24], sizes = [16, 8], strides = [1, 1]} : vector<16x32xf32> to vector<16x8xf32>
    %338 = vector.extract_strided_slice %284 {offsets = [0, 24], sizes = [16, 8], strides = [1, 1]} : vector<16x32xf32> to vector<16x8xf32>
    %339 = vector.extract_strided_slice %285 {offsets = [0, 24], sizes = [16, 8], strides = [1, 1]} : vector<16x32xf32> to vector<16x8xf32>
    %cst_131 = arith.constant dense<0.000000e+00> : vector<16x16xf32>
    %340 = tpu.matmul %337, %338, %cst_131 {dimension_numbers = #tpu.dot_dimension_numbers<[1], [1], [0], [0], [0, 0, 1, 0], [], []>} : vector<16x8xf32>, vector<16x8xf32>, vector<16x16xf32> -> vector<16x16xf32>
    %cst_132 = arith.constant 0.353553385 : f32
    %341 = vector.broadcast %cst_132 : f32 to vector<16x16xf32>
    %342 = arith.mulf %340, %341 : vector<16x16xf32>
    %343 = arith.addf %342, %168 : vector<16x16xf32>
    %cst_133 = arith.constant dense<0xFF800000> : vector<16xf32>
    %344 = vector.multi_reduction <maximumf>, %343, %cst_133 [1] : vector<16x16xf32> to vector<16xf32>
    %345 = vector.shape_cast %344 : vector<16xf32> to vector<16x1xf32>
    %346 = vector.broadcast %345 : vector<16x1xf32> to vector<16x16xf32>
    %347 = arith.subf %343, %346 : vector<16x16xf32>
    %348 = math.exp %347 : vector<16x16xf32>
    %cst_134 = arith.constant dense<0.000000e+00> : vector<16xf32>
    %349 = vector.multi_reduction <add>, %348, %cst_134 [1] : vector<16x16xf32> to vector<16xf32>
    %350 = vector.shape_cast %349 : vector<16xf32> to vector<16x1xf32>
    %351 = vector.broadcast %350 : vector<16x1xf32> to vector<16x16xf32>
    %352 = arith.divf %348, %351 : vector<16x16xf32>
    %cst_135 = arith.constant dense<0.000000e+00> : vector<16x8xf32>
    %353 = tpu.matmul %352, %339, %cst_135 {dimension_numbers = #tpu.dot_dimension_numbers<[1], [0], [0], [1], [0, 0, 1, 1], [], []>} : vector<16x16xf32>, vector<16x8xf32>, vector<16x8xf32> -> vector<16x8xf32>
    %354 = tpu.concatenate %302, %319, %336, %353 in 1 : vector<16x8xf32>, vector<16x8xf32>, vector<16x8xf32>, vector<16x8xf32> -> vector<16x32xf32>
    %c0_136 = arith.constant 0 : index
    %c416 = arith.constant 416 : index
    %355 = vector.load %arg8[%c0_136, %c416] : memref<32x524xf32, #tpu.memory_space<vmem>>, vector<32x32xf32>
    %c0_137 = arith.constant 0 : index
    %c2688 = arith.constant 2688 : index
    %356 = vector.load %arg9[%c0_137, %c2688] : memref<1x5004xf32, #tpu.memory_space<vmem>>, vector<1x32xf32>
    %cst_138 = arith.constant dense<0.000000e+00> : vector<16x32xf32>
    %357 = tpu.matmul %354, %355, %cst_138 {dimension_numbers = #tpu.dot_dimension_numbers<[1], [0], [0], [1], [0, 0, 1, 1], [], []>} : vector<16x32xf32>, vector<32x32xf32>, vector<16x32xf32> -> vector<16x32xf32>
    %358 = vector.broadcast %356 : vector<1x32xf32> to vector<16x32xf32>
    %359 = arith.addf %357, %358 : vector<16x32xf32>
    %360 = arith.addf %273, %359 : vector<16x32xf32>
    %c0_139 = arith.constant 0 : index
    %c2720 = arith.constant 2720 : index
    %361 = vector.load %arg9[%c0_139, %c2720] : memref<1x5004xf32, #tpu.memory_space<vmem>>, vector<1x32xf32>
    %c0_140 = arith.constant 0 : index
    %c2752 = arith.constant 2752 : index
    %362 = vector.load %arg9[%c0_140, %c2752] : memref<1x5004xf32, #tpu.memory_space<vmem>>, vector<1x32xf32>
    %cst_141 = arith.constant dense<0.000000e+00> : vector<16xf32>
    %363 = vector.multi_reduction <add>, %360, %cst_141 [1] : vector<16x32xf32> to vector<16xf32>
    %364 = vector.shape_cast %363 : vector<16xf32> to vector<16x1xf32>
    %cst_142 = arith.constant 3.200000e+01 : f32
    %365 = vector.broadcast %cst_142 : f32 to vector<16x1xf32>
    %366 = arith.divf %364, %365 : vector<16x1xf32>
    %367 = vector.broadcast %366 : vector<16x1xf32> to vector<16x32xf32>
    %368 = arith.subf %360, %367 : vector<16x32xf32>
    %369 = arith.mulf %368, %368 : vector<16x32xf32>
    %cst_143 = arith.constant dense<0.000000e+00> : vector<16xf32>
    %370 = vector.multi_reduction <add>, %369, %cst_143 [1] : vector<16x32xf32> to vector<16xf32>
    %371 = vector.shape_cast %370 : vector<16xf32> to vector<16x1xf32>
    %cst_144 = arith.constant 3.200000e+01 : f32
    %372 = vector.broadcast %cst_144 : f32 to vector<16x1xf32>
    %373 = arith.divf %371, %372 : vector<16x1xf32>
    %cst_145 = arith.constant 9.99999974E-6 : f32
    %374 = vector.broadcast %cst_145 : f32 to vector<16x1xf32>
    %375 = arith.addf %373, %374 : vector<16x1xf32>
    %376 = math.rsqrt %375 : vector<16x1xf32>
    %377 = vector.broadcast %376 : vector<16x1xf32> to vector<16x32xf32>
    %378 = arith.mulf %368, %377 : vector<16x32xf32>
    %379 = vector.broadcast %361 : vector<1x32xf32> to vector<16x32xf32>
    %380 = arith.mulf %378, %379 : vector<16x32xf32>
    %381 = vector.broadcast %362 : vector<1x32xf32> to vector<16x32xf32>
    %382 = arith.addf %380, %381 : vector<16x32xf32>
    %c0_146 = arith.constant 0 : index
    %c2784 = arith.constant 2784 : index
    %383 = vector.load %arg9[%c0_146, %c2784] : memref<1x5004xf32, #tpu.memory_space<vmem>>, vector<1x2048xf32>
    %c0_147 = arith.constant 0 : index
    %c4832 = arith.constant 4832 : index
    %384 = vector.load %arg9[%c0_147, %c4832] : memref<1x5004xf32, #tpu.memory_space<vmem>>, vector<1x32xf32>
    %c0_148 = arith.constant 0 : index
    %c0_149 = arith.constant 0 : index
    %385 = vector.load %arg12[%c0_148, %c0_149] : memref<32x2048xf32, #tpu.memory_space<vmem>>, vector<32x2048xf32>
    %cst_150 = arith.constant dense<0.000000e+00> : vector<16x2048xf32>
    %386 = tpu.matmul %382, %385, %cst_150 {dimension_numbers = #tpu.dot_dimension_numbers<[1], [0], [0], [1], [0, 0, 1, 1], [], []>} : vector<16x32xf32>, vector<32x2048xf32>, vector<16x2048xf32> -> vector<16x2048xf32>
    %387 = vector.broadcast %383 : vector<1x2048xf32> to vector<16x2048xf32>
    %388 = arith.addf %386, %387 : vector<16x2048xf32>
    %cst_151 = arith.constant 5.000000e-01 : f32
    %389 = vector.broadcast %cst_151 : f32 to vector<16x2048xf32>
    %390 = arith.mulf %389, %388 : vector<16x2048xf32>
    %cst_152 = arith.constant 0.707106769 : f32
    %391 = vector.broadcast %cst_152 : f32 to vector<16x2048xf32>
    %392 = arith.mulf %388, %391 : vector<16x2048xf32>
    %393 = math.erf %392 : vector<16x2048xf32>
    %cst_153 = arith.constant 1.000000e+00 : f32
    %394 = vector.broadcast %cst_153 : f32 to vector<16x2048xf32>
    %395 = arith.addf %394, %393 : vector<16x2048xf32>
    %396 = arith.mulf %390, %395 : vector<16x2048xf32>
    %c0_154 = arith.constant 0 : index
    %c0_155 = arith.constant 0 : index
    %397 = vector.load %arg13[%c0_154, %c0_155] : memref<2048x32xf32, #tpu.memory_space<vmem>>, vector<2048x32xf32>
    %cst_156 = arith.constant dense<0.000000e+00> : vector<16x32xf32>
    %398 = tpu.matmul %396, %397, %cst_156 {dimension_numbers = #tpu.dot_dimension_numbers<[1], [0], [0], [1], [0, 0, 1, 1], [], []>} : vector<16x2048xf32>, vector<2048x32xf32>, vector<16x32xf32> -> vector<16x32xf32>
    %399 = vector.broadcast %384 : vector<1x32xf32> to vector<16x32xf32>
    %400 = arith.addf %398, %399 : vector<16x32xf32>
    %401 = arith.addf %382, %400 : vector<16x32xf32>
    %c0_157 = arith.constant 0 : index
    %c4864 = arith.constant 4864 : index
    %402 = vector.load %arg9[%c0_157, %c4864] : memref<1x5004xf32, #tpu.memory_space<vmem>>, vector<1x32xf32>
    %c0_158 = arith.constant 0 : index
    %c4896 = arith.constant 4896 : index
    %403 = vector.load %arg9[%c0_158, %c4896] : memref<1x5004xf32, #tpu.memory_space<vmem>>, vector<1x32xf32>
    %cst_159 = arith.constant dense<0.000000e+00> : vector<16xf32>
    %404 = vector.multi_reduction <add>, %401, %cst_159 [1] : vector<16x32xf32> to vector<16xf32>
    %405 = vector.shape_cast %404 : vector<16xf32> to vector<16x1xf32>
    %cst_160 = arith.constant 3.200000e+01 : f32
    %406 = vector.broadcast %cst_160 : f32 to vector<16x1xf32>
    %407 = arith.divf %405, %406 : vector<16x1xf32>
    %408 = vector.broadcast %407 : vector<16x1xf32> to vector<16x32xf32>
    %409 = arith.subf %401, %408 : vector<16x32xf32>
    %410 = arith.mulf %409, %409 : vector<16x32xf32>
    %cst_161 = arith.constant dense<0.000000e+00> : vector<16xf32>
    %411 = vector.multi_reduction <add>, %410, %cst_161 [1] : vector<16x32xf32> to vector<16xf32>
    %412 = vector.shape_cast %411 : vector<16xf32> to vector<16x1xf32>
    %cst_162 = arith.constant 3.200000e+01 : f32
    %413 = vector.broadcast %cst_162 : f32 to vector<16x1xf32>
    %414 = arith.divf %412, %413 : vector<16x1xf32>
    %cst_163 = arith.constant 9.99999974E-6 : f32
    %415 = vector.broadcast %cst_163 : f32 to vector<16x1xf32>
    %416 = arith.addf %414, %415 : vector<16x1xf32>
    %417 = math.rsqrt %416 : vector<16x1xf32>
    %418 = vector.broadcast %417 : vector<16x1xf32> to vector<16x32xf32>
    %419 = arith.mulf %409, %418 : vector<16x32xf32>
    %420 = vector.broadcast %402 : vector<1x32xf32> to vector<16x32xf32>
    %421 = arith.mulf %419, %420 : vector<16x32xf32>
    %422 = vector.broadcast %403 : vector<1x32xf32> to vector<16x32xf32>
    %423 = arith.addf %421, %422 : vector<16x32xf32>
    %c0_164 = arith.constant 0 : index
    %c0_165 = arith.constant 0 : index
    %424 = vector.load %arg14[%c0_164, %c0_165] : memref<16x32xf32, #tpu.memory_space<vmem>>, vector<16x32xf32>
    tpu.vector_store %arg14[%c0_164, %c0_165], %423 {strides = array<i32>} : memref<16x32xf32, #tpu.memory_space<vmem>>, vector<16x32xf32>,
    %c0_166 = arith.constant 0 : index
    %c448 = arith.constant 448 : index
    %425 = vector.load %arg8[%c0_166, %c448] : memref<32x524xf32, #tpu.memory_space<vmem>>, vector<32x30xf32>
    %c0_167 = arith.constant 0 : index
    %c4928 = arith.constant 4928 : index
    %426 = vector.load %arg9[%c0_167, %c4928] : memref<1x5004xf32, #tpu.memory_space<vmem>>, vector<1x30xf32>
    %cst_168 = arith.constant dense<0.000000e+00> : vector<16x30xf32>
    %427 = tpu.matmul %423, %425, %cst_168 {dimension_numbers = #tpu.dot_dimension_numbers<[1], [0], [0], [1], [0, 0, 1, 1], [], []>} : vector<16x32xf32>, vector<32x30xf32>, vector<16x30xf32> -> vector<16x30xf32>
    %428 = vector.broadcast %426 : vector<1x30xf32> to vector<16x30xf32>
    %429 = arith.addf %427, %428 : vector<16x30xf32>
    %cst_169 = arith.constant 0.000000e+00 : f32
    %430 = vector.broadcast %cst_169 : f32 to vector<16x30xf32>
    %431 = arith.cmpf ogt, %429, %430 : vector<16x30xf32>
    %cst_170 = arith.constant 0.000000e+00 : f32
    %432 = vector.broadcast %cst_170 : f32 to vector<16x30xf32>
    %433 = arith.minimumf %429, %432 : vector<16x30xf32>
    %434 = math.exp %433 : vector<16x30xf32>
    %cst_171 = arith.constant 1.000000e+00 : f32
    %435 = vector.broadcast %cst_171 : f32 to vector<16x30xf32>
    %436 = arith.subf %434, %435 : vector<16x30xf32>
    %437 = arith.select %431, %429, %436 : vector<16x30xi1>, vector<16x30xf32>
    %c0_172 = arith.constant 0 : index
    %c478 = arith.constant 478 : index
    %438 = vector.load %arg8[%c0_172, %c478] : memref<32x524xf32, #tpu.memory_space<vmem>>, vector<30x15xf32>
    %c0_173 = arith.constant 0 : index
    %c4958 = arith.constant 4958 : index
    %439 = vector.load %arg9[%c0_173, %c4958] : memref<1x5004xf32, #tpu.memory_space<vmem>>, vector<1x15xf32>
    %cst_174 = arith.constant dense<0.000000e+00> : vector<16x15xf32>
    %440 = tpu.matmul %437, %438, %cst_174 {dimension_numbers = #tpu.dot_dimension_numbers<[1], [0], [0], [1], [0, 0, 1, 1], [], []>} : vector<16x30xf32>, vector<30x15xf32>, vector<16x15xf32> -> vector<16x15xf32>
    %441 = vector.broadcast %439 : vector<1x15xf32> to vector<16x15xf32>
    %442 = arith.addf %440, %441 : vector<16x15xf32>
    %cst_175 = arith.constant 0.000000e+00 : f32
    %443 = vector.broadcast %cst_175 : f32 to vector<16x15xf32>
    %444 = arith.cmpf ogt, %442, %443 : vector<16x15xf32>
    %cst_176 = arith.constant 0.000000e+00 : f32
    %445 = vector.broadcast %cst_176 : f32 to vector<16x15xf32>
    %446 = arith.minimumf %442, %445 : vector<16x15xf32>
    %447 = math.exp %446 : vector<16x15xf32>
    %cst_177 = arith.constant 1.000000e+00 : f32
    %448 = vector.broadcast %cst_177 : f32 to vector<16x15xf32>
    %449 = arith.subf %447, %448 : vector<16x15xf32>
    %450 = arith.select %444, %442, %449 : vector<16x15xi1>, vector<16x15xf32>
    %c0_178 = arith.constant 0 : index
    %c493 = arith.constant 493 : index
    %451 = vector.load %arg8[%c0_178, %c493] : memref<32x524xf32, #tpu.memory_space<vmem>>, vector<15x6xf32>
    %c0_179 = arith.constant 0 : index
    %c4973 = arith.constant 4973 : index
    %452 = vector.load %arg9[%c0_179, %c4973] : memref<1x5004xf32, #tpu.memory_space<vmem>>, vector<1x6xf32>
    %cst_180 = arith.constant dense<0.000000e+00> : vector<16x6xf32>
    %453 = tpu.matmul %450, %451, %cst_180 {dimension_numbers = #tpu.dot_dimension_numbers<[1], [0], [0], [1], [0, 0, 1, 1], [], []>} : vector<16x15xf32>, vector<15x6xf32>, vector<16x6xf32> -> vector<16x6xf32>
    %454 = vector.broadcast %452 : vector<1x6xf32> to vector<16x6xf32>
    %455 = arith.addf %453, %454 : vector<16x6xf32>
    %cst_181 = arith.constant 0.000000e+00 : f32
    %456 = vector.broadcast %cst_181 : f32 to vector<16x6xf32>
    %457 = arith.cmpf ogt, %455, %456 : vector<16x6xf32>
    %cst_182 = arith.constant 0.000000e+00 : f32
    %458 = vector.broadcast %cst_182 : f32 to vector<16x6xf32>
    %459 = arith.minimumf %455, %458 : vector<16x6xf32>
    %460 = math.exp %459 : vector<16x6xf32>
    %cst_183 = arith.constant 1.000000e+00 : f32
    %461 = vector.broadcast %cst_183 : f32 to vector<16x6xf32>
    %462 = arith.subf %460, %461 : vector<16x6xf32>
    %463 = arith.select %457, %455, %462 : vector<16x6xi1>, vector<16x6xf32>
    %c0_184 = arith.constant 0 : index
    %c499 = arith.constant 499 : index
    %464 = vector.load %arg8[%c0_184, %c499] : memref<32x524xf32, #tpu.memory_space<vmem>>, vector<6x25xf32>
    %c0_185 = arith.constant 0 : index
    %c4979 = arith.constant 4979 : index
    %465 = vector.load %arg9[%c0_185, %c4979] : memref<1x5004xf32, #tpu.memory_space<vmem>>, vector<1x25xf32>
    %cst_186 = arith.constant dense<0.000000e+00> : vector<16x25xf32>
    %466 = tpu.matmul %463, %464, %cst_186 {dimension_numbers = #tpu.dot_dimension_numbers<[1], [0], [0], [1], [0, 0, 1, 1], [], []>} : vector<16x6xf32>, vector<6x25xf32>, vector<16x25xf32> -> vector<16x25xf32>
    %467 = vector.broadcast %465 : vector<1x25xf32> to vector<16x25xf32>
    %468 = arith.addf %466, %467 : vector<16x25xf32>
    %469 = vector.extract_strided_slice %468 {offsets = [0, 0], sizes = [16, 5], strides = [1, 1]} : vector<16x25xf32> to vector<16x5xf32>
    %cst_187 = arith.constant dense<0xFF800000> : vector<16xf32>
    %470 = vector.multi_reduction <maximumf>, %469, %cst_187 [1] : vector<16x5xf32> to vector<16xf32>
    %471 = vector.shape_cast %470 : vector<16xf32> to vector<16x1xf32>
    %472 = vector.broadcast %471 : vector<16x1xf32> to vector<16x5xf32>
    %473 = arith.subf %469, %472 : vector<16x5xf32>
    %474 = math.exp %473 : vector<16x5xf32>
    %cst_188 = arith.constant dense<0.000000e+00> : vector<16xf32>
    %475 = vector.multi_reduction <add>, %474, %cst_188 [1] : vector<16x5xf32> to vector<16xf32>
    %476 = vector.shape_cast %475 : vector<16xf32> to vector<16x1xf32>
    %477 = vector.broadcast %476 : vector<16x1xf32> to vector<16x5xf32>
    %478 = arith.divf %474, %477 : vector<16x5xf32>
    %479 = vector.extract_strided_slice %468 {offsets = [0, 5], sizes = [16, 10], strides = [1, 1]} : vector<16x25xf32> to vector<16x10xf32>
    %480 = math.exp %479 : vector<16x10xf32>
    %481 = vector.extract_strided_slice %468 {offsets = [0, 15], sizes = [16, 10], strides = [1, 1]} : vector<16x25xf32> to vector<16x10xf32>
    %482 = tpu.concatenate %478, %480, %481 in 1 : vector<16x5xf32>, vector<16x10xf32>, vector<16x10xf32> -> vector<16x25xf32>
    %c0_189 = arith.constant 0 : index
    %c0_190 = arith.constant 0 : index
    %483 = vector.load %arg15[%c0_189, %c0_190] : memref<16x25xf32, #tpu.memory_space<vmem>>, vector<16x25xf32>
    tpu.vector_store %arg15[%c0_189, %c0_190], %482 {strides = array<i32>} : memref<16x25xf32, #tpu.memory_space<vmem>>, vector<16x25xf32>,
    return
  }
  func.func @transform_0(%arg0: i32) -> (i32, i32) {
    %c0_i32 = arith.constant 0 : i32
    %c0_i32_0 = arith.constant 0 : i32
    %c0_i32_1 = arith.constant 0 : i32
    return %c0_i32, %c0_i32_0 : i32, i32
  }
  func.func @transform_1(%arg0: i32) -> (i32, i32) {
    %c0_i32 = arith.constant 0 : i32
    %c0_i32_0 = arith.constant 0 : i32
    %c0_i32_1 = arith.constant 0 : i32
    return %c0_i32, %c0_i32_0 : i32, i32
  }
  func.func @transform_2(%arg0: i32) -> (i32, i32) {
    %c0_i32 = arith.constant 0 : i32
    %c0_i32_0 = arith.constant 0 : i32
    %c0_i32_1 = arith.constant 0 : i32
    return %c0_i32, %c0_i32_0 : i32, i32
  }
  func.func @transform_3(%arg0: i32) -> (i32, i32) {
    %c0_i32 = arith.constant 0 : i32
    %c0_i32_0 = arith.constant 0 : i32
    %c0_i32_1 = arith.constant 0 : i32
    return %c0_i32, %c0_i32_0 : i32, i32
  }
  func.func @transform_4(%arg0: i32) -> (i32, i32) {
    %c0_i32 = arith.constant 0 : i32
    %c0_i32_0 = arith.constant 0 : i32
    %c0_i32_1 = arith.constant 0 : i32
    return %c0_i32, %c0_i32_0 : i32, i32
  }
  func.func @transform_5(%arg0: i32) -> (i32, i32) {
    %c0_i32 = arith.constant 0 : i32
    %c0_i32_0 = arith.constant 0 : i32
    %c0_i32_1 = arith.constant 0 : i32
    return %c0_i32, %c0_i32_0 : i32, i32
  }
  func.func @transform_6(%arg0: i32) -> (i32, i32) {
    %c0_i32 = arith.constant 0 : i32
    %c0_i32_0 = arith.constant 0 : i32
    %c0_i32_1 = arith.constant 0 : i32
    return %c0_i32, %c0_i32_0 : i32, i32
  }
  func.func @transform_7(%arg0: i32) -> (i32, i32) {
    %c0_i32 = arith.constant 0 : i32
    %c0_i32_0 = arith.constant 0 : i32
    %c0_i32_1 = arith.constant 0 : i32
    return %c0_i32, %c0_i32_0 : i32, i32
  }
  func.func @transform_8(%arg0: i32) -> (i32, i32) {
    %c0_i32 = arith.constant 0 : i32
    %c0_i32_0 = arith.constant 0 : i32
    %c0_i32_1 = arith.constant 0 : i32
    return %c0_i32, %c0_i32_0 : i32, i32
  }
  func.func @transform_9(%arg0: i32) -> (i32, i32) {
    %c0_i32 = arith.constant 0 : i32
    %c0_i32_0 = arith.constant 0 : i32
    %c0_i32_1 = arith.constant 0 : i32
    return %c0_i32, %c0_i32_0 : i32, i32
  }
  func.func @transform_10(%arg0: i32) -> (i32, i32) {
    %c0_i32 = arith.constant 0 : i32
    %c0_i32_0 = arith.constant 0 : i32
    %c0_i32_1 = arith.constant 0 : i32
    return %c0_i32, %c0_i32_0 : i32, i32
  }
  func.func @transform_11(%arg0: i32) -> (i32, i32) {
    %c0_i32 = arith.constant 0 : i32
    %c0_i32_0 = arith.constant 0 : i32
    %c0_i32_1 = arith.constant 0 : i32
    return %c0_i32, %c0_i32_0 : i32, i32
  }
  func.func @transform_12(%arg0: i32) -> (i32, i32) {
    %c0_i32 = arith.constant 0 : i32
    %c0_i32_0 = arith.constant 0 : i32
    %c0_i32_1 = arith.constant 0 : i32
    return %c0_i32, %c0_i32_0 : i32, i32
  }
  func.func @transform_13(%arg0: i32) -> (i32, i32) {
    %c0_i32 = arith.constant 0 : i32
    %c0_i32_0 = arith.constant 0 : i32
    %c0_i32_1 = arith.constant 0 : i32
    return %c0_i32, %c0_i32_0 : i32, i32
  }
  func.func @transform_14(%arg0: i32) -> (i32, i32) {
    %c0_i32 = arith.constant 0 : i32
    %c0_i32_0 = arith.constant 0 : i32
    %c0_i32_1 = arith.constant 0 : i32
    return %c0_i32, %c0_i32_0 : i32, i32
  }
}

</mosaic_0001>

<llo_original>
// kernel: attention_gmm_forward.1
$region0: #{attention_gmm_forward.1}
  #allocation0 [shape = 'u32[]', space=smem, size = 0x4, offset = 0x4, fixed_abs, tag = 'smem constant byte address 0x4 - core index']
  #allocation1 [shape = 'u32[144,128]{1,0:T(1,128)}', space=vmem, size = 0x12000, scoped, tag = 'internal scratch']
  %s0 = inlined_call_operand.vmem [shape: f32[16,2], index: 0, kind: input, shape index: {}]
  %s1 = inlined_call_operand.vmem [shape: f32[16,2], index: 1, kind: input, shape index: {}]
  %s2 = inlined_call_operand.vmem [shape: f32[16,32], index: 2, kind: input, shape index: {}, may-alias: {2,3}]
  %s3 = inlined_call_operand.vmem [shape: f32[16,32], index: 3, kind: input, shape index: {}, may-alias: {2,3}]
  %s4 = inlined_call_operand.vmem [shape: f32[16,16], index: 4, kind: input, shape index: {}, may-alias: {4,5,6}]
  %s5 = inlined_call_operand.vmem [shape: f32[16,16], index: 5, kind: input, shape index: {}, may-alias: {4,5,6}]
  %s6 = inlined_call_operand.vmem [shape: f32[16,16], index: 6, kind: input, shape index: {}, may-alias: {4,5,6}]
  %s7 = inlined_call_operand.vmem [shape: f32[32,524], index: 7, kind: input, shape index: {}]
  %s8 = inlined_call_operand.vmem [shape: f32[1,5004], index: 8, kind: input, shape index: {}]
  %s9 = inlined_call_operand.vmem [shape: f32[32,2048], index: 9, kind: input, shape index: {}]
  %s10 = inlined_call_operand.vmem [shape: f32[2048,32], index: 10, kind: input, shape index: {}]
  %s11 = inlined_call_operand.vmem [shape: f32[32,2048], index: 11, kind: input, shape index: {}]
  %s12 = inlined_call_operand.vmem [shape: f32[2048,32], index: 12, kind: input, shape index: {}]
  %s13 = inlined_call_operand.hbm [shape: f32[16,32], index: 13, kind: output, shape index: {0}]
  %s14 = inlined_call_operand.vmem [shape: f32[16,25], index: 14, kind: output, shape index: {1}]
  %15 = xla_tuple %s13, %s14
  %s16 = sld [smem:[#allocation0]]
  $region70: #{attention_gmm_forward.1} parent=0
    _
  %s18 = ssub.s32 1, %s16
  %s19 = scalar_select 0, %s18, %s16
  $region1: #{attention_gmm_forward.1} parent=0
    #allocation2 [shape = 'u8[8192]{0}', space=vmem, size = 0x2000, scoped, tag = 'output window, operand 0, single buffered']
    #allocation3 [shape = 's32[1]{0}', space=sflag, size = 0x4, scoped, tag = 'scoped memory for attention_gmm_forward.1']
    %20 = vsyncpa [#allocation3], 0
    // Predicated region
    $region2: #{attention_gmm_forward.1} parent=1 // pred_check
      _
    $region3: #{attention_gmm_forward.1} parent=1 // pred_check_branch
      %22 = sbr.rel (0) target = $region5
    $region4: #{attention_gmm_forward.1} parent=1 // pred_region
      _
    $region5: #{attention_gmm_forward.1} parent=1 // pred_fallthru
      _
    // Predicated region
    $region6: #{attention_gmm_forward.1} parent=1 // pred_check
      _
    $region7: #{attention_gmm_forward.1} parent=1 // pred_check_branch
      %24 = sbr.rel (0) target = $region9
    $region8: #{attention_gmm_forward.1} parent=1 // pred_region
      _
    $region9: #{attention_gmm_forward.1} parent=1 // pred_fallthru
      _
    // Predicated region
    $region10: #{attention_gmm_forward.1} parent=1 // pred_check
      _
    $region11: #{attention_gmm_forward.1} parent=1 // pred_check_branch
      %26 = sbr.rel (0) target = $region13
    $region12: #{attention_gmm_forward.1} parent=1 // pred_region
      _
    $region13: #{attention_gmm_forward.1} parent=1 // pred_fallthru
      _
    // Predicated region
    $region14: #{attention_gmm_forward.1} parent=1 // pred_check
      _
    $region15: #{attention_gmm_forward.1} parent=1 // pred_check_branch
      %28 = sbr.rel (0) target = $region17
    $region16: #{attention_gmm_forward.1} parent=1 // pred_region
      _
    $region17: #{attention_gmm_forward.1} parent=1 // pred_fallthru
      _
    // Predicated region
    $region18: #{attention_gmm_forward.1} parent=1 // pred_check
      _
    $region19: #{attention_gmm_forward.1} parent=1 // pred_check_branch
      %30 = sbr.rel (0) target = $region21
    $region20: #{attention_gmm_forward.1} parent=1 // pred_region
      _
    $region21: #{attention_gmm_forward.1} parent=1 // pred_fallthru
      _
    // Predicated region
    $region22: #{attention_gmm_forward.1} parent=1 // pred_check
      _
    $region23: #{attention_gmm_forward.1} parent=1 // pred_check_branch
      %32 = sbr.rel (0) target = $region25
    $region24: #{attention_gmm_forward.1} parent=1 // pred_region
      _
    $region25: #{attention_gmm_forward.1} parent=1 // pred_fallthru
      _
    // Predicated region
    $region26: #{attention_gmm_forward.1} parent=1 // pred_check
      _
    $region27: #{attention_gmm_forward.1} parent=1 // pred_check_branch
      %34 = sbr.rel (0) target = $region29
    $region28: #{attention_gmm_forward.1} parent=1 // pred_region
      _
    $region29: #{attention_gmm_forward.1} parent=1 // pred_fallthru
      _
    // Predicated region
    $region30: #{attention_gmm_forward.1} parent=1 // pred_check
      _
    $region31: #{attention_gmm_forward.1} parent=1 // pred_check_branch
      %36 = sbr.rel (0) target = $region33
    $region32: #{attention_gmm_forward.1} parent=1 // pred_region
      _
    $region33: #{attention_gmm_forward.1} parent=1 // pred_fallthru
      _
    // Predicated region
    $region34: #{attention_gmm_forward.1} parent=1 // pred_check
      _
    $region35: #{attention_gmm_forward.1} parent=1 // pred_check_branch
      %38 = sbr.rel (0) target = $region37
    $region36: #{attention_gmm_forward.1} parent=1 // pred_region
      _
    $region37: #{attention_gmm_forward.1} parent=1 // pred_fallthru
      _
    // Predicated region
    $region38: #{attention_gmm_forward.1} parent=1 // pred_check
      _
    $region39: #{attention_gmm_forward.1} parent=1 // pred_check_branch
      %40 = sbr.rel (0) target = $region41
    $region40: #{attention_gmm_forward.1} parent=1 // pred_region
      _
    $region41: #{attention_gmm_forward.1} parent=1 // pred_fallthru
      _
    // Predicated region
    $region42: #{attention_gmm_forward.1} parent=1 // pred_check
      _
    $region43: #{attention_gmm_forward.1} parent=1 // pred_check_branch
      %42 = sbr.rel (0) target = $region45
    $region44: #{attention_gmm_forward.1} parent=1 // pred_region
      _
    $region45: #{attention_gmm_forward.1} parent=1 // pred_fallthru
      _
    // Predicated region
    $region46: #{attention_gmm_forward.1} parent=1 // pred_check
      _
    $region47: #{attention_gmm_forward.1} parent=1 // pred_check_branch
      %44 = sbr.rel (0) target = $region49
    $region48: #{attention_gmm_forward.1} parent=1 // pred_region
      _
    $region49: #{attention_gmm_forward.1} parent=1 // pred_fallthru
      _
    // Predicated region
    $region50: #{attention_gmm_forward.1} parent=1 // pred_check
      _
    $region51: #{attention_gmm_forward.1} parent=1 // pred_check_branch
      %46 = sbr.rel (0) target = $region53
    $region52: #{attention_gmm_forward.1} parent=1 // pred_region
      _
    $region53: #{attention_gmm_forward.1} parent=1 // pred_fallthru
      _
    %v47 = vld [vmem:[%s0] sm:$0xff]
    %v48 = vld [vmem:[%s0 + $0x8] sm:$0xff]
    %v49 = vld [vmem:[%s7] sm:$0x3]
    %v50 = vld [vmem:[%s8] sm:$0x1]
    %v52 = vlaneseq
    %v53 = vshrl.u32 %v52, 7
    %v54 = vsub.s32 0, %v53
    %v55 = vrot.slane %v50, %v54
    %vm57 = vcmask 15360
    %v59 = vsel %vm57, %v47, 0
    %v62 = vsel %vm57, %v48, 0
    %vm64 = vcmask 1041408
    %v66 = vsel %vm64, %v49, 0
    %68 = vmatprep.subr.mxu0 0.0
    %69 = vmatpush1.msra.mxu0 0.0
    %70 = vmatprep.subr.mxu0 0.0
    %71 = vmatpush1.msra.mxu0 0.0
    %72 = vmatprep.subr.mxu0 0.0
    %73 = vmatpush1.msra.mxu0 0.0
    %74 = vmatprep.subr.mxu0 0.0
    %75 = vmatpush1.msra.mxu0 0.0
    %76 = vmatprep.subr.mxu0 0.0
    %77 = vmatpush1.msra.mxu0 0.0
    %78 = vmatprep.subr.mxu0 0.0
    %79 = vmatpush1.msra.mxu0 0.0
    %80 = vmatprep.subr.mxu0 0.0
    %81 = vmatpush1.msra.mxu0 0.0
    %82 = vmatprep.subr.mxu0 0.0
    %83 = vmatpush1.msra.mxu0 0.0
    %84 = vmatprep.subr.mxu0 0.0
    %85 = vmatpush1.msra.mxu0 0.0
    %86 = vmatprep.subr.mxu0 0.0
    %87 = vmatpush1.msra.mxu0 0.0
    %88 = vmatprep.subr.mxu0 0.0
    %89 = vmatpush1.msra.mxu0 0.0
    %90 = vmatprep.subr.mxu0 0.0
    %91 = vmatpush1.msra.mxu0 0.0
    %92 = vmatprep.subr.mxu0 0.0
    %93 = vmatpush1.msra.mxu0 0.0
    %94 = vmatprep.subr.mxu0 0.0
    %95 = vmatpush1.msra.mxu0 0.0
    %96 = vmatprep.subr.mxu0 0.0
    %97 = vmatpush1.msra.mxu0 0.0
    %98 = vmatprep.subr.mxu0 0.0
    %99 = vmatpush1.msra.mxu0 %v66
    %100 = vmatprep.subr.mxu0 0.0
    %101 = vmatpush2.msra.mxu0 0.0
    %102 = vmatprep.subr.mxu0 0.0
    %103 = vmatpush2.msra.mxu0 0.0
    %104 = vmatprep.subr.mxu0 0.0
    %105 = vmatpush2.msra.mxu0 0.0
    %106 = vmatprep.subr.mxu0 0.0
    %107 = vmatpush2.msra.mxu0 0.0
    %108 = vmatprep.subr.mxu0 0.0
    %109 = vmatpush2.msra.mxu0 0.0
    %110 = vmatprep.subr.mxu0 0.0
    %111 = vmatpush2.msra.mxu0 0.0
    %112 = vmatprep.subr.mxu0 0.0
    %113 = vmatpush2.msra.mxu0 0.0
    %114 = vmatprep.subr.mxu0 0.0
    %115 = vmatpush2.msra.mxu0 0.0
    %116 = vmatprep.subr.mxu0 0.0
    %117 = vmatpush2.msra.mxu0 0.0
    %118 = vmatprep.subr.mxu0 0.0
    %119 = vmatpush2.msra.mxu0 0.0
    %120 = vmatprep.subr.mxu0 0.0
    %121 = vmatpush2.msra.mxu0 0.0
    %122 = vmatprep.subr.mxu0 0.0
    %123 = vmatpush2.msra.mxu0 0.0
    %124 = vmatprep.subr.mxu0 0.0
    %125 = vmatpush2.msra.mxu0 0.0
    %126 = vmatprep.subr.mxu0 0.0
    %127 = vmatpush2.msra.mxu0 0.0
    %128 = vmatprep.subr.mxu0 0.0
    %129 = vmatpush2.msra.mxu0 0.0
    %130 = vmatprep.subr.mxu0 0.0
    %131 = vmatpush2.msra.mxu0 0.0
    %132 = vmatprep.mubr.f32.mxu0 0.0
    %133 = vmatmul.mubr.f32.gmra.mxu0 %v59
    %v134 = vpop.f32.mrf.mxu0
    %v135 = vadd.f32 %v55, %v134
    %v136 = vpop.f32.mrf.mxu0
    %137 = vmatprep.mubr.f32.mxu0 0.0
    %138 = vmatmul.mubr.f32.gmra.mxu0 %v62
    %v139 = vpop.f32.mrf.mxu0
    %v140 = vadd.f32 %v55, %v139
    %v141 = vpop.f32.mrf.mxu0
    %142 = vdwg.mxu0
    %v143 = vmul.f32 %v135, 5.656854
    %v144 = vmul.f32 %v140, 5.656854
    %v145 = vld [vmem:[%s2] sm:$0xff]
    %v146 = vld [vmem:[%s2 + $0x8] sm:$0xff]
    %v147 = vadd.f32 %v143, %v145
    %v148 = vadd.f32 %v144, %v146
    %v149 = vld [vmem:[%s4] sm:$0xff]
    %v150 = vld [vmem:[%s4 + $0x8] sm:$0xff]
    %v151 = vld [vmem:[%s7] sm:$0xff]
    %v152 = vld [vmem:[%s7 + $0x8] sm:$0xff]
    %v153 = vld [vmem:[%s7 + $0x28] sm:$0xff]
    %v154 = vld [vmem:[%s7 + $0x30] sm:$0xff]
    %v155 = vld [vmem:[%s7 + $0x50] sm:$0xff]
    %v156 = vld [vmem:[%s7 + $0x58] sm:$0xff]
    %v157 = vld [vmem:[%s7 + $0x78] sm:$0xff]
    %v158 = vld [vmem:[%s7 + $0x80] sm:$0xff]
    %v159 = vld [vmem:[%s8] sm:$0x3]
    %v161 = vlaneseq
    %v162 = vshrl.u32 %v161, 7
    %v163 = vsub.s32 0, %v162
    %v164 = vrot.slane %v159, %v163
    %v165 = vlaneseq
    %v166 = vshrl.u32 %v165, 7
    %v167 = vsub.s32 1, %v166
    %v168 = vrot.slane %v159, %v167
    %177 = vrot.lane.b32.xlu0 %v151, 64
    %v178 = vpop.permute.xlu0 %177
    %179 = vrot.lane.b32.xlu0 %v152, 64
    %v180 = vpop.permute.xlu0 %179
    %181 = vrot.lane.b32.xlu0 %v153, 64
    %v182 = vpop.permute.xlu0 %181
    %183 = vrot.lane.b32.xlu0 %v154, 64
    %v184 = vpop.permute.xlu0 %183
    %185 = vrot.lane.b32.xlu0 %v155, 64
    %v186 = vpop.permute.xlu0 %185
    %187 = vrot.lane.b32.xlu0 %v156, 64
    %v188 = vpop.permute.xlu0 %187
    %189 = vrot.lane.b32.xlu0 %v157, 64
    %v190 = vpop.permute.xlu0 %189
    %191 = vrot.lane.b32.xlu0 %v158, 64
    %v192 = vpop.permute.xlu0 %191
    %vm193 = vcmask 523264
    %v194 = vsel %vm193, %v178, %v180
    %v195 = vsel %vm193, %v182, %v184
    %v196 = vsel %vm193, %v186, %v188
    %v197 = vsel %vm193, %v190, %v192
    %202 = vrot.lane.b32.xlu0 %v164, 64
    %v203 = vpop.permute.xlu0 %202
    %204 = vrot.lane.b32.xlu0 %v168, 64
    %v205 = vpop.permute.xlu0 %204
    %v206 = vsel %vm193, %v203, %v205
    %vm208 = vcmask 261120
    %v210 = vsel %vm208, %v147, 0
    %v213 = vsel %vm208, %v148, 0
    %215 = vmatprep.subr.mxu0 0.0
    %216 = vmatpush1.msra.mxu0 0.0
    %217 = vmatprep.subr.mxu0 0.0
    %218 = vmatpush1.msra.mxu0 0.0
    %219 = vmatprep.subr.mxu0 0.0
    %220 = vmatpush1.msra.mxu0 0.0
    %221 = vmatprep.subr.mxu0 0.0
    %222 = vmatpush1.msra.mxu0 0.0
    %223 = vmatprep.subr.mxu0 0.0
    %224 = vmatpush1.msra.mxu0 0.0
    %225 = vmatprep.subr.mxu0 0.0
    %226 = vmatpush1.msra.mxu0 0.0
    %227 = vmatprep.subr.mxu0 0.0
    %228 = vmatpush1.msra.mxu0 0.0
    %229 = vmatprep.subr.mxu0 0.0
    %230 = vmatpush1.msra.mxu0 0.0
    %231 = vmatprep.subr.mxu0 0.0
    %232 = vmatpush1.msra.mxu0 0.0
    %233 = vmatprep.subr.mxu0 0.0
    %234 = vmatpush1.msra.mxu0 0.0
    %235 = vmatprep.subr.mxu0 0.0
    %236 = vmatpush1.msra.mxu0 0.0
    %237 = vmatprep.subr.mxu0 0.0
    %238 = vmatpush1.msra.mxu0 0.0
    %239 = vmatprep.subr.mxu0 0.0
    %240 = vmatpush1.msra.mxu0 %v197
    %241 = vmatprep.subr.mxu0 0.0
    %242 = vmatpush1.msra.mxu0 %v196
    %243 = vmatprep.subr.mxu0 0.0
    %244 = vmatpush1.msra.mxu0 %v195
    %245 = vmatprep.subr.mxu0 0.0
    %246 = vmatpush1.msra.mxu0 %v194
    %247 = vmatprep.subr.mxu0 0.0
    %248 = vmatpush2.msra.mxu0 0.0
    %249 = vmatprep.subr.mxu0 0.0
    %250 = vmatpush2.msra.mxu0 0.0
    %251 = vmatprep.subr.mxu0 0.0
    %252 = vmatpush2.msra.mxu0 0.0
    %253 = vmatprep.subr.mxu0 0.0
    %254 = vmatpush2.msra.mxu0 0.0
    %255 = vmatprep.subr.mxu0 0.0
    %256 = vmatpush2.msra.mxu0 0.0
    %257 = vmatprep.subr.mxu0 0.0
    %258 = vmatpush2.msra.mxu0 0.0
    %259 = vmatprep.subr.mxu0 0.0
    %260 = vmatpush2.msra.mxu0 0.0
    %261 = vmatprep.subr.mxu0 0.0
    %262 = vmatpush2.msra.mxu0 0.0
    %263 = vmatprep.subr.mxu0 0.0
    %264 = vmatpush2.msra.mxu0 0.0
    %265 = vmatprep.subr.mxu0 0.0
    %266 = vmatpush2.msra.mxu0 0.0
    %267 = vmatprep.subr.mxu0 0.0
    %268 = vmatpush2.msra.mxu0 0.0
    %269 = vmatprep.subr.mxu0 0.0
    %270 = vmatpush2.msra.mxu0 0.0
    %271 = vmatprep.subr.mxu0 0.0
    %272 = vmatpush2.msra.mxu0 0.0
    %273 = vmatprep.subr.mxu0 0.0
    %274 = vmatpush2.msra.mxu0 0.0
    %275 = vmatprep.subr.mxu0 0.0
    %276 = vmatpush2.msra.mxu0 0.0
    %277 = vmatprep.subr.mxu0 0.0
    %278 = vmatpush2.msra.mxu0 0.0
    %279 = vmatprep.mubr.f32.mxu0 0.0
    %280 = vmatmul.mubr.f32.gmra.mxu0 %v210
    %v281 = vpop.f32.mrf.mxu0
    %v282 = vadd.f32 %v206, %v281
    %v283 = vpop.f32.mrf.mxu0
    %284 = vmatprep.mubr.f32.mxu0 0.0
    %285 = vmatmul.mubr.f32.gmra.mxu0 %v213
    %v286 = vpop.f32.mrf.mxu0
    %v287 = vadd.f32 %v206, %v286
    %v288 = vpop.f32.mrf.mxu0
    %289 = vdwg.mxu0
    %292 = vrot.lane.b32.xlu0 %v282, 96
    %v293 = vpop.permute.xlu0 %292
    %294 = vrot.lane.b32.xlu0 %v287, 96
    %v295 = vpop.permute.xlu0 %294
    %vm296 = vcmask 64512
    %v297 = vsel %vm296, %v282, 0
    %v299 = vsel %vm296, %v287, 0
    %v301 = vsel %vm296, %v293, 0
    %v303 = vsel %vm296, %v295, 0
    %305 = vmatprep.subr.mxu0 0.0
    %306 = vmatpush1.xpose.msra.mxu0 0.0
    %307 = vmatprep.subr.mxu0 0.0
    %308 = vmatpush1.xpose.msra.mxu0 0.0
    %309 = vmatprep.subr.mxu0 0.0
    %310 = vmatpush1.xpose.msra.mxu0 0.0
    %311 = vmatprep.subr.mxu0 0.0
    %312 = vmatpush1.xpose.msra.mxu0 0.0
    %313 = vmatprep.subr.mxu0 0.0
    %314 = vmatpush1.xpose.msra.mxu0 0.0
    %315 = vmatprep.subr.mxu0 0.0
    %316 = vmatpush1.xpose.msra.mxu0 0.0
    %317 = vmatprep.subr.mxu0 0.0
    %318 = vmatpush1.xpose.msra.mxu0 0.0
    %319 = vmatprep.subr.mxu0 0.0
    %320 = vmatpush1.xpose.msra.mxu0 0.0
    %321 = vmatprep.subr.mxu0 0.0
    %322 = vmatpush1.xpose.msra.mxu0 0.0
    %323 = vmatprep.subr.mxu0 0.0
    %324 = vmatpush1.xpose.msra.mxu0 0.0
    %325 = vmatprep.subr.mxu0 0.0
    %326 = vmatpush1.xpose.msra.mxu0 0.0
    %327 = vmatprep.subr.mxu0 0.0
    %328 = vmatpush1.xpose.msra.mxu0 0.0
    %329 = vmatprep.subr.mxu0 0.0
    %330 = vmatpush1.xpose.msra.mxu0 0.0
    %331 = vmatprep.subr.mxu0 0.0
    %332 = vmatpush1.xpose.msra.mxu0 0.0
    %333 = vmatprep.subr.mxu0 0.0
    %334 = vmatpush1.xpose.msra.mxu0 %v303
    %335 = vmatprep.subr.mxu0 0.0
    %336 = vmatpush1.xpose.msra.mxu0 %v301
    %337 = vmatprep.subr.mxu0 0.0
    %338 = vmatpush2.xpose.msra.mxu0 0.0
    %339 = vmatprep.subr.mxu0 0.0
    %340 = vmatpush2.xpose.msra.mxu0 0.0
    %341 = vmatprep.subr.mxu0 0.0
    %342 = vmatpush2.xpose.msra.mxu0 0.0
    %343 = vmatprep.subr.mxu0 0.0
    %344 = vmatpush2.xpose.msra.mxu0 0.0
    %345 = vmatprep.subr.mxu0 0.0
    %346 = vmatpush2.xpose.msra.mxu0 0.0
    %347 = vmatprep.subr.mxu0 0.0
    %348 = vmatpush2.xpose.msra.mxu0 0.0
    %349 = vmatprep.subr.mxu0 0.0
    %350 = vmatpush2.xpose.msra.mxu0 0.0
    %351 = vmatprep.subr.mxu0 0.0
    %352 = vmatpush2.xpose.msra.mxu0 0.0
    %353 = vmatprep.subr.mxu0 0.0
    %354 = vmatpush2.xpose.msra.mxu0 0.0
    %355 = vmatprep.subr.mxu0 0.0
    %356 = vmatpush2.xpose.msra.mxu0 0.0
    %357 = vmatprep.subr.mxu0 0.0
    %358 = vmatpush2.xpose.msra.mxu0 0.0
    %359 = vmatprep.subr.mxu0 0.0
    %360 = vmatpush2.xpose.msra.mxu0 0.0
    %361 = vmatprep.subr.mxu0 0.0
    %362 = vmatpush2.xpose.msra.mxu0 0.0
    %363 = vmatprep.subr.mxu0 0.0
    %364 = vmatpush2.xpose.msra.mxu0 0.0
    %365 = vmatprep.subr.mxu0 0.0
    %366 = vmatpush2.xpose.msra.mxu0 0.0
    %367 = vmatprep.subr.mxu0 0.0
    %368 = vmatpush2.xpose.msra.mxu0 0.0
    %369 = vmatprep.mubr.f32.mxu0 0.0
    %370 = vmatmul.mubr.f32.gmra.mxu0 %v297
    %v371 = vpop.f32.mrf.mxu0
    %v372 = vadd.f32 0.0, %v371
    %v373 = vpop.f32.mrf.mxu0
    %374 = vmatprep.mubr.f32.mxu0 0.0
    %375 = vmatmul.mubr.f32.gmra.mxu0 %v299
    %v376 = vpop.f32.mrf.mxu0
    %v377 = vadd.f32 0.0, %v376
    %v378 = vpop.f32.mrf.mxu0
    %379 = vdwg.mxu0
    %v380 = vmul.f32 %v372, 0.35355338
    %v381 = vmul.f32 %v377, 0.35355338
    %v382 = vadd.f32 %v380, %v149
    %v383 = vadd.f32 %v381, %v150
    %vm384 = vcmask 130048
    %v385 = vsel %vm384, %v382, -inf
    %386 = vmax.xlane.f32.xlu0 %v385
    %v387 = vpop.xlane.xlu0 %386
    %v388 = vsel %vm384, %v383, -inf
    %389 = vmax.xlane.f32.xlu0 %v388
    %v390 = vpop.xlane.xlu0 %389
    %v391 = vsub.f32 %v382, %v387
    %v392 = vsub.f32 %v383, %v390
    %v393 = vmul.f32 %v391, 1.442695
    %v394 = vpow.pop %v393
    %v395 = vmul.f32 %v392, 1.442695
    %v396 = vpow.pop %v395
    %v397 = vsel %vm384, %v394, 0.0
    %398 = vadd.xlane.f32.xlu0 %v397
    %v399 = vpop.xlane.xlu0 %398
    %v400 = vsel %vm384, %v396, 0.0
    %401 = vadd.xlane.f32.xlu0 %v400
    %v402 = vpop.xlane.xlu0 %401
    %v403 = vrcp.pop %v399
    %v404 = vmul.f32 %v394, %v403
    %v405 = vrcp.pop %v402
    %v406 = vmul.f32 %v396, %v405
    %407 = vrot.lane.b32.xlu0 %v282, 64
    %v408 = vpop.permute.xlu0 %407
    %409 = vrot.lane.b32.xlu0 %v287, 64
    %v410 = vpop.permute.xlu0 %409
    %v414 = vsel %vm384, %v404, 0
    %v417 = vsel %vm384, %v406, 0
    %419 = vmatprep.subr.mxu0 0.0
    %420 = vmatpush1.msra.mxu0 0.0
    %421 = vmatprep.subr.mxu0 0.0
    %422 = vmatpush1.msra.mxu0 0.0
    %423 = vmatprep.subr.mxu0 0.0
    %424 = vmatpush1.msra.mxu0 0.0
    %425 = vmatprep.subr.mxu0 0.0
    %426 = vmatpush1.msra.mxu0 0.0
    %427 = vmatprep.subr.mxu0 0.0
    %428 = vmatpush1.msra.mxu0 0.0
    %429 = vmatprep.subr.mxu0 0.0
    %430 = vmatpush1.msra.mxu0 0.0
    %431 = vmatprep.subr.mxu0 0.0
    %432 = vmatpush1.msra.mxu0 0.0
    %433 = vmatprep.subr.mxu0 0.0
    %434 = vmatpush1.msra.mxu0 0.0
    %435 = vmatprep.subr.mxu0 0.0
    %436 = vmatpush1.msra.mxu0 0.0
    %437 = vmatprep.subr.mxu0 0.0
    %438 = vmatpush1.msra.mxu0 0.0
    %439 = vmatprep.subr.mxu0 0.0
    %440 = vmatpush1.msra.mxu0 0.0
    %441 = vmatprep.subr.mxu0 0.0
    %442 = vmatpush1.msra.mxu0 0.0
    %443 = vmatprep.subr.mxu0 0.0
    %444 = vmatpush1.msra.mxu0 0.0
    %445 = vmatprep.subr.mxu0 0.0
    %446 = vmatpush1.msra.mxu0 0.0
    %447 = vmatprep.subr.mxu0 0.0
    %448 = vmatpush1.msra.mxu0 %v410
    %449 = vmatprep.subr.mxu0 0.0
    %450 = vmatpush1.msra.mxu0 %v408
    %451 = vmatprep.subr.mxu0 0.0
    %452 = vmatpush2.msra.mxu0 0.0
    %453 = vmatprep.subr.mxu0 0.0
    %454 = vmatpush2.msra.mxu0 0.0
    %455 = vmatprep.subr.mxu0 0.0
    %456 = vmatpush2.msra.mxu0 0.0
    %457 = vmatprep.subr.mxu0 0.0
    %458 = vmatpush2.msra.mxu0 0.0
    %459 = vmatprep.subr.mxu0 0.0
    %460 = vmatpush2.msra.mxu0 0.0
    %461 = vmatprep.subr.mxu0 0.0
    %462 = vmatpush2.msra.mxu0 0.0
    %463 = vmatprep.subr.mxu0 0.0
    %464 = vmatpush2.msra.mxu0 0.0
    %465 = vmatprep.subr.mxu0 0.0
    %466 = vmatpush2.msra.mxu0 0.0
    %467 = vmatprep.subr.mxu0 0.0
    %468 = vmatpush2.msra.mxu0 0.0
    %469 = vmatprep.subr.mxu0 0.0
    %470 = vmatpush2.msra.mxu0 0.0
    %471 = vmatprep.subr.mxu0 0.0
    %472 = vmatpush2.msra.mxu0 0.0
    %473 = vmatprep.subr.mxu0 0.0
    %474 = vmatpush2.msra.mxu0 0.0
    %475 = vmatprep.subr.mxu0 0.0
    %476 = vmatpush2.msra.mxu0 0.0
    %477 = vmatprep.subr.mxu0 0.0
    %478 = vmatpush2.msra.mxu0 0.0
    %479 = vmatprep.subr.mxu0 0.0
    %480 = vmatpush2.msra.mxu0 0.0
    %481 = vmatprep.subr.mxu0 0.0
    %482 = vmatpush2.msra.mxu0 0.0
    %483 = vmatprep.mubr.f32.mxu0 0.0
    %484 = vmatmul.mubr.f32.gmra.mxu0 %v414
    %v485 = vpop.f32.mrf.mxu0
    %v486 = vadd.f32 0.0, %v485
    %v487 = vpop.f32.mrf.mxu0
    %488 = vmatprep.mubr.f32.mxu0 0.0
    %489 = vmatmul.mubr.f32.gmra.mxu0 %v417
    %v490 = vpop.f32.mrf.mxu0
    %v491 = vadd.f32 0.0, %v490
    %v492 = vpop.f32.mrf.mxu0
    %493 = vdwg.mxu0
    %494 = vrot.lane.b32.xlu0 %v282, 120
    %v495 = vpop.permute.xlu0 %494
    %496 = vrot.lane.b32.xlu0 %v287, 120
    %v497 = vpop.permute.xlu0 %496
    %498 = vrot.lane.b32.xlu0 %v282, 88
    %v499 = vpop.permute.xlu0 %498
    %500 = vrot.lane.b32.xlu0 %v287, 88
    %v501 = vpop.permute.xlu0 %500
    %v502 = vsel %vm296, %v495, 0
    %v504 = vsel %vm296, %v497, 0
    %v506 = vsel %vm296, %v499, 0
    %v508 = vsel %vm296, %v501, 0
    %510 = vmatprep.subr.mxu0 0.0
    %511 = vmatpush1.xpose.msra.mxu0 0.0
    %512 = vmatprep.subr.mxu0 0.0
    %513 = vmatpush1.xpose.msra.mxu0 0.0
    %514 = vmatprep.subr.mxu0 0.0
    %515 = vmatpush1.xpose.msra.mxu0 0.0
    %516 = vmatprep.subr.mxu0 0.0
    %517 = vmatpush1.xpose.msra.mxu0 0.0
    %518 = vmatprep.subr.mxu0 0.0
    %519 = vmatpush1.xpose.msra.mxu0 0.0
    %520 = vmatprep.subr.mxu0 0.0
    %521 = vmatpush1.xpose.msra.mxu0 0.0
    %522 = vmatprep.subr.mxu0 0.0
    %523 = vmatpush1.xpose.msra.mxu0 0.0
    %524 = vmatprep.subr.mxu0 0.0
    %525 = vmatpush1.xpose.msra.mxu0 0.0
    %526 = vmatprep.subr.mxu0 0.0
    %527 = vmatpush1.xpose.msra.mxu0 0.0
    %528 = vmatprep.subr.mxu0 0.0
    %529 = vmatpush1.xpose.msra.mxu0 0.0
    %530 = vmatprep.subr.mxu0 0.0
    %531 = vmatpush1.xpose.msra.mxu0 0.0
    %532 = vmatprep.subr.mxu0 0.0
    %533 = vmatpush1.xpose.msra.mxu0 0.0
    %534 = vmatprep.subr.mxu0 0.0
    %535 = vmatpush1.xpose.msra.mxu0 0.0
    %536 = vmatprep.subr.mxu0 0.0
    %537 = vmatpush1.xpose.msra.mxu0 0.0
    %538 = vmatprep.subr.mxu0 0.0
    %539 = vmatpush1.xpose.msra.mxu0 %v508
    %540 = vmatprep.subr.mxu0 0.0
    %541 = vmatpush1.xpose.msra.mxu0 %v506
    %542 = vmatprep.subr.mxu0 0.0
    %543 = vmatpush2.xpose.msra.mxu0 0.0
    %544 = vmatprep.subr.mxu0 0.0
    %545 = vmatpush2.xpose.msra.mxu0 0.0
    %546 = vmatprep.subr.mxu0 0.0
    %547 = vmatpush2.xpose.msra.mxu0 0.0
    %548 = vmatprep.subr.mxu0 0.0
    %549 = vmatpush2.xpose.msra.mxu0 0.0
    %550 = vmatprep.subr.mxu0 0.0
    %551 = vmatpush2.xpose.msra.mxu0 0.0
    %552 = vmatprep.subr.mxu0 0.0
    %553 = vmatpush2.xpose.msra.mxu0 0.0
    %554 = vmatprep.subr.mxu0 0.0
    %555 = vmatpush2.xpose.msra.mxu0 0.0
    %556 = vmatprep.subr.mxu0 0.0
    %557 = vmatpush2.xpose.msra.mxu0 0.0
    %558 = vmatprep.subr.mxu0 0.0
    %559 = vmatpush2.xpose.msra.mxu0 0.0
    %560 = vmatprep.subr.mxu0 0.0
    %561 = vmatpush2.xpose.msra.mxu0 0.0
    %562 = vmatprep.subr.mxu0 0.0
    %563 = vmatpush2.xpose.msra.mxu0 0.0
    %564 = vmatprep.subr.mxu0 0.0
    %565 = vmatpush2.xpose.msra.mxu0 0.0
    %566 = vmatprep.subr.mxu0 0.0
    %567 = vmatpush2.xpose.msra.mxu0 0.0
    %568 = vmatprep.subr.mxu0 0.0
    %569 = vmatpush2.xpose.msra.mxu0 0.0
    %570 = vmatprep.subr.mxu0 0.0
    %571 = vmatpush2.xpose.msra.mxu0 0.0
    %572 = vmatprep.subr.mxu0 0.0
    %573 = vmatpush2.xpose.msra.mxu0 0.0
    %574 = vmatprep.mubr.f32.mxu0 0.0
    %575 = vmatmul.mubr.f32.gmra.mxu0 %v502
    %v576 = vpop.f32.mrf.mxu0
    %v577 = vadd.f32 0.0, %v576
    %v578 = vpop.f32.mrf.mxu0
    %579 = vmatprep.mubr.f32.mxu0 0.0
    %580 = vmatmul.mubr.f32.gmra.mxu0 %v504
    %v581 = vpop.f32.mrf.mxu0
    %v582 = vadd.f32 0.0, %v581
    %v583 = vpop.f32.mrf.mxu0
    %584 = vdwg.mxu0
    %v585 = vmul.f32 %v577, 0.35355338
    %v586 = vmul.f32 %v582, 0.35355338
    %v587 = vadd.f32 %v585, %v149
    %v588 = vadd.f32 %v586, %v150
    %v589 = vsel %vm384, %v587, -inf
    %590 = vmax.xlane.f32.xlu0 %v589
    %v591 = vpop.xlane.xlu0 %590
    %v592 = vsel %vm384, %v588, -inf
    %593 = vmax.xlane.f32.xlu0 %v592
    %v594 = vpop.xlane.xlu0 %593
    %v595 = vsub.f32 %v587, %v591
    %v596 = vsub.f32 %v588, %v594
    %v597 = vmul.f32 %v595, 1.442695
    %v598 = vpow.pop %v597
    %v599 = vmul.f32 %v596, 1.442695
    %v600 = vpow.pop %v599
    %v601 = vsel %vm384, %v598, 0.0
    %602 = vadd.xlane.f32.xlu0 %v601
    %v603 = vpop.xlane.xlu0 %602
    %v604 = vsel %vm384, %v600, 0.0
    %605 = vadd.xlane.f32.xlu0 %v604
    %v606 = vpop.xlane.xlu0 %605
    %v607 = vrcp.pop %v603
    %v608 = vmul.f32 %v598, %v607
    %v609 = vrcp.pop %v606
    %v610 = vmul.f32 %v600, %v609
    %611 = vrot.lane.b32.xlu0 %v282, 56
    %v612 = vpop.permute.xlu0 %611
    %613 = vrot.lane.b32.xlu0 %v287, 56
    %v614 = vpop.permute.xlu0 %613
    %v618 = vsel %vm384, %v608, 0
    %v621 = vsel %vm384, %v610, 0
    %623 = vmatprep.subr.mxu0 0.0
    %624 = vmatpush1.msra.mxu0 0.0
    %625 = vmatprep.subr.mxu0 0.0
    %626 = vmatpush1.msra.mxu0 0.0
    %627 = vmatprep.subr.mxu0 0.0
    %628 = vmatpush1.msra.mxu0 0.0
    %629 = vmatprep.subr.mxu0 0.0
    %630 = vmatpush1.msra.mxu0 0.0
    %631 = vmatprep.subr.mxu0 0.0
    %632 = vmatpush1.msra.mxu0 0.0
    %633 = vmatprep.subr.mxu0 0.0
    %634 = vmatpush1.msra.mxu0 0.0
    %635 = vmatprep.subr.mxu0 0.0
    %636 = vmatpush1.msra.mxu0 0.0
    %637 = vmatprep.subr.mxu0 0.0
    %638 = vmatpush1.msra.mxu0 0.0
    %639 = vmatprep.subr.mxu0 0.0
    %640 = vmatpush1.msra.mxu0 0.0
    %641 = vmatprep.subr.mxu0 0.0
    %642 = vmatpush1.msra.mxu0 0.0
    %643 = vmatprep.subr.mxu0 0.0
    %644 = vmatpush1.msra.mxu0 0.0
    %645 = vmatprep.subr.mxu0 0.0
    %646 = vmatpush1.msra.mxu0 0.0
    %647 = vmatprep.subr.mxu0 0.0
    %648 = vmatpush1.msra.mxu0 0.0
    %649 = vmatprep.subr.mxu0 0.0
    %650 = vmatpush1.msra.mxu0 0.0
    %651 = vmatprep.subr.mxu0 0.0
    %652 = vmatpush1.msra.mxu0 %v614
    %653 = vmatprep.subr.mxu0 0.0
    %654 = vmatpush1.msra.mxu0 %v612
    %655 = vmatprep.subr.mxu0 0.0
    %656 = vmatpush2.msra.mxu0 0.0
    %657 = vmatprep.subr.mxu0 0.0
    %658 = vmatpush2.msra.mxu0 0.0
    %659 = vmatprep.subr.mxu0 0.0
    %660 = vmatpush2.msra.mxu0 0.0
    %661 = vmatprep.subr.mxu0 0.0
    %662 = vmatpush2.msra.mxu0 0.0
    %663 = vmatprep.subr.mxu0 0.0
    %664 = vmatpush2.msra.mxu0 0.0
    %665 = vmatprep.subr.mxu0 0.0
    %666 = vmatpush2.msra.mxu0 0.0
    %667 = vmatprep.subr.mxu0 0.0
    %668 = vmatpush2.msra.mxu0 0.0
    %669 = vmatprep.subr.mxu0 0.0
    %670 = vmatpush2.msra.mxu0 0.0
    %671 = vmatprep.subr.mxu0 0.0
    %672 = vmatpush2.msra.mxu0 0.0
    %673 = vmatprep.subr.mxu0 0.0
    %674 = vmatpush2.msra.mxu0 0.0
    %675 = vmatprep.subr.mxu0 0.0
    %676 = vmatpush2.msra.mxu0 0.0
    %677 = vmatprep.subr.mxu0 0.0
    %678 = vmatpush2.msra.mxu0 0.0
    %679 = vmatprep.subr.mxu0 0.0
    %680 = vmatpush2.msra.mxu0 0.0
    %681 = vmatprep.subr.mxu0 0.0
    %682 = vmatpush2.msra.mxu0 0.0
    %683 = vmatprep.subr.mxu0 0.0
    %684 = vmatpush2.msra.mxu0 0.0
    %685 = vmatprep.subr.mxu0 0.0
    %686 = vmatpush2.msra.mxu0 0.0
    %687 = vmatprep.mubr.f32.mxu0 0.0
    %688 = vmatmul.mubr.f32.gmra.mxu0 %v618
    %v689 = vpop.f32.mrf.mxu0
    %v690 = vadd.f32 0.0, %v689
    %v691 = vpop.f32.mrf.mxu0
    %692 = vmatprep.mubr.f32.mxu0 0.0
    %693 = vmatmul.mubr.f32.gmra.mxu0 %v621
    %v694 = vpop.f32.mrf.mxu0
    %v695 = vadd.f32 0.0, %v694
    %v696 = vpop.f32.mrf.mxu0
    %697 = vdwg.mxu0
    %698 = vrot.lane.b32.xlu0 %v282, 112
    %v699 = vpop.permute.xlu0 %698
    %700 = vrot.lane.b32.xlu0 %v287, 112
    %v701 = vpop.permute.xlu0 %700
    %702 = vrot.lane.b32.xlu0 %v282, 80
    %v703 = vpop.permute.xlu0 %702
    %704 = vrot.lane.b32.xlu0 %v287, 80
    %v705 = vpop.permute.xlu0 %704
    %v706 = vsel %vm296, %v699, 0
    %v708 = vsel %vm296, %v701, 0
    %v710 = vsel %vm296, %v703, 0
    %v712 = vsel %vm296, %v705, 0
    %714 = vmatprep.subr.mxu0 0.0
    %715 = vmatpush1.xpose.msra.mxu0 0.0
    %716 = vmatprep.subr.mxu0 0.0
    %717 = vmatpush1.xpose.msra.mxu0 0.0
    %718 = vmatprep.subr.mxu0 0.0
    %719 = vmatpush1.xpose.msra.mxu0 0.0
    %720 = vmatprep.subr.mxu0 0.0
    %721 = vmatpush1.xpose.msra.mxu0 0.0
    %722 = vmatprep.subr.mxu0 0.0
    %723 = vmatpush1.xpose.msra.mxu0 0.0
    %724 = vmatprep.subr.mxu0 0.0
    %725 = vmatpush1.xpose.msra.mxu0 0.0
    %726 = vmatprep.subr.mxu0 0.0
    %727 = vmatpush1.xpose.msra.mxu0 0.0
    %728 = vmatprep.subr.mxu0 0.0
    %729 = vmatpush1.xpose.msra.mxu0 0.0
    %730 = vmatprep.subr.mxu0 0.0
    %731 = vmatpush1.xpose.msra.mxu0 0.0
    %732 = vmatprep.subr.mxu0 0.0
    %733 = vmatpush1.xpose.msra.mxu0 0.0
    %734 = vmatprep.subr.mxu0 0.0
    %735 = vmatpush1.xpose.msra.mxu0 0.0
    %736 = vmatprep.subr.mxu0 0.0
    %737 = vmatpush1.xpose.msra.mxu0 0.0
    %738 = vmatprep.subr.mxu0 0.0
    %739 = vmatpush1.xpose.msra.mxu0 0.0
    %740 = vmatprep.subr.mxu0 0.0
    %741 = vmatpush1.xpose.msra.mxu0 0.0
    %742 = vmatprep.subr.mxu0 0.0
    %743 = vmatpush1.xpose.msra.mxu0 %v712
    %744 = vmatprep.subr.mxu0 0.0
    %745 = vmatpush1.xpose.msra.mxu0 %v710
    %746 = vmatprep.subr.mxu0 0.0
    %747 = vmatpush2.xpose.msra.mxu0 0.0
    %748 = vmatprep.subr.mxu0 0.0
    %749 = vmatpush2.xpose.msra.mxu0 0.0
    %750 = vmatprep.subr.mxu0 0.0
    %751 = vmatpush2.xpose.msra.mxu0 0.0
    %752 = vmatprep.subr.mxu0 0.0
    %753 = vmatpush2.xpose.msra.mxu0 0.0
    %754 = vmatprep.subr.mxu0 0.0
    %755 = vmatpush2.xpose.msra.mxu0 0.0
    %756 = vmatprep.subr.mxu0 0.0
    %757 = vmatpush2.xpose.msra.mxu0 0.0
    %758 = vmatprep.subr.mxu0 0.0
    %759 = vmatpush2.xpose.msra.mxu0 0.0
    %760 = vmatprep.subr.mxu0 0.0
    %761 = vmatpush2.xpose.msra.mxu0 0.0
    %762 = vmatprep.subr.mxu0 0.0
    %763 = vmatpush2.xpose.msra.mxu0 0.0
    %764 = vmatprep.subr.mxu0 0.0
    %765 = vmatpush2.xpose.msra.mxu0 0.0
    %766 = vmatprep.subr.mxu0 0.0
    %767 = vmatpush2.xpose.msra.mxu0 0.0
    %768 = vmatprep.subr.mxu0 0.0
    %769 = vmatpush2.xpose.msra.mxu0 0.0
    %770 = vmatprep.subr.mxu0 0.0
    %771 = vmatpush2.xpose.msra.mxu0 0.0
    %772 = vmatprep.subr.mxu0 0.0
    %773 = vmatpush2.xpose.msra.mxu0 0.0
    %774 = vmatprep.subr.mxu0 0.0
    %775 = vmatpush2.xpose.msra.mxu0 0.0
    %776 = vmatprep.subr.mxu0 0.0
    %777 = vmatpush2.xpose.msra.mxu0 0.0
    %778 = vmatprep.mubr.f32.mxu0 0.0
    %779 = vmatmul.mubr.f32.gmra.mxu0 %v706
    %v780 = vpop.f32.mrf.mxu0
    %v781 = vadd.f32 0.0, %v780
    %v782 = vpop.f32.mrf.mxu0
    %783 = vmatprep.mubr.f32.mxu0 0.0
    %784 = vmatmul.mubr.f32.gmra.mxu0 %v708
    %v785 = vpop.f32.mrf.mxu0
    %v786 = vadd.f32 0.0, %v785
    %v787 = vpop.f32.mrf.mxu0
    %788 = vdwg.mxu0
    %v789 = vmul.f32 %v781, 0.35355338
    %v790 = vmul.f32 %v786, 0.35355338
    %v791 = vadd.f32 %v789, %v149
    %v792 = vadd.f32 %v790, %v150
    %v793 = vsel %vm384, %v791, -inf
    %794 = vmax.xlane.f32.xlu0 %v793
    %v795 = vpop.xlane.xlu0 %794
    %v796 = vsel %vm384, %v792, -inf
    %797 = vmax.xlane.f32.xlu0 %v796
    %v798 = vpop.xlane.xlu0 %797
    %v799 = vsub.f32 %v791, %v795
    %v800 = vsub.f32 %v792, %v798
    %v801 = vmul.f32 %v799, 1.442695
    %v802 = vpow.pop %v801
    %v803 = vmul.f32 %v800, 1.442695
    %v804 = vpow.pop %v803
    %v805 = vsel %vm384, %v802, 0.0
    %806 = vadd.xlane.f32.xlu0 %v805
    %v807 = vpop.xlane.xlu0 %806
    %v808 = vsel %vm384, %v804, 0.0
    %809 = vadd.xlane.f32.xlu0 %v808
    %v810 = vpop.xlane.xlu0 %809
    %v811 = vrcp.pop %v807
    %v812 = vmul.f32 %v802, %v811
    %v813 = vrcp.pop %v810
    %v814 = vmul.f32 %v804, %v813
    %815 = vrot.lane.b32.xlu0 %v282, 48
    %v816 = vpop.permute.xlu0 %815
    %817 = vrot.lane.b32.xlu0 %v287, 48
    %v818 = vpop.permute.xlu0 %817
    %v822 = vsel %vm384, %v812, 0
    %v825 = vsel %vm384, %v814, 0
    %827 = vmatprep.subr.mxu0 0.0
    %828 = vmatpush1.msra.mxu0 0.0
    %829 = vmatprep.subr.mxu0 0.0
    %830 = vmatpush1.msra.mxu0 0.0
    %831 = vmatprep.subr.mxu0 0.0
    %832 = vmatpush1.msra.mxu0 0.0
    %833 = vmatprep.subr.mxu0 0.0
    %834 = vmatpush1.msra.mxu0 0.0
    %835 = vmatprep.subr.mxu0 0.0
    %836 = vmatpush1.msra.mxu0 0.0
    %837 = vmatprep.subr.mxu0 0.0
    %838 = vmatpush1.msra.mxu0 0.0
    %839 = vmatprep.subr.mxu0 0.0
    %840 = vmatpush1.msra.mxu0 0.0
    %841 = vmatprep.subr.mxu0 0.0
    %842 = vmatpush1.msra.mxu0 0.0
    %843 = vmatprep.subr.mxu0 0.0
    %844 = vmatpush1.msra.mxu0 0.0
    %845 = vmatprep.subr.mxu0 0.0
    %846 = vmatpush1.msra.mxu0 0.0
    %847 = vmatprep.subr.mxu0 0.0
    %848 = vmatpush1.msra.mxu0 0.0
    %849 = vmatprep.subr.mxu0 0.0
    %850 = vmatpush1.msra.mxu0 0.0
    %851 = vmatprep.subr.mxu0 0.0
    %852 = vmatpush1.msra.mxu0 0.0
    %853 = vmatprep.subr.mxu0 0.0
    %854 = vmatpush1.msra.mxu0 0.0
    %855 = vmatprep.subr.mxu0 0.0
    %856 = vmatpush1.msra.mxu0 %v818
    %857 = vmatprep.subr.mxu0 0.0
    %858 = vmatpush1.msra.mxu0 %v816
    %859 = vmatprep.subr.mxu0 0.0
    %860 = vmatpush2.msra.mxu0 0.0
    %861 = vmatprep.subr.mxu0 0.0
    %862 = vmatpush2.msra.mxu0 0.0
    %863 = vmatprep.subr.mxu0 0.0
    %864 = vmatpush2.msra.mxu0 0.0
    %865 = vmatprep.subr.mxu0 0.0
    %866 = vmatpush2.msra.mxu0 0.0
    %867 = vmatprep.subr.mxu0 0.0
    %868 = vmatpush2.msra.mxu0 0.0
    %869 = vmatprep.subr.mxu0 0.0
    %870 = vmatpush2.msra.mxu0 0.0
    %871 = vmatprep.subr.mxu0 0.0
    %872 = vmatpush2.msra.mxu0 0.0
    %873 = vmatprep.subr.mxu0 0.0
    %874 = vmatpush2.msra.mxu0 0.0
    %875 = vmatprep.subr.mxu0 0.0
    %876 = vmatpush2.msra.mxu0 0.0
    %877 = vmatprep.subr.mxu0 0.0
    %878 = vmatpush2.msra.mxu0 0.0
    %879 = vmatprep.subr.mxu0 0.0
    %880 = vmatpush2.msra.mxu0 0.0
    %881 = vmatprep.subr.mxu0 0.0
    %882 = vmatpush2.msra.mxu0 0.0
    %883 = vmatprep.subr.mxu0 0.0
    %884 = vmatpush2.msra.mxu0 0.0
    %885 = vmatprep.subr.mxu0 0.0
    %886 = vmatpush2.msra.mxu0 0.0
    %887 = vmatprep.subr.mxu0 0.0
    %888 = vmatpush2.msra.mxu0 0.0
    %889 = vmatprep.subr.mxu0 0.0
    %890 = vmatpush2.msra.mxu0 0.0
    %891 = vmatprep.mubr.f32.mxu0 0.0
    %892 = vmatmul.mubr.f32.gmra.mxu0 %v822
    %v893 = vpop.f32.mrf.mxu0
    %v894 = vadd.f32 0.0, %v893
    %v895 = vpop.f32.mrf.mxu0
    %896 = vmatprep.mubr.f32.mxu0 0.0
    %897 = vmatmul.mubr.f32.gmra.mxu0 %v825
    %v898 = vpop.f32.mrf.mxu0
    %v899 = vadd.f32 0.0, %v898
    %v900 = vpop.f32.mrf.mxu0
    %901 = vdwg.mxu0
    %902 = vrot.lane.b32.xlu0 %v282, 104
    %v903 = vpop.permute.xlu0 %902
    %904 = vrot.lane.b32.xlu0 %v287, 104
    %v905 = vpop.permute.xlu0 %904
    %906 = vrot.lane.b32.xlu0 %v282, 72
    %v907 = vpop.permute.xlu0 %906
    %908 = vrot.lane.b32.xlu0 %v287, 72
    %v909 = vpop.permute.xlu0 %908
    %v910 = vsel %vm296, %v903, 0
    %v912 = vsel %vm296, %v905, 0
    %v914 = vsel %vm296, %v907, 0
    %v916 = vsel %vm296, %v909, 0
    %918 = vmatprep.subr.mxu0 0.0
    %919 = vmatpush1.xpose.msra.mxu0 0.0
    %920 = vmatprep.subr.mxu0 0.0
    %921 = vmatpush1.xpose.msra.mxu0 0.0
    %922 = vmatprep.subr.mxu0 0.0
    %923 = vmatpush1.xpose.msra.mxu0 0.0
    %924 = vmatprep.subr.mxu0 0.0
    %925 = vmatpush1.xpose.msra.mxu0 0.0
    %926 = vmatprep.subr.mxu0 0.0
    %927 = vmatpush1.xpose.msra.mxu0 0.0
    %928 = vmatprep.subr.mxu0 0.0
    %929 = vmatpush1.xpose.msra.mxu0 0.0
    %930 = vmatprep.subr.mxu0 0.0
    %931 = vmatpush1.xpose.msra.mxu0 0.0
    %932 = vmatprep.subr.mxu0 0.0
    %933 = vmatpush1.xpose.msra.mxu0 0.0
    %934 = vmatprep.subr.mxu0 0.0
    %935 = vmatpush1.xpose.msra.mxu0 0.0
    %936 = vmatprep.subr.mxu0 0.0
    %937 = vmatpush1.xpose.msra.mxu0 0.0
    %938 = vmatprep.subr.mxu0 0.0
    %939 = vmatpush1.xpose.msra.mxu0 0.0
    %940 = vmatprep.subr.mxu0 0.0
    %941 = vmatpush1.xpose.msra.mxu0 0.0
    %942 = vmatprep.subr.mxu0 0.0
    %943 = vmatpush1.xpose.msra.mxu0 0.0
    %944 = vmatprep.subr.mxu0 0.0
    %945 = vmatpush1.xpose.msra.mxu0 0.0
    %946 = vmatprep.subr.mxu0 0.0
    %947 = vmatpush1.xpose.msra.mxu0 %v916
    %948 = vmatprep.subr.mxu0 0.0
    %949 = vmatpush1.xpose.msra.mxu0 %v914
    %950 = vmatprep.subr.mxu0 0.0
    %951 = vmatpush2.xpose.msra.mxu0 0.0
    %952 = vmatprep.subr.mxu0 0.0
    %953 = vmatpush2.xpose.msra.mxu0 0.0
    %954 = vmatprep.subr.mxu0 0.0
    %955 = vmatpush2.xpose.msra.mxu0 0.0
    %956 = vmatprep.subr.mxu0 0.0
    %957 = vmatpush2.xpose.msra.mxu0 0.0
    %958 = vmatprep.subr.mxu0 0.0
    %959 = vmatpush2.xpose.msra.mxu0 0.0
    %960 = vmatprep.subr.mxu0 0.0
    %961 = vmatpush2.xpose.msra.mxu0 0.0
    %962 = vmatprep.subr.mxu0 0.0
    %963 = vmatpush2.xpose.msra.mxu0 0.0
    %964 = vmatprep.subr.mxu0 0.0
    %965 = vmatpush2.xpose.msra.mxu0 0.0
    %966 = vmatprep.subr.mxu0 0.0
    %967 = vmatpush2.xpose.msra.mxu0 0.0
    %968 = vmatprep.subr.mxu0 0.0
    %969 = vmatpush2.xpose.msra.mxu0 0.0
    %970 = vmatprep.subr.mxu0 0.0
    %971 = vmatpush2.xpose.msra.mxu0 0.0
    %972 = vmatprep.subr.mxu0 0.0
    %973 = vmatpush2.xpose.msra.mxu0 0.0
    %974 = vmatprep.subr.mxu0 0.0
    %975 = vmatpush2.xpose.msra.mxu0 0.0
    %976 = vmatprep.subr.mxu0 0.0
    %977 = vmatpush2.xpose.msra.mxu0 0.0
    %978 = vmatprep.subr.mxu0 0.0
    %979 = vmatpush2.xpose.msra.mxu0 0.0
    %980 = vmatprep.subr.mxu0 0.0
    %981 = vmatpush2.xpose.msra.mxu0 0.0
    %982 = vmatprep.mubr.f32.mxu0 0.0
    %983 = vmatmul.mubr.f32.gmra.mxu0 %v910
    %v984 = vpop.f32.mrf.mxu0
    %v985 = vadd.f32 0.0, %v984
    %v986 = vpop.f32.mrf.mxu0
    %987 = vmatprep.mubr.f32.mxu0 0.0
    %988 = vmatmul.mubr.f32.gmra.mxu0 %v912
    %v989 = vpop.f32.mrf.mxu0
    %v990 = vadd.f32 0.0, %v989
    %v991 = vpop.f32.mrf.mxu0
    %992 = vdwg.mxu0
    %v993 = vmul.f32 %v985, 0.35355338
    %v994 = vmul.f32 %v990, 0.35355338
    %v995 = vadd.f32 %v993, %v149
    %v996 = vadd.f32 %v994, %v150
    %v997 = vsel %vm384, %v995, -inf
    %998 = vmax.xlane.f32.xlu0 %v997
    %v999 = vpop.xlane.xlu0 %998
    %v1000 = vsel %vm384, %v996, -inf
    %1001 = vmax.xlane.f32.xlu0 %v1000
    %v1002 = vpop.xlane.xlu0 %1001
    %v1003 = vsub.f32 %v995, %v999
    %v1004 = vsub.f32 %v996, %v1002
    %v1005 = vmul.f32 %v1003, 1.442695
    %v1006 = vpow.pop %v1005
    %v1007 = vmul.f32 %v1004, 1.442695
    %v1008 = vpow.pop %v1007
    %v1009 = vsel %vm384, %v1006, 0.0
    %1010 = vadd.xlane.f32.xlu0 %v1009
    %v1011 = vpop.xlane.xlu0 %1010
    %v1012 = vsel %vm384, %v1008, 0.0
    %1013 = vadd.xlane.f32.xlu0 %v1012
    %v1014 = vpop.xlane.xlu0 %1013
    %v1015 = vrcp.pop %v1011
    %v1016 = vmul.f32 %v1006, %v1015
    %v1017 = vrcp.pop %v1014
    %v1018 = vmul.f32 %v1008, %v1017
    %1019 = vrot.lane.b32.xlu0 %v282, 40
    %v1020 = vpop.permute.xlu0 %1019
    %1021 = vrot.lane.b32.xlu0 %v287, 40
    %v1022 = vpop.permute.xlu0 %1021
    %v1026 = vsel %vm384, %v1016, 0
    %v1029 = vsel %vm384, %v1018, 0
    %1031 = vmatprep.subr.mxu0 0.0
    %1032 = vmatpush1.msra.mxu0 0.0
    %1033 = vmatprep.subr.mxu0 0.0
    %1034 = vmatpush1.msra.mxu0 0.0
    %1035 = vmatprep.subr.mxu0 0.0
    %1036 = vmatpush1.msra.mxu0 0.0
    %1037 = vmatprep.subr.mxu0 0.0
    %1038 = vmatpush1.msra.mxu0 0.0
    %1039 = vmatprep.subr.mxu0 0.0
    %1040 = vmatpush1.msra.mxu0 0.0
    %1041 = vmatprep.subr.mxu0 0.0
    %1042 = vmatpush1.msra.mxu0 0.0
    %1043 = vmatprep.subr.mxu0 0.0
    %1044 = vmatpush1.msra.mxu0 0.0
    %1045 = vmatprep.subr.mxu0 0.0
    %1046 = vmatpush1.msra.mxu0 0.0
    %1047 = vmatprep.subr.mxu0 0.0
    %1048 = vmatpush1.msra.mxu0 0.0
    %1049 = vmatprep.subr.mxu0 0.0
    %1050 = vmatpush1.msra.mxu0 0.0
    %1051 = vmatprep.subr.mxu0 0.0
    %1052 = vmatpush1.msra.mxu0 0.0
    %1053 = vmatprep.subr.mxu0 0.0
    %1054 = vmatpush1.msra.mxu0 0.0
    %1055 = vmatprep.subr.mxu0 0.0
    %1056 = vmatpush1.msra.mxu0 0.0
    %1057 = vmatprep.subr.mxu0 0.0
    %1058 = vmatpush1.msra.mxu0 0.0
    %1059 = vmatprep.subr.mxu0 0.0
    %1060 = vmatpush1.msra.mxu0 %v1022
    %1061 = vmatprep.subr.mxu0 0.0
    %1062 = vmatpush1.msra.mxu0 %v1020
    %1063 = vmatprep.subr.mxu0 0.0
    %1064 = vmatpush2.msra.mxu0 0.0
    %1065 = vmatprep.subr.mxu0 0.0
    %1066 = vmatpush2.msra.mxu0 0.0
    %1067 = vmatprep.subr.mxu0 0.0
    %1068 = vmatpush2.msra.mxu0 0.0
    %1069 = vmatprep.subr.mxu0 0.0
    %1070 = vmatpush2.msra.mxu0 0.0
    %1071 = vmatprep.subr.mxu0 0.0
    %1072 = vmatpush2.msra.mxu0 0.0
    %1073 = vmatprep.subr.mxu0 0.0
    %1074 = vmatpush2.msra.mxu0 0.0
    %1075 = vmatprep.subr.mxu0 0.0
    %1076 = vmatpush2.msra.mxu0 0.0
    %1077 = vmatprep.subr.mxu0 0.0
    %1078 = vmatpush2.msra.mxu0 0.0
    %1079 = vmatprep.subr.mxu0 0.0
    %1080 = vmatpush2.msra.mxu0 0.0
    %1081 = vmatprep.subr.mxu0 0.0
    %1082 = vmatpush2.msra.mxu0 0.0
    %1083 = vmatprep.subr.mxu0 0.0
    %1084 = vmatpush2.msra.mxu0 0.0
    %1085 = vmatprep.subr.mxu0 0.0
    %1086 = vmatpush2.msra.mxu0 0.0
    %1087 = vmatprep.subr.mxu0 0.0
    %1088 = vmatpush2.msra.mxu0 0.0
    %1089 = vmatprep.subr.mxu0 0.0
    %1090 = vmatpush2.msra.mxu0 0.0
    %1091 = vmatprep.subr.mxu0 0.0
    %1092 = vmatpush2.msra.mxu0 0.0
    %1093 = vmatprep.subr.mxu0 0.0
    %1094 = vmatpush2.msra.mxu0 0.0
    %1095 = vmatprep.mubr.f32.mxu0 0.0
    %1096 = vmatmul.mubr.f32.gmra.mxu0 %v1026
    %v1097 = vpop.f32.mrf.mxu0
    %v1098 = vadd.f32 0.0, %v1097
    %v1099 = vpop.f32.mrf.mxu0
    %1100 = vmatprep.mubr.f32.mxu0 0.0
    %1101 = vmatmul.mubr.f32.gmra.mxu0 %v1029
    %v1102 = vpop.f32.mrf.mxu0
    %v1103 = vadd.f32 0.0, %v1102
    %v1104 = vpop.f32.mrf.mxu0
    %1105 = vdwg.mxu0
    %1108 = vrot.lane.b32.xlu0 %v690, 8
    %v1109 = vpop.permute.xlu0 %1108
    %1110 = vrot.lane.b32.xlu0 %v695, 8
    %v1111 = vpop.permute.xlu0 %1110
    %1116 = vrot.lane.b32.xlu0 %v894, 16
    %v1117 = vpop.permute.xlu0 %1116
    %1118 = vrot.lane.b32.xlu0 %v899, 16
    %v1119 = vpop.permute.xlu0 %1118
    %1124 = vrot.lane.b32.xlu0 %v1098, 24
    %v1125 = vpop.permute.xlu0 %1124
    %1126 = vrot.lane.b32.xlu0 %v1103, 24
    %v1127 = vpop.permute.xlu0 %1126
    %v1130 = vsel %vm296, %v486, %v1109
    %v1131 = vsel %vm296, %v491, %v1111
    %v1132 = vsel %vm384, %v1130, %v1117
    %v1133 = vsel %vm384, %v1131, %v1119
    %vm1134 = vcmask 195584
    %v1135 = vsel %vm1134, %v1132, %v1125
    %v1136 = vsel %vm1134, %v1133, %v1127
    %v1137 = vld [vmem:[%s8 + $0x1] sm:$0x1]
    %v1139 = vlaneseq
    %v1140 = vshrl.u32 %v1139, 7
    %v1141 = vsub.s32 0, %v1140
    %v1142 = vrot.slane %v1137, %v1141
    %1143 = vrot.lane.b32.xlu0 %v152, 96
    %v1144 = vpop.permute.xlu0 %1143
    %1145 = vrot.lane.b32.xlu0 %v154, 96
    %v1146 = vpop.permute.xlu0 %1145
    %1147 = vrot.lane.b32.xlu0 %v156, 96
    %v1148 = vpop.permute.xlu0 %1147
    %1149 = vrot.lane.b32.xlu0 %v158, 96
    %v1150 = vpop.permute.xlu0 %1149
    %1155 = vrot.lane.b32.xlu0 %v1142, 96
    %v1156 = vpop.permute.xlu0 %1155
    %v1159 = vsel %vm208, %v1135, 0
    %v1162 = vsel %vm208, %v1136, 0
    %1164 = vmatprep.subr.mxu0 0.0
    %1165 = vmatpush1.msra.mxu0 0.0
    %1166 = vmatprep.subr.mxu0 0.0
    %1167 = vmatpush1.msra.mxu0 0.0
    %1168 = vmatprep.subr.mxu0 0.0
    %1169 = vmatpush1.msra.mxu0 0.0
    %1170 = vmatprep.subr.mxu0 0.0
    %1171 = vmatpush1.msra.mxu0 0.0
    %1172 = vmatprep.subr.mxu0 0.0
    %1173 = vmatpush1.msra.mxu0 0.0
    %1174 = vmatprep.subr.mxu0 0.0
    %1175 = vmatpush1.msra.mxu0 0.0
    %1176 = vmatprep.subr.mxu0 0.0
    %1177 = vmatpush1.msra.mxu0 0.0
    %1178 = vmatprep.subr.mxu0 0.0
    %1179 = vmatpush1.msra.mxu0 0.0
    %1180 = vmatprep.subr.mxu0 0.0
    %1181 = vmatpush1.msra.mxu0 0.0
    %1182 = vmatprep.subr.mxu0 0.0
    %1183 = vmatpush1.msra.mxu0 0.0
    %1184 = vmatprep.subr.mxu0 0.0
    %1185 = vmatpush1.msra.mxu0 0.0
    %1186 = vmatprep.subr.mxu0 0.0
    %1187 = vmatpush1.msra.mxu0 0.0
    %1188 = vmatprep.subr.mxu0 0.0
    %1189 = vmatpush1.msra.mxu0 %v1150
    %1190 = vmatprep.subr.mxu0 0.0
    %1191 = vmatpush1.msra.mxu0 %v1148
    %1192 = vmatprep.subr.mxu0 0.0
    %1193 = vmatpush1.msra.mxu0 %v1146
    %1194 = vmatprep.subr.mxu0 0.0
    %1195 = vmatpush1.msra.mxu0 %v1144
    %1196 = vmatprep.subr.mxu0 0.0
    %1197 = vmatpush2.msra.mxu0 0.0
    %1198 = vmatprep.subr.mxu0 0.0
    %1199 = vmatpush2.msra.mxu0 0.0
    %1200 = vmatprep.subr.mxu0 0.0
    %1201 = vmatpush2.msra.mxu0 0.0
    %1202 = vmatprep.subr.mxu0 0.0
    %1203 = vmatpush2.msra.mxu0 0.0
    %1204 = vmatprep.subr.mxu0 0.0
    %1205 = vmatpush2.msra.mxu0 0.0
    %1206 = vmatprep.subr.mxu0 0.0
    %1207 = vmatpush2.msra.mxu0 0.0
    %1208 = vmatprep.subr.mxu0 0.0
    %1209 = vmatpush2.msra.mxu0 0.0
    %1210 = vmatprep.subr.mxu0 0.0
    %1211 = vmatpush2.msra.mxu0 0.0
    %1212 = vmatprep.subr.mxu0 0.0
    %1213 = vmatpush2.msra.mxu0 0.0
    %1214 = vmatprep.subr.mxu0 0.0
    %1215 = vmatpush2.msra.mxu0 0.0
    %1216 = vmatprep.subr.mxu0 0.0
    %1217 = vmatpush2.msra.mxu0 0.0
    %1218 = vmatprep.subr.mxu0 0.0
    %1219 = vmatpush2.msra.mxu0 0.0
    %1220 = vmatprep.subr.mxu0 0.0
    %1221 = vmatpush2.msra.mxu0 0.0
    %1222 = vmatprep.subr.mxu0 0.0
    %1223 = vmatpush2.msra.mxu0 0.0
    %1224 = vmatprep.subr.mxu0 0.0
    %1225 = vmatpush2.msra.mxu0 0.0
    %1226 = vmatprep.subr.mxu0 0.0
    %1227 = vmatpush2.msra.mxu0 0.0
    %1228 = vmatprep.mubr.f32.mxu0 0.0
    %1229 = vmatmul.mubr.f32.gmra.mxu0 %v1159
    %v1230 = vpop.f32.mrf.mxu0
    %v1231 = vadd.f32 %v1156, %v1230
    %v1232 = vpop.f32.mrf.mxu0
    %1233 = vmatprep.mubr.f32.mxu0 0.0
    %1234 = vmatmul.mubr.f32.gmra.mxu0 %v1162
    %v1235 = vpop.f32.mrf.mxu0
    %v1236 = vadd.f32 %v1156, %v1235
    %v1237 = vpop.f32.mrf.mxu0
    %1238 = vdwg.mxu0
    %v1239 = vadd.f32 %v147, %v1231
    %v1240 = vadd.f32 %v148, %v1236
    %v1241 = vsel %vm208, %v1239, 0.0
    %1242 = vadd.xlane.f32.xlu0 %v1241
    %v1243 = vpop.xlane.xlu0 %1242
    %v1244 = vsel %vm208, %v1240, 0.0
    %1245 = vadd.xlane.f32.xlu0 %v1244
    %v1246 = vpop.xlane.xlu0 %1245
    %v1247 = vrcp.pop 32.0
    %v1248 = vmul.f32 %v1243, %v1247
    %v1249 = vmul.f32 %v1246, %v1247
    %v1250 = vsub.f32 %v1239, %v1248
    %v1251 = vsub.f32 %v1240, %v1249
    %v1252 = vmul.f32 %v1250, %v1250
    %v1253 = vmul.f32 %v1251, %v1251
    %v1254 = vsel %vm208, %v1252, 0.0
    %1255 = vadd.xlane.f32.xlu0 %v1254
    %v1256 = vpop.xlane.xlu0 %1255
    %v1257 = vsel %vm208, %v1253, 0.0
    %1258 = vadd.xlane.f32.xlu0 %v1257
    %v1259 = vpop.xlane.xlu0 %1258
    %v1260 = vmul.f32 %v1256, %v1247
    %v1261 = vmul.f32 %v1259, %v1247
    %v1262 = vadd.f32 %v1260, 1e-05
    %v1263 = vadd.f32 %v1261, 1e-05
    %v1264 = vrsqrt.pop %v1262
    %v1265 = vrsqrt.pop %v1263
    %v1266 = vmul.f32 %v1250, %v1264
    %v1267 = vmul.f32 %v1251, %v1265
    %1268 = vrot.lane.b32.xlu0 %v1142, 64
    %v1269 = vpop.permute.xlu0 %1268
    %v1271 = vmul.f32 %v1266, %v1269
    %v1272 = vmul.f32 %v1267, %v1269
    %1273 = vrot.lane.b32.xlu0 %v1142, 32
    %v1274 = vpop.permute.xlu0 %1273
    %v1276 = vadd.f32 %v1271, %v1274
    %v1277 = vadd.f32 %v1272, %v1274
    %v1278 = vld [vmem:[%s8 + $0x2] sm:$0xff]
    %v1279 = vld [vmem:[%s8 + $0xa] sm:$0xff]
    %v1280 = vld [vmem:[%s8 + $0x12] sm:$0x1]
    %v1281 = vld [vmem:[%s9] sm:$0xff]
    %v1282 = vld [vmem:[%s9 + $0x8] sm:$0xff]
    %v1283 = vld [vmem:[%s9 + $0x10] sm:$0xff]
    %v1284 = vld [vmem:[%s9 + $0x18] sm:$0xff]
    %v1285 = vld [vmem:[%s9 + $0x20] sm:$0xff]
    %v1286 = vld [vmem:[%s9 + $0x28] sm:$0xff]
    %v1287 = vld [vmem:[%s9 + $0x30] sm:$0xff]
    %v1288 = vld [vmem:[%s9 + $0x38] sm:$0xff]
    %v1289 = vld [vmem:[%s9 + $0x40] sm:$0xff]
    %v1290 = vld [vmem:[%s9 + $0x48] sm:$0xff]
    %v1291 = vld [vmem:[%s9 + $0x50] sm:$0xff]
    %v1292 = vld [vmem:[%s9 + $0x58] sm:$0xff]
    %v1293 = vld [vmem:[%s9 + $0x60] sm:$0xff]
    %v1294 = vld [vmem:[%s9 + $0x68] sm:$0xff]
    %v1295 = vld [vmem:[%s9 + $0x70] sm:$0xff]
    %v1296 = vld [vmem:[%s9 + $0x78] sm:$0xff]
    %v1297 = vld [vmem:[%s9 + $0x80] sm:$0xff]
    %v1298 = vld [vmem:[%s9 + $0x88] sm:$0xff]
    %v1299 = vld [vmem:[%s9 + $0x90] sm:$0xff]
    %v1300 = vld [vmem:[%s9 + $0x98] sm:$0xff]
    %v1301 = vld [vmem:[%s9 + $0xa0] sm:$0xff]
    %v1302 = vld [vmem:[%s9 + $0xa8] sm:$0xff]
    %v1303 = vld [vmem:[%s9 + $0xb0] sm:$0xff]
    %v1304 = vld [vmem:[%s9 + $0xb8] sm:$0xff]
    %v1305 = vld [vmem:[%s9 + $0xc0] sm:$0xff]
    %v1306 = vld [vmem:[%s9 + $0xc8] sm:$0xff]
    %v1307 = vld [vmem:[%s9 + $0xd0] sm:$0xff]
    %v1308 = vld [vmem:[%s9 + $0xd8] sm:$0xff]
    %v1309 = vld [vmem:[%s9 + $0xe0] sm:$0xff]
    %v1310 = vld [vmem:[%s9 + $0xe8] sm:$0xff]
    %v1311 = vld [vmem:[%s9 + $0xf0] sm:$0xff]
    %v1312 = vld [vmem:[%s9 + $0xf8] sm:$0xff]
    %v1313 = vld [vmem:[%s9 + $0x100] sm:$0xff]
    %v1314 = vld [vmem:[%s9 + $0x108] sm:$0xff]
    %v1315 = vld [vmem:[%s9 + $0x110] sm:$0xff]
    %v1316 = vld [vmem:[%s9 + $0x118] sm:$0xff]
    %v1317 = vld [vmem:[%s9 + $0x120] sm:$0xff]
    %v1318 = vld [vmem:[%s9 + $0x128] sm:$0xff]
    %v1319 = vld [vmem:[%s9 + $0x130] sm:$0xff]
    %v1320 = vld [vmem:[%s9 + $0x138] sm:$0xff]
    %v1321 = vld [vmem:[%s9 + $0x140] sm:$0xff]
    %v1322 = vld [vmem:[%s9 + $0x148] sm:$0xff]
    %v1323 = vld [vmem:[%s9 + $0x150] sm:$0xff]
    %v1324 = vld [vmem:[%s9 + $0x158] sm:$0xff]
    %v1325 = vld [vmem:[%s9 + $0x160] sm:$0xff]
    %v1326 = vld [vmem:[%s9 + $0x168] sm:$0xff]
    %v1327 = vld [vmem:[%s9 + $0x170] sm:$0xff]
    %v1328 = vld [vmem:[%s9 + $0x178] sm:$0xff]
    %v1329 = vld [vmem:[%s9 + $0x180] sm:$0xff]
    %v1330 = vld [vmem:[%s9 + $0x188] sm:$0xff]
    %v1331 = vld [vmem:[%s9 + $0x190] sm:$0xff]
    %v1332 = vld [vmem:[%s9 + $0x198] sm:$0xff]
    %v1333 = vld [vmem:[%s9 + $0x1a0] sm:$0xff]
    %v1334 = vld [vmem:[%s9 + $0x1a8] sm:$0xff]
    %v1335 = vld [vmem:[%s9 + $0x1b0] sm:$0xff]
    %v1336 = vld [vmem:[%s9 + $0x1b8] sm:$0xff]
    %v1337 = vld [vmem:[%s9 + $0x1c0] sm:$0xff]
    %v1338 = vld [vmem:[%s9 + $0x1c8] sm:$0xff]
    %v1339 = vld [vmem:[%s9 + $0x1d0] sm:$0xff]
    %v1340 = vld [vmem:[%s9 + $0x1d8] sm:$0xff]
    %v1341 = vld [vmem:[%s9 + $0x1e0] sm:$0xff]
    %v1342 = vld [vmem:[%s9 + $0x1e8] sm:$0xff]
    %v1343 = vld [vmem:[%s9 + $0x1f0] sm:$0xff]
    %v1344 = vld [vmem:[%s9 + $0x1f8] sm:$0xff]
    %v1347 = vlaneseq
    %v1348 = vshrl.u32 %v1347, 7
    %v1349 = vsub.s32 0, %v1348
    %v1350 = vrot.slane %v1278, %v1349
    %v1351 = vlaneseq
    %v1352 = vshrl.u32 %v1351, 7
    %v1353 = vsub.s32 1, %v1352
    %v1354 = vrot.slane %v1278, %v1353
    %v1355 = vlaneseq
    %v1356 = vshrl.u32 %v1355, 7
    %v1357 = vsub.s32 2, %v1356
    %v1358 = vrot.slane %v1278, %v1357
    %v1359 = vlaneseq
    %v1360 = vshrl.u32 %v1359, 7
    %v1361 = vsub.s32 3, %v1360
    %v1362 = vrot.slane %v1278, %v1361
    %v1363 = vlaneseq
    %v1364 = vshrl.u32 %v1363, 7
    %v1365 = vsub.s32 4, %v1364
    %v1366 = vrot.slane %v1278, %v1365
    %v1367 = vlaneseq
    %v1368 = vshrl.u32 %v1367, 7
    %v1369 = vsub.s32 5, %v1368
    %v1370 = vrot.slane %v1278, %v1369
    %v1371 = vlaneseq
    %v1372 = vshrl.u32 %v1371, 7
    %v1373 = vsub.s32 6, %v1372
    %v1374 = vrot.slane %v1278, %v1373
    %v1375 = vlaneseq
    %v1376 = vshrl.u32 %v1375, 7
    %v1377 = vsub.s32 7, %v1376
    %v1378 = vrot.slane %v1278, %v1377
    %v1379 = vlaneseq
    %v1380 = vshrl.u32 %v1379, 7
    %v1381 = vsub.s32 0, %v1380
    %v1382 = vrot.slane %v1279, %v1381
    %v1383 = vlaneseq
    %v1384 = vshrl.u32 %v1383, 7
    %v1385 = vsub.s32 1, %v1384
    %v1386 = vrot.slane %v1279, %v1385
    %v1387 = vlaneseq
    %v1388 = vshrl.u32 %v1387, 7
    %v1389 = vsub.s32 2, %v1388
    %v1390 = vrot.slane %v1279, %v1389
    %v1391 = vlaneseq
    %v1392 = vshrl.u32 %v1391, 7
    %v1393 = vsub.s32 3, %v1392
    %v1394 = vrot.slane %v1279, %v1393
    %v1395 = vlaneseq
    %v1396 = vshrl.u32 %v1395, 7
    %v1397 = vsub.s32 4, %v1396
    %v1398 = vrot.slane %v1279, %v1397
    %v1399 = vlaneseq
    %v1400 = vshrl.u32 %v1399, 7
    %v1401 = vsub.s32 5, %v1400
    %v1402 = vrot.slane %v1279, %v1401
    %v1403 = vlaneseq
    %v1404 = vshrl.u32 %v1403, 7
    %v1405 = vsub.s32 6, %v1404
    %v1406 = vrot.slane %v1279, %v1405
    %v1407 = vlaneseq
    %v1408 = vshrl.u32 %v1407, 7
    %v1409 = vsub.s32 7, %v1408
    %v1410 = vrot.slane %v1279, %v1409
    %v1428 = vsel %vm208, %v1276, 0
    %v1431 = vsel %vm208, %v1277, 0
    %1433 = vmatprep.subr.mxu0 0.0
    %1434 = vmatpush1.msra.mxu0 0.0
    %1435 = vmatprep.subr.mxu0 0.0
    %1436 = vmatpush1.msra.mxu0 0.0
    %1437 = vmatprep.subr.mxu0 0.0
    %1438 = vmatpush1.msra.mxu0 0.0
    %1439 = vmatprep.subr.mxu0 0.0
    %1440 = vmatpush1.msra.mxu0 0.0
    %1441 = vmatprep.subr.mxu0 0.0
    %1442 = vmatpush1.msra.mxu0 0.0
    %1443 = vmatprep.subr.mxu0 0.0
    %1444 = vmatpush1.msra.mxu0 0.0
    %1445 = vmatprep.subr.mxu0 0.0
    %1446 = vmatpush1.msra.mxu0 0.0
    %1447 = vmatprep.subr.mxu0 0.0
    %1448 = vmatpush1.msra.mxu0 0.0
    %1449 = vmatprep.subr.mxu0 0.0
    %1450 = vmatpush1.msra.mxu0 0.0
    %1451 = vmatprep.subr.mxu0 0.0
    %1452 = vmatpush1.msra.mxu0 0.0
    %1453 = vmatprep.subr.mxu0 0.0
    %1454 = vmatpush1.msra.mxu0 0.0
    %1455 = vmatprep.subr.mxu0 0.0
    %1456 = vmatpush1.msra.mxu0 0.0
    %1457 = vmatprep.subr.mxu0 %v1330
    %1458 = vmatpush1.msra.mxu0 %v1329
    %1459 = vmatprep.subr.mxu0 %v1314
    %1460 = vmatpush1.msra.mxu0 %v1313
    %1461 = vmatprep.subr.mxu0 %v1298
    %1462 = vmatpush1.msra.mxu0 %v1297
    %1463 = vmatprep.subr.mxu0 %v1282
    %1464 = vmatpush1.msra.mxu0 %v1281
    %1465 = vmatprep.subr.mxu0 0.0
    %1466 = vmatpush2.msra.mxu0 0.0
    %1467 = vmatprep.subr.mxu0 0.0
    %1468 = vmatpush2.msra.mxu0 0.0
    %1469 = vmatprep.subr.mxu0 0.0
    %1470 = vmatpush2.msra.mxu0 0.0
    %1471 = vmatprep.subr.mxu0 0.0
    %1472 = vmatpush2.msra.mxu0 0.0
    %1473 = vmatprep.subr.mxu0 0.0
    %1474 = vmatpush2.msra.mxu0 0.0
    %1475 = vmatprep.subr.mxu0 0.0
    %1476 = vmatpush2.msra.mxu0 0.0
    %1477 = vmatprep.subr.mxu0 0.0
    %1478 = vmatpush2.msra.mxu0 0.0
    %1479 = vmatprep.subr.mxu0 0.0
    %1480 = vmatpush2.msra.mxu0 0.0
    %1481 = vmatprep.subr.mxu0 0.0
    %1482 = vmatpush2.msra.mxu0 0.0
    %1483 = vmatprep.subr.mxu0 0.0
    %1484 = vmatpush2.msra.mxu0 0.0
    %1485 = vmatprep.subr.mxu0 0.0
    %1486 = vmatpush2.msra.mxu0 0.0
    %1487 = vmatprep.subr.mxu0 0.0
    %1488 = vmatpush2.msra.mxu0 0.0
    %1489 = vmatprep.subr.mxu0 0.0
    %1490 = vmatpush2.msra.mxu0 0.0
    %1491 = vmatprep.subr.mxu0 0.0
    %1492 = vmatpush2.msra.mxu0 0.0
    %1493 = vmatprep.subr.mxu0 0.0
    %1494 = vmatpush2.msra.mxu0 0.0
    %1495 = vmatprep.subr.mxu0 0.0
    %1496 = vmatpush2.msra.mxu0 0.0
    %1497 = vmatprep.mubr.f32.mxu0 0.0
    %1498 = vmatmul.mubr.f32.gmra.mxu0 %v1428
    %v1499 = vpop.f32.mrf.mxu0
    %v1500 = vadd.f32 %v1350, %v1499
    %v1501 = vpop.f32.mrf.mxu0
    %v1502 = vadd.f32 %v1354, %v1501
    %1503 = vmatprep.mubr.f32.mxu0 0.0
    %1504 = vmatmul.mubr.f32.gmra.mxu0 %v1431
    %v1505 = vpop.f32.mrf.mxu0
    %v1506 = vadd.f32 %v1350, %v1505
    %v1507 = vpop.f32.mrf.mxu0
    %v1508 = vadd.f32 %v1354, %v1507
    %1509 = vdwg.mxu0
    %1510 = vmatprep.subr.mxu0 0.0
    %1511 = vmatpush1.msra.mxu0 0.0
    %1512 = vmatprep.subr.mxu0 0.0
    %1513 = vmatpush1.msra.mxu0 0.0
    %1514 = vmatprep.subr.mxu0 0.0
    %1515 = vmatpush1.msra.mxu0 0.0
    %1516 = vmatprep.subr.mxu0 0.0
    %1517 = vmatpush1.msra.mxu0 0.0
    %1518 = vmatprep.subr.mxu0 0.0
    %1519 = vmatpush1.msra.mxu0 0.0
    %1520 = vmatprep.subr.mxu0 0.0
    %1521 = vmatpush1.msra.mxu0 0.0
    %1522 = vmatprep.subr.mxu0 0.0
    %1523 = vmatpush1.msra.mxu0 0.0
    %1524 = vmatprep.subr.mxu0 0.0
    %1525 = vmatpush1.msra.mxu0 0.0
    %1526 = vmatprep.subr.mxu0 0.0
    %1527 = vmatpush1.msra.mxu0 0.0
    %1528 = vmatprep.subr.mxu0 0.0
    %1529 = vmatpush1.msra.mxu0 0.0
    %1530 = vmatprep.subr.mxu0 0.0
    %1531 = vmatpush1.msra.mxu0 0.0
    %1532 = vmatprep.subr.mxu0 0.0
    %1533 = vmatpush1.msra.mxu0 0.0
    %1534 = vmatprep.subr.mxu0 %v1332
    %1535 = vmatpush1.msra.mxu0 %v1331
    %1536 = vmatprep.subr.mxu0 %v1316
    %1537 = vmatpush1.msra.mxu0 %v1315
    %1538 = vmatprep.subr.mxu0 %v1300
    %1539 = vmatpush1.msra.mxu0 %v1299
    %1540 = vmatprep.subr.mxu0 %v1284
    %1541 = vmatpush1.msra.mxu0 %v1283
    %1542 = vmatprep.subr.mxu0 0.0
    %1543 = vmatpush2.msra.mxu0 0.0
    %1544 = vmatprep.subr.mxu0 0.0
    %1545 = vmatpush2.msra.mxu0 0.0
    %1546 = vmatprep.subr.mxu0 0.0
    %1547 = vmatpush2.msra.mxu0 0.0
    %1548 = vmatprep.subr.mxu0 0.0
    %1549 = vmatpush2.msra.mxu0 0.0
    %1550 = vmatprep.subr.mxu0 0.0
    %1551 = vmatpush2.msra.mxu0 0.0
    %1552 = vmatprep.subr.mxu0 0.0
    %1553 = vmatpush2.msra.mxu0 0.0
    %1554 = vmatprep.subr.mxu0 0.0
    %1555 = vmatpush2.msra.mxu0 0.0
    %1556 = vmatprep.subr.mxu0 0.0
    %1557 = vmatpush2.msra.mxu0 0.0
    %1558 = vmatprep.subr.mxu0 0.0
    %1559 = vmatpush2.msra.mxu0 0.0
    %1560 = vmatprep.subr.mxu0 0.0
    %1561 = vmatpush2.msra.mxu0 0.0
    %1562 = vmatprep.subr.mxu0 0.0
    %1563 = vmatpush2.msra.mxu0 0.0
    %1564 = vmatprep.subr.mxu0 0.0
    %1565 = vmatpush2.msra.mxu0 0.0
    %1566 = vmatprep.subr.mxu0 0.0
    %1567 = vmatpush2.msra.mxu0 0.0
    %1568 = vmatprep.subr.mxu0 0.0
    %1569 = vmatpush2.msra.mxu0 0.0
    %1570 = vmatprep.subr.mxu0 0.0
    %1571 = vmatpush2.msra.mxu0 0.0
    %1572 = vmatprep.subr.mxu0 0.0
    %1573 = vmatpush2.msra.mxu0 0.0
    %1574 = vmatprep.mubr.f32.mxu0 0.0
    %1575 = vmatmul.mubr.f32.gmra.mxu0 %v1428
    %v1576 = vpop.f32.mrf.mxu0
    %v1577 = vadd.f32 %v1358, %v1576
    %v1578 = vpop.f32.mrf.mxu0
    %v1579 = vadd.f32 %v1362, %v1578
    %1580 = vmatprep.mubr.f32.mxu0 0.0
    %1581 = vmatmul.mubr.f32.gmra.mxu0 %v1431
    %v1582 = vpop.f32.mrf.mxu0
    %v1583 = vadd.f32 %v1358, %v1582
    %v1584 = vpop.f32.mrf.mxu0
    %v1585 = vadd.f32 %v1362, %v1584
    %1586 = vdwg.mxu0
    %1587 = vmatprep.subr.mxu0 0.0
    %1588 = vmatpush1.msra.mxu0 0.0
    %1589 = vmatprep.subr.mxu0 0.0
    %1590 = vmatpush1.msra.mxu0 0.0
    %1591 = vmatprep.subr.mxu0 0.0
    %1592 = vmatpush1.msra.mxu0 0.0
    %1593 = vmatprep.subr.mxu0 0.0
    %1594 = vmatpush1.msra.mxu0 0.0
    %1595 = vmatprep.subr.mxu0 0.0
    %1596 = vmatpush1.msra.mxu0 0.0
    %1597 = vmatprep.subr.mxu0 0.0
    %1598 = vmatpush1.msra.mxu0 0.0
    %1599 = vmatprep.subr.mxu0 0.0
    %1600 = vmatpush1.msra.mxu0 0.0
    %1601 = vmatprep.subr.mxu0 0.0
    %1602 = vmatpush1.msra.mxu0 0.0
    %1603 = vmatprep.subr.mxu0 0.0
    %1604 = vmatpush1.msra.mxu0 0.0
    %1605 = vmatprep.subr.mxu0 0.0
    %1606 = vmatpush1.msra.mxu0 0.0
    %1607 = vmatprep.subr.mxu0 0.0
    %1608 = vmatpush1.msra.mxu0 0.0
    %1609 = vmatprep.subr.mxu0 0.0
    %1610 = vmatpush1.msra.mxu0 0.0
    %1611 = vmatprep.subr.mxu0 %v1334
    %1612 = vmatpush1.msra.mxu0 %v1333
    %1613 = vmatprep.subr.mxu0 %v1318
    %1614 = vmatpush1.msra.mxu0 %v1317
    %1615 = vmatprep.subr.mxu0 %v1302
    %1616 = vmatpush1.msra.mxu0 %v1301
    %1617 = vmatprep.subr.mxu0 %v1286
    %1618 = vmatpush1.msra.mxu0 %v1285
    %1619 = vmatprep.subr.mxu0 0.0
    %1620 = vmatpush2.msra.mxu0 0.0
    %1621 = vmatprep.subr.mxu0 0.0
    %1622 = vmatpush2.msra.mxu0 0.0
    %1623 = vmatprep.subr.mxu0 0.0
    %1624 = vmatpush2.msra.mxu0 0.0
    %1625 = vmatprep.subr.mxu0 0.0
    %1626 = vmatpush2.msra.mxu0 0.0
    %1627 = vmatprep.subr.mxu0 0.0
    %1628 = vmatpush2.msra.mxu0 0.0
    %1629 = vmatprep.subr.mxu0 0.0
    %1630 = vmatpush2.msra.mxu0 0.0
    %1631 = vmatprep.subr.mxu0 0.0
    %1632 = vmatpush2.msra.mxu0 0.0
    %1633 = vmatprep.subr.mxu0 0.0
    %1634 = vmatpush2.msra.mxu0 0.0
    %1635 = vmatprep.subr.mxu0 0.0
    %1636 = vmatpush2.msra.mxu0 0.0
    %1637 = vmatprep.subr.mxu0 0.0
    %1638 = vmatpush2.msra.mxu0 0.0
    %1639 = vmatprep.subr.mxu0 0.0
    %1640 = vmatpush2.msra.mxu0 0.0
    %1641 = vmatprep.subr.mxu0 0.0
    %1642 = vmatpush2.msra.mxu0 0.0
    %1643 = vmatprep.subr.mxu0 0.0
    %1644 = vmatpush2.msra.mxu0 0.0
    %1645 = vmatprep.subr.mxu0 0.0
    %1646 = vmatpush2.msra.mxu0 0.0
    %1647 = vmatprep.subr.mxu0 0.0
    %1648 = vmatpush2.msra.mxu0 0.0
    %1649 = vmatprep.subr.mxu0 0.0
    %1650 = vmatpush2.msra.mxu0 0.0
    %1651 = vmatprep.mubr.f32.mxu0 0.0
    %1652 = vmatmul.mubr.f32.gmra.mxu0 %v1428
    %v1653 = vpop.f32.mrf.mxu0
    %v1654 = vadd.f32 %v1366, %v1653
    %v1655 = vpop.f32.mrf.mxu0
    %v1656 = vadd.f32 %v1370, %v1655
    %1657 = vmatprep.mubr.f32.mxu0 0.0
    %1658 = vmatmul.mubr.f32.gmra.mxu0 %v1431
    %v1659 = vpop.f32.mrf.mxu0
    %v1660 = vadd.f32 %v1366, %v1659
    %v1661 = vpop.f32.mrf.mxu0
    %v1662 = vadd.f32 %v1370, %v1661
    %1663 = vdwg.mxu0
    %1664 = vmatprep.subr.mxu0 0.0
    %1665 = vmatpush1.msra.mxu0 0.0
    %1666 = vmatprep.subr.mxu0 0.0
    %1667 = vmatpush1.msra.mxu0 0.0
    %1668 = vmatprep.subr.mxu0 0.0
    %1669 = vmatpush1.msra.mxu0 0.0
    %1670 = vmatprep.subr.mxu0 0.0
    %1671 = vmatpush1.msra.mxu0 0.0
    %1672 = vmatprep.subr.mxu0 0.0
    %1673 = vmatpush1.msra.mxu0 0.0
    %1674 = vmatprep.subr.mxu0 0.0
    %1675 = vmatpush1.msra.mxu0 0.0
    %1676 = vmatprep.subr.mxu0 0.0
    %1677 = vmatpush1.msra.mxu0 0.0
    %1678 = vmatprep.subr.mxu0 0.0
    %1679 = vmatpush1.msra.mxu0 0.0
    %1680 = vmatprep.subr.mxu0 0.0
    %1681 = vmatpush1.msra.mxu0 0.0
    %1682 = vmatprep.subr.mxu0 0.0
    %1683 = vmatpush1.msra.mxu0 0.0
    %1684 = vmatprep.subr.mxu0 0.0
    %1685 = vmatpush1.msra.mxu0 0.0
    %1686 = vmatprep.subr.mxu0 0.0
    %1687 = vmatpush1.msra.mxu0 0.0
    %1688 = vmatprep.subr.mxu0 %v1336
    %1689 = vmatpush1.msra.mxu0 %v1335
    %1690 = vmatprep.subr.mxu0 %v1320
    %1691 = vmatpush1.msra.mxu0 %v1319
    %1692 = vmatprep.subr.mxu0 %v1304
    %1693 = vmatpush1.msra.mxu0 %v1303
    %1694 = vmatprep.subr.mxu0 %v1288
    %1695 = vmatpush1.msra.mxu0 %v1287
    %1696 = vmatprep.subr.mxu0 0.0
    %1697 = vmatpush2.msra.mxu0 0.0
    %1698 = vmatprep.subr.mxu0 0.0
    %1699 = vmatpush2.msra.mxu0 0.0
    %1700 = vmatprep.subr.mxu0 0.0
    %1701 = vmatpush2.msra.mxu0 0.0
    %1702 = vmatprep.subr.mxu0 0.0
    %1703 = vmatpush2.msra.mxu0 0.0
    %1704 = vmatprep.subr.mxu0 0.0
    %1705 = vmatpush2.msra.mxu0 0.0
    %1706 = vmatprep.subr.mxu0 0.0
    %1707 = vmatpush2.msra.mxu0 0.0
    %1708 = vmatprep.subr.mxu0 0.0
    %1709 = vmatpush2.msra.mxu0 0.0
    %1710 = vmatprep.subr.mxu0 0.0
    %1711 = vmatpush2.msra.mxu0 0.0
    %1712 = vmatprep.subr.mxu0 0.0
    %1713 = vmatpush2.msra.mxu0 0.0
    %1714 = vmatprep.subr.mxu0 0.0
    %1715 = vmatpush2.msra.mxu0 0.0
    %1716 = vmatprep.subr.mxu0 0.0
    %1717 = vmatpush2.msra.mxu0 0.0
    %1718 = vmatprep.subr.mxu0 0.0
    %1719 = vmatpush2.msra.mxu0 0.0
    %1720 = vmatprep.subr.mxu0 0.0
    %1721 = vmatpush2.msra.mxu0 0.0
    %1722 = vmatprep.subr.mxu0 0.0
    %1723 = vmatpush2.msra.mxu0 0.0
    %1724 = vmatprep.subr.mxu0 0.0
    %1725 = vmatpush2.msra.mxu0 0.0
    %1726 = vmatprep.subr.mxu0 0.0
    %1727 = vmatpush2.msra.mxu0 0.0
    %1728 = vmatprep.mubr.f32.mxu0 0.0
    %1729 = vmatmul.mubr.f32.gmra.mxu0 %v1428
    %v1730 = vpop.f32.mrf.mxu0
    %v1731 = vadd.f32 %v1374, %v1730
    %v1732 = vpop.f32.mrf.mxu0
    %v1733 = vadd.f32 %v1378, %v1732
    %1734 = vmatprep.mubr.f32.mxu0 0.0
    %1735 = vmatmul.mubr.f32.gmra.mxu0 %v1431
    %v1736 = vpop.f32.mrf.mxu0
    %v1737 = vadd.f32 %v1374, %v1736
    %v1738 = vpop.f32.mrf.mxu0
    %v1739 = vadd.f32 %v1378, %v1738
    %1740 = vdwg.mxu0
    %1741 = vmatprep.subr.mxu0 0.0
    %1742 = vmatpush1.msra.mxu0 0.0
    %1743 = vmatprep.subr.mxu0 0.0
    %1744 = vmatpush1.msra.mxu0 0.0
    %1745 = vmatprep.subr.mxu0 0.0
    %1746 = vmatpush1.msra.mxu0 0.0
    %1747 = vmatprep.subr.mxu0 0.0
    %1748 = vmatpush1.msra.mxu0 0.0
    %1749 = vmatprep.subr.mxu0 0.0
    %1750 = vmatpush1.msra.mxu0 0.0
    %1751 = vmatprep.subr.mxu0 0.0
    %1752 = vmatpush1.msra.mxu0 0.0
    %1753 = vmatprep.subr.mxu0 0.0
    %1754 = vmatpush1.msra.mxu0 0.0
    %1755 = vmatprep.subr.mxu0 0.0
    %1756 = vmatpush1.msra.mxu0 0.0
    %1757 = vmatprep.subr.mxu0 0.0
    %1758 = vmatpush1.msra.mxu0 0.0
    %1759 = vmatprep.subr.mxu0 0.0
    %1760 = vmatpush1.msra.mxu0 0.0
    %1761 = vmatprep.subr.mxu0 0.0
    %1762 = vmatpush1.msra.mxu0 0.0
    %1763 = vmatprep.subr.mxu0 0.0
    %1764 = vmatpush1.msra.mxu0 0.0
    %1765 = vmatprep.subr.mxu0 %v1338
    %1766 = vmatpush1.msra.mxu0 %v1337
    %1767 = vmatprep.subr.mxu0 %v1322
    %1768 = vmatpush1.msra.mxu0 %v1321
    %1769 = vmatprep.subr.mxu0 %v1306
    %1770 = vmatpush1.msra.mxu0 %v1305
    %1771 = vmatprep.subr.mxu0 %v1290
    %1772 = vmatpush1.msra.mxu0 %v1289
    %1773 = vmatprep.subr.mxu0 0.0
    %1774 = vmatpush2.msra.mxu0 0.0
    %1775 = vmatprep.subr.mxu0 0.0
    %1776 = vmatpush2.msra.mxu0 0.0
    %1777 = vmatprep.subr.mxu0 0.0
    %1778 = vmatpush2.msra.mxu0 0.0
    %1779 = vmatprep.subr.mxu0 0.0
    %1780 = vmatpush2.msra.mxu0 0.0
    %1781 = vmatprep.subr.mxu0 0.0
    %1782 = vmatpush2.msra.mxu0 0.0
    %1783 = vmatprep.subr.mxu0 0.0
    %1784 = vmatpush2.msra.mxu0 0.0
    %1785 = vmatprep.subr.mxu0 0.0
    %1786 = vmatpush2.msra.mxu0 0.0
    %1787 = vmatprep.subr.mxu0 0.0
    %1788 = vmatpush2.msra.mxu0 0.0
    %1789 = vmatprep.subr.mxu0 0.0
    %1790 = vmatpush2.msra.mxu0 0.0
    %1791 = vmatprep.subr.mxu0 0.0
    %1792 = vmatpush2.msra.mxu0 0.0
    %1793 = vmatprep.subr.mxu0 0.0
    %1794 = vmatpush2.msra.mxu0 0.0
    %1795 = vmatprep.subr.mxu0 0.0
    %1796 = vmatpush2.msra.mxu0 0.0
    %1797 = vmatprep.subr.mxu0 0.0
    %1798 = vmatpush2.msra.mxu0 0.0
    %1799 = vmatprep.subr.mxu0 0.0
    %1800 = vmatpush2.msra.mxu0 0.0
    %1801 = vmatprep.subr.mxu0 0.0
    %1802 = vmatpush2.msra.mxu0 0.0
    %1803 = vmatprep.subr.mxu0 0.0
    %1804 = vmatpush2.msra.mxu0 0.0
    %1805 = vmatprep.mubr.f32.mxu0 0.0
    %1806 = vmatmul.mubr.f32.gmra.mxu0 %v1428
    %v1807 = vpop.f32.mrf.mxu0
    %v1808 = vadd.f32 %v1382, %v1807
    %v1809 = vpop.f32.mrf.mxu0
    %v1810 = vadd.f32 %v1386, %v1809
    %1811 = vmatprep.mubr.f32.mxu0 0.0
    %1812 = vmatmul.mubr.f32.gmra.mxu0 %v1431
    %v1813 = vpop.f32.mrf.mxu0
    %v1814 = vadd.f32 %v1382, %v1813
    %v1815 = vpop.f32.mrf.mxu0
    %v1816 = vadd.f32 %v1386, %v1815
    %1817 = vdwg.mxu0
    %1818 = vmatprep.subr.mxu0 0.0
    %1819 = vmatpush1.msra.mxu0 0.0
    %1820 = vmatprep.subr.mxu0 0.0
    %1821 = vmatpush1.msra.mxu0 0.0
    %1822 = vmatprep.subr.mxu0 0.0
    %1823 = vmatpush1.msra.mxu0 0.0
    %1824 = vmatprep.subr.mxu0 0.0
    %1825 = vmatpush1.msra.mxu0 0.0
    %1826 = vmatprep.subr.mxu0 0.0
    %1827 = vmatpush1.msra.mxu0 0.0
    %1828 = vmatprep.subr.mxu0 0.0
    %1829 = vmatpush1.msra.mxu0 0.0
    %1830 = vmatprep.subr.mxu0 0.0
    %1831 = vmatpush1.msra.mxu0 0.0
    %1832 = vmatprep.subr.mxu0 0.0
    %1833 = vmatpush1.msra.mxu0 0.0
    %1834 = vmatprep.subr.mxu0 0.0
    %1835 = vmatpush1.msra.mxu0 0.0
    %1836 = vmatprep.subr.mxu0 0.0
    %1837 = vmatpush1.msra.mxu0 0.0
    %1838 = vmatprep.subr.mxu0 0.0
    %1839 = vmatpush1.msra.mxu0 0.0
    %1840 = vmatprep.subr.mxu0 0.0
    %1841 = vmatpush1.msra.mxu0 0.0
    %1842 = vmatprep.subr.mxu0 %v1340
    %1843 = vmatpush1.msra.mxu0 %v1339
    %1844 = vmatprep.subr.mxu0 %v1324
    %1845 = vmatpush1.msra.mxu0 %v1323
    %1846 = vmatprep.subr.mxu0 %v1308
    %1847 = vmatpush1.msra.mxu0 %v1307
    %1848 = vmatprep.subr.mxu0 %v1292
    %1849 = vmatpush1.msra.mxu0 %v1291
    %1850 = vmatprep.subr.mxu0 0.0
    %1851 = vmatpush2.msra.mxu0 0.0
    %1852 = vmatprep.subr.mxu0 0.0
    %1853 = vmatpush2.msra.mxu0 0.0
    %1854 = vmatprep.subr.mxu0 0.0
    %1855 = vmatpush2.msra.mxu0 0.0
    %1856 = vmatprep.subr.mxu0 0.0
    %1857 = vmatpush2.msra.mxu0 0.0
    %1858 = vmatprep.subr.mxu0 0.0
    %1859 = vmatpush2.msra.mxu0 0.0
    %1860 = vmatprep.subr.mxu0 0.0
    %1861 = vmatpush2.msra.mxu0 0.0
    %1862 = vmatprep.subr.mxu0 0.0
    %1863 = vmatpush2.msra.mxu0 0.0
    %1864 = vmatprep.subr.mxu0 0.0
    %1865 = vmatpush2.msra.mxu0 0.0
    %1866 = vmatprep.subr.mxu0 0.0
    %1867 = vmatpush2.msra.mxu0 0.0
    %1868 = vmatprep.subr.mxu0 0.0
    %1869 = vmatpush2.msra.mxu0 0.0
    %1870 = vmatprep.subr.mxu0 0.0
    %1871 = vmatpush2.msra.mxu0 0.0
    %1872 = vmatprep.subr.mxu0 0.0
    %1873 = vmatpush2.msra.mxu0 0.0
    %1874 = vmatprep.subr.mxu0 0.0
    %1875 = vmatpush2.msra.mxu0 0.0
    %1876 = vmatprep.subr.mxu0 0.0
    %1877 = vmatpush2.msra.mxu0 0.0
    %1878 = vmatprep.subr.mxu0 0.0
    %1879 = vmatpush2.msra.mxu0 0.0
    %1880 = vmatprep.subr.mxu0 0.0
    %1881 = vmatpush2.msra.mxu0 0.0
    %1882 = vmatprep.mubr.f32.mxu0 0.0
    %1883 = vmatmul.mubr.f32.gmra.mxu0 %v1428
    %v1884 = vpop.f32.mrf.mxu0
    %v1885 = vadd.f32 %v1390, %v1884
    %v1886 = vpop.f32.mrf.mxu0
    %v1887 = vadd.f32 %v1394, %v1886
    %1888 = vmatprep.mubr.f32.mxu0 0.0
    %1889 = vmatmul.mubr.f32.gmra.mxu0 %v1431
    %v1890 = vpop.f32.mrf.mxu0
    %v1891 = vadd.f32 %v1390, %v1890
    %v1892 = vpop.f32.mrf.mxu0
    %v1893 = vadd.f32 %v1394, %v1892
    %1894 = vdwg.mxu0
    %1895 = vmatprep.subr.mxu0 0.0
    %1896 = vmatpush1.msra.mxu0 0.0
    %1897 = vmatprep.subr.mxu0 0.0
    %1898 = vmatpush1.msra.mxu0 0.0
    %1899 = vmatprep.subr.mxu0 0.0
    %1900 = vmatpush1.msra.mxu0 0.0
    %1901 = vmatprep.subr.mxu0 0.0
    %1902 = vmatpush1.msra.mxu0 0.0
    %1903 = vmatprep.subr.mxu0 0.0
    %1904 = vmatpush1.msra.mxu0 0.0
    %1905 = vmatprep.subr.mxu0 0.0
    %1906 = vmatpush1.msra.mxu0 0.0
    %1907 = vmatprep.subr.mxu0 0.0
    %1908 = vmatpush1.msra.mxu0 0.0
    %1909 = vmatprep.subr.mxu0 0.0
    %1910 = vmatpush1.msra.mxu0 0.0
    %1911 = vmatprep.subr.mxu0 0.0
    %1912 = vmatpush1.msra.mxu0 0.0
    %1913 = vmatprep.subr.mxu0 0.0
    %1914 = vmatpush1.msra.mxu0 0.0
    %1915 = vmatprep.subr.mxu0 0.0
    %1916 = vmatpush1.msra.mxu0 0.0
    %1917 = vmatprep.subr.mxu0 0.0
    %1918 = vmatpush1.msra.mxu0 0.0
    %1919 = vmatprep.subr.mxu0 %v1342
    %1920 = vmatpush1.msra.mxu0 %v1341
    %1921 = vmatprep.subr.mxu0 %v1326
    %1922 = vmatpush1.msra.mxu0 %v1325
    %1923 = vmatprep.subr.mxu0 %v1310
    %1924 = vmatpush1.msra.mxu0 %v1309
    %1925 = vmatprep.subr.mxu0 %v1294
    %1926 = vmatpush1.msra.mxu0 %v1293
    %1927 = vmatprep.subr.mxu0 0.0
    %1928 = vmatpush2.msra.mxu0 0.0
    %1929 = vmatprep.subr.mxu0 0.0
    %1930 = vmatpush2.msra.mxu0 0.0
    %1931 = vmatprep.subr.mxu0 0.0
    %1932 = vmatpush2.msra.mxu0 0.0
    %1933 = vmatprep.subr.mxu0 0.0
    %1934 = vmatpush2.msra.mxu0 0.0
    %1935 = vmatprep.subr.mxu0 0.0
    %1936 = vmatpush2.msra.mxu0 0.0
    %1937 = vmatprep.subr.mxu0 0.0
    %1938 = vmatpush2.msra.mxu0 0.0
    %1939 = vmatprep.subr.mxu0 0.0
    %1940 = vmatpush2.msra.mxu0 0.0
    %1941 = vmatprep.subr.mxu0 0.0
    %1942 = vmatpush2.msra.mxu0 0.0
    %1943 = vmatprep.subr.mxu0 0.0
    %1944 = vmatpush2.msra.mxu0 0.0
    %1945 = vmatprep.subr.mxu0 0.0
    %1946 = vmatpush2.msra.mxu0 0.0
    %1947 = vmatprep.subr.mxu0 0.0
    %1948 = vmatpush2.msra.mxu0 0.0
    %1949 = vmatprep.subr.mxu0 0.0
    %1950 = vmatpush2.msra.mxu0 0.0
    %1951 = vmatprep.subr.mxu0 0.0
    %1952 = vmatpush2.msra.mxu0 0.0
    %1953 = vmatprep.subr.mxu0 0.0
    %1954 = vmatpush2.msra.mxu0 0.0
    %1955 = vmatprep.subr.mxu0 0.0
    %1956 = vmatpush2.msra.mxu0 0.0
    %1957 = vmatprep.subr.mxu0 0.0
    %1958 = vmatpush2.msra.mxu0 0.0
    %1959 = vmatprep.mubr.f32.mxu0 0.0
    %1960 = vmatmul.mubr.f32.gmra.mxu0 %v1428
    %v1961 = vpop.f32.mrf.mxu0
    %v1962 = vadd.f32 %v1398, %v1961
    %v1963 = vpop.f32.mrf.mxu0
    %v1964 = vadd.f32 %v1402, %v1963
    %1965 = vmatprep.mubr.f32.mxu0 0.0
    %1966 = vmatmul.mubr.f32.gmra.mxu0 %v1431
    %v1967 = vpop.f32.mrf.mxu0
    %v1968 = vadd.f32 %v1398, %v1967
    %v1969 = vpop.f32.mrf.mxu0
    %v1970 = vadd.f32 %v1402, %v1969
    %1971 = vdwg.mxu0
    %1972 = vmatprep.subr.mxu0 0.0
    %1973 = vmatpush1.msra.mxu0 0.0
    %1974 = vmatprep.subr.mxu0 0.0
    %1975 = vmatpush1.msra.mxu0 0.0
    %1976 = vmatprep.subr.mxu0 0.0
    %1977 = vmatpush1.msra.mxu0 0.0
    %1978 = vmatprep.subr.mxu0 0.0
    %1979 = vmatpush1.msra.mxu0 0.0
    %1980 = vmatprep.subr.mxu0 0.0
    %1981 = vmatpush1.msra.mxu0 0.0
    %1982 = vmatprep.subr.mxu0 0.0
    %1983 = vmatpush1.msra.mxu0 0.0
    %1984 = vmatprep.subr.mxu0 0.0
    %1985 = vmatpush1.msra.mxu0 0.0
    %1986 = vmatprep.subr.mxu0 0.0
    %1987 = vmatpush1.msra.mxu0 0.0
    %1988 = vmatprep.subr.mxu0 0.0
    %1989 = vmatpush1.msra.mxu0 0.0
    %1990 = vmatprep.subr.mxu0 0.0
    %1991 = vmatpush1.msra.mxu0 0.0
    %1992 = vmatprep.subr.mxu0 0.0
    %1993 = vmatpush1.msra.mxu0 0.0
    %1994 = vmatprep.subr.mxu0 0.0
    %1995 = vmatpush1.msra.mxu0 0.0
    %1996 = vmatprep.subr.mxu0 %v1344
    %1997 = vmatpush1.msra.mxu0 %v1343
    %1998 = vmatprep.subr.mxu0 %v1328
    %1999 = vmatpush1.msra.mxu0 %v1327
    %2000 = vmatprep.subr.mxu0 %v1312
    %2001 = vmatpush1.msra.mxu0 %v1311
    %2002 = vmatprep.subr.mxu0 %v1296
    %2003 = vmatpush1.msra.mxu0 %v1295
    %2004 = vmatprep.subr.mxu0 0.0
    %2005 = vmatpush2.msra.mxu0 0.0
    %2006 = vmatprep.subr.mxu0 0.0
    %2007 = vmatpush2.msra.mxu0 0.0
    %2008 = vmatprep.subr.mxu0 0.0
    %2009 = vmatpush2.msra.mxu0 0.0
    %2010 = vmatprep.subr.mxu0 0.0
    %2011 = vmatpush2.msra.mxu0 0.0
    %2012 = vmatprep.subr.mxu0 0.0
    %2013 = vmatpush2.msra.mxu0 0.0
    %2014 = vmatprep.subr.mxu0 0.0
    %2015 = vmatpush2.msra.mxu0 0.0
    %2016 = vmatprep.subr.mxu0 0.0
    %2017 = vmatpush2.msra.mxu0 0.0
    %2018 = vmatprep.subr.mxu0 0.0
    %2019 = vmatpush2.msra.mxu0 0.0
    %2020 = vmatprep.subr.mxu0 0.0
    %2021 = vmatpush2.msra.mxu0 0.0
    %2022 = vmatprep.subr.mxu0 0.0
    %2023 = vmatpush2.msra.mxu0 0.0
    %2024 = vmatprep.subr.mxu0 0.0
    %2025 = vmatpush2.msra.mxu0 0.0
    %2026 = vmatprep.subr.mxu0 0.0
    %2027 = vmatpush2.msra.mxu0 0.0
    %2028 = vmatprep.subr.mxu0 0.0
    %2029 = vmatpush2.msra.mxu0 0.0
    %2030 = vmatprep.subr.mxu0 0.0
    %2031 = vmatpush2.msra.mxu0 0.0
    %2032 = vmatprep.subr.mxu0 0.0
    %2033 = vmatpush2.msra.mxu0 0.0
    %2034 = vmatprep.subr.mxu0 0.0
    %2035 = vmatpush2.msra.mxu0 0.0
    %2036 = vmatprep.mubr.f32.mxu0 0.0
    %2037 = vmatmul.mubr.f32.gmra.mxu0 %v1428
    %v2038 = vpop.f32.mrf.mxu0
    %v2039 = vadd.f32 %v1406, %v2038
    %v2040 = vpop.f32.mrf.mxu0
    %v2041 = vadd.f32 %v1410, %v2040
    %2042 = vmatprep.mubr.f32.mxu0 0.0
    %2043 = vmatmul.mubr.f32.gmra.mxu0 %v1431
    %v2044 = vpop.f32.mrf.mxu0
    %v2045 = vadd.f32 %v1406, %v2044
    %v2046 = vpop.f32.mrf.mxu0
    %v2047 = vadd.f32 %v1410, %v2046
    %2048 = vdwg.mxu0
    %v2049 = vmul.f32 %v1500, 0.5
    %v2050 = vmul.f32 %v1502, 0.5
    %v2051 = vmul.f32 %v1577, 0.5
    %v2052 = vmul.f32 %v1579, 0.5
    %v2053 = vmul.f32 %v1654, 0.5
    %v2054 = vmul.f32 %v1656, 0.5
    %v2055 = vmul.f32 %v1731, 0.5
    %v2056 = vmul.f32 %v1733, 0.5
    %v2057 = vmul.f32 %v1808, 0.5
    %v2058 = vmul.f32 %v1810, 0.5
    %v2059 = vmul.f32 %v1885, 0.5
    %v2060 = vmul.f32 %v1887, 0.5
    %v2061 = vmul.f32 %v1962, 0.5
    %v2062 = vmul.f32 %v1964, 0.5
    %v2063 = vmul.f32 %v2039, 0.5
    %v2064 = vmul.f32 %v2041, 0.5
    %v2065 = vmul.f32 %v1506, 0.5
    %v2066 = vmul.f32 %v1508, 0.5
    %v2067 = vmul.f32 %v1583, 0.5
    %v2068 = vmul.f32 %v1585, 0.5
    %v2069 = vmul.f32 %v1660, 0.5
    %v2070 = vmul.f32 %v1662, 0.5
    %v2071 = vmul.f32 %v1737, 0.5
    %v2072 = vmul.f32 %v1739, 0.5
    %v2073 = vmul.f32 %v1814, 0.5
    %v2074 = vmul.f32 %v1816, 0.5
    %v2075 = vmul.f32 %v1891, 0.5
    %v2076 = vmul.f32 %v1893, 0.5
    %v2077 = vmul.f32 %v1968, 0.5
    %v2078 = vmul.f32 %v1970, 0.5
    %v2079 = vmul.f32 %v2045, 0.5
    %v2080 = vmul.f32 %v2047, 0.5
    %v2081 = vmul.f32 %v1500, 0.70710677
    %v2082 = vmul.f32 %v1502, 0.70710677
    %v2083 = vmul.f32 %v1577, 0.70710677
    %v2084 = vmul.f32 %v1579, 0.70710677
    %v2085 = vmul.f32 %v1654, 0.70710677
    %v2086 = vmul.f32 %v1656, 0.70710677
    %v2087 = vmul.f32 %v1731, 0.70710677
    %v2088 = vmul.f32 %v1733, 0.70710677
    %v2089 = vmul.f32 %v1808, 0.70710677
    %v2090 = vmul.f32 %v1810, 0.70710677
    %v2091 = vmul.f32 %v1885, 0.70710677
    %v2092 = vmul.f32 %v1887, 0.70710677
    %v2093 = vmul.f32 %v1962, 0.70710677
    %v2094 = vmul.f32 %v1964, 0.70710677
    %v2095 = vmul.f32 %v2039, 0.70710677
    %v2096 = vmul.f32 %v2041, 0.70710677
    %v2097 = vmul.f32 %v1506, 0.70710677
    %v2098 = vmul.f32 %v1508, 0.70710677
    %v2099 = vmul.f32 %v1583, 0.70710677
    %v2100 = vmul.f32 %v1585, 0.70710677
    %v2101 = vmul.f32 %v1660, 0.70710677
    %v2102 = vmul.f32 %v1662, 0.70710677
    %v2103 = vmul.f32 %v1737, 0.70710677
    %v2104 = vmul.f32 %v1739, 0.70710677
    %v2105 = vmul.f32 %v1814, 0.70710677
    %v2106 = vmul.f32 %v1816, 0.70710677
    %v2107 = vmul.f32 %v1891, 0.70710677
    %v2108 = vmul.f32 %v1893, 0.70710677
    %v2109 = vmul.f32 %v1968, 0.70710677
    %v2110 = vmul.f32 %v1970, 0.70710677
    %v2111 = vmul.f32 %v2045, 0.70710677
    %v2112 = vmul.f32 %v2047, 0.70710677
    %v2113 = verf.f32.pop %v2081
    %v2114 = verf.f32.pop %v2082
    %v2115 = verf.f32.pop %v2083
    %v2116 = verf.f32.pop %v2084
    %v2117 = verf.f32.pop %v2085
    %v2118 = verf.f32.pop %v2086
    %v2119 = verf.f32.pop %v2087
    %v2120 = verf.f32.pop %v2088
    %v2121 = verf.f32.pop %v2089
    %v2122 = verf.f32.pop %v2090
    %v2123 = verf.f32.pop %v2091
    %v2124 = verf.f32.pop %v2092
    %v2125 = verf.f32.pop %v2093
    %v2126 = verf.f32.pop %v2094
    %v2127 = verf.f32.pop %v2095
    %v2128 = verf.f32.pop %v2096
    %v2129 = verf.f32.pop %v2097
    %v2130 = verf.f32.pop %v2098
    %v2131 = verf.f32.pop %v2099
    %v2132 = verf.f32.pop %v2100
    %v2133 = verf.f32.pop %v2101
    %v2134 = verf.f32.pop %v2102
    %v2135 = verf.f32.pop %v2103
    %v2136 = verf.f32.pop %v2104
    %v2137 = verf.f32.pop %v2105
    %v2138 = verf.f32.pop %v2106
    %v2139 = verf.f32.pop %v2107
    %v2140 = verf.f32.pop %v2108
    %v2141 = verf.f32.pop %v2109
    %v2142 = verf.f32.pop %v2110
    %v2143 = verf.f32.pop %v2111
    %v2144 = verf.f32.pop %v2112
    %v2145 = vadd.f32 %v2113, 1.0
    %v2146 = vadd.f32 %v2114, 1.0
    %v2147 = vadd.f32 %v2115, 1.0
    %v2148 = vadd.f32 %v2116, 1.0
    %v2149 = vadd.f32 %v2117, 1.0
    %v2150 = vadd.f32 %v2118, 1.0
    %v2151 = vadd.f32 %v2119, 1.0
    %v2152 = vadd.f32 %v2120, 1.0
    %v2153 = vadd.f32 %v2121, 1.0
    %v2154 = vadd.f32 %v2122, 1.0
    %v2155 = vadd.f32 %v2123, 1.0
    %v2156 = vadd.f32 %v2124, 1.0
    %v2157 = vadd.f32 %v2125, 1.0
    %v2158 = vadd.f32 %v2126, 1.0
    %v2159 = vadd.f32 %v2127, 1.0
    %v2160 = vadd.f32 %v2128, 1.0
    %v2161 = vadd.f32 %v2129, 1.0
    %v2162 = vadd.f32 %v2130, 1.0
    %v2163 = vadd.f32 %v2131, 1.0
    %v2164 = vadd.f32 %v2132, 1.0
    %v2165 = vadd.f32 %v2133, 1.0
    %v2166 = vadd.f32 %v2134, 1.0
    %v2167 = vadd.f32 %v2135, 1.0
    %v2168 = vadd.f32 %v2136, 1.0
    %v2169 = vadd.f32 %v2137, 1.0
    %v2170 = vadd.f32 %v2138, 1.0
    %v2171 = vadd.f32 %v2139, 1.0
    %v2172 = vadd.f32 %v2140, 1.0
    %v2173 = vadd.f32 %v2141, 1.0
    %v2174 = vadd.f32 %v2142, 1.0
    %v2175 = vadd.f32 %v2143, 1.0
    %v2176 = vadd.f32 %v2144, 1.0
    %v2177 = vmul.f32 %v2049, %v2145
    %v2178 = vmul.f32 %v2050, %v2146
    %v2179 = vmul.f32 %v2051, %v2147
    %v2180 = vmul.f32 %v2052, %v2148
    %v2181 = vmul.f32 %v2053, %v2149
    %v2182 = vmul.f32 %v2054, %v2150
    %v2183 = vmul.f32 %v2055, %v2151
    %v2184 = vmul.f32 %v2056, %v2152
    %v2185 = vmul.f32 %v2057, %v2153
    %v2186 = vmul.f32 %v2058, %v2154
    %v2187 = vmul.f32 %v2059, %v2155
    %v2188 = vmul.f32 %v2060, %v2156
    %v2189 = vmul.f32 %v2061, %v2157
    %v2190 = vmul.f32 %v2062, %v2158
    %v2191 = vmul.f32 %v2063, %v2159
    %v2192 = vmul.f32 %v2064, %v2160
    %v2193 = vmul.f32 %v2065, %v2161
    %v2194 = vmul.f32 %v2066, %v2162
    %v2195 = vmul.f32 %v2067, %v2163
    %v2196 = vmul.f32 %v2068, %v2164
    %v2197 = vmul.f32 %v2069, %v2165
    %v2198 = vmul.f32 %v2070, %v2166
    %v2199 = vmul.f32 %v2071, %v2167
    %v2200 = vmul.f32 %v2072, %v2168
    %v2201 = vmul.f32 %v2073, %v2169
    %v2202 = vmul.f32 %v2074, %v2170
    %v2203 = vmul.f32 %v2075, %v2171
    %v2204 = vmul.f32 %v2076, %v2172
    %v2205 = vmul.f32 %v2077, %v2173
    %v2206 = vmul.f32 %v2078, %v2174
    %v2207 = vmul.f32 %v2079, %v2175
    %v2208 = vmul.f32 %v2080, %v2176
    %v2209 = vld [vmem:[%s10] sm:$0xff]
    %v2210 = vld [vmem:[%s10 + $0x8] sm:$0xff]
    %v2211 = vld [vmem:[%s10 + $0x10] sm:$0xff]
    %v2212 = vld [vmem:[%s10 + $0x18] sm:$0xff]
    %v2213 = vld [vmem:[%s10 + $0x20] sm:$0xff]
    %v2214 = vld [vmem:[%s10 + $0x28] sm:$0xff]
    %v2215 = vld [vmem:[%s10 + $0x30] sm:$0xff]
    %v2216 = vld [vmem:[%s10 + $0x38] sm:$0xff]
    %v2217 = vld [vmem:[%s10 + $0x40] sm:$0xff]
    %v2218 = vld [vmem:[%s10 + $0x48] sm:$0xff]
    %v2219 = vld [vmem:[%s10 + $0x50] sm:$0xff]
    %v2220 = vld [vmem:[%s10 + $0x58] sm:$0xff]
    %v2221 = vld [vmem:[%s10 + $0x60] sm:$0xff]
    %v2222 = vld [vmem:[%s10 + $0x68] sm:$0xff]
    %v2223 = vld [vmem:[%s10 + $0x70] sm:$0xff]
    %v2224 = vld [vmem:[%s10 + $0x78] sm:$0xff]
    %v2225 = vld [vmem:[%s10 + $0x80] sm:$0xff]
    %v2226 = vld [vmem:[%s10 + $0x88] sm:$0xff]
    %v2227 = vld [vmem:[%s10 + $0x90] sm:$0xff]
    %v2228 = vld [vmem:[%s10 + $0x98] sm:$0xff]
    %v2229 = vld [vmem:[%s10 + $0xa0] sm:$0xff]
    %v2230 = vld [vmem:[%s10 + $0xa8] sm:$0xff]
    %v2231 = vld [vmem:[%s10 + $0xb0] sm:$0xff]
    %v2232 = vld [vmem:[%s10 + $0xb8] sm:$0xff]
    %v2233 = vld [vmem:[%s10 + $0xc0] sm:$0xff]
    %v2234 = vld [vmem:[%s10 + $0xc8] sm:$0xff]
    %v2235 = vld [vmem:[%s10 + $0xd0] sm:$0xff]
    %v2236 = vld [vmem:[%s10 + $0xd8] sm:$0xff]
    %v2237 = vld [vmem:[%s10 + $0xe0] sm:$0xff]
    %v2238 = vld [vmem:[%s10 + $0xe8] sm:$0xff]
    %v2239 = vld [vmem:[%s10 + $0xf0] sm:$0xff]
    %v2240 = vld [vmem:[%s10 + $0xf8] sm:$0xff]
    %v2241 = vld [vmem:[%s10 + $0x100] sm:$0xff]
    %v2242 = vld [vmem:[%s10 + $0x108] sm:$0xff]
    %v2243 = vld [vmem:[%s10 + $0x110] sm:$0xff]
    %v2244 = vld [vmem:[%s10 + $0x118] sm:$0xff]
    %v2245 = vld [vmem:[%s10 + $0x120] sm:$0xff]
    %v2246 = vld [vmem:[%s10 + $0x128] sm:$0xff]
    %v2247 = vld [vmem:[%s10 + $0x130] sm:$0xff]
    %v2248 = vld [vmem:[%s10 + $0x138] sm:$0xff]
    %v2249 = vld [vmem:[%s10 + $0x140] sm:$0xff]
    %v2250 = vld [vmem:[%s10 + $0x148] sm:$0xff]
    %v2251 = vld [vmem:[%s10 + $0x150] sm:$0xff]
    %v2252 = vld [vmem:[%s10 + $0x158] sm:$0xff]
    %v2253 = vld [vmem:[%s10 + $0x160] sm:$0xff]
    %v2254 = vld [vmem:[%s10 + $0x168] sm:$0xff]
    %v2255 = vld [vmem:[%s10 + $0x170] sm:$0xff]
    %v2256 = vld [vmem:[%s10 + $0x178] sm:$0xff]
    %v2257 = vld [vmem:[%s10 + $0x180] sm:$0xff]
    %v2258 = vld [vmem:[%s10 + $0x188] sm:$0xff]
    %v2259 = vld [vmem:[%s10 + $0x190] sm:$0xff]
    %v2260 = vld [vmem:[%s10 + $0x198] sm:$0xff]
    %v2261 = vld [vmem:[%s10 + $0x1a0] sm:$0xff]
    %v2262 = vld [vmem:[%s10 + $0x1a8] sm:$0xff]
    %v2263 = vld [vmem:[%s10 + $0x1b0] sm:$0xff]
    %v2264 = vld [vmem:[%s10 + $0x1b8] sm:$0xff]
    %v2265 = vld [vmem:[%s10 + $0x1c0] sm:$0xff]
    %v2266 = vld [vmem:[%s10 + $0x1c8] sm:$0xff]
    %v2267 = vld [vmem:[%s10 + $0x1d0] sm:$0xff]
    %v2268 = vld [vmem:[%s10 + $0x1d8] sm:$0xff]
    %v2269 = vld [vmem:[%s10 + $0x1e0] sm:$0xff]
    %v2270 = vld [vmem:[%s10 + $0x1e8] sm:$0xff]
    %v2271 = vld [vmem:[%s10 + $0x1f0] sm:$0xff]
    %v2272 = vld [vmem:[%s10 + $0x1f8] sm:$0xff]
    %v2273 = vld [vmem:[%s10 + $0x200] sm:$0xff]
    %v2274 = vld [vmem:[%s10 + $0x208] sm:$0xff]
    %v2275 = vld [vmem:[%s10 + $0x210] sm:$0xff]
    %v2276 = vld [vmem:[%s10 + $0x218] sm:$0xff]
    %v2277 = vld [vmem:[%s10 + $0x220] sm:$0xff]
    %v2278 = vld [vmem:[%s10 + $0x228] sm:$0xff]
    %v2279 = vld [vmem:[%s10 + $0x230] sm:$0xff]
    %v2280 = vld [vmem:[%s10 + $0x238] sm:$0xff]
    %v2281 = vld [vmem:[%s10 + $0x240] sm:$0xff]
    %v2282 = vld [vmem:[%s10 + $0x248] sm:$0xff]
    %v2283 = vld [vmem:[%s10 + $0x250] sm:$0xff]
    %v2284 = vld [vmem:[%s10 + $0x258] sm:$0xff]
    %v2285 = vld [vmem:[%s10 + $0x260] sm:$0xff]
    %v2286 = vld [vmem:[%s10 + $0x268] sm:$0xff]
    %v2287 = vld [vmem:[%s10 + $0x270] sm:$0xff]
    %v2288 = vld [vmem:[%s10 + $0x278] sm:$0xff]
    %v2289 = vld [vmem:[%s10 + $0x280] sm:$0xff]
    %v2290 = vld [vmem:[%s10 + $0x288] sm:$0xff]
    %v2291 = vld [vmem:[%s10 + $0x290] sm:$0xff]
    %v2292 = vld [vmem:[%s10 + $0x298] sm:$0xff]
    %v2293 = vld [vmem:[%s10 + $0x2a0] sm:$0xff]
    %v2294 = vld [vmem:[%s10 + $0x2a8] sm:$0xff]
    %v2295 = vld [vmem:[%s10 + $0x2b0] sm:$0xff]
    %v2296 = vld [vmem:[%s10 + $0x2b8] sm:$0xff]
    %v2297 = vld [vmem:[%s10 + $0x2c0] sm:$0xff]
    %v2298 = vld [vmem:[%s10 + $0x2c8] sm:$0xff]
    %v2299 = vld [vmem:[%s10 + $0x2d0] sm:$0xff]
    %v2300 = vld [vmem:[%s10 + $0x2d8] sm:$0xff]
    %v2301 = vld [vmem:[%s10 + $0x2e0] sm:$0xff]
    %v2302 = vld [vmem:[%s10 + $0x2e8] sm:$0xff]
    %v2303 = vld [vmem:[%s10 + $0x2f0] sm:$0xff]
    %v2304 = vld [vmem:[%s10 + $0x2f8] sm:$0xff]
    %v2305 = vld [vmem:[%s10 + $0x300] sm:$0xff]
    %v2306 = vld [vmem:[%s10 + $0x308] sm:$0xff]
    %v2307 = vld [vmem:[%s10 + $0x310] sm:$0xff]
    %v2308 = vld [vmem:[%s10 + $0x318] sm:$0xff]
    %v2309 = vld [vmem:[%s10 + $0x320] sm:$0xff]
    %v2310 = vld [vmem:[%s10 + $0x328] sm:$0xff]
    %v2311 = vld [vmem:[%s10 + $0x330] sm:$0xff]
    %v2312 = vld [vmem:[%s10 + $0x338] sm:$0xff]
    %v2313 = vld [vmem:[%s10 + $0x340] sm:$0xff]
    %v2314 = vld [vmem:[%s10 + $0x348] sm:$0xff]
    %v2315 = vld [vmem:[%s10 + $0x350] sm:$0xff]
    %v2316 = vld [vmem:[%s10 + $0x358] sm:$0xff]
    %v2317 = vld [vmem:[%s10 + $0x360] sm:$0xff]
    %v2318 = vld [vmem:[%s10 + $0x368] sm:$0xff]
    %v2319 = vld [vmem:[%s10 + $0x370] sm:$0xff]
    %v2320 = vld [vmem:[%s10 + $0x378] sm:$0xff]
    %v2321 = vld [vmem:[%s10 + $0x380] sm:$0xff]
    %v2322 = vld [vmem:[%s10 + $0x388] sm:$0xff]
    %v2323 = vld [vmem:[%s10 + $0x390] sm:$0xff]
    %v2324 = vld [vmem:[%s10 + $0x398] sm:$0xff]
    %v2325 = vld [vmem:[%s10 + $0x3a0] sm:$0xff]
    %v2326 = vld [vmem:[%s10 + $0x3a8] sm:$0xff]
    %v2327 = vld [vmem:[%s10 + $0x3b0] sm:$0xff]
    %v2328 = vld [vmem:[%s10 + $0x3b8] sm:$0xff]
    %v2329 = vld [vmem:[%s10 + $0x3c0] sm:$0xff]
    %v2330 = vld [vmem:[%s10 + $0x3c8] sm:$0xff]
    %v2331 = vld [vmem:[%s10 + $0x3d0] sm:$0xff]
    %v2332 = vld [vmem:[%s10 + $0x3d8] sm:$0xff]
    %v2333 = vld [vmem:[%s10 + $0x3e0] sm:$0xff]
    %v2334 = vld [vmem:[%s10 + $0x3e8] sm:$0xff]
    %v2335 = vld [vmem:[%s10 + $0x3f0] sm:$0xff]
    %v2336 = vld [vmem:[%s10 + $0x3f8] sm:$0xff]
    %v2337 = vld [vmem:[%s10 + $0x400] sm:$0xff]
    %v2338 = vld [vmem:[%s10 + $0x408] sm:$0xff]
    %v2339 = vld [vmem:[%s10 + $0x410] sm:$0xff]
    %v2340 = vld [vmem:[%s10 + $0x418] sm:$0xff]
    %v2341 = vld [vmem:[%s10 + $0x420] sm:$0xff]
    %v2342 = vld [vmem:[%s10 + $0x428] sm:$0xff]
    %v2343 = vld [vmem:[%s10 + $0x430] sm:$0xff]
    %v2344 = vld [vmem:[%s10 + $0x438] sm:$0xff]
    %v2345 = vld [vmem:[%s10 + $0x440] sm:$0xff]
    %v2346 = vld [vmem:[%s10 + $0x448] sm:$0xff]
    %v2347 = vld [vmem:[%s10 + $0x450] sm:$0xff]
    %v2348 = vld [vmem:[%s10 + $0x458] sm:$0xff]
    %v2349 = vld [vmem:[%s10 + $0x460] sm:$0xff]
    %v2350 = vld [vmem:[%s10 + $0x468] sm:$0xff]
    %v2351 = vld [vmem:[%s10 + $0x470] sm:$0xff]
    %v2352 = vld [vmem:[%s10 + $0x478] sm:$0xff]
    %v2353 = vld [vmem:[%s10 + $0x480] sm:$0xff]
    %v2354 = vld [vmem:[%s10 + $0x488] sm:$0xff]
    %v2355 = vld [vmem:[%s10 + $0x490] sm:$0xff]
    %v2356 = vld [vmem:[%s10 + $0x498] sm:$0xff]
    %v2357 = vld [vmem:[%s10 + $0x4a0] sm:$0xff]
    %v2358 = vld [vmem:[%s10 + $0x4a8] sm:$0xff]
    %v2359 = vld [vmem:[%s10 + $0x4b0] sm:$0xff]
    %v2360 = vld [vmem:[%s10 + $0x4b8] sm:$0xff]
    %v2361 = vld [vmem:[%s10 + $0x4c0] sm:$0xff]
    %v2362 = vld [vmem:[%s10 + $0x4c8] sm:$0xff]
    %v2363 = vld [vmem:[%s10 + $0x4d0] sm:$0xff]
    %v2364 = vld [vmem:[%s10 + $0x4d8] sm:$0xff]
    %v2365 = vld [vmem:[%s10 + $0x4e0] sm:$0xff]
    %v2366 = vld [vmem:[%s10 + $0x4e8] sm:$0xff]
    %v2367 = vld [vmem:[%s10 + $0x4f0] sm:$0xff]
    %v2368 = vld [vmem:[%s10 + $0x4f8] sm:$0xff]
    %v2369 = vld [vmem:[%s10 + $0x500] sm:$0xff]
    %v2370 = vld [vmem:[%s10 + $0x508] sm:$0xff]
    %v2371 = vld [vmem:[%s10 + $0x510] sm:$0xff]
    %v2372 = vld [vmem:[%s10 + $0x518] sm:$0xff]
    %v2373 = vld [vmem:[%s10 + $0x520] sm:$0xff]
    %v2374 = vld [vmem:[%s10 + $0x528] sm:$0xff]
    %v2375 = vld [vmem:[%s10 + $0x530] sm:$0xff]
    %v2376 = vld [vmem:[%s10 + $0x538] sm:$0xff]
    %v2377 = vld [vmem:[%s10 + $0x540] sm:$0xff]
    %v2378 = vld [vmem:[%s10 + $0x548] sm:$0xff]
    %v2379 = vld [vmem:[%s10 + $0x550] sm:$0xff]
    %v2380 = vld [vmem:[%s10 + $0x558] sm:$0xff]
    %v2381 = vld [vmem:[%s10 + $0x560] sm:$0xff]
    %v2382 = vld [vmem:[%s10 + $0x568] sm:$0xff]
    %v2383 = vld [vmem:[%s10 + $0x570] sm:$0xff]
    %v2384 = vld [vmem:[%s10 + $0x578] sm:$0xff]
    %v2385 = vld [vmem:[%s10 + $0x580] sm:$0xff]
    %v2386 = vld [vmem:[%s10 + $0x588] sm:$0xff]
    %v2387 = vld [vmem:[%s10 + $0x590] sm:$0xff]
    %v2388 = vld [vmem:[%s10 + $0x598] sm:$0xff]
    %v2389 = vld [vmem:[%s10 + $0x5a0] sm:$0xff]
    %v2390 = vld [vmem:[%s10 + $0x5a8] sm:$0xff]
    %v2391 = vld [vmem:[%s10 + $0x5b0] sm:$0xff]
    %v2392 = vld [vmem:[%s10 + $0x5b8] sm:$0xff]
    %v2393 = vld [vmem:[%s10 + $0x5c0] sm:$0xff]
    %v2394 = vld [vmem:[%s10 + $0x5c8] sm:$0xff]
    %v2395 = vld [vmem:[%s10 + $0x5d0] sm:$0xff]
    %v2396 = vld [vmem:[%s10 + $0x5d8] sm:$0xff]
    %v2397 = vld [vmem:[%s10 + $0x5e0] sm:$0xff]
    %v2398 = vld [vmem:[%s10 + $0x5e8] sm:$0xff]
    %v2399 = vld [vmem:[%s10 + $0x5f0] sm:$0xff]
    %v2400 = vld [vmem:[%s10 + $0x5f8] sm:$0xff]
    %v2401 = vld [vmem:[%s10 + $0x600] sm:$0xff]
    %v2402 = vld [vmem:[%s10 + $0x608] sm:$0xff]
    %v2403 = vld [vmem:[%s10 + $0x610] sm:$0xff]
    %v2404 = vld [vmem:[%s10 + $0x618] sm:$0xff]
    %v2405 = vld [vmem:[%s10 + $0x620] sm:$0xff]
    %v2406 = vld [vmem:[%s10 + $0x628] sm:$0xff]
    %v2407 = vld [vmem:[%s10 + $0x630] sm:$0xff]
    %v2408 = vld [vmem:[%s10 + $0x638] sm:$0xff]
    %v2409 = vld [vmem:[%s10 + $0x640] sm:$0xff]
    %v2410 = vld [vmem:[%s10 + $0x648] sm:$0xff]
    %v2411 = vld [vmem:[%s10 + $0x650] sm:$0xff]
    %v2412 = vld [vmem:[%s10 + $0x658] sm:$0xff]
    %v2413 = vld [vmem:[%s10 + $0x660] sm:$0xff]
    %v2414 = vld [vmem:[%s10 + $0x668] sm:$0xff]
    %v2415 = vld [vmem:[%s10 + $0x670] sm:$0xff]
    %v2416 = vld [vmem:[%s10 + $0x678] sm:$0xff]
    %v2417 = vld [vmem:[%s10 + $0x680] sm:$0xff]
    %v2418 = vld [vmem:[%s10 + $0x688] sm:$0xff]
    %v2419 = vld [vmem:[%s10 + $0x690] sm:$0xff]
    %v2420 = vld [vmem:[%s10 + $0x698] sm:$0xff]
    %v2421 = vld [vmem:[%s10 + $0x6a0] sm:$0xff]
    %v2422 = vld [vmem:[%s10 + $0x6a8] sm:$0xff]
    %v2423 = vld [vmem:[%s10 + $0x6b0] sm:$0xff]
    %v2424 = vld [vmem:[%s10 + $0x6b8] sm:$0xff]
    %v2425 = vld [vmem:[%s10 + $0x6c0] sm:$0xff]
    %v2426 = vld [vmem:[%s10 + $0x6c8] sm:$0xff]
    %v2427 = vld [vmem:[%s10 + $0x6d0] sm:$0xff]
    %v2428 = vld [vmem:[%s10 + $0x6d8] sm:$0xff]
    %v2429 = vld [vmem:[%s10 + $0x6e0] sm:$0xff]
    %v2430 = vld [vmem:[%s10 + $0x6e8] sm:$0xff]
    %v2431 = vld [vmem:[%s10 + $0x6f0] sm:$0xff]
    %v2432 = vld [vmem:[%s10 + $0x6f8] sm:$0xff]
    %v2433 = vld [vmem:[%s10 + $0x700] sm:$0xff]
    %v2434 = vld [vmem:[%s10 + $0x708] sm:$0xff]
    %v2435 = vld [vmem:[%s10 + $0x710] sm:$0xff]
    %v2436 = vld [vmem:[%s10 + $0x718] sm:$0xff]
    %v2437 = vld [vmem:[%s10 + $0x720] sm:$0xff]
    %v2438 = vld [vmem:[%s10 + $0x728] sm:$0xff]
    %v2439 = vld [vmem:[%s10 + $0x730] sm:$0xff]
    %v2440 = vld [vmem:[%s10 + $0x738] sm:$0xff]
    %v2441 = vld [vmem:[%s10 + $0x740] sm:$0xff]
    %v2442 = vld [vmem:[%s10 + $0x748] sm:$0xff]
    %v2443 = vld [vmem:[%s10 + $0x750] sm:$0xff]
    %v2444 = vld [vmem:[%s10 + $0x758] sm:$0xff]
    %v2445 = vld [vmem:[%s10 + $0x760] sm:$0xff]
    %v2446 = vld [vmem:[%s10 + $0x768] sm:$0xff]
    %v2447 = vld [vmem:[%s10 + $0x770] sm:$0xff]
    %v2448 = vld [vmem:[%s10 + $0x778] sm:$0xff]
    %v2449 = vld [vmem:[%s10 + $0x780] sm:$0xff]
    %v2450 = vld [vmem:[%s10 + $0x788] sm:$0xff]
    %v2451 = vld [vmem:[%s10 + $0x790] sm:$0xff]
    %v2452 = vld [vmem:[%s10 + $0x798] sm:$0xff]
    %v2453 = vld [vmem:[%s10 + $0x7a0] sm:$0xff]
    %v2454 = vld [vmem:[%s10 + $0x7a8] sm:$0xff]
    %v2455 = vld [vmem:[%s10 + $0x7b0] sm:$0xff]
    %v2456 = vld [vmem:[%s10 + $0x7b8] sm:$0xff]
    %v2457 = vld [vmem:[%s10 + $0x7c0] sm:$0xff]
    %v2458 = vld [vmem:[%s10 + $0x7c8] sm:$0xff]
    %v2459 = vld [vmem:[%s10 + $0x7d0] sm:$0xff]
    %v2460 = vld [vmem:[%s10 + $0x7d8] sm:$0xff]
    %v2461 = vld [vmem:[%s10 + $0x7e0] sm:$0xff]
    %v2462 = vld [vmem:[%s10 + $0x7e8] sm:$0xff]
    %v2463 = vld [vmem:[%s10 + $0x7f0] sm:$0xff]
    %v2464 = vld [vmem:[%s10 + $0x7f8] sm:$0xff]
    %v2466 = vlaneseq
    %v2467 = vshrl.u32 %v2466, 7
    %v2468 = vsub.s32 0, %v2467
    %v2469 = vrot.slane %v1280, %v2468
    %2471 = vmatprep.subr.mxu0 0.0
    %2472 = vmatpush1.msra.mxu0 %v2224
    %2473 = vmatprep.subr.mxu0 0.0
    %2474 = vmatpush1.msra.mxu0 %v2223
    %2475 = vmatprep.subr.mxu0 0.0
    %2476 = vmatpush1.msra.mxu0 %v2222
    %2477 = vmatprep.subr.mxu0 0.0
    %2478 = vmatpush1.msra.mxu0 %v2221
    %2479 = vmatprep.subr.mxu0 0.0
    %2480 = vmatpush1.msra.mxu0 %v2220
    %2481 = vmatprep.subr.mxu0 0.0
    %2482 = vmatpush1.msra.mxu0 %v2219
    %2483 = vmatprep.subr.mxu0 0.0
    %2484 = vmatpush1.msra.mxu0 %v2218
    %2485 = vmatprep.subr.mxu0 0.0
    %2486 = vmatpush1.msra.mxu0 %v2217
    %2487 = vmatprep.subr.mxu0 0.0
    %2488 = vmatpush1.msra.mxu0 %v2216
    %2489 = vmatprep.subr.mxu0 0.0
    %2490 = vmatpush1.msra.mxu0 %v2215
    %2491 = vmatprep.subr.mxu0 0.0
    %2492 = vmatpush1.msra.mxu0 %v2214
    %2493 = vmatprep.subr.mxu0 0.0
    %2494 = vmatpush1.msra.mxu0 %v2213
    %2495 = vmatprep.subr.mxu0 0.0
    %2496 = vmatpush1.msra.mxu0 %v2212
    %2497 = vmatprep.subr.mxu0 0.0
    %2498 = vmatpush1.msra.mxu0 %v2211
    %2499 = vmatprep.subr.mxu0 0.0
    %2500 = vmatpush1.msra.mxu0 %v2210
    %2501 = vmatprep.subr.mxu0 0.0
    %2502 = vmatpush1.msra.mxu0 %v2209
    %2503 = vmatprep.subr.mxu0 0.0
    %2504 = vmatpush2.msra.mxu0 %v2240
    %2505 = vmatprep.subr.mxu0 0.0
    %2506 = vmatpush2.msra.mxu0 %v2239
    %2507 = vmatprep.subr.mxu0 0.0
    %2508 = vmatpush2.msra.mxu0 %v2238
    %2509 = vmatprep.subr.mxu0 0.0
    %2510 = vmatpush2.msra.mxu0 %v2237
    %2511 = vmatprep.subr.mxu0 0.0
    %2512 = vmatpush2.msra.mxu0 %v2236
    %2513 = vmatprep.subr.mxu0 0.0
    %2514 = vmatpush2.msra.mxu0 %v2235
    %2515 = vmatprep.subr.mxu0 0.0
    %2516 = vmatpush2.msra.mxu0 %v2234
    %2517 = vmatprep.subr.mxu0 0.0
    %2518 = vmatpush2.msra.mxu0 %v2233
    %2519 = vmatprep.subr.mxu0 0.0
    %2520 = vmatpush2.msra.mxu0 %v2232
    %2521 = vmatprep.subr.mxu0 0.0
    %2522 = vmatpush2.msra.mxu0 %v2231
    %2523 = vmatprep.subr.mxu0 0.0
    %2524 = vmatpush2.msra.mxu0 %v2230
    %2525 = vmatprep.subr.mxu0 0.0
    %2526 = vmatpush2.msra.mxu0 %v2229
    %2527 = vmatprep.subr.mxu0 0.0
    %2528 = vmatpush2.msra.mxu0 %v2228
    %2529 = vmatprep.subr.mxu0 0.0
    %2530 = vmatpush2.msra.mxu0 %v2227
    %2531 = vmatprep.subr.mxu0 0.0
    %2532 = vmatpush2.msra.mxu0 %v2226
    %2533 = vmatprep.subr.mxu0 0.0
    %2534 = vmatpush2.msra.mxu0 %v2225
    %2535 = vmatprep.mubr.f32.mxu0 %v2178
    %2536 = vmatmul.mubr.f32.gmra.mxu0 %v2177
    %v2537 = vpop.f32.mrf.mxu0
    %v2538 = vadd.f32 %v2469, %v2537
    %v2539 = vpop.f32.mrf.mxu0
    %2540 = vmatprep.mubr.f32.mxu0 %v2194
    %2541 = vmatmul.mubr.f32.gmra.mxu0 %v2193
    %v2542 = vpop.f32.mrf.mxu0
    %v2543 = vadd.f32 %v2469, %v2542
    %v2544 = vpop.f32.mrf.mxu0
    %2545 = vdwg.mxu0
    %2546 = vmatprep.subr.mxu0 0.0
    %2547 = vmatpush1.msra.mxu0 %v2256
    %2548 = vmatprep.subr.mxu0 0.0
    %2549 = vmatpush1.msra.mxu0 %v2255
    %2550 = vmatprep.subr.mxu0 0.0
    %2551 = vmatpush1.msra.mxu0 %v2254
    %2552 = vmatprep.subr.mxu0 0.0
    %2553 = vmatpush1.msra.mxu0 %v2253
    %2554 = vmatprep.subr.mxu0 0.0
    %2555 = vmatpush1.msra.mxu0 %v2252
    %2556 = vmatprep.subr.mxu0 0.0
    %2557 = vmatpush1.msra.mxu0 %v2251
    %2558 = vmatprep.subr.mxu0 0.0
    %2559 = vmatpush1.msra.mxu0 %v2250
    %2560 = vmatprep.subr.mxu0 0.0
    %2561 = vmatpush1.msra.mxu0 %v2249
    %2562 = vmatprep.subr.mxu0 0.0
    %2563 = vmatpush1.msra.mxu0 %v2248
    %2564 = vmatprep.subr.mxu0 0.0
    %2565 = vmatpush1.msra.mxu0 %v2247
    %2566 = vmatprep.subr.mxu0 0.0
    %2567 = vmatpush1.msra.mxu0 %v2246
    %2568 = vmatprep.subr.mxu0 0.0
    %2569 = vmatpush1.msra.mxu0 %v2245
    %2570 = vmatprep.subr.mxu0 0.0
    %2571 = vmatpush1.msra.mxu0 %v2244
    %2572 = vmatprep.subr.mxu0 0.0
    %2573 = vmatpush1.msra.mxu0 %v2243
    %2574 = vmatprep.subr.mxu0 0.0
    %2575 = vmatpush1.msra.mxu0 %v2242
    %2576 = vmatprep.subr.mxu0 0.0
    %2577 = vmatpush1.msra.mxu0 %v2241
    %2578 = vmatprep.subr.mxu0 0.0
    %2579 = vmatpush2.msra.mxu0 %v2272
    %2580 = vmatprep.subr.mxu0 0.0
    %2581 = vmatpush2.msra.mxu0 %v2271
    %2582 = vmatprep.subr.mxu0 0.0
    %2583 = vmatpush2.msra.mxu0 %v2270
    %2584 = vmatprep.subr.mxu0 0.0
    %2585 = vmatpush2.msra.mxu0 %v2269
    %2586 = vmatprep.subr.mxu0 0.0
    %2587 = vmatpush2.msra.mxu0 %v2268
    %2588 = vmatprep.subr.mxu0 0.0
    %2589 = vmatpush2.msra.mxu0 %v2267
    %2590 = vmatprep.subr.mxu0 0.0
    %2591 = vmatpush2.msra.mxu0 %v2266
    %2592 = vmatprep.subr.mxu0 0.0
    %2593 = vmatpush2.msra.mxu0 %v2265
    %2594 = vmatprep.subr.mxu0 0.0
    %2595 = vmatpush2.msra.mxu0 %v2264
    %2596 = vmatprep.subr.mxu0 0.0
    %2597 = vmatpush2.msra.mxu0 %v2263
    %2598 = vmatprep.subr.mxu0 0.0
    %2599 = vmatpush2.msra.mxu0 %v2262
    %2600 = vmatprep.subr.mxu0 0.0
    %2601 = vmatpush2.msra.mxu0 %v2261
    %2602 = vmatprep.subr.mxu0 0.0
    %2603 = vmatpush2.msra.mxu0 %v2260
    %2604 = vmatprep.subr.mxu0 0.0
    %2605 = vmatpush2.msra.mxu0 %v2259
    %2606 = vmatprep.subr.mxu0 0.0
    %2607 = vmatpush2.msra.mxu0 %v2258
    %2608 = vmatprep.subr.mxu0 0.0
    %2609 = vmatpush2.msra.mxu0 %v2257
    %2610 = vmatprep.mubr.f32.mxu0 %v2180
    %2611 = vmatmul.mubr.f32.gmra.mxu0 %v2179
    %v2612 = vpop.f32.mrf.mxu0
    %v2613 = vadd.f32 %v2538, %v2612
    %v2614 = vpop.f32.mrf.mxu0
    %2615 = vmatprep.mubr.f32.mxu0 %v2196
    %2616 = vmatmul.mubr.f32.gmra.mxu0 %v2195
    %v2617 = vpop.f32.mrf.mxu0
    %v2618 = vadd.f32 %v2543, %v2617
    %v2619 = vpop.f32.mrf.mxu0
    %2620 = vdwg.mxu0
    %2621 = vmatprep.subr.mxu0 0.0
    %2622 = vmatpush1.msra.mxu0 %v2288
    %2623 = vmatprep.subr.mxu0 0.0
    %2624 = vmatpush1.msra.mxu0 %v2287
    %2625 = vmatprep.subr.mxu0 0.0
    %2626 = vmatpush1.msra.mxu0 %v2286
    %2627 = vmatprep.subr.mxu0 0.0
    %2628 = vmatpush1.msra.mxu0 %v2285
    %2629 = vmatprep.subr.mxu0 0.0
    %2630 = vmatpush1.msra.mxu0 %v2284
    %2631 = vmatprep.subr.mxu0 0.0
    %2632 = vmatpush1.msra.mxu0 %v2283
    %2633 = vmatprep.subr.mxu0 0.0
    %2634 = vmatpush1.msra.mxu0 %v2282
    %2635 = vmatprep.subr.mxu0 0.0
    %2636 = vmatpush1.msra.mxu0 %v2281
    %2637 = vmatprep.subr.mxu0 0.0
    %2638 = vmatpush1.msra.mxu0 %v2280
    %2639 = vmatprep.subr.mxu0 0.0
    %2640 = vmatpush1.msra.mxu0 %v2279
    %2641 = vmatprep.subr.mxu0 0.0
    %2642 = vmatpush1.msra.mxu0 %v2278
    %2643 = vmatprep.subr.mxu0 0.0
    %2644 = vmatpush1.msra.mxu0 %v2277
    %2645 = vmatprep.subr.mxu0 0.0
    %2646 = vmatpush1.msra.mxu0 %v2276
    %2647 = vmatprep.subr.mxu0 0.0
    %2648 = vmatpush1.msra.mxu0 %v2275
    %2649 = vmatprep.subr.mxu0 0.0
    %2650 = vmatpush1.msra.mxu0 %v2274
    %2651 = vmatprep.subr.mxu0 0.0
    %2652 = vmatpush1.msra.mxu0 %v2273
    %2653 = vmatprep.subr.mxu0 0.0
    %2654 = vmatpush2.msra.mxu0 %v2304
    %2655 = vmatprep.subr.mxu0 0.0
    %2656 = vmatpush2.msra.mxu0 %v2303
    %2657 = vmatprep.subr.mxu0 0.0
    %2658 = vmatpush2.msra.mxu0 %v2302
    %2659 = vmatprep.subr.mxu0 0.0
    %2660 = vmatpush2.msra.mxu0 %v2301
    %2661 = vmatprep.subr.mxu0 0.0
    %2662 = vmatpush2.msra.mxu0 %v2300
    %2663 = vmatprep.subr.mxu0 0.0
    %2664 = vmatpush2.msra.mxu0 %v2299
    %2665 = vmatprep.subr.mxu0 0.0
    %2666 = vmatpush2.msra.mxu0 %v2298
    %2667 = vmatprep.subr.mxu0 0.0
    %2668 = vmatpush2.msra.mxu0 %v2297
    %2669 = vmatprep.subr.mxu0 0.0
    %2670 = vmatpush2.msra.mxu0 %v2296
    %2671 = vmatprep.subr.mxu0 0.0
    %2672 = vmatpush2.msra.mxu0 %v2295
    %2673 = vmatprep.subr.mxu0 0.0
    %2674 = vmatpush2.msra.mxu0 %v2294
    %2675 = vmatprep.subr.mxu0 0.0
    %2676 = vmatpush2.msra.mxu0 %v2293
    %2677 = vmatprep.subr.mxu0 0.0
    %2678 = vmatpush2.msra.mxu0 %v2292
    %2679 = vmatprep.subr.mxu0 0.0
    %2680 = vmatpush2.msra.mxu0 %v2291
    %2681 = vmatprep.subr.mxu0 0.0
    %2682 = vmatpush2.msra.mxu0 %v2290
    %2683 = vmatprep.subr.mxu0 0.0
    %2684 = vmatpush2.msra.mxu0 %v2289
    %2685 = vmatprep.mubr.f32.mxu0 %v2182
    %2686 = vmatmul.mubr.f32.gmra.mxu0 %v2181
    %v2687 = vpop.f32.mrf.mxu0
    %v2688 = vadd.f32 %v2613, %v2687
    %v2689 = vpop.f32.mrf.mxu0
    %2690 = vmatprep.mubr.f32.mxu0 %v2198
    %2691 = vmatmul.mubr.f32.gmra.mxu0 %v2197
    %v2692 = vpop.f32.mrf.mxu0
    %v2693 = vadd.f32 %v2618, %v2692
    %v2694 = vpop.f32.mrf.mxu0
    %2695 = vdwg.mxu0
    %2696 = vmatprep.subr.mxu0 0.0
    %2697 = vmatpush1.msra.mxu0 %v2320
    %2698 = vmatprep.subr.mxu0 0.0
    %2699 = vmatpush1.msra.mxu0 %v2319
    %2700 = vmatprep.subr.mxu0 0.0
    %2701 = vmatpush1.msra.mxu0 %v2318
    %2702 = vmatprep.subr.mxu0 0.0
    %2703 = vmatpush1.msra.mxu0 %v2317
    %2704 = vmatprep.subr.mxu0 0.0
    %2705 = vmatpush1.msra.mxu0 %v2316
    %2706 = vmatprep.subr.mxu0 0.0
    %2707 = vmatpush1.msra.mxu0 %v2315
    %2708 = vmatprep.subr.mxu0 0.0
    %2709 = vmatpush1.msra.mxu0 %v2314
    %2710 = vmatprep.subr.mxu0 0.0
    %2711 = vmatpush1.msra.mxu0 %v2313
    %2712 = vmatprep.subr.mxu0 0.0
    %2713 = vmatpush1.msra.mxu0 %v2312
    %2714 = vmatprep.subr.mxu0 0.0
    %2715 = vmatpush1.msra.mxu0 %v2311
    %2716 = vmatprep.subr.mxu0 0.0
    %2717 = vmatpush1.msra.mxu0 %v2310
    %2718 = vmatprep.subr.mxu0 0.0
    %2719 = vmatpush1.msra.mxu0 %v2309
    %2720 = vmatprep.subr.mxu0 0.0
    %2721 = vmatpush1.msra.mxu0 %v2308
    %2722 = vmatprep.subr.mxu0 0.0
    %2723 = vmatpush1.msra.mxu0 %v2307
    %2724 = vmatprep.subr.mxu0 0.0
    %2725 = vmatpush1.msra.mxu0 %v2306
    %2726 = vmatprep.subr.mxu0 0.0
    %2727 = vmatpush1.msra.mxu0 %v2305
    %2728 = vmatprep.subr.mxu0 0.0
    %2729 = vmatpush2.msra.mxu0 %v2336
    %2730 = vmatprep.subr.mxu0 0.0
    %2731 = vmatpush2.msra.mxu0 %v2335
    %2732 = vmatprep.subr.mxu0 0.0
    %2733 = vmatpush2.msra.mxu0 %v2334
    %2734 = vmatprep.subr.mxu0 0.0
    %2735 = vmatpush2.msra.mxu0 %v2333
    %2736 = vmatprep.subr.mxu0 0.0
    %2737 = vmatpush2.msra.mxu0 %v2332
    %2738 = vmatprep.subr.mxu0 0.0
    %2739 = vmatpush2.msra.mxu0 %v2331
    %2740 = vmatprep.subr.mxu0 0.0
    %2741 = vmatpush2.msra.mxu0 %v2330
    %2742 = vmatprep.subr.mxu0 0.0
    %2743 = vmatpush2.msra.mxu0 %v2329
    %2744 = vmatprep.subr.mxu0 0.0
    %2745 = vmatpush2.msra.mxu0 %v2328
    %2746 = vmatprep.subr.mxu0 0.0
    %2747 = vmatpush2.msra.mxu0 %v2327
    %2748 = vmatprep.subr.mxu0 0.0
    %2749 = vmatpush2.msra.mxu0 %v2326
    %2750 = vmatprep.subr.mxu0 0.0
    %2751 = vmatpush2.msra.mxu0 %v2325
    %2752 = vmatprep.subr.mxu0 0.0
    %2753 = vmatpush2.msra.mxu0 %v2324
    %2754 = vmatprep.subr.mxu0 0.0
    %2755 = vmatpush2.msra.mxu0 %v2323
    %2756 = vmatprep.subr.mxu0 0.0
    %2757 = vmatpush2.msra.mxu0 %v2322
    %2758 = vmatprep.subr.mxu0 0.0
    %2759 = vmatpush2.msra.mxu0 %v2321
    %2760 = vmatprep.mubr.f32.mxu0 %v2184
    %2761 = vmatmul.mubr.f32.gmra.mxu0 %v2183
    %v2762 = vpop.f32.mrf.mxu0
    %v2763 = vadd.f32 %v2688, %v2762
    %v2764 = vpop.f32.mrf.mxu0
    %2765 = vmatprep.mubr.f32.mxu0 %v2200
    %2766 = vmatmul.mubr.f32.gmra.mxu0 %v2199
    %v2767 = vpop.f32.mrf.mxu0
    %v2768 = vadd.f32 %v2693, %v2767
    %v2769 = vpop.f32.mrf.mxu0
    %2770 = vdwg.mxu0
    %2771 = vmatprep.subr.mxu0 0.0
    %2772 = vmatpush1.msra.mxu0 %v2352
    %2773 = vmatprep.subr.mxu0 0.0
    %2774 = vmatpush1.msra.mxu0 %v2351
    %2775 = vmatprep.subr.mxu0 0.0
    %2776 = vmatpush1.msra.mxu0 %v2350
    %2777 = vmatprep.subr.mxu0 0.0
    %2778 = vmatpush1.msra.mxu0 %v2349
    %2779 = vmatprep.subr.mxu0 0.0
    %2780 = vmatpush1.msra.mxu0 %v2348
    %2781 = vmatprep.subr.mxu0 0.0
    %2782 = vmatpush1.msra.mxu0 %v2347
    %2783 = vmatprep.subr.mxu0 0.0
    %2784 = vmatpush1.msra.mxu0 %v2346
    %2785 = vmatprep.subr.mxu0 0.0
    %2786 = vmatpush1.msra.mxu0 %v2345
    %2787 = vmatprep.subr.mxu0 0.0
    %2788 = vmatpush1.msra.mxu0 %v2344
    %2789 = vmatprep.subr.mxu0 0.0
    %2790 = vmatpush1.msra.mxu0 %v2343
    %2791 = vmatprep.subr.mxu0 0.0
    %2792 = vmatpush1.msra.mxu0 %v2342
    %2793 = vmatprep.subr.mxu0 0.0
    %2794 = vmatpush1.msra.mxu0 %v2341
    %2795 = vmatprep.subr.mxu0 0.0
    %2796 = vmatpush1.msra.mxu0 %v2340
    %2797 = vmatprep.subr.mxu0 0.0
    %2798 = vmatpush1.msra.mxu0 %v2339
    %2799 = vmatprep.subr.mxu0 0.0
    %2800 = vmatpush1.msra.mxu0 %v2338
    %2801 = vmatprep.subr.mxu0 0.0
    %2802 = vmatpush1.msra.mxu0 %v2337
    %2803 = vmatprep.subr.mxu0 0.0
    %2804 = vmatpush2.msra.mxu0 %v2368
    %2805 = vmatprep.subr.mxu0 0.0
    %2806 = vmatpush2.msra.mxu0 %v2367
    %2807 = vmatprep.subr.mxu0 0.0
    %2808 = vmatpush2.msra.mxu0 %v2366
    %2809 = vmatprep.subr.mxu0 0.0
    %2810 = vmatpush2.msra.mxu0 %v2365
    %2811 = vmatprep.subr.mxu0 0.0
    %2812 = vmatpush2.msra.mxu0 %v2364
    %2813 = vmatprep.subr.mxu0 0.0
    %2814 = vmatpush2.msra.mxu0 %v2363
    %2815 = vmatprep.subr.mxu0 0.0
    %2816 = vmatpush2.msra.mxu0 %v2362
    %2817 = vmatprep.subr.mxu0 0.0
    %2818 = vmatpush2.msra.mxu0 %v2361
    %2819 = vmatprep.subr.mxu0 0.0
    %2820 = vmatpush2.msra.mxu0 %v2360
    %2821 = vmatprep.subr.mxu0 0.0
    %2822 = vmatpush2.msra.mxu0 %v2359
    %2823 = vmatprep.subr.mxu0 0.0
    %2824 = vmatpush2.msra.mxu0 %v2358
    %2825 = vmatprep.subr.mxu0 0.0
    %2826 = vmatpush2.msra.mxu0 %v2357
    %2827 = vmatprep.subr.mxu0 0.0
    %2828 = vmatpush2.msra.mxu0 %v2356
    %2829 = vmatprep.subr.mxu0 0.0
    %2830 = vmatpush2.msra.mxu0 %v2355
    %2831 = vmatprep.subr.mxu0 0.0
    %2832 = vmatpush2.msra.mxu0 %v2354
    %2833 = vmatprep.subr.mxu0 0.0
    %2834 = vmatpush2.msra.mxu0 %v2353
    %2835 = vmatprep.mubr.f32.mxu0 %v2186
    %2836 = vmatmul.mubr.f32.gmra.mxu0 %v2185
    %v2837 = vpop.f32.mrf.mxu0
    %v2838 = vadd.f32 %v2763, %v2837
    %v2839 = vpop.f32.mrf.mxu0
    %2840 = vmatprep.mubr.f32.mxu0 %v2202
    %2841 = vmatmul.mubr.f32.gmra.mxu0 %v2201
    %v2842 = vpop.f32.mrf.mxu0
    %v2843 = vadd.f32 %v2768, %v2842
    %v2844 = vpop.f32.mrf.mxu0
    %2845 = vdwg.mxu0
    %2846 = vmatprep.subr.mxu0 0.0
    %2847 = vmatpush1.msra.mxu0 %v2384
    %2848 = vmatprep.subr.mxu0 0.0
    %2849 = vmatpush1.msra.mxu0 %v2383
    %2850 = vmatprep.subr.mxu0 0.0
    %2851 = vmatpush1.msra.mxu0 %v2382
    %2852 = vmatprep.subr.mxu0 0.0
    %2853 = vmatpush1.msra.mxu0 %v2381
    %2854 = vmatprep.subr.mxu0 0.0
    %2855 = vmatpush1.msra.mxu0 %v2380
    %2856 = vmatprep.subr.mxu0 0.0
    %2857 = vmatpush1.msra.mxu0 %v2379
    %2858 = vmatprep.subr.mxu0 0.0
    %2859 = vmatpush1.msra.mxu0 %v2378
    %2860 = vmatprep.subr.mxu0 0.0
    %2861 = vmatpush1.msra.mxu0 %v2377
    %2862 = vmatprep.subr.mxu0 0.0
    %2863 = vmatpush1.msra.mxu0 %v2376
    %2864 = vmatprep.subr.mxu0 0.0
    %2865 = vmatpush1.msra.mxu0 %v2375
    %2866 = vmatprep.subr.mxu0 0.0
    %2867 = vmatpush1.msra.mxu0 %v2374
    %2868 = vmatprep.subr.mxu0 0.0
    %2869 = vmatpush1.msra.mxu0 %v2373
    %2870 = vmatprep.subr.mxu0 0.0
    %2871 = vmatpush1.msra.mxu0 %v2372
    %2872 = vmatprep.subr.mxu0 0.0
    %2873 = vmatpush1.msra.mxu0 %v2371
    %2874 = vmatprep.subr.mxu0 0.0
    %2875 = vmatpush1.msra.mxu0 %v2370
    %2876 = vmatprep.subr.mxu0 0.0
    %2877 = vmatpush1.msra.mxu0 %v2369
    %2878 = vmatprep.subr.mxu0 0.0
    %2879 = vmatpush2.msra.mxu0 %v2400
    %2880 = vmatprep.subr.mxu0 0.0
    %2881 = vmatpush2.msra.mxu0 %v2399
    %2882 = vmatprep.subr.mxu0 0.0
    %2883 = vmatpush2.msra.mxu0 %v2398
    %2884 = vmatprep.subr.mxu0 0.0
    %2885 = vmatpush2.msra.mxu0 %v2397
    %2886 = vmatprep.subr.mxu0 0.0
    %2887 = vmatpush2.msra.mxu0 %v2396
    %2888 = vmatprep.subr.mxu0 0.0
    %2889 = vmatpush2.msra.mxu0 %v2395
    %2890 = vmatprep.subr.mxu0 0.0
    %2891 = vmatpush2.msra.mxu0 %v2394
    %2892 = vmatprep.subr.mxu0 0.0
    %2893 = vmatpush2.msra.mxu0 %v2393
    %2894 = vmatprep.subr.mxu0 0.0
    %2895 = vmatpush2.msra.mxu0 %v2392
    %2896 = vmatprep.subr.mxu0 0.0
    %2897 = vmatpush2.msra.mxu0 %v2391
    %2898 = vmatprep.subr.mxu0 0.0
    %2899 = vmatpush2.msra.mxu0 %v2390
    %2900 = vmatprep.subr.mxu0 0.0
    %2901 = vmatpush2.msra.mxu0 %v2389
    %2902 = vmatprep.subr.mxu0 0.0
    %2903 = vmatpush2.msra.mxu0 %v2388
    %2904 = vmatprep.subr.mxu0 0.0
    %2905 = vmatpush2.msra.mxu0 %v2387
    %2906 = vmatprep.subr.mxu0 0.0
    %2907 = vmatpush2.msra.mxu0 %v2386
    %2908 = vmatprep.subr.mxu0 0.0
    %2909 = vmatpush2.msra.mxu0 %v2385
    %2910 = vmatprep.mubr.f32.mxu0 %v2188
    %2911 = vmatmul.mubr.f32.gmra.mxu0 %v2187
    %v2912 = vpop.f32.mrf.mxu0
    %v2913 = vadd.f32 %v2838, %v2912
    %v2914 = vpop.f32.mrf.mxu0
    %2915 = vmatprep.mubr.f32.mxu0 %v2204
    %2916 = vmatmul.mubr.f32.gmra.mxu0 %v2203
    %v2917 = vpop.f32.mrf.mxu0
    %v2918 = vadd.f32 %v2843, %v2917
    %v2919 = vpop.f32.mrf.mxu0
    %2920 = vdwg.mxu0
    %2921 = vmatprep.subr.mxu0 0.0
    %2922 = vmatpush1.msra.mxu0 %v2416
    %2923 = vmatprep.subr.mxu0 0.0
    %2924 = vmatpush1.msra.mxu0 %v2415
    %2925 = vmatprep.subr.mxu0 0.0
    %2926 = vmatpush1.msra.mxu0 %v2414
    %2927 = vmatprep.subr.mxu0 0.0
    %2928 = vmatpush1.msra.mxu0 %v2413
    %2929 = vmatprep.subr.mxu0 0.0
    %2930 = vmatpush1.msra.mxu0 %v2412
    %2931 = vmatprep.subr.mxu0 0.0
    %2932 = vmatpush1.msra.mxu0 %v2411
    %2933 = vmatprep.subr.mxu0 0.0
    %2934 = vmatpush1.msra.mxu0 %v2410
    %2935 = vmatprep.subr.mxu0 0.0
    %2936 = vmatpush1.msra.mxu0 %v2409
    %2937 = vmatprep.subr.mxu0 0.0
    %2938 = vmatpush1.msra.mxu0 %v2408
    %2939 = vmatprep.subr.mxu0 0.0
    %2940 = vmatpush1.msra.mxu0 %v2407
    %2941 = vmatprep.subr.mxu0 0.0
    %2942 = vmatpush1.msra.mxu0 %v2406
    %2943 = vmatprep.subr.mxu0 0.0
    %2944 = vmatpush1.msra.mxu0 %v2405
    %2945 = vmatprep.subr.mxu0 0.0
    %2946 = vmatpush1.msra.mxu0 %v2404
    %2947 = vmatprep.subr.mxu0 0.0
    %2948 = vmatpush1.msra.mxu0 %v2403
    %2949 = vmatprep.subr.mxu0 0.0
    %2950 = vmatpush1.msra.mxu0 %v2402
    %2951 = vmatprep.subr.mxu0 0.0
    %2952 = vmatpush1.msra.mxu0 %v2401
    %2953 = vmatprep.subr.mxu0 0.0
    %2954 = vmatpush2.msra.mxu0 %v2432
    %2955 = vmatprep.subr.mxu0 0.0
    %2956 = vmatpush2.msra.mxu0 %v2431
    %2957 = vmatprep.subr.mxu0 0.0
    %2958 = vmatpush2.msra.mxu0 %v2430
    %2959 = vmatprep.subr.mxu0 0.0
    %2960 = vmatpush2.msra.mxu0 %v2429
    %2961 = vmatprep.subr.mxu0 0.0
    %2962 = vmatpush2.msra.mxu0 %v2428
    %2963 = vmatprep.subr.mxu0 0.0
    %2964 = vmatpush2.msra.mxu0 %v2427
    %2965 = vmatprep.subr.mxu0 0.0
    %2966 = vmatpush2.msra.mxu0 %v2426
    %2967 = vmatprep.subr.mxu0 0.0
    %2968 = vmatpush2.msra.mxu0 %v2425
    %2969 = vmatprep.subr.mxu0 0.0
    %2970 = vmatpush2.msra.mxu0 %v2424
    %2971 = vmatprep.subr.mxu0 0.0
    %2972 = vmatpush2.msra.mxu0 %v2423
    %2973 = vmatprep.subr.mxu0 0.0
    %2974 = vmatpush2.msra.mxu0 %v2422
    %2975 = vmatprep.subr.mxu0 0.0
    %2976 = vmatpush2.msra.mxu0 %v2421
    %2977 = vmatprep.subr.mxu0 0.0
    %2978 = vmatpush2.msra.mxu0 %v2420
    %2979 = vmatprep.subr.mxu0 0.0
    %2980 = vmatpush2.msra.mxu0 %v2419
    %2981 = vmatprep.subr.mxu0 0.0
    %2982 = vmatpush2.msra.mxu0 %v2418
    %2983 = vmatprep.subr.mxu0 0.0
    %2984 = vmatpush2.msra.mxu0 %v2417
    %2985 = vmatprep.mubr.f32.mxu0 %v2190
    %2986 = vmatmul.mubr.f32.gmra.mxu0 %v2189
    %v2987 = vpop.f32.mrf.mxu0
    %v2988 = vadd.f32 %v2913, %v2987
    %v2989 = vpop.f32.mrf.mxu0
    %2990 = vmatprep.mubr.f32.mxu0 %v2206
    %2991 = vmatmul.mubr.f32.gmra.mxu0 %v2205
    %v2992 = vpop.f32.mrf.mxu0
    %v2993 = vadd.f32 %v2918, %v2992
    %v2994 = vpop.f32.mrf.mxu0
    %2995 = vdwg.mxu0
    %2996 = vmatprep.subr.mxu0 0.0
    %2997 = vmatpush1.msra.mxu0 %v2448
    %2998 = vmatprep.subr.mxu0 0.0
    %2999 = vmatpush1.msra.mxu0 %v2447
    %3000 = vmatprep.subr.mxu0 0.0
    %3001 = vmatpush1.msra.mxu0 %v2446
    %3002 = vmatprep.subr.mxu0 0.0
    %3003 = vmatpush1.msra.mxu0 %v2445
    %3004 = vmatprep.subr.mxu0 0.0
    %3005 = vmatpush1.msra.mxu0 %v2444
    %3006 = vmatprep.subr.mxu0 0.0
    %3007 = vmatpush1.msra.mxu0 %v2443
    %3008 = vmatprep.subr.mxu0 0.0
    %3009 = vmatpush1.msra.mxu0 %v2442
    %3010 = vmatprep.subr.mxu0 0.0
    %3011 = vmatpush1.msra.mxu0 %v2441
    %3012 = vmatprep.subr.mxu0 0.0
    %3013 = vmatpush1.msra.mxu0 %v2440
    %3014 = vmatprep.subr.mxu0 0.0
    %3015 = vmatpush1.msra.mxu0 %v2439
    %3016 = vmatprep.subr.mxu0 0.0
    %3017 = vmatpush1.msra.mxu0 %v2438
    %3018 = vmatprep.subr.mxu0 0.0
    %3019 = vmatpush1.msra.mxu0 %v2437
    %3020 = vmatprep.subr.mxu0 0.0
    %3021 = vmatpush1.msra.mxu0 %v2436
    %3022 = vmatprep.subr.mxu0 0.0
    %3023 = vmatpush1.msra.mxu0 %v2435
    %3024 = vmatprep.subr.mxu0 0.0
    %3025 = vmatpush1.msra.mxu0 %v2434
    %3026 = vmatprep.subr.mxu0 0.0
    %3027 = vmatpush1.msra.mxu0 %v2433
    %3028 = vmatprep.subr.mxu0 0.0
    %3029 = vmatpush2.msra.mxu0 %v2464
    %3030 = vmatprep.subr.mxu0 0.0
    %3031 = vmatpush2.msra.mxu0 %v2463
    %3032 = vmatprep.subr.mxu0 0.0
    %3033 = vmatpush2.msra.mxu0 %v2462
    %3034 = vmatprep.subr.mxu0 0.0
    %3035 = vmatpush2.msra.mxu0 %v2461
    %3036 = vmatprep.subr.mxu0 0.0
    %3037 = vmatpush2.msra.mxu0 %v2460
    %3038 = vmatprep.subr.mxu0 0.0
    %3039 = vmatpush2.msra.mxu0 %v2459
    %3040 = vmatprep.subr.mxu0 0.0
    %3041 = vmatpush2.msra.mxu0 %v2458
    %3042 = vmatprep.subr.mxu0 0.0
    %3043 = vmatpush2.msra.mxu0 %v2457
    %3044 = vmatprep.subr.mxu0 0.0
    %3045 = vmatpush2.msra.mxu0 %v2456
    %3046 = vmatprep.subr.mxu0 0.0
    %3047 = vmatpush2.msra.mxu0 %v2455
    %3048 = vmatprep.subr.mxu0 0.0
    %3049 = vmatpush2.msra.mxu0 %v2454
    %3050 = vmatprep.subr.mxu0 0.0
    %3051 = vmatpush2.msra.mxu0 %v2453
    %3052 = vmatprep.subr.mxu0 0.0
    %3053 = vmatpush2.msra.mxu0 %v2452
    %3054 = vmatprep.subr.mxu0 0.0
    %3055 = vmatpush2.msra.mxu0 %v2451
    %3056 = vmatprep.subr.mxu0 0.0
    %3057 = vmatpush2.msra.mxu0 %v2450
    %3058 = vmatprep.subr.mxu0 0.0
    %3059 = vmatpush2.msra.mxu0 %v2449
    %3060 = vmatprep.mubr.f32.mxu0 %v2192
    %3061 = vmatmul.mubr.f32.gmra.mxu0 %v2191
    %v3062 = vpop.f32.mrf.mxu0
    %v3063 = vadd.f32 %v2988, %v3062
    %v3064 = vpop.f32.mrf.mxu0
    %3065 = vmatprep.mubr.f32.mxu0 %v2208
    %3066 = vmatmul.mubr.f32.gmra.mxu0 %v2207
    %v3067 = vpop.f32.mrf.mxu0
    %v3068 = vadd.f32 %v2993, %v3067
    %v3069 = vpop.f32.mrf.mxu0
    %3070 = vdwg.mxu0
    %v3071 = vadd.f32 %v1276, %v3063
    %v3072 = vadd.f32 %v1277, %v3068
    %v3073 = vsel %vm208, %v3071, 0.0
    %3074 = vadd.xlane.f32.xlu0 %v3073
    %v3075 = vpop.xlane.xlu0 %3074
    %v3076 = vsel %vm208, %v3072, 0.0
    %3077 = vadd.xlane.f32.xlu0 %v3076
    %v3078 = vpop.xlane.xlu0 %3077
    %v3079 = vmul.f32 %v3075, %v1247
    %v3080 = vmul.f32 %v3078, %v1247
    %v3081 = vsub.f32 %v3071, %v3079
    %v3082 = vsub.f32 %v3072, %v3080
    %v3083 = vmul.f32 %v3081, %v3081
    %v3084 = vmul.f32 %v3082, %v3082
    %v3085 = vsel %vm208, %v3083, 0.0
    %3086 = vadd.xlane.f32.xlu0 %v3085
    %v3087 = vpop.xlane.xlu0 %3086
    %v3088 = vsel %vm208, %v3084, 0.0
    %3089 = vadd.xlane.f32.xlu0 %v3088
    %v3090 = vpop.xlane.xlu0 %3089
    %v3091 = vmul.f32 %v3087, %v1247
    %v3092 = vmul.f32 %v3090, %v1247
    %v3093 = vadd.f32 %v3091, 1e-05
    %v3094 = vadd.f32 %v3092, 1e-05
    %v3095 = vrsqrt.pop %v3093
    %v3096 = vrsqrt.pop %v3094
    %v3097 = vmul.f32 %v3081, %v3095
    %v3098 = vmul.f32 %v3082, %v3096
    %3099 = vrot.lane.b32.xlu0 %v2469, 96
    %v3100 = vpop.permute.xlu0 %3099
    %v3102 = vmul.f32 %v3097, %v3100
    %v3103 = vmul.f32 %v3098, %v3100
    %3104 = vrot.lane.b32.xlu0 %v2469, 64
    %v3105 = vpop.permute.xlu0 %3104
    %v3107 = vadd.f32 %v3102, %v3105
    %v3108 = vadd.f32 %v3103, %v3105
    %v3109 = vld [vmem:[%s1] sm:$0xff]
    %v3110 = vld [vmem:[%s1 + $0x8] sm:$0xff]
    %3111 = vrot.lane.b32.xlu0 %v49, 96
    %v3112 = vpop.permute.xlu0 %3111
    %3113 = vrot.lane.b32.xlu0 %v55, 96
    %v3114 = vpop.permute.xlu0 %3113
    %v3117 = vsel %vm57, %v3109, 0
    %v3120 = vsel %vm57, %v3110, 0
    %v3122 = vsel %vm64, %v3112, 0
    %3124 = vmatprep.subr.mxu0 0.0
    %3125 = vmatpush1.msra.mxu0 0.0
    %3126 = vmatprep.subr.mxu0 0.0
    %3127 = vmatpush1.msra.mxu0 0.0
    %3128 = vmatprep.subr.mxu0 0.0
    %3129 = vmatpush1.msra.mxu0 0.0
    %3130 = vmatprep.subr.mxu0 0.0
    %3131 = vmatpush1.msra.mxu0 0.0
    %3132 = vmatprep.subr.mxu0 0.0
    %3133 = vmatpush1.msra.mxu0 0.0
    %3134 = vmatprep.subr.mxu0 0.0
    %3135 = vmatpush1.msra.mxu0 0.0
    %3136 = vmatprep.subr.mxu0 0.0
    %3137 = vmatpush1.msra.mxu0 0.0
    %3138 = vmatprep.subr.mxu0 0.0
    %3139 = vmatpush1.msra.mxu0 0.0
    %3140 = vmatprep.subr.mxu0 0.0
    %3141 = vmatpush1.msra.mxu0 0.0
    %3142 = vmatprep.subr.mxu0 0.0
    %3143 = vmatpush1.msra.mxu0 0.0
    %3144 = vmatprep.subr.mxu0 0.0
    %3145 = vmatpush1.msra.mxu0 0.0
    %3146 = vmatprep.subr.mxu0 0.0
    %3147 = vmatpush1.msra.mxu0 0.0
    %3148 = vmatprep.subr.mxu0 0.0
    %3149 = vmatpush1.msra.mxu0 0.0
    %3150 = vmatprep.subr.mxu0 0.0
    %3151 = vmatpush1.msra.mxu0 0.0
    %3152 = vmatprep.subr.mxu0 0.0
    %3153 = vmatpush1.msra.mxu0 0.0
    %3154 = vmatprep.subr.mxu0 0.0
    %3155 = vmatpush1.msra.mxu0 %v3122
    %3156 = vmatprep.subr.mxu0 0.0
    %3157 = vmatpush2.msra.mxu0 0.0
    %3158 = vmatprep.subr.mxu0 0.0
    %3159 = vmatpush2.msra.mxu0 0.0
    %3160 = vmatprep.subr.mxu0 0.0
    %3161 = vmatpush2.msra.mxu0 0.0
    %3162 = vmatprep.subr.mxu0 0.0
    %3163 = vmatpush2.msra.mxu0 0.0
    %3164 = vmatprep.subr.mxu0 0.0
    %3165 = vmatpush2.msra.mxu0 0.0
    %3166 = vmatprep.subr.mxu0 0.0
    %3167 = vmatpush2.msra.mxu0 0.0
    %3168 = vmatprep.subr.mxu0 0.0
    %3169 = vmatpush2.msra.mxu0 0.0
    %3170 = vmatprep.subr.mxu0 0.0
    %3171 = vmatpush2.msra.mxu0 0.0
    %3172 = vmatprep.subr.mxu0 0.0
    %3173 = vmatpush2.msra.mxu0 0.0
    %3174 = vmatprep.subr.mxu0 0.0
    %3175 = vmatpush2.msra.mxu0 0.0
    %3176 = vmatprep.subr.mxu0 0.0
    %3177 = vmatpush2.msra.mxu0 0.0
    %3178 = vmatprep.subr.mxu0 0.0
    %3179 = vmatpush2.msra.mxu0 0.0
    %3180 = vmatprep.subr.mxu0 0.0
    %3181 = vmatpush2.msra.mxu0 0.0
    %3182 = vmatprep.subr.mxu0 0.0
    %3183 = vmatpush2.msra.mxu0 0.0
    %3184 = vmatprep.subr.mxu0 0.0
    %3185 = vmatpush2.msra.mxu0 0.0
    %3186 = vmatprep.subr.mxu0 0.0
    %3187 = vmatpush2.msra.mxu0 0.0
    %3188 = vmatprep.mubr.f32.mxu0 0.0
    %3189 = vmatmul.mubr.f32.gmra.mxu0 %v3117
    %v3190 = vpop.f32.mrf.mxu0
    %v3191 = vadd.f32 %v3114, %v3190
    %v3192 = vpop.f32.mrf.mxu0
    %3193 = vmatprep.mubr.f32.mxu0 0.0
    %3194 = vmatmul.mubr.f32.gmra.mxu0 %v3120
    %v3195 = vpop.f32.mrf.mxu0
    %v3196 = vadd.f32 %v3114, %v3195
    %v3197 = vpop.f32.mrf.mxu0
    %3198 = vdwg.mxu0
    %v3199 = vmul.f32 %v3191, 5.656854
    %v3200 = vmul.f32 %v3196, 5.656854
    %v3201 = vld [vmem:[%s3] sm:$0xff]
    %v3202 = vld [vmem:[%s3 + $0x8] sm:$0xff]
    %v3203 = vadd.f32 %v3199, %v3201
    %v3204 = vadd.f32 %v3200, %v3202
    %v3205 = vld [vmem:[%s5] sm:$0xff]
    %v3206 = vld [vmem:[%s5 + $0x8] sm:$0xff]
    %v3207 = vld [vmem:[%s6] sm:$0xff]
    %v3208 = vld [vmem:[%s6 + $0x8] sm:$0xff]
    %v3209 = vld [vmem:[%s7 + $0x8] sm:$0xff]
    %v3210 = vld [vmem:[%s7 + $0x10] sm:$0xff]
    %v3211 = vld [vmem:[%s7 + $0x30] sm:$0xff]
    %v3212 = vld [vmem:[%s7 + $0x38] sm:$0xff]
    %v3213 = vld [vmem:[%s7 + $0x58] sm:$0xff]
    %v3214 = vld [vmem:[%s7 + $0x60] sm:$0xff]
    %v3215 = vld [vmem:[%s7 + $0x80] sm:$0xff]
    %v3216 = vld [vmem:[%s7 + $0x88] sm:$0xff]
    %v3217 = vld [vmem:[%s8 + $0x12] sm:$0x3]
    %v3219 = vlaneseq
    %v3220 = vshrl.u32 %v3219, 7
    %v3221 = vsub.s32 0, %v3220
    %v3222 = vrot.slane %v3217, %v3221
    %v3223 = vlaneseq
    %v3224 = vshrl.u32 %v3223, 7
    %v3225 = vsub.s32 1, %v3224
    %v3226 = vrot.slane %v3217, %v3225
    %3235 = vrot.lane.b32.xlu0 %v3209, 64
    %v3236 = vpop.permute.xlu0 %3235
    %3237 = vrot.lane.b32.xlu0 %v3210, 64
    %v3238 = vpop.permute.xlu0 %3237
    %3239 = vrot.lane.b32.xlu0 %v3211, 64
    %v3240 = vpop.permute.xlu0 %3239
    %3241 = vrot.lane.b32.xlu0 %v3212, 64
    %v3242 = vpop.permute.xlu0 %3241
    %3243 = vrot.lane.b32.xlu0 %v3213, 64
    %v3244 = vpop.permute.xlu0 %3243
    %3245 = vrot.lane.b32.xlu0 %v3214, 64
    %v3246 = vpop.permute.xlu0 %3245
    %3247 = vrot.lane.b32.xlu0 %v3215, 64
    %v3248 = vpop.permute.xlu0 %3247
    %3249 = vrot.lane.b32.xlu0 %v3216, 64
    %v3250 = vpop.permute.xlu0 %3249
    %v3251 = vsel %vm193, %v3236, %v3238
    %v3252 = vsel %vm193, %v3240, %v3242
    %v3253 = vsel %vm193, %v3244, %v3246
    %v3254 = vsel %vm193, %v3248, %v3250
    %3259 = vrot.lane.b32.xlu0 %v3222, 32
    %v3260 = vpop.permute.xlu0 %3259
    %3261 = vrot.lane.b32.xlu0 %v3226, 32
    %v3262 = vpop.permute.xlu0 %3261
    %v3263 = vsel %vm208, %v3260, %v3262
    %v3266 = vsel %vm208, %v3203, 0
    %v3269 = vsel %vm208, %v3204, 0
    %3271 = vmatprep.subr.mxu0 0.0
    %3272 = vmatpush1.msra.mxu0 0.0
    %3273 = vmatprep.subr.mxu0 0.0
    %3274 = vmatpush1.msra.mxu0 0.0
    %3275 = vmatprep.subr.mxu0 0.0
    %3276 = vmatpush1.msra.mxu0 0.0
    %3277 = vmatprep.subr.mxu0 0.0
    %3278 = vmatpush1.msra.mxu0 0.0
    %3279 = vmatprep.subr.mxu0 0.0
    %3280 = vmatpush1.msra.mxu0 0.0
    %3281 = vmatprep.subr.mxu0 0.0
    %3282 = vmatpush1.msra.mxu0 0.0
    %3283 = vmatprep.subr.mxu0 0.0
    %3284 = vmatpush1.msra.mxu0 0.0
    %3285 = vmatprep.subr.mxu0 0.0
    %3286 = vmatpush1.msra.mxu0 0.0
    %3287 = vmatprep.subr.mxu0 0.0
    %3288 = vmatpush1.msra.mxu0 0.0
    %3289 = vmatprep.subr.mxu0 0.0
    %3290 = vmatpush1.msra.mxu0 0.0
    %3291 = vmatprep.subr.mxu0 0.0
    %3292 = vmatpush1.msra.mxu0 0.0
    %3293 = vmatprep.subr.mxu0 0.0
    %3294 = vmatpush1.msra.mxu0 0.0
    %3295 = vmatprep.subr.mxu0 0.0
    %3296 = vmatpush1.msra.mxu0 %v3254
    %3297 = vmatprep.subr.mxu0 0.0
    %3298 = vmatpush1.msra.mxu0 %v3253
    %3299 = vmatprep.subr.mxu0 0.0
    %3300 = vmatpush1.msra.mxu0 %v3252
    %3301 = vmatprep.subr.mxu0 0.0
    %3302 = vmatpush1.msra.mxu0 %v3251
    %3303 = vmatprep.subr.mxu0 0.0
    %3304 = vmatpush2.msra.mxu0 0.0
    %3305 = vmatprep.subr.mxu0 0.0
    %3306 = vmatpush2.msra.mxu0 0.0
    %3307 = vmatprep.subr.mxu0 0.0
    %3308 = vmatpush2.msra.mxu0 0.0
    %3309 = vmatprep.subr.mxu0 0.0
    %3310 = vmatpush2.msra.mxu0 0.0
    %3311 = vmatprep.subr.mxu0 0.0
    %3312 = vmatpush2.msra.mxu0 0.0
    %3313 = vmatprep.subr.mxu0 0.0
    %3314 = vmatpush2.msra.mxu0 0.0
    %3315 = vmatprep.subr.mxu0 0.0
    %3316 = vmatpush2.msra.mxu0 0.0
    %3317 = vmatprep.subr.mxu0 0.0
    %3318 = vmatpush2.msra.mxu0 0.0
    %3319 = vmatprep.subr.mxu0 0.0
    %3320 = vmatpush2.msra.mxu0 0.0
    %3321 = vmatprep.subr.mxu0 0.0
    %3322 = vmatpush2.msra.mxu0 0.0
    %3323 = vmatprep.subr.mxu0 0.0
    %3324 = vmatpush2.msra.mxu0 0.0
    %3325 = vmatprep.subr.mxu0 0.0
    %3326 = vmatpush2.msra.mxu0 0.0
    %3327 = vmatprep.subr.mxu0 0.0
    %3328 = vmatpush2.msra.mxu0 0.0
    %3329 = vmatprep.subr.mxu0 0.0
    %3330 = vmatpush2.msra.mxu0 0.0
    %3331 = vmatprep.subr.mxu0 0.0
    %3332 = vmatpush2.msra.mxu0 0.0
    %3333 = vmatprep.subr.mxu0 0.0
    %3334 = vmatpush2.msra.mxu0 0.0
    %3335 = vmatprep.mubr.f32.mxu0 0.0
    %3336 = vmatmul.mubr.f32.gmra.mxu0 %v3266
    %v3337 = vpop.f32.mrf.mxu0
    %v3338 = vadd.f32 %v3263, %v3337
    %v3339 = vpop.f32.mrf.mxu0
    %3340 = vmatprep.mubr.f32.mxu0 0.0
    %3341 = vmatmul.mubr.f32.gmra.mxu0 %v3269
    %v3342 = vpop.f32.mrf.mxu0
    %v3343 = vadd.f32 %v3263, %v3342
    %v3344 = vpop.f32.mrf.mxu0
    %3345 = vdwg.mxu0
    %3348 = vrot.lane.b32.xlu0 %v3338, 96
    %v3349 = vpop.permute.xlu0 %3348
    %3350 = vrot.lane.b32.xlu0 %v3343, 96
    %v3351 = vpop.permute.xlu0 %3350
    %v3352 = vsel %vm296, %v3338, 0
    %v3354 = vsel %vm296, %v3343, 0
    %v3356 = vsel %vm296, %v3349, 0
    %v3358 = vsel %vm296, %v3351, 0
    %3360 = vmatprep.subr.mxu0 0.0
    %3361 = vmatpush1.xpose.msra.mxu0 0.0
    %3362 = vmatprep.subr.mxu0 0.0
    %3363 = vmatpush1.xpose.msra.mxu0 0.0
    %3364 = vmatprep.subr.mxu0 0.0
    %3365 = vmatpush1.xpose.msra.mxu0 0.0
    %3366 = vmatprep.subr.mxu0 0.0
    %3367 = vmatpush1.xpose.msra.mxu0 0.0
    %3368 = vmatprep.subr.mxu0 0.0
    %3369 = vmatpush1.xpose.msra.mxu0 0.0
    %3370 = vmatprep.subr.mxu0 0.0
    %3371 = vmatpush1.xpose.msra.mxu0 0.0
    %3372 = vmatprep.subr.mxu0 0.0
    %3373 = vmatpush1.xpose.msra.mxu0 0.0
    %3374 = vmatprep.subr.mxu0 0.0
    %3375 = vmatpush1.xpose.msra.mxu0 0.0
    %3376 = vmatprep.subr.mxu0 0.0
    %3377 = vmatpush1.xpose.msra.mxu0 0.0
    %3378 = vmatprep.subr.mxu0 0.0
    %3379 = vmatpush1.xpose.msra.mxu0 0.0
    %3380 = vmatprep.subr.mxu0 0.0
    %3381 = vmatpush1.xpose.msra.mxu0 0.0
    %3382 = vmatprep.subr.mxu0 0.0
    %3383 = vmatpush1.xpose.msra.mxu0 0.0
    %3384 = vmatprep.subr.mxu0 0.0
    %3385 = vmatpush1.xpose.msra.mxu0 0.0
    %3386 = vmatprep.subr.mxu0 0.0
    %3387 = vmatpush1.xpose.msra.mxu0 0.0
    %3388 = vmatprep.subr.mxu0 0.0
    %3389 = vmatpush1.xpose.msra.mxu0 %v3358
    %3390 = vmatprep.subr.mxu0 0.0
    %3391 = vmatpush1.xpose.msra.mxu0 %v3356
    %3392 = vmatprep.subr.mxu0 0.0
    %3393 = vmatpush2.xpose.msra.mxu0 0.0
    %3394 = vmatprep.subr.mxu0 0.0
    %3395 = vmatpush2.xpose.msra.mxu0 0.0
    %3396 = vmatprep.subr.mxu0 0.0
    %3397 = vmatpush2.xpose.msra.mxu0 0.0
    %3398 = vmatprep.subr.mxu0 0.0
    %3399 = vmatpush2.xpose.msra.mxu0 0.0
    %3400 = vmatprep.subr.mxu0 0.0
    %3401 = vmatpush2.xpose.msra.mxu0 0.0
    %3402 = vmatprep.subr.mxu0 0.0
    %3403 = vmatpush2.xpose.msra.mxu0 0.0
    %3404 = vmatprep.subr.mxu0 0.0
    %3405 = vmatpush2.xpose.msra.mxu0 0.0
    %3406 = vmatprep.subr.mxu0 0.0
    %3407 = vmatpush2.xpose.msra.mxu0 0.0
    %3408 = vmatprep.subr.mxu0 0.0
    %3409 = vmatpush2.xpose.msra.mxu0 0.0
    %3410 = vmatprep.subr.mxu0 0.0
    %3411 = vmatpush2.xpose.msra.mxu0 0.0
    %3412 = vmatprep.subr.mxu0 0.0
    %3413 = vmatpush2.xpose.msra.mxu0 0.0
    %3414 = vmatprep.subr.mxu0 0.0
    %3415 = vmatpush2.xpose.msra.mxu0 0.0
    %3416 = vmatprep.subr.mxu0 0.0
    %3417 = vmatpush2.xpose.msra.mxu0 0.0
    %3418 = vmatprep.subr.mxu0 0.0
    %3419 = vmatpush2.xpose.msra.mxu0 0.0
    %3420 = vmatprep.subr.mxu0 0.0
    %3421 = vmatpush2.xpose.msra.mxu0 0.0
    %3422 = vmatprep.subr.mxu0 0.0
    %3423 = vmatpush2.xpose.msra.mxu0 0.0
    %3424 = vmatprep.mubr.f32.mxu0 0.0
    %3425 = vmatmul.mubr.f32.gmra.mxu0 %v3352
    %v3426 = vpop.f32.mrf.mxu0
    %v3427 = vadd.f32 0.0, %v3426
    %v3428 = vpop.f32.mrf.mxu0
    %3429 = vmatprep.mubr.f32.mxu0 0.0
    %3430 = vmatmul.mubr.f32.gmra.mxu0 %v3354
    %v3431 = vpop.f32.mrf.mxu0
    %v3432 = vadd.f32 0.0, %v3431
    %v3433 = vpop.f32.mrf.mxu0
    %3434 = vdwg.mxu0
    %v3435 = vmul.f32 %v3427, 0.35355338
    %v3436 = vmul.f32 %v3432, 0.35355338
    %v3437 = vadd.f32 %v3435, %v3205
    %v3438 = vadd.f32 %v3436, %v3206
    %v3439 = vsel %vm384, %v3437, -inf
    %3440 = vmax.xlane.f32.xlu0 %v3439
    %v3441 = vpop.xlane.xlu0 %3440
    %v3442 = vsel %vm384, %v3438, -inf
    %3443 = vmax.xlane.f32.xlu0 %v3442
    %v3444 = vpop.xlane.xlu0 %3443
    %v3445 = vsub.f32 %v3437, %v3441
    %v3446 = vsub.f32 %v3438, %v3444
    %v3447 = vmul.f32 %v3445, 1.442695
    %v3448 = vpow.pop %v3447
    %v3449 = vmul.f32 %v3446, 1.442695
    %v3450 = vpow.pop %v3449
    %v3451 = vsel %vm384, %v3448, 0.0
    %3452 = vadd.xlane.f32.xlu0 %v3451
    %v3453 = vpop.xlane.xlu0 %3452
    %v3454 = vsel %vm384, %v3450, 0.0
    %3455 = vadd.xlane.f32.xlu0 %v3454
    %v3456 = vpop.xlane.xlu0 %3455
    %v3457 = vrcp.pop %v3453
    %v3458 = vmul.f32 %v3448, %v3457
    %v3459 = vrcp.pop %v3456
    %v3460 = vmul.f32 %v3450, %v3459
    %3461 = vrot.lane.b32.xlu0 %v3338, 64
    %v3462 = vpop.permute.xlu0 %3461
    %3463 = vrot.lane.b32.xlu0 %v3343, 64
    %v3464 = vpop.permute.xlu0 %3463
    %v3468 = vsel %vm384, %v3458, 0
    %v3471 = vsel %vm384, %v3460, 0
    %3473 = vmatprep.subr.mxu0 0.0
    %3474 = vmatpush1.msra.mxu0 0.0
    %3475 = vmatprep.subr.mxu0 0.0
    %3476 = vmatpush1.msra.mxu0 0.0
    %3477 = vmatprep.subr.mxu0 0.0
    %3478 = vmatpush1.msra.mxu0 0.0
    %3479 = vmatprep.subr.mxu0 0.0
    %3480 = vmatpush1.msra.mxu0 0.0
    %3481 = vmatprep.subr.mxu0 0.0
    %3482 = vmatpush1.msra.mxu0 0.0
    %3483 = vmatprep.subr.mxu0 0.0
    %3484 = vmatpush1.msra.mxu0 0.0
    %3485 = vmatprep.subr.mxu0 0.0
    %3486 = vmatpush1.msra.mxu0 0.0
    %3487 = vmatprep.subr.mxu0 0.0
    %3488 = vmatpush1.msra.mxu0 0.0
    %3489 = vmatprep.subr.mxu0 0.0
    %3490 = vmatpush1.msra.mxu0 0.0
    %3491 = vmatprep.subr.mxu0 0.0
    %3492 = vmatpush1.msra.mxu0 0.0
    %3493 = vmatprep.subr.mxu0 0.0
    %3494 = vmatpush1.msra.mxu0 0.0
    %3495 = vmatprep.subr.mxu0 0.0
    %3496 = vmatpush1.msra.mxu0 0.0
    %3497 = vmatprep.subr.mxu0 0.0
    %3498 = vmatpush1.msra.mxu0 0.0
    %3499 = vmatprep.subr.mxu0 0.0
    %3500 = vmatpush1.msra.mxu0 0.0
    %3501 = vmatprep.subr.mxu0 0.0
    %3502 = vmatpush1.msra.mxu0 %v3464
    %3503 = vmatprep.subr.mxu0 0.0
    %3504 = vmatpush1.msra.mxu0 %v3462
    %3505 = vmatprep.subr.mxu0 0.0
    %3506 = vmatpush2.msra.mxu0 0.0
    %3507 = vmatprep.subr.mxu0 0.0
    %3508 = vmatpush2.msra.mxu0 0.0
    %3509 = vmatprep.subr.mxu0 0.0
    %3510 = vmatpush2.msra.mxu0 0.0
    %3511 = vmatprep.subr.mxu0 0.0
    %3512 = vmatpush2.msra.mxu0 0.0
    %3513 = vmatprep.subr.mxu0 0.0
    %3514 = vmatpush2.msra.mxu0 0.0
    %3515 = vmatprep.subr.mxu0 0.0
    %3516 = vmatpush2.msra.mxu0 0.0
    %3517 = vmatprep.subr.mxu0 0.0
    %3518 = vmatpush2.msra.mxu0 0.0
    %3519 = vmatprep.subr.mxu0 0.0
    %3520 = vmatpush2.msra.mxu0 0.0
    %3521 = vmatprep.subr.mxu0 0.0
    %3522 = vmatpush2.msra.mxu0 0.0
    %3523 = vmatprep.subr.mxu0 0.0
    %3524 = vmatpush2.msra.mxu0 0.0
    %3525 = vmatprep.subr.mxu0 0.0
    %3526 = vmatpush2.msra.mxu0 0.0
    %3527 = vmatprep.subr.mxu0 0.0
    %3528 = vmatpush2.msra.mxu0 0.0
    %3529 = vmatprep.subr.mxu0 0.0
    %3530 = vmatpush2.msra.mxu0 0.0
    %3531 = vmatprep.subr.mxu0 0.0
    %3532 = vmatpush2.msra.mxu0 0.0
    %3533 = vmatprep.subr.mxu0 0.0
    %3534 = vmatpush2.msra.mxu0 0.0
    %3535 = vmatprep.subr.mxu0 0.0
    %3536 = vmatpush2.msra.mxu0 0.0
    %3537 = vmatprep.mubr.f32.mxu0 0.0
    %3538 = vmatmul.mubr.f32.gmra.mxu0 %v3468
    %v3539 = vpop.f32.mrf.mxu0
    %v3540 = vadd.f32 0.0, %v3539
    %v3541 = vpop.f32.mrf.mxu0
    %3542 = vmatprep.mubr.f32.mxu0 0.0
    %3543 = vmatmul.mubr.f32.gmra.mxu0 %v3471
    %v3544 = vpop.f32.mrf.mxu0
    %v3545 = vadd.f32 0.0, %v3544
    %v3546 = vpop.f32.mrf.mxu0
    %3547 = vdwg.mxu0
    %3548 = vrot.lane.b32.xlu0 %v3338, 120
    %v3549 = vpop.permute.xlu0 %3548
    %3550 = vrot.lane.b32.xlu0 %v3343, 120
    %v3551 = vpop.permute.xlu0 %3550
    %3552 = vrot.lane.b32.xlu0 %v3338, 88
    %v3553 = vpop.permute.xlu0 %3552
    %3554 = vrot.lane.b32.xlu0 %v3343, 88
    %v3555 = vpop.permute.xlu0 %3554
    %v3556 = vsel %vm296, %v3549, 0
    %v3558 = vsel %vm296, %v3551, 0
    %v3560 = vsel %vm296, %v3553, 0
    %v3562 = vsel %vm296, %v3555, 0
    %3564 = vmatprep.subr.mxu0 0.0
    %3565 = vmatpush1.xpose.msra.mxu0 0.0
    %3566 = vmatprep.subr.mxu0 0.0
    %3567 = vmatpush1.xpose.msra.mxu0 0.0
    %3568 = vmatprep.subr.mxu0 0.0
    %3569 = vmatpush1.xpose.msra.mxu0 0.0
    %3570 = vmatprep.subr.mxu0 0.0
    %3571 = vmatpush1.xpose.msra.mxu0 0.0
    %3572 = vmatprep.subr.mxu0 0.0
    %3573 = vmatpush1.xpose.msra.mxu0 0.0
    %3574 = vmatprep.subr.mxu0 0.0
    %3575 = vmatpush1.xpose.msra.mxu0 0.0
    %3576 = vmatprep.subr.mxu0 0.0
    %3577 = vmatpush1.xpose.msra.mxu0 0.0
    %3578 = vmatprep.subr.mxu0 0.0
    %3579 = vmatpush1.xpose.msra.mxu0 0.0
    %3580 = vmatprep.subr.mxu0 0.0
    %3581 = vmatpush1.xpose.msra.mxu0 0.0
    %3582 = vmatprep.subr.mxu0 0.0
    %3583 = vmatpush1.xpose.msra.mxu0 0.0
    %3584 = vmatprep.subr.mxu0 0.0
    %3585 = vmatpush1.xpose.msra.mxu0 0.0
    %3586 = vmatprep.subr.mxu0 0.0
    %3587 = vmatpush1.xpose.msra.mxu0 0.0
    %3588 = vmatprep.subr.mxu0 0.0
    %3589 = vmatpush1.xpose.msra.mxu0 0.0
    %3590 = vmatprep.subr.mxu0 0.0
    %3591 = vmatpush1.xpose.msra.mxu0 0.0
    %3592 = vmatprep.subr.mxu0 0.0
    %3593 = vmatpush1.xpose.msra.mxu0 %v3562
    %3594 = vmatprep.subr.mxu0 0.0
    %3595 = vmatpush1.xpose.msra.mxu0 %v3560
    %3596 = vmatprep.subr.mxu0 0.0
    %3597 = vmatpush2.xpose.msra.mxu0 0.0
    %3598 = vmatprep.subr.mxu0 0.0
    %3599 = vmatpush2.xpose.msra.mxu0 0.0
    %3600 = vmatprep.subr.mxu0 0.0
    %3601 = vmatpush2.xpose.msra.mxu0 0.0
    %3602 = vmatprep.subr.mxu0 0.0
    %3603 = vmatpush2.xpose.msra.mxu0 0.0
    %3604 = vmatprep.subr.mxu0 0.0
    %3605 = vmatpush2.xpose.msra.mxu0 0.0
    %3606 = vmatprep.subr.mxu0 0.0
    %3607 = vmatpush2.xpose.msra.mxu0 0.0
    %3608 = vmatprep.subr.mxu0 0.0
    %3609 = vmatpush2.xpose.msra.mxu0 0.0
    %3610 = vmatprep.subr.mxu0 0.0
    %3611 = vmatpush2.xpose.msra.mxu0 0.0
    %3612 = vmatprep.subr.mxu0 0.0
    %3613 = vmatpush2.xpose.msra.mxu0 0.0
    %3614 = vmatprep.subr.mxu0 0.0
    %3615 = vmatpush2.xpose.msra.mxu0 0.0
    %3616 = vmatprep.subr.mxu0 0.0
    %3617 = vmatpush2.xpose.msra.mxu0 0.0
    %3618 = vmatprep.subr.mxu0 0.0
    %3619 = vmatpush2.xpose.msra.mxu0 0.0
    %3620 = vmatprep.subr.mxu0 0.0
    %3621 = vmatpush2.xpose.msra.mxu0 0.0
    %3622 = vmatprep.subr.mxu0 0.0
    %3623 = vmatpush2.xpose.msra.mxu0 0.0
    %3624 = vmatprep.subr.mxu0 0.0
    %3625 = vmatpush2.xpose.msra.mxu0 0.0
    %3626 = vmatprep.subr.mxu0 0.0
    %3627 = vmatpush2.xpose.msra.mxu0 0.0
    %3628 = vmatprep.mubr.f32.mxu0 0.0
    %3629 = vmatmul.mubr.f32.gmra.mxu0 %v3556
    %v3630 = vpop.f32.mrf.mxu0
    %v3631 = vadd.f32 0.0, %v3630
    %v3632 = vpop.f32.mrf.mxu0
    %3633 = vmatprep.mubr.f32.mxu0 0.0
    %3634 = vmatmul.mubr.f32.gmra.mxu0 %v3558
    %v3635 = vpop.f32.mrf.mxu0
    %v3636 = vadd.f32 0.0, %v3635
    %v3637 = vpop.f32.mrf.mxu0
    %3638 = vdwg.mxu0
    %v3639 = vmul.f32 %v3631, 0.35355338
    %v3640 = vmul.f32 %v3636, 0.35355338
    %v3641 = vadd.f32 %v3639, %v3205
    %v3642 = vadd.f32 %v3640, %v3206
    %v3643 = vsel %vm384, %v3641, -inf
    %3644 = vmax.xlane.f32.xlu0 %v3643
    %v3645 = vpop.xlane.xlu0 %3644
    %v3646 = vsel %vm384, %v3642, -inf
    %3647 = vmax.xlane.f32.xlu0 %v3646
    %v3648 = vpop.xlane.xlu0 %3647
    %v3649 = vsub.f32 %v3641, %v3645
    %v3650 = vsub.f32 %v3642, %v3648
    %v3651 = vmul.f32 %v3649, 1.442695
    %v3652 = vpow.pop %v3651
    %v3653 = vmul.f32 %v3650, 1.442695
    %v3654 = vpow.pop %v3653
    %v3655 = vsel %vm384, %v3652, 0.0
    %3656 = vadd.xlane.f32.xlu0 %v3655
    %v3657 = vpop.xlane.xlu0 %3656
    %v3658 = vsel %vm384, %v3654, 0.0
    %3659 = vadd.xlane.f32.xlu0 %v3658
    %v3660 = vpop.xlane.xlu0 %3659
    %v3661 = vrcp.pop %v3657
    %v3662 = vmul.f32 %v3652, %v3661
    %v3663 = vrcp.pop %v3660
    %v3664 = vmul.f32 %v3654, %v3663
    %3665 = vrot.lane.b32.xlu0 %v3338, 56
    %v3666 = vpop.permute.xlu0 %3665
    %3667 = vrot.lane.b32.xlu0 %v3343, 56
    %v3668 = vpop.permute.xlu0 %3667
    %v3672 = vsel %vm384, %v3662, 0
    %v3675 = vsel %vm384, %v3664, 0
    %3677 = vmatprep.subr.mxu0 0.0
    %3678 = vmatpush1.msra.mxu0 0.0
    %3679 = vmatprep.subr.mxu0 0.0
    %3680 = vmatpush1.msra.mxu0 0.0
    %3681 = vmatprep.subr.mxu0 0.0
    %3682 = vmatpush1.msra.mxu0 0.0
    %3683 = vmatprep.subr.mxu0 0.0
    %3684 = vmatpush1.msra.mxu0 0.0
    %3685 = vmatprep.subr.mxu0 0.0
    %3686 = vmatpush1.msra.mxu0 0.0
    %3687 = vmatprep.subr.mxu0 0.0
    %3688 = vmatpush1.msra.mxu0 0.0
    %3689 = vmatprep.subr.mxu0 0.0
    %3690 = vmatpush1.msra.mxu0 0.0
    %3691 = vmatprep.subr.mxu0 0.0
    %3692 = vmatpush1.msra.mxu0 0.0
    %3693 = vmatprep.subr.mxu0 0.0
    %3694 = vmatpush1.msra.mxu0 0.0
    %3695 = vmatprep.subr.mxu0 0.0
    %3696 = vmatpush1.msra.mxu0 0.0
    %3697 = vmatprep.subr.mxu0 0.0
    %3698 = vmatpush1.msra.mxu0 0.0
    %3699 = vmatprep.subr.mxu0 0.0
    %3700 = vmatpush1.msra.mxu0 0.0
    %3701 = vmatprep.subr.mxu0 0.0
    %3702 = vmatpush1.msra.mxu0 0.0
    %3703 = vmatprep.subr.mxu0 0.0
    %3704 = vmatpush1.msra.mxu0 0.0
    %3705 = vmatprep.subr.mxu0 0.0
    %3706 = vmatpush1.msra.mxu0 %v3668
    %3707 = vmatprep.subr.mxu0 0.0
    %3708 = vmatpush1.msra.mxu0 %v3666
    %3709 = vmatprep.subr.mxu0 0.0
    %3710 = vmatpush2.msra.mxu0 0.0
    %3711 = vmatprep.subr.mxu0 0.0
    %3712 = vmatpush2.msra.mxu0 0.0
    %3713 = vmatprep.subr.mxu0 0.0
    %3714 = vmatpush2.msra.mxu0 0.0
    %3715 = vmatprep.subr.mxu0 0.0
    %3716 = vmatpush2.msra.mxu0 0.0
    %3717 = vmatprep.subr.mxu0 0.0
    %3718 = vmatpush2.msra.mxu0 0.0
    %3719 = vmatprep.subr.mxu0 0.0
    %3720 = vmatpush2.msra.mxu0 0.0
    %3721 = vmatprep.subr.mxu0 0.0
    %3722 = vmatpush2.msra.mxu0 0.0
    %3723 = vmatprep.subr.mxu0 0.0
    %3724 = vmatpush2.msra.mxu0 0.0
    %3725 = vmatprep.subr.mxu0 0.0
    %3726 = vmatpush2.msra.mxu0 0.0
    %3727 = vmatprep.subr.mxu0 0.0
    %3728 = vmatpush2.msra.mxu0 0.0
    %3729 = vmatprep.subr.mxu0 0.0
    %3730 = vmatpush2.msra.mxu0 0.0
    %3731 = vmatprep.subr.mxu0 0.0
    %3732 = vmatpush2.msra.mxu0 0.0
    %3733 = vmatprep.subr.mxu0 0.0
    %3734 = vmatpush2.msra.mxu0 0.0
    %3735 = vmatprep.subr.mxu0 0.0
    %3736 = vmatpush2.msra.mxu0 0.0
    %3737 = vmatprep.subr.mxu0 0.0
    %3738 = vmatpush2.msra.mxu0 0.0
    %3739 = vmatprep.subr.mxu0 0.0
    %3740 = vmatpush2.msra.mxu0 0.0
    %3741 = vmatprep.mubr.f32.mxu0 0.0
    %3742 = vmatmul.mubr.f32.gmra.mxu0 %v3672
    %v3743 = vpop.f32.mrf.mxu0
    %v3744 = vadd.f32 0.0, %v3743
    %v3745 = vpop.f32.mrf.mxu0
    %3746 = vmatprep.mubr.f32.mxu0 0.0
    %3747 = vmatmul.mubr.f32.gmra.mxu0 %v3675
    %v3748 = vpop.f32.mrf.mxu0
    %v3749 = vadd.f32 0.0, %v3748
    %v3750 = vpop.f32.mrf.mxu0
    %3751 = vdwg.mxu0
    %3752 = vrot.lane.b32.xlu0 %v3338, 112
    %v3753 = vpop.permute.xlu0 %3752
    %3754 = vrot.lane.b32.xlu0 %v3343, 112
    %v3755 = vpop.permute.xlu0 %3754
    %3756 = vrot.lane.b32.xlu0 %v3338, 80
    %v3757 = vpop.permute.xlu0 %3756
    %3758 = vrot.lane.b32.xlu0 %v3343, 80
    %v3759 = vpop.permute.xlu0 %3758
    %v3760 = vsel %vm296, %v3753, 0
    %v3762 = vsel %vm296, %v3755, 0
    %v3764 = vsel %vm296, %v3757, 0
    %v3766 = vsel %vm296, %v3759, 0
    %3768 = vmatprep.subr.mxu0 0.0
    %3769 = vmatpush1.xpose.msra.mxu0 0.0
    %3770 = vmatprep.subr.mxu0 0.0
    %3771 = vmatpush1.xpose.msra.mxu0 0.0
    %3772 = vmatprep.subr.mxu0 0.0
    %3773 = vmatpush1.xpose.msra.mxu0 0.0
    %3774 = vmatprep.subr.mxu0 0.0
    %3775 = vmatpush1.xpose.msra.mxu0 0.0
    %3776 = vmatprep.subr.mxu0 0.0
    %3777 = vmatpush1.xpose.msra.mxu0 0.0
    %3778 = vmatprep.subr.mxu0 0.0
    %3779 = vmatpush1.xpose.msra.mxu0 0.0
    %3780 = vmatprep.subr.mxu0 0.0
    %3781 = vmatpush1.xpose.msra.mxu0 0.0
    %3782 = vmatprep.subr.mxu0 0.0
    %3783 = vmatpush1.xpose.msra.mxu0 0.0
    %3784 = vmatprep.subr.mxu0 0.0
    %3785 = vmatpush1.xpose.msra.mxu0 0.0
    %3786 = vmatprep.subr.mxu0 0.0
    %3787 = vmatpush1.xpose.msra.mxu0 0.0
    %3788 = vmatprep.subr.mxu0 0.0
    %3789 = vmatpush1.xpose.msra.mxu0 0.0
    %3790 = vmatprep.subr.mxu0 0.0
    %3791 = vmatpush1.xpose.msra.mxu0 0.0
    %3792 = vmatprep.subr.mxu0 0.0
    %3793 = vmatpush1.xpose.msra.mxu0 0.0
    %3794 = vmatprep.subr.mxu0 0.0
    %3795 = vmatpush1.xpose.msra.mxu0 0.0
    %3796 = vmatprep.subr.mxu0 0.0
    %3797 = vmatpush1.xpose.msra.mxu0 %v3766
    %3798 = vmatprep.subr.mxu0 0.0
    %3799 = vmatpush1.xpose.msra.mxu0 %v3764
    %3800 = vmatprep.subr.mxu0 0.0
    %3801 = vmatpush2.xpose.msra.mxu0 0.0
    %3802 = vmatprep.subr.mxu0 0.0
    %3803 = vmatpush2.xpose.msra.mxu0 0.0
    %3804 = vmatprep.subr.mxu0 0.0
    %3805 = vmatpush2.xpose.msra.mxu0 0.0
    %3806 = vmatprep.subr.mxu0 0.0
    %3807 = vmatpush2.xpose.msra.mxu0 0.0
    %3808 = vmatprep.subr.mxu0 0.0
    %3809 = vmatpush2.xpose.msra.mxu0 0.0
    %3810 = vmatprep.subr.mxu0 0.0
    %3811 = vmatpush2.xpose.msra.mxu0 0.0
    %3812 = vmatprep.subr.mxu0 0.0
    %3813 = vmatpush2.xpose.msra.mxu0 0.0
    %3814 = vmatprep.subr.mxu0 0.0
    %3815 = vmatpush2.xpose.msra.mxu0 0.0
    %3816 = vmatprep.subr.mxu0 0.0
    %3817 = vmatpush2.xpose.msra.mxu0 0.0
    %3818 = vmatprep.subr.mxu0 0.0
    %3819 = vmatpush2.xpose.msra.mxu0 0.0
    %3820 = vmatprep.subr.mxu0 0.0
    %3821 = vmatpush2.xpose.msra.mxu0 0.0
    %3822 = vmatprep.subr.mxu0 0.0
    %3823 = vmatpush2.xpose.msra.mxu0 0.0
    %3824 = vmatprep.subr.mxu0 0.0
    %3825 = vmatpush2.xpose.msra.mxu0 0.0
    %3826 = vmatprep.subr.mxu0 0.0
    %3827 = vmatpush2.xpose.msra.mxu0 0.0
    %3828 = vmatprep.subr.mxu0 0.0
    %3829 = vmatpush2.xpose.msra.mxu0 0.0
    %3830 = vmatprep.subr.mxu0 0.0
    %3831 = vmatpush2.xpose.msra.mxu0 0.0
    %3832 = vmatprep.mubr.f32.mxu0 0.0
    %3833 = vmatmul.mubr.f32.gmra.mxu0 %v3760
    %v3834 = vpop.f32.mrf.mxu0
    %v3835 = vadd.f32 0.0, %v3834
    %v3836 = vpop.f32.mrf.mxu0
    %3837 = vmatprep.mubr.f32.mxu0 0.0
    %3838 = vmatmul.mubr.f32.gmra.mxu0 %v3762
    %v3839 = vpop.f32.mrf.mxu0
    %v3840 = vadd.f32 0.0, %v3839
    %v3841 = vpop.f32.mrf.mxu0
    %3842 = vdwg.mxu0
    %v3843 = vmul.f32 %v3835, 0.35355338
    %v3844 = vmul.f32 %v3840, 0.35355338
    %v3845 = vadd.f32 %v3843, %v3205
    %v3846 = vadd.f32 %v3844, %v3206
    %v3847 = vsel %vm384, %v3845, -inf
    %3848 = vmax.xlane.f32.xlu0 %v3847
    %v3849 = vpop.xlane.xlu0 %3848
    %v3850 = vsel %vm384, %v3846, -inf
    %3851 = vmax.xlane.f32.xlu0 %v3850
    %v3852 = vpop.xlane.xlu0 %3851
    %v3853 = vsub.f32 %v3845, %v3849
    %v3854 = vsub.f32 %v3846, %v3852
    %v3855 = vmul.f32 %v3853, 1.442695
    %v3856 = vpow.pop %v3855
    %v3857 = vmul.f32 %v3854, 1.442695
    %v3858 = vpow.pop %v3857
    %v3859 = vsel %vm384, %v3856, 0.0
    %3860 = vadd.xlane.f32.xlu0 %v3859
    %v3861 = vpop.xlane.xlu0 %3860
    %v3862 = vsel %vm384, %v3858, 0.0
    %3863 = vadd.xlane.f32.xlu0 %v3862
    %v3864 = vpop.xlane.xlu0 %3863
    %v3865 = vrcp.pop %v3861
    %v3866 = vmul.f32 %v3856, %v3865
    %v3867 = vrcp.pop %v3864
    %v3868 = vmul.f32 %v3858, %v3867
    %3869 = vrot.lane.b32.xlu0 %v3338, 48
    %v3870 = vpop.permute.xlu0 %3869
    %3871 = vrot.lane.b32.xlu0 %v3343, 48
    %v3872 = vpop.permute.xlu0 %3871
    %v3876 = vsel %vm384, %v3866, 0
    %v3879 = vsel %vm384, %v3868, 0
    %3881 = vmatprep.subr.mxu0 0.0
    %3882 = vmatpush1.msra.mxu0 0.0
    %3883 = vmatprep.subr.mxu0 0.0
    %3884 = vmatpush1.msra.mxu0 0.0
    %3885 = vmatprep.subr.mxu0 0.0
    %3886 = vmatpush1.msra.mxu0 0.0
    %3887 = vmatprep.subr.mxu0 0.0
    %3888 = vmatpush1.msra.mxu0 0.0
    %3889 = vmatprep.subr.mxu0 0.0
    %3890 = vmatpush1.msra.mxu0 0.0
    %3891 = vmatprep.subr.mxu0 0.0
    %3892 = vmatpush1.msra.mxu0 0.0
    %3893 = vmatprep.subr.mxu0 0.0
    %3894 = vmatpush1.msra.mxu0 0.0
    %3895 = vmatprep.subr.mxu0 0.0
    %3896 = vmatpush1.msra.mxu0 0.0
    %3897 = vmatprep.subr.mxu0 0.0
    %3898 = vmatpush1.msra.mxu0 0.0
    %3899 = vmatprep.subr.mxu0 0.0
    %3900 = vmatpush1.msra.mxu0 0.0
    %3901 = vmatprep.subr.mxu0 0.0
    %3902 = vmatpush1.msra.mxu0 0.0
    %3903 = vmatprep.subr.mxu0 0.0
    %3904 = vmatpush1.msra.mxu0 0.0
    %3905 = vmatprep.subr.mxu0 0.0
    %3906 = vmatpush1.msra.mxu0 0.0
    %3907 = vmatprep.subr.mxu0 0.0
    %3908 = vmatpush1.msra.mxu0 0.0
    %3909 = vmatprep.subr.mxu0 0.0
    %3910 = vmatpush1.msra.mxu0 %v3872
    %3911 = vmatprep.subr.mxu0 0.0
    %3912 = vmatpush1.msra.mxu0 %v3870
    %3913 = vmatprep.subr.mxu0 0.0
    %3914 = vmatpush2.msra.mxu0 0.0
    %3915 = vmatprep.subr.mxu0 0.0
    %3916 = vmatpush2.msra.mxu0 0.0
    %3917 = vmatprep.subr.mxu0 0.0
    %3918 = vmatpush2.msra.mxu0 0.0
    %3919 = vmatprep.subr.mxu0 0.0
    %3920 = vmatpush2.msra.mxu0 0.0
    %3921 = vmatprep.subr.mxu0 0.0
    %3922 = vmatpush2.msra.mxu0 0.0
    %3923 = vmatprep.subr.mxu0 0.0
    %3924 = vmatpush2.msra.mxu0 0.0
    %3925 = vmatprep.subr.mxu0 0.0
    %3926 = vmatpush2.msra.mxu0 0.0
    %3927 = vmatprep.subr.mxu0 0.0
    %3928 = vmatpush2.msra.mxu0 0.0
    %3929 = vmatprep.subr.mxu0 0.0
    %3930 = vmatpush2.msra.mxu0 0.0
    %3931 = vmatprep.subr.mxu0 0.0
    %3932 = vmatpush2.msra.mxu0 0.0
    %3933 = vmatprep.subr.mxu0 0.0
    %3934 = vmatpush2.msra.mxu0 0.0
    %3935 = vmatprep.subr.mxu0 0.0
    %3936 = vmatpush2.msra.mxu0 0.0
    %3937 = vmatprep.subr.mxu0 0.0
    %3938 = vmatpush2.msra.mxu0 0.0
    %3939 = vmatprep.subr.mxu0 0.0
    %3940 = vmatpush2.msra.mxu0 0.0
    %3941 = vmatprep.subr.mxu0 0.0
    %3942 = vmatpush2.msra.mxu0 0.0
    %3943 = vmatprep.subr.mxu0 0.0
    %3944 = vmatpush2.msra.mxu0 0.0
    %3945 = vmatprep.mubr.f32.mxu0 0.0
    %3946 = vmatmul.mubr.f32.gmra.mxu0 %v3876
    %v3947 = vpop.f32.mrf.mxu0
    %v3948 = vadd.f32 0.0, %v3947
    %v3949 = vpop.f32.mrf.mxu0
    %3950 = vmatprep.mubr.f32.mxu0 0.0
    %3951 = vmatmul.mubr.f32.gmra.mxu0 %v3879
    %v3952 = vpop.f32.mrf.mxu0
    %v3953 = vadd.f32 0.0, %v3952
    %v3954 = vpop.f32.mrf.mxu0
    %3955 = vdwg.mxu0
    %3956 = vrot.lane.b32.xlu0 %v3338, 104
    %v3957 = vpop.permute.xlu0 %3956
    %3958 = vrot.lane.b32.xlu0 %v3343, 104
    %v3959 = vpop.permute.xlu0 %3958
    %3960 = vrot.lane.b32.xlu0 %v3338, 72
    %v3961 = vpop.permute.xlu0 %3960
    %3962 = vrot.lane.b32.xlu0 %v3343, 72
    %v3963 = vpop.permute.xlu0 %3962
    %v3964 = vsel %vm296, %v3957, 0
    %v3966 = vsel %vm296, %v3959, 0
    %v3968 = vsel %vm296, %v3961, 0
    %v3970 = vsel %vm296, %v3963, 0
    %3972 = vmatprep.subr.mxu0 0.0
    %3973 = vmatpush1.xpose.msra.mxu0 0.0
    %3974 = vmatprep.subr.mxu0 0.0
    %3975 = vmatpush1.xpose.msra.mxu0 0.0
    %3976 = vmatprep.subr.mxu0 0.0
    %3977 = vmatpush1.xpose.msra.mxu0 0.0
    %3978 = vmatprep.subr.mxu0 0.0
    %3979 = vmatpush1.xpose.msra.mxu0 0.0
    %3980 = vmatprep.subr.mxu0 0.0
    %3981 = vmatpush1.xpose.msra.mxu0 0.0
    %3982 = vmatprep.subr.mxu0 0.0
    %3983 = vmatpush1.xpose.msra.mxu0 0.0
    %3984 = vmatprep.subr.mxu0 0.0
    %3985 = vmatpush1.xpose.msra.mxu0 0.0
    %3986 = vmatprep.subr.mxu0 0.0
    %3987 = vmatpush1.xpose.msra.mxu0 0.0
    %3988 = vmatprep.subr.mxu0 0.0
    %3989 = vmatpush1.xpose.msra.mxu0 0.0
    %3990 = vmatprep.subr.mxu0 0.0
    %3991 = vmatpush1.xpose.msra.mxu0 0.0
    %3992 = vmatprep.subr.mxu0 0.0
    %3993 = vmatpush1.xpose.msra.mxu0 0.0
    %3994 = vmatprep.subr.mxu0 0.0
    %3995 = vmatpush1.xpose.msra.mxu0 0.0
    %3996 = vmatprep.subr.mxu0 0.0
    %3997 = vmatpush1.xpose.msra.mxu0 0.0
    %3998 = vmatprep.subr.mxu0 0.0
    %3999 = vmatpush1.xpose.msra.mxu0 0.0
    %4000 = vmatprep.subr.mxu0 0.0
    %4001 = vmatpush1.xpose.msra.mxu0 %v3970
    %4002 = vmatprep.subr.mxu0 0.0
    %4003 = vmatpush1.xpose.msra.mxu0 %v3968
    %4004 = vmatprep.subr.mxu0 0.0
    %4005 = vmatpush2.xpose.msra.mxu0 0.0
    %4006 = vmatprep.subr.mxu0 0.0
    %4007 = vmatpush2.xpose.msra.mxu0 0.0
    %4008 = vmatprep.subr.mxu0 0.0
    %4009 = vmatpush2.xpose.msra.mxu0 0.0
    %4010 = vmatprep.subr.mxu0 0.0
    %4011 = vmatpush2.xpose.msra.mxu0 0.0
    %4012 = vmatprep.subr.mxu0 0.0
    %4013 = vmatpush2.xpose.msra.mxu0 0.0
    %4014 = vmatprep.subr.mxu0 0.0
    %4015 = vmatpush2.xpose.msra.mxu0 0.0
    %4016 = vmatprep.subr.mxu0 0.0
    %4017 = vmatpush2.xpose.msra.mxu0 0.0
    %4018 = vmatprep.subr.mxu0 0.0
    %4019 = vmatpush2.xpose.msra.mxu0 0.0
    %4020 = vmatprep.subr.mxu0 0.0
    %4021 = vmatpush2.xpose.msra.mxu0 0.0
    %4022 = vmatprep.subr.mxu0 0.0
    %4023 = vmatpush2.xpose.msra.mxu0 0.0
    %4024 = vmatprep.subr.mxu0 0.0
    %4025 = vmatpush2.xpose.msra.mxu0 0.0
    %4026 = vmatprep.subr.mxu0 0.0
    %4027 = vmatpush2.xpose.msra.mxu0 0.0
    %4028 = vmatprep.subr.mxu0 0.0
    %4029 = vmatpush2.xpose.msra.mxu0 0.0
    %4030 = vmatprep.subr.mxu0 0.0
    %4031 = vmatpush2.xpose.msra.mxu0 0.0
    %4032 = vmatprep.subr.mxu0 0.0
    %4033 = vmatpush2.xpose.msra.mxu0 0.0
    %4034 = vmatprep.subr.mxu0 0.0
    %4035 = vmatpush2.xpose.msra.mxu0 0.0
    %4036 = vmatprep.mubr.f32.mxu0 0.0
    %4037 = vmatmul.mubr.f32.gmra.mxu0 %v3964
    %v4038 = vpop.f32.mrf.mxu0
    %v4039 = vadd.f32 0.0, %v4038
    %v4040 = vpop.f32.mrf.mxu0
    %4041 = vmatprep.mubr.f32.mxu0 0.0
    %4042 = vmatmul.mubr.f32.gmra.mxu0 %v3966
    %v4043 = vpop.f32.mrf.mxu0
    %v4044 = vadd.f32 0.0, %v4043
    %v4045 = vpop.f32.mrf.mxu0
    %4046 = vdwg.mxu0
    %v4047 = vmul.f32 %v4039, 0.35355338
    %v4048 = vmul.f32 %v4044, 0.35355338
    %v4049 = vadd.f32 %v4047, %v3205
    %v4050 = vadd.f32 %v4048, %v3206
    %v4051 = vsel %vm384, %v4049, -inf
    %4052 = vmax.xlane.f32.xlu0 %v4051
    %v4053 = vpop.xlane.xlu0 %4052
    %v4054 = vsel %vm384, %v4050, -inf
    %4055 = vmax.xlane.f32.xlu0 %v4054
    %v4056 = vpop.xlane.xlu0 %4055
    %v4057 = vsub.f32 %v4049, %v4053
    %v4058 = vsub.f32 %v4050, %v4056
    %v4059 = vmul.f32 %v4057, 1.442695
    %v4060 = vpow.pop %v4059
    %v4061 = vmul.f32 %v4058, 1.442695
    %v4062 = vpow.pop %v4061
    %v4063 = vsel %vm384, %v4060, 0.0
    %4064 = vadd.xlane.f32.xlu0 %v4063
    %v4065 = vpop.xlane.xlu0 %4064
    %v4066 = vsel %vm384, %v4062, 0.0
    %4067 = vadd.xlane.f32.xlu0 %v4066
    %v4068 = vpop.xlane.xlu0 %4067
    %v4069 = vrcp.pop %v4065
    %v4070 = vmul.f32 %v4060, %v4069
    %v4071 = vrcp.pop %v4068
    %v4072 = vmul.f32 %v4062, %v4071
    %4073 = vrot.lane.b32.xlu0 %v3338, 40
    %v4074 = vpop.permute.xlu0 %4073
    %4075 = vrot.lane.b32.xlu0 %v3343, 40
    %v4076 = vpop.permute.xlu0 %4075
    %v4080 = vsel %vm384, %v4070, 0
    %v4083 = vsel %vm384, %v4072, 0
    %4085 = vmatprep.subr.mxu0 0.0
    %4086 = vmatpush1.msra.mxu0 0.0
    %4087 = vmatprep.subr.mxu0 0.0
    %4088 = vmatpush1.msra.mxu0 0.0
    %4089 = vmatprep.subr.mxu0 0.0
    %4090 = vmatpush1.msra.mxu0 0.0
    %4091 = vmatprep.subr.mxu0 0.0
    %4092 = vmatpush1.msra.mxu0 0.0
    %4093 = vmatprep.subr.mxu0 0.0
    %4094 = vmatpush1.msra.mxu0 0.0
    %4095 = vmatprep.subr.mxu0 0.0
    %4096 = vmatpush1.msra.mxu0 0.0
    %4097 = vmatprep.subr.mxu0 0.0
    %4098 = vmatpush1.msra.mxu0 0.0
    %4099 = vmatprep.subr.mxu0 0.0
    %4100 = vmatpush1.msra.mxu0 0.0
    %4101 = vmatprep.subr.mxu0 0.0
    %4102 = vmatpush1.msra.mxu0 0.0
    %4103 = vmatprep.subr.mxu0 0.0
    %4104 = vmatpush1.msra.mxu0 0.0
    %4105 = vmatprep.subr.mxu0 0.0
    %4106 = vmatpush1.msra.mxu0 0.0
    %4107 = vmatprep.subr.mxu0 0.0
    %4108 = vmatpush1.msra.mxu0 0.0
    %4109 = vmatprep.subr.mxu0 0.0
    %4110 = vmatpush1.msra.mxu0 0.0
    %4111 = vmatprep.subr.mxu0 0.0
    %4112 = vmatpush1.msra.mxu0 0.0
    %4113 = vmatprep.subr.mxu0 0.0
    %4114 = vmatpush1.msra.mxu0 %v4076
    %4115 = vmatprep.subr.mxu0 0.0
    %4116 = vmatpush1.msra.mxu0 %v4074
    %4117 = vmatprep.subr.mxu0 0.0
    %4118 = vmatpush2.msra.mxu0 0.0
    %4119 = vmatprep.subr.mxu0 0.0
    %4120 = vmatpush2.msra.mxu0 0.0
    %4121 = vmatprep.subr.mxu0 0.0
    %4122 = vmatpush2.msra.mxu0 0.0
    %4123 = vmatprep.subr.mxu0 0.0
    %4124 = vmatpush2.msra.mxu0 0.0
    %4125 = vmatprep.subr.mxu0 0.0
    %4126 = vmatpush2.msra.mxu0 0.0
    %4127 = vmatprep.subr.mxu0 0.0
    %4128 = vmatpush2.msra.mxu0 0.0
    %4129 = vmatprep.subr.mxu0 0.0
    %4130 = vmatpush2.msra.mxu0 0.0
    %4131 = vmatprep.subr.mxu0 0.0
    %4132 = vmatpush2.msra.mxu0 0.0
    %4133 = vmatprep.subr.mxu0 0.0
    %4134 = vmatpush2.msra.mxu0 0.0
    %4135 = vmatprep.subr.mxu0 0.0
    %4136 = vmatpush2.msra.mxu0 0.0
    %4137 = vmatprep.subr.mxu0 0.0
    %4138 = vmatpush2.msra.mxu0 0.0
    %4139 = vmatprep.subr.mxu0 0.0
    %4140 = vmatpush2.msra.mxu0 0.0
    %4141 = vmatprep.subr.mxu0 0.0
    %4142 = vmatpush2.msra.mxu0 0.0
    %4143 = vmatprep.subr.mxu0 0.0
    %4144 = vmatpush2.msra.mxu0 0.0
    %4145 = vmatprep.subr.mxu0 0.0
    %4146 = vmatpush2.msra.mxu0 0.0
    %4147 = vmatprep.subr.mxu0 0.0
    %4148 = vmatpush2.msra.mxu0 0.0
    %4149 = vmatprep.mubr.f32.mxu0 0.0
    %4150 = vmatmul.mubr.f32.gmra.mxu0 %v4080
    %v4151 = vpop.f32.mrf.mxu0
    %v4152 = vadd.f32 0.0, %v4151
    %v4153 = vpop.f32.mrf.mxu0
    %4154 = vmatprep.mubr.f32.mxu0 0.0
    %4155 = vmatmul.mubr.f32.gmra.mxu0 %v4083
    %v4156 = vpop.f32.mrf.mxu0
    %v4157 = vadd.f32 0.0, %v4156
    %v4158 = vpop.f32.mrf.mxu0
    %4159 = vdwg.mxu0
    %4162 = vrot.lane.b32.xlu0 %v3744, 8
    %v4163 = vpop.permute.xlu0 %4162
    %4164 = vrot.lane.b32.xlu0 %v3749, 8
    %v4165 = vpop.permute.xlu0 %4164
    %4170 = vrot.lane.b32.xlu0 %v3948, 16
    %v4171 = vpop.permute.xlu0 %4170
    %4172 = vrot.lane.b32.xlu0 %v3953, 16
    %v4173 = vpop.permute.xlu0 %4172
    %4178 = vrot.lane.b32.xlu0 %v4152, 24
    %v4179 = vpop.permute.xlu0 %4178
    %4180 = vrot.lane.b32.xlu0 %v4157, 24
    %v4181 = vpop.permute.xlu0 %4180
    %v4184 = vsel %vm296, %v3540, %v4163
    %v4185 = vsel %vm296, %v3545, %v4165
    %v4186 = vsel %vm384, %v4184, %v4171
    %v4187 = vsel %vm384, %v4185, %v4173
    %v4188 = vsel %vm1134, %v4186, %v4179
    %v4189 = vsel %vm1134, %v4187, %v4181
    %v4190 = vld [vmem:[%s8 + $0x13] sm:$0x1]
    %v4192 = vlaneseq
    %v4193 = vshrl.u32 %v4192, 7
    %v4194 = vsub.s32 0, %v4193
    %v4195 = vrot.slane %v4190, %v4194
    %4196 = vrot.lane.b32.xlu0 %v3210, 96
    %v4197 = vpop.permute.xlu0 %4196
    %4198 = vrot.lane.b32.xlu0 %v3212, 96
    %v4199 = vpop.permute.xlu0 %4198
    %4200 = vrot.lane.b32.xlu0 %v3214, 96
    %v4201 = vpop.permute.xlu0 %4200
    %4202 = vrot.lane.b32.xlu0 %v3216, 96
    %v4203 = vpop.permute.xlu0 %4202
    %4208 = vrot.lane.b32.xlu0 %v4195, 64
    %v4209 = vpop.permute.xlu0 %4208
    %v4212 = vsel %vm208, %v4188, 0
    %v4215 = vsel %vm208, %v4189, 0
    %4217 = vmatprep.subr.mxu0 0.0
    %4218 = vmatpush1.msra.mxu0 0.0
    %4219 = vmatprep.subr.mxu0 0.0
    %4220 = vmatpush1.msra.mxu0 0.0
    %4221 = vmatprep.subr.mxu0 0.0
    %4222 = vmatpush1.msra.mxu0 0.0
    %4223 = vmatprep.subr.mxu0 0.0
    %4224 = vmatpush1.msra.mxu0 0.0
    %4225 = vmatprep.subr.mxu0 0.0
    %4226 = vmatpush1.msra.mxu0 0.0
    %4227 = vmatprep.subr.mxu0 0.0
    %4228 = vmatpush1.msra.mxu0 0.0
    %4229 = vmatprep.subr.mxu0 0.0
    %4230 = vmatpush1.msra.mxu0 0.0
    %4231 = vmatprep.subr.mxu0 0.0
    %4232 = vmatpush1.msra.mxu0 0.0
    %4233 = vmatprep.subr.mxu0 0.0
    %4234 = vmatpush1.msra.mxu0 0.0
    %4235 = vmatprep.subr.mxu0 0.0
    %4236 = vmatpush1.msra.mxu0 0.0
    %4237 = vmatprep.subr.mxu0 0.0
    %4238 = vmatpush1.msra.mxu0 0.0
    %4239 = vmatprep.subr.mxu0 0.0
    %4240 = vmatpush1.msra.mxu0 0.0
    %4241 = vmatprep.subr.mxu0 0.0
    %4242 = vmatpush1.msra.mxu0 %v4203
    %4243 = vmatprep.subr.mxu0 0.0
    %4244 = vmatpush1.msra.mxu0 %v4201
    %4245 = vmatprep.subr.mxu0 0.0
    %4246 = vmatpush1.msra.mxu0 %v4199
    %4247 = vmatprep.subr.mxu0 0.0
    %4248 = vmatpush1.msra.mxu0 %v4197
    %4249 = vmatprep.subr.mxu0 0.0
    %4250 = vmatpush2.msra.mxu0 0.0
    %4251 = vmatprep.subr.mxu0 0.0
    %4252 = vmatpush2.msra.mxu0 0.0
    %4253 = vmatprep.subr.mxu0 0.0
    %4254 = vmatpush2.msra.mxu0 0.0
    %4255 = vmatprep.subr.mxu0 0.0
    %4256 = vmatpush2.msra.mxu0 0.0
    %4257 = vmatprep.subr.mxu0 0.0
    %4258 = vmatpush2.msra.mxu0 0.0
    %4259 = vmatprep.subr.mxu0 0.0
    %4260 = vmatpush2.msra.mxu0 0.0
    %4261 = vmatprep.subr.mxu0 0.0
    %4262 = vmatpush2.msra.mxu0 0.0
    %4263 = vmatprep.subr.mxu0 0.0
    %4264 = vmatpush2.msra.mxu0 0.0
    %4265 = vmatprep.subr.mxu0 0.0
    %4266 = vmatpush2.msra.mxu0 0.0
    %4267 = vmatprep.subr.mxu0 0.0
    %4268 = vmatpush2.msra.mxu0 0.0
    %4269 = vmatprep.subr.mxu0 0.0
    %4270 = vmatpush2.msra.mxu0 0.0
    %4271 = vmatprep.subr.mxu0 0.0
    %4272 = vmatpush2.msra.mxu0 0.0
    %4273 = vmatprep.subr.mxu0 0.0
    %4274 = vmatpush2.msra.mxu0 0.0
    %4275 = vmatprep.subr.mxu0 0.0
    %4276 = vmatpush2.msra.mxu0 0.0
    %4277 = vmatprep.subr.mxu0 0.0
    %4278 = vmatpush2.msra.mxu0 0.0
    %4279 = vmatprep.subr.mxu0 0.0
    %4280 = vmatpush2.msra.mxu0 0.0
    %4281 = vmatprep.mubr.f32.mxu0 0.0
    %4282 = vmatmul.mubr.f32.gmra.mxu0 %v4212
    %v4283 = vpop.f32.mrf.mxu0
    %v4284 = vadd.f32 %v4209, %v4283
    %v4285 = vpop.f32.mrf.mxu0
    %4286 = vmatprep.mubr.f32.mxu0 0.0
    %4287 = vmatmul.mubr.f32.gmra.mxu0 %v4215
    %v4288 = vpop.f32.mrf.mxu0
    %v4289 = vadd.f32 %v4209, %v4288
    %v4290 = vpop.f32.mrf.mxu0
    %4291 = vdwg.mxu0
    %v4292 = vadd.f32 %v3203, %v4284
    %v4293 = vadd.f32 %v3204, %v4289
    %v4294 = vld [vmem:[%s8 + $0x14] sm:$0x1]
    %v4295 = vsel %vm208, %v4292, 0.0
    %4296 = vadd.xlane.f32.xlu0 %v4295
    %v4297 = vpop.xlane.xlu0 %4296
    %v4298 = vsel %vm208, %v4293, 0.0
    %4299 = vadd.xlane.f32.xlu0 %v4298
    %v4300 = vpop.xlane.xlu0 %4299
    %v4301 = vmul.f32 %v4297, %v1247
    %v4302 = vmul.f32 %v4300, %v1247
    %v4303 = vsub.f32 %v4292, %v4301
    %v4304 = vsub.f32 %v4293, %v4302
    %v4305 = vmul.f32 %v4303, %v4303
    %v4306 = vmul.f32 %v4304, %v4304
    %v4307 = vsel %vm208, %v4305, 0.0
    %4308 = vadd.xlane.f32.xlu0 %v4307
    %v4309 = vpop.xlane.xlu0 %4308
    %v4310 = vsel %vm208, %v4306, 0.0
    %4311 = vadd.xlane.f32.xlu0 %v4310
    %v4312 = vpop.xlane.xlu0 %4311
    %v4313 = vmul.f32 %v4309, %v1247
    %v4314 = vmul.f32 %v4312, %v1247
    %v4315 = vadd.f32 %v4313, 1e-05
    %v4316 = vadd.f32 %v4314, 1e-05
    %v4317 = vrsqrt.pop %v4315
    %v4318 = vrsqrt.pop %v4316
    %v4319 = vmul.f32 %v4303, %v4317
    %v4320 = vmul.f32 %v4304, %v4318
    %4321 = vrot.lane.b32.xlu0 %v4195, 32
    %v4322 = vpop.permute.xlu0 %4321
    %v4324 = vmul.f32 %v4319, %v4322
    %v4325 = vmul.f32 %v4320, %v4322
    %v4327 = vlaneseq
    %v4328 = vshrl.u32 %v4327, 7
    %v4329 = vsub.s32 0, %v4328
    %v4330 = vrot.slane %v4294, %v4329
    %v4332 = vadd.f32 %v4324, %v4330
    %v4333 = vadd.f32 %v4325, %v4330
    %4338 = vrot.lane.b32.xlu0 %v4330, 96
    %v4339 = vpop.permute.xlu0 %4338
    %v4342 = vsel %vm208, %v4332, 0
    %v4345 = vsel %vm208, %v4333, 0
    %4347 = vmatprep.subr.mxu0 0.0
    %4348 = vmatpush1.msra.mxu0 0.0
    %4349 = vmatprep.subr.mxu0 0.0
    %4350 = vmatpush1.msra.mxu0 0.0
    %4351 = vmatprep.subr.mxu0 0.0
    %4352 = vmatpush1.msra.mxu0 0.0
    %4353 = vmatprep.subr.mxu0 0.0
    %4354 = vmatpush1.msra.mxu0 0.0
    %4355 = vmatprep.subr.mxu0 0.0
    %4356 = vmatpush1.msra.mxu0 0.0
    %4357 = vmatprep.subr.mxu0 0.0
    %4358 = vmatpush1.msra.mxu0 0.0
    %4359 = vmatprep.subr.mxu0 0.0
    %4360 = vmatpush1.msra.mxu0 0.0
    %4361 = vmatprep.subr.mxu0 0.0
    %4362 = vmatpush1.msra.mxu0 0.0
    %4363 = vmatprep.subr.mxu0 0.0
    %4364 = vmatpush1.msra.mxu0 0.0
    %4365 = vmatprep.subr.mxu0 0.0
    %4366 = vmatpush1.msra.mxu0 0.0
    %4367 = vmatprep.subr.mxu0 0.0
    %4368 = vmatpush1.msra.mxu0 0.0
    %4369 = vmatprep.subr.mxu0 0.0
    %4370 = vmatpush1.msra.mxu0 0.0
    %4371 = vmatprep.subr.mxu0 0.0
    %4372 = vmatpush1.msra.mxu0 %v3250
    %4373 = vmatprep.subr.mxu0 0.0
    %4374 = vmatpush1.msra.mxu0 %v3246
    %4375 = vmatprep.subr.mxu0 0.0
    %4376 = vmatpush1.msra.mxu0 %v3242
    %4377 = vmatprep.subr.mxu0 0.0
    %4378 = vmatpush1.msra.mxu0 %v3238
    %4379 = vmatprep.subr.mxu0 0.0
    %4380 = vmatpush2.msra.mxu0 0.0
    %4381 = vmatprep.subr.mxu0 0.0
    %4382 = vmatpush2.msra.mxu0 0.0
    %4383 = vmatprep.subr.mxu0 0.0
    %4384 = vmatpush2.msra.mxu0 0.0
    %4385 = vmatprep.subr.mxu0 0.0
    %4386 = vmatpush2.msra.mxu0 0.0
    %4387 = vmatprep.subr.mxu0 0.0
    %4388 = vmatpush2.msra.mxu0 0.0
    %4389 = vmatprep.subr.mxu0 0.0
    %4390 = vmatpush2.msra.mxu0 0.0
    %4391 = vmatprep.subr.mxu0 0.0
    %4392 = vmatpush2.msra.mxu0 0.0
    %4393 = vmatprep.subr.mxu0 0.0
    %4394 = vmatpush2.msra.mxu0 0.0
    %4395 = vmatprep.subr.mxu0 0.0
    %4396 = vmatpush2.msra.mxu0 0.0
    %4397 = vmatprep.subr.mxu0 0.0
    %4398 = vmatpush2.msra.mxu0 0.0
    %4399 = vmatprep.subr.mxu0 0.0
    %4400 = vmatpush2.msra.mxu0 0.0
    %4401 = vmatprep.subr.mxu0 0.0
    %4402 = vmatpush2.msra.mxu0 0.0
    %4403 = vmatprep.subr.mxu0 0.0
    %4404 = vmatpush2.msra.mxu0 0.0
    %4405 = vmatprep.subr.mxu0 0.0
    %4406 = vmatpush2.msra.mxu0 0.0
    %4407 = vmatprep.subr.mxu0 0.0
    %4408 = vmatpush2.msra.mxu0 0.0
    %4409 = vmatprep.subr.mxu0 0.0
    %4410 = vmatpush2.msra.mxu0 0.0
    %4411 = vmatprep.mubr.f32.mxu0 0.0
    %4412 = vmatmul.mubr.f32.gmra.mxu0 %v4342
    %v4413 = vpop.f32.mrf.mxu0
    %v4414 = vadd.f32 %v4339, %v4413
    %v4415 = vpop.f32.mrf.mxu0
    %4416 = vmatprep.mubr.f32.mxu0 0.0
    %4417 = vmatmul.mubr.f32.gmra.mxu0 %v4345
    %v4418 = vpop.f32.mrf.mxu0
    %v4419 = vadd.f32 %v4339, %v4418
    %v4420 = vpop.f32.mrf.mxu0
    %4421 = vdwg.mxu0
    %v4422 = vld [vmem:[%s7 + $0x10] sm:$0xff]
    %v4423 = vld [vmem:[%s7 + $0x18] sm:$0xff]
    %v4424 = vld [vmem:[%s7 + $0x38] sm:$0xff]
    %v4425 = vld [vmem:[%s7 + $0x40] sm:$0xff]
    %v4426 = vld [vmem:[%s7 + $0x60] sm:$0xff]
    %v4427 = vld [vmem:[%s7 + $0x68] sm:$0xff]
    %v4428 = vld [vmem:[%s7 + $0x88] sm:$0xff]
    %v4429 = vld [vmem:[%s7 + $0x90] sm:$0xff]
    %4438 = vrot.lane.b32.xlu0 %v4422, 32
    %v4439 = vpop.permute.xlu0 %4438
    %4440 = vrot.lane.b32.xlu0 %v4423, 32
    %v4441 = vpop.permute.xlu0 %4440
    %4442 = vrot.lane.b32.xlu0 %v4424, 32
    %v4443 = vpop.permute.xlu0 %4442
    %4444 = vrot.lane.b32.xlu0 %v4425, 32
    %v4445 = vpop.permute.xlu0 %4444
    %4446 = vrot.lane.b32.xlu0 %v4426, 32
    %v4447 = vpop.permute.xlu0 %4446
    %4448 = vrot.lane.b32.xlu0 %v4427, 32
    %v4449 = vpop.permute.xlu0 %4448
    %4450 = vrot.lane.b32.xlu0 %v4428, 32
    %v4451 = vpop.permute.xlu0 %4450
    %4452 = vrot.lane.b32.xlu0 %v4429, 32
    %v4453 = vpop.permute.xlu0 %4452
    %v4454 = vsel %vm208, %v4439, %v4441
    %v4455 = vsel %vm208, %v4443, %v4445
    %v4456 = vsel %vm208, %v4447, %v4449
    %v4457 = vsel %vm208, %v4451, %v4453
    %4462 = vrot.lane.b32.xlu0 %v4330, 64
    %v4463 = vpop.permute.xlu0 %4462
    %v4466 = vsel %vm208, %v3107, 0
    %v4469 = vsel %vm208, %v3108, 0
    %4471 = vmatprep.subr.mxu0 0.0
    %4472 = vmatpush1.msra.mxu0 0.0
    %4473 = vmatprep.subr.mxu0 0.0
    %4474 = vmatpush1.msra.mxu0 0.0
    %4475 = vmatprep.subr.mxu0 0.0
    %4476 = vmatpush1.msra.mxu0 0.0
    %4477 = vmatprep.subr.mxu0 0.0
    %4478 = vmatpush1.msra.mxu0 0.0
    %4479 = vmatprep.subr.mxu0 0.0
    %4480 = vmatpush1.msra.mxu0 0.0
    %4481 = vmatprep.subr.mxu0 0.0
    %4482 = vmatpush1.msra.mxu0 0.0
    %4483 = vmatprep.subr.mxu0 0.0
    %4484 = vmatpush1.msra.mxu0 0.0
    %4485 = vmatprep.subr.mxu0 0.0
    %4486 = vmatpush1.msra.mxu0 0.0
    %4487 = vmatprep.subr.mxu0 0.0
    %4488 = vmatpush1.msra.mxu0 0.0
    %4489 = vmatprep.subr.mxu0 0.0
    %4490 = vmatpush1.msra.mxu0 0.0
    %4491 = vmatprep.subr.mxu0 0.0
    %4492 = vmatpush1.msra.mxu0 0.0
    %4493 = vmatprep.subr.mxu0 0.0
    %4494 = vmatpush1.msra.mxu0 0.0
    %4495 = vmatprep.subr.mxu0 0.0
    %4496 = vmatpush1.msra.mxu0 %v4457
    %4497 = vmatprep.subr.mxu0 0.0
    %4498 = vmatpush1.msra.mxu0 %v4456
    %4499 = vmatprep.subr.mxu0 0.0
    %4500 = vmatpush1.msra.mxu0 %v4455
    %4501 = vmatprep.subr.mxu0 0.0
    %4502 = vmatpush1.msra.mxu0 %v4454
    %4503 = vmatprep.subr.mxu0 0.0
    %4504 = vmatpush2.msra.mxu0 0.0
    %4505 = vmatprep.subr.mxu0 0.0
    %4506 = vmatpush2.msra.mxu0 0.0
    %4507 = vmatprep.subr.mxu0 0.0
    %4508 = vmatpush2.msra.mxu0 0.0
    %4509 = vmatprep.subr.mxu0 0.0
    %4510 = vmatpush2.msra.mxu0 0.0
    %4511 = vmatprep.subr.mxu0 0.0
    %4512 = vmatpush2.msra.mxu0 0.0
    %4513 = vmatprep.subr.mxu0 0.0
    %4514 = vmatpush2.msra.mxu0 0.0
    %4515 = vmatprep.subr.mxu0 0.0
    %4516 = vmatpush2.msra.mxu0 0.0
    %4517 = vmatprep.subr.mxu0 0.0
    %4518 = vmatpush2.msra.mxu0 0.0
    %4519 = vmatprep.subr.mxu0 0.0
    %4520 = vmatpush2.msra.mxu0 0.0
    %4521 = vmatprep.subr.mxu0 0.0
    %4522 = vmatpush2.msra.mxu0 0.0
    %4523 = vmatprep.subr.mxu0 0.0
    %4524 = vmatpush2.msra.mxu0 0.0
    %4525 = vmatprep.subr.mxu0 0.0
    %4526 = vmatpush2.msra.mxu0 0.0
    %4527 = vmatprep.subr.mxu0 0.0
    %4528 = vmatpush2.msra.mxu0 0.0
    %4529 = vmatprep.subr.mxu0 0.0
    %4530 = vmatpush2.msra.mxu0 0.0
    %4531 = vmatprep.subr.mxu0 0.0
    %4532 = vmatpush2.msra.mxu0 0.0
    %4533 = vmatprep.subr.mxu0 0.0
    %4534 = vmatpush2.msra.mxu0 0.0
    %4535 = vmatprep.mubr.f32.mxu0 0.0
    %4536 = vmatmul.mubr.f32.gmra.mxu0 %v4466
    %v4537 = vpop.f32.mrf.mxu0
    %v4538 = vadd.f32 %v4463, %v4537
    %v4539 = vpop.f32.mrf.mxu0
    %4540 = vmatprep.mubr.f32.mxu0 0.0
    %4541 = vmatmul.mubr.f32.gmra.mxu0 %v4469
    %v4542 = vpop.f32.mrf.mxu0
    %v4543 = vadd.f32 %v4463, %v4542
    %v4544 = vpop.f32.mrf.mxu0
    %4545 = vdwg.mxu0
    %v4547 = vsel %vm296, %v4414, 0
    %v4550 = vsel %vm296, %v4419, 0
    %v4553 = vsel %vm296, %v4538, 0
    %v4556 = vsel %vm296, %v4543, 0
    %4558 = vmatprep.subr.mxu0 0.0
    %4559 = vmatpush1.xpose.msra.mxu0 0.0
    %4560 = vmatprep.subr.mxu0 0.0
    %4561 = vmatpush1.xpose.msra.mxu0 0.0
    %4562 = vmatprep.subr.mxu0 0.0
    %4563 = vmatpush1.xpose.msra.mxu0 0.0
    %4564 = vmatprep.subr.mxu0 0.0
    %4565 = vmatpush1.xpose.msra.mxu0 0.0
    %4566 = vmatprep.subr.mxu0 0.0
    %4567 = vmatpush1.xpose.msra.mxu0 0.0
    %4568 = vmatprep.subr.mxu0 0.0
    %4569 = vmatpush1.xpose.msra.mxu0 0.0
    %4570 = vmatprep.subr.mxu0 0.0
    %4571 = vmatpush1.xpose.msra.mxu0 0.0
    %4572 = vmatprep.subr.mxu0 0.0
    %4573 = vmatpush1.xpose.msra.mxu0 0.0
    %4574 = vmatprep.subr.mxu0 0.0
    %4575 = vmatpush1.xpose.msra.mxu0 0.0
    %4576 = vmatprep.subr.mxu0 0.0
    %4577 = vmatpush1.xpose.msra.mxu0 0.0
    %4578 = vmatprep.subr.mxu0 0.0
    %4579 = vmatpush1.xpose.msra.mxu0 0.0
    %4580 = vmatprep.subr.mxu0 0.0
    %4581 = vmatpush1.xpose.msra.mxu0 0.0
    %4582 = vmatprep.subr.mxu0 0.0
    %4583 = vmatpush1.xpose.msra.mxu0 0.0
    %4584 = vmatprep.subr.mxu0 0.0
    %4585 = vmatpush1.xpose.msra.mxu0 0.0
    %4586 = vmatprep.subr.mxu0 0.0
    %4587 = vmatpush1.xpose.msra.mxu0 %v4556
    %4588 = vmatprep.subr.mxu0 0.0
    %4589 = vmatpush1.xpose.msra.mxu0 %v4553
    %4590 = vmatprep.subr.mxu0 0.0
    %4591 = vmatpush2.xpose.msra.mxu0 0.0
    %4592 = vmatprep.subr.mxu0 0.0
    %4593 = vmatpush2.xpose.msra.mxu0 0.0
    %4594 = vmatprep.subr.mxu0 0.0
    %4595 = vmatpush2.xpose.msra.mxu0 0.0
    %4596 = vmatprep.subr.mxu0 0.0
    %4597 = vmatpush2.xpose.msra.mxu0 0.0
    %4598 = vmatprep.subr.mxu0 0.0
    %4599 = vmatpush2.xpose.msra.mxu0 0.0
    %4600 = vmatprep.subr.mxu0 0.0
    %4601 = vmatpush2.xpose.msra.mxu0 0.0
    %4602 = vmatprep.subr.mxu0 0.0
    %4603 = vmatpush2.xpose.msra.mxu0 0.0
    %4604 = vmatprep.subr.mxu0 0.0
    %4605 = vmatpush2.xpose.msra.mxu0 0.0
    %4606 = vmatprep.subr.mxu0 0.0
    %4607 = vmatpush2.xpose.msra.mxu0 0.0
    %4608 = vmatprep.subr.mxu0 0.0
    %4609 = vmatpush2.xpose.msra.mxu0 0.0
    %4610 = vmatprep.subr.mxu0 0.0
    %4611 = vmatpush2.xpose.msra.mxu0 0.0
    %4612 = vmatprep.subr.mxu0 0.0
    %4613 = vmatpush2.xpose.msra.mxu0 0.0
    %4614 = vmatprep.subr.mxu0 0.0
    %4615 = vmatpush2.xpose.msra.mxu0 0.0
    %4616 = vmatprep.subr.mxu0 0.0
    %4617 = vmatpush2.xpose.msra.mxu0 0.0
    %4618 = vmatprep.subr.mxu0 0.0
    %4619 = vmatpush2.xpose.msra.mxu0 0.0
    %4620 = vmatprep.subr.mxu0 0.0
    %4621 = vmatpush2.xpose.msra.mxu0 0.0
    %4622 = vmatprep.mubr.f32.mxu0 0.0
    %4623 = vmatmul.mubr.f32.gmra.mxu0 %v4547
    %v4624 = vpop.f32.mrf.mxu0
    %v4625 = vadd.f32 0.0, %v4624
    %v4626 = vpop.f32.mrf.mxu0
    %4627 = vmatprep.mubr.f32.mxu0 0.0
    %4628 = vmatmul.mubr.f32.gmra.mxu0 %v4550
    %v4629 = vpop.f32.mrf.mxu0
    %v4630 = vadd.f32 0.0, %v4629
    %v4631 = vpop.f32.mrf.mxu0
    %4632 = vdwg.mxu0
    %v4633 = vmul.f32 %v4625, 0.35355338
    %v4634 = vmul.f32 %v4630, 0.35355338
    %v4635 = vadd.f32 %v4633, %v3207
    %v4636 = vadd.f32 %v4634, %v3208
    %v4637 = vsel %vm384, %v4635, -inf
    %4638 = vmax.xlane.f32.xlu0 %v4637
    %v4639 = vpop.xlane.xlu0 %4638
    %v4640 = vsel %vm384, %v4636, -inf
    %4641 = vmax.xlane.f32.xlu0 %v4640
    %v4642 = vpop.xlane.xlu0 %4641
    %v4643 = vsub.f32 %v4635, %v4639
    %v4644 = vsub.f32 %v4636, %v4642
    %v4645 = vmul.f32 %v4643, 1.442695
    %v4646 = vpow.pop %v4645
    %v4647 = vmul.f32 %v4644, 1.442695
    %v4648 = vpow.pop %v4647
    %v4649 = vsel %vm384, %v4646, 0.0
    %4650 = vadd.xlane.f32.xlu0 %v4649
    %v4651 = vpop.xlane.xlu0 %4650
    %v4652 = vsel %vm384, %v4648, 0.0
    %4653 = vadd.xlane.f32.xlu0 %v4652
    %v4654 = vpop.xlane.xlu0 %4653
    %v4655 = vrcp.pop %v4651
    %v4656 = vmul.f32 %v4646, %v4655
    %v4657 = vrcp.pop %v4654
    %v4658 = vmul.f32 %v4648, %v4657
    %4659 = vrot.lane.b32.xlu0 %v4538, 96
    %v4660 = vpop.permute.xlu0 %4659
    %4661 = vrot.lane.b32.xlu0 %v4543, 96
    %v4662 = vpop.permute.xlu0 %4661
    %v4666 = vsel %vm384, %v4656, 0
    %v4669 = vsel %vm384, %v4658, 0
    %4671 = vmatprep.subr.mxu0 0.0
    %4672 = vmatpush1.msra.mxu0 0.0
    %4673 = vmatprep.subr.mxu0 0.0
    %4674 = vmatpush1.msra.mxu0 0.0
    %4675 = vmatprep.subr.mxu0 0.0
    %4676 = vmatpush1.msra.mxu0 0.0
    %4677 = vmatprep.subr.mxu0 0.0
    %4678 = vmatpush1.msra.mxu0 0.0
    %4679 = vmatprep.subr.mxu0 0.0
    %4680 = vmatpush1.msra.mxu0 0.0
    %4681 = vmatprep.subr.mxu0 0.0
    %4682 = vmatpush1.msra.mxu0 0.0
    %4683 = vmatprep.subr.mxu0 0.0
    %4684 = vmatpush1.msra.mxu0 0.0
    %4685 = vmatprep.subr.mxu0 0.0
    %4686 = vmatpush1.msra.mxu0 0.0
    %4687 = vmatprep.subr.mxu0 0.0
    %4688 = vmatpush1.msra.mxu0 0.0
    %4689 = vmatprep.subr.mxu0 0.0
    %4690 = vmatpush1.msra.mxu0 0.0
    %4691 = vmatprep.subr.mxu0 0.0
    %4692 = vmatpush1.msra.mxu0 0.0
    %4693 = vmatprep.subr.mxu0 0.0
    %4694 = vmatpush1.msra.mxu0 0.0
    %4695 = vmatprep.subr.mxu0 0.0
    %4696 = vmatpush1.msra.mxu0 0.0
    %4697 = vmatprep.subr.mxu0 0.0
    %4698 = vmatpush1.msra.mxu0 0.0
    %4699 = vmatprep.subr.mxu0 0.0
    %4700 = vmatpush1.msra.mxu0 %v4662
    %4701 = vmatprep.subr.mxu0 0.0
    %4702 = vmatpush1.msra.mxu0 %v4660
    %4703 = vmatprep.subr.mxu0 0.0
    %4704 = vmatpush2.msra.mxu0 0.0
    %4705 = vmatprep.subr.mxu0 0.0
    %4706 = vmatpush2.msra.mxu0 0.0
    %4707 = vmatprep.subr.mxu0 0.0
    %4708 = vmatpush2.msra.mxu0 0.0
    %4709 = vmatprep.subr.mxu0 0.0
    %4710 = vmatpush2.msra.mxu0 0.0
    %4711 = vmatprep.subr.mxu0 0.0
    %4712 = vmatpush2.msra.mxu0 0.0
    %4713 = vmatprep.subr.mxu0 0.0
    %4714 = vmatpush2.msra.mxu0 0.0
    %4715 = vmatprep.subr.mxu0 0.0
    %4716 = vmatpush2.msra.mxu0 0.0
    %4717 = vmatprep.subr.mxu0 0.0
    %4718 = vmatpush2.msra.mxu0 0.0
    %4719 = vmatprep.subr.mxu0 0.0
    %4720 = vmatpush2.msra.mxu0 0.0
    %4721 = vmatprep.subr.mxu0 0.0
    %4722 = vmatpush2.msra.mxu0 0.0
    %4723 = vmatprep.subr.mxu0 0.0
    %4724 = vmatpush2.msra.mxu0 0.0
    %4725 = vmatprep.subr.mxu0 0.0
    %4726 = vmatpush2.msra.mxu0 0.0
    %4727 = vmatprep.subr.mxu0 0.0
    %4728 = vmatpush2.msra.mxu0 0.0
    %4729 = vmatprep.subr.mxu0 0.0
    %4730 = vmatpush2.msra.mxu0 0.0
    %4731 = vmatprep.subr.mxu0 0.0
    %4732 = vmatpush2.msra.mxu0 0.0
    %4733 = vmatprep.subr.mxu0 0.0
    %4734 = vmatpush2.msra.mxu0 0.0
    %4735 = vmatprep.mubr.f32.mxu0 0.0
    %4736 = vmatmul.mubr.f32.gmra.mxu0 %v4666
    %v4737 = vpop.f32.mrf.mxu0
    %v4738 = vadd.f32 0.0, %v4737
    %v4739 = vpop.f32.mrf.mxu0
    %4740 = vmatprep.mubr.f32.mxu0 0.0
    %4741 = vmatmul.mubr.f32.gmra.mxu0 %v4669
    %v4742 = vpop.f32.mrf.mxu0
    %v4743 = vadd.f32 0.0, %v4742
    %v4744 = vpop.f32.mrf.mxu0
    %4745 = vdwg.mxu0
    %4746 = vrot.lane.b32.xlu0 %v4414, 120
    %v4747 = vpop.permute.xlu0 %4746
    %4748 = vrot.lane.b32.xlu0 %v4419, 120
    %v4749 = vpop.permute.xlu0 %4748
    %4750 = vrot.lane.b32.xlu0 %v4538, 120
    %v4751 = vpop.permute.xlu0 %4750
    %4752 = vrot.lane.b32.xlu0 %v4543, 120
    %v4753 = vpop.permute.xlu0 %4752
    %v4754 = vsel %vm296, %v4747, 0
    %v4756 = vsel %vm296, %v4749, 0
    %v4758 = vsel %vm296, %v4751, 0
    %v4760 = vsel %vm296, %v4753, 0
    %4762 = vmatprep.subr.mxu0 0.0
    %4763 = vmatpush1.xpose.msra.mxu0 0.0
    %4764 = vmatprep.subr.mxu0 0.0
    %4765 = vmatpush1.xpose.msra.mxu0 0.0
    %4766 = vmatprep.subr.mxu0 0.0
    %4767 = vmatpush1.xpose.msra.mxu0 0.0
    %4768 = vmatprep.subr.mxu0 0.0
    %4769 = vmatpush1.xpose.msra.mxu0 0.0
    %4770 = vmatprep.subr.mxu0 0.0
    %4771 = vmatpush1.xpose.msra.mxu0 0.0
    %4772 = vmatprep.subr.mxu0 0.0
    %4773 = vmatpush1.xpose.msra.mxu0 0.0
    %4774 = vmatprep.subr.mxu0 0.0
    %4775 = vmatpush1.xpose.msra.mxu0 0.0
    %4776 = vmatprep.subr.mxu0 0.0
    %4777 = vmatpush1.xpose.msra.mxu0 0.0
    %4778 = vmatprep.subr.mxu0 0.0
    %4779 = vmatpush1.xpose.msra.mxu0 0.0
    %4780 = vmatprep.subr.mxu0 0.0
    %4781 = vmatpush1.xpose.msra.mxu0 0.0
    %4782 = vmatprep.subr.mxu0 0.0
    %4783 = vmatpush1.xpose.msra.mxu0 0.0
    %4784 = vmatprep.subr.mxu0 0.0
    %4785 = vmatpush1.xpose.msra.mxu0 0.0
    %4786 = vmatprep.subr.mxu0 0.0
    %4787 = vmatpush1.xpose.msra.mxu0 0.0
    %4788 = vmatprep.subr.mxu0 0.0
    %4789 = vmatpush1.xpose.msra.mxu0 0.0
    %4790 = vmatprep.subr.mxu0 0.0
    %4791 = vmatpush1.xpose.msra.mxu0 %v4760
    %4792 = vmatprep.subr.mxu0 0.0
    %4793 = vmatpush1.xpose.msra.mxu0 %v4758
    %4794 = vmatprep.subr.mxu0 0.0
    %4795 = vmatpush2.xpose.msra.mxu0 0.0
    %4796 = vmatprep.subr.mxu0 0.0
    %4797 = vmatpush2.xpose.msra.mxu0 0.0
    %4798 = vmatprep.subr.mxu0 0.0
    %4799 = vmatpush2.xpose.msra.mxu0 0.0
    %4800 = vmatprep.subr.mxu0 0.0
    %4801 = vmatpush2.xpose.msra.mxu0 0.0
    %4802 = vmatprep.subr.mxu0 0.0
    %4803 = vmatpush2.xpose.msra.mxu0 0.0
    %4804 = vmatprep.subr.mxu0 0.0
    %4805 = vmatpush2.xpose.msra.mxu0 0.0
    %4806 = vmatprep.subr.mxu0 0.0
    %4807 = vmatpush2.xpose.msra.mxu0 0.0
    %4808 = vmatprep.subr.mxu0 0.0
    %4809 = vmatpush2.xpose.msra.mxu0 0.0
    %4810 = vmatprep.subr.mxu0 0.0
    %4811 = vmatpush2.xpose.msra.mxu0 0.0
    %4812 = vmatprep.subr.mxu0 0.0
    %4813 = vmatpush2.xpose.msra.mxu0 0.0
    %4814 = vmatprep.subr.mxu0 0.0
    %4815 = vmatpush2.xpose.msra.mxu0 0.0
    %4816 = vmatprep.subr.mxu0 0.0
    %4817 = vmatpush2.xpose.msra.mxu0 0.0
    %4818 = vmatprep.subr.mxu0 0.0
    %4819 = vmatpush2.xpose.msra.mxu0 0.0
    %4820 = vmatprep.subr.mxu0 0.0
    %4821 = vmatpush2.xpose.msra.mxu0 0.0
    %4822 = vmatprep.subr.mxu0 0.0
    %4823 = vmatpush2.xpose.msra.mxu0 0.0
    %4824 = vmatprep.subr.mxu0 0.0
    %4825 = vmatpush2.xpose.msra.mxu0 0.0
    %4826 = vmatprep.mubr.f32.mxu0 0.0
    %4827 = vmatmul.mubr.f32.gmra.mxu0 %v4754
    %v4828 = vpop.f32.mrf.mxu0
    %v4829 = vadd.f32 0.0, %v4828
    %v4830 = vpop.f32.mrf.mxu0
    %4831 = vmatprep.mubr.f32.mxu0 0.0
    %4832 = vmatmul.mubr.f32.gmra.mxu0 %v4756
    %v4833 = vpop.f32.mrf.mxu0
    %v4834 = vadd.f32 0.0, %v4833
    %v4835 = vpop.f32.mrf.mxu0
    %4836 = vdwg.mxu0
    %v4837 = vmul.f32 %v4829, 0.35355338
    %v4838 = vmul.f32 %v4834, 0.35355338
    %v4839 = vadd.f32 %v4837, %v3207
    %v4840 = vadd.f32 %v4838, %v3208
    %v4841 = vsel %vm384, %v4839, -inf
    %4842 = vmax.xlane.f32.xlu0 %v4841
    %v4843 = vpop.xlane.xlu0 %4842
    %v4844 = vsel %vm384, %v4840, -inf
    %4845 = vmax.xlane.f32.xlu0 %v4844
    %v4846 = vpop.xlane.xlu0 %4845
    %v4847 = vsub.f32 %v4839, %v4843
    %v4848 = vsub.f32 %v4840, %v4846
    %v4849 = vmul.f32 %v4847, 1.442695
    %v4850 = vpow.pop %v4849
    %v4851 = vmul.f32 %v4848, 1.442695
    %v4852 = vpow.pop %v4851
    %v4853 = vsel %vm384, %v4850, 0.0
    %4854 = vadd.xlane.f32.xlu0 %v4853
    %v4855 = vpop.xlane.xlu0 %4854
    %v4856 = vsel %vm384, %v4852, 0.0
    %4857 = vadd.xlane.f32.xlu0 %v4856
    %v4858 = vpop.xlane.xlu0 %4857
    %v4859 = vrcp.pop %v4855
    %v4860 = vmul.f32 %v4850, %v4859
    %v4861 = vrcp.pop %v4858
    %v4862 = vmul.f32 %v4852, %v4861
    %4863 = vrot.lane.b32.xlu0 %v4538, 88
    %v4864 = vpop.permute.xlu0 %4863
    %4865 = vrot.lane.b32.xlu0 %v4543, 88
    %v4866 = vpop.permute.xlu0 %4865
    %v4870 = vsel %vm384, %v4860, 0
    %v4873 = vsel %vm384, %v4862, 0
    %4875 = vmatprep.subr.mxu0 0.0
    %4876 = vmatpush1.msra.mxu0 0.0
    %4877 = vmatprep.subr.mxu0 0.0
    %4878 = vmatpush1.msra.mxu0 0.0
    %4879 = vmatprep.subr.mxu0 0.0
    %4880 = vmatpush1.msra.mxu0 0.0
    %4881 = vmatprep.subr.mxu0 0.0
    %4882 = vmatpush1.msra.mxu0 0.0
    %4883 = vmatprep.subr.mxu0 0.0
    %4884 = vmatpush1.msra.mxu0 0.0
    %4885 = vmatprep.subr.mxu0 0.0
    %4886 = vmatpush1.msra.mxu0 0.0
    %4887 = vmatprep.subr.mxu0 0.0
    %4888 = vmatpush1.msra.mxu0 0.0
    %4889 = vmatprep.subr.mxu0 0.0
    %4890 = vmatpush1.msra.mxu0 0.0
    %4891 = vmatprep.subr.mxu0 0.0
    %4892 = vmatpush1.msra.mxu0 0.0
    %4893 = vmatprep.subr.mxu0 0.0
    %4894 = vmatpush1.msra.mxu0 0.0
    %4895 = vmatprep.subr.mxu0 0.0
    %4896 = vmatpush1.msra.mxu0 0.0
    %4897 = vmatprep.subr.mxu0 0.0
    %4898 = vmatpush1.msra.mxu0 0.0
    %4899 = vmatprep.subr.mxu0 0.0
    %4900 = vmatpush1.msra.mxu0 0.0
    %4901 = vmatprep.subr.mxu0 0.0
    %4902 = vmatpush1.msra.mxu0 0.0
    %4903 = vmatprep.subr.mxu0 0.0
    %4904 = vmatpush1.msra.mxu0 %v4866
    %4905 = vmatprep.subr.mxu0 0.0
    %4906 = vmatpush1.msra.mxu0 %v4864
    %4907 = vmatprep.subr.mxu0 0.0
    %4908 = vmatpush2.msra.mxu0 0.0
    %4909 = vmatprep.subr.mxu0 0.0
    %4910 = vmatpush2.msra.mxu0 0.0
    %4911 = vmatprep.subr.mxu0 0.0
    %4912 = vmatpush2.msra.mxu0 0.0
    %4913 = vmatprep.subr.mxu0 0.0
    %4914 = vmatpush2.msra.mxu0 0.0
    %4915 = vmatprep.subr.mxu0 0.0
    %4916 = vmatpush2.msra.mxu0 0.0
    %4917 = vmatprep.subr.mxu0 0.0
    %4918 = vmatpush2.msra.mxu0 0.0
    %4919 = vmatprep.subr.mxu0 0.0
    %4920 = vmatpush2.msra.mxu0 0.0
    %4921 = vmatprep.subr.mxu0 0.0
    %4922 = vmatpush2.msra.mxu0 0.0
    %4923 = vmatprep.subr.mxu0 0.0
    %4924 = vmatpush2.msra.mxu0 0.0
    %4925 = vmatprep.subr.mxu0 0.0
    %4926 = vmatpush2.msra.mxu0 0.0
    %4927 = vmatprep.subr.mxu0 0.0
    %4928 = vmatpush2.msra.mxu0 0.0
    %4929 = vmatprep.subr.mxu0 0.0
    %4930 = vmatpush2.msra.mxu0 0.0
    %4931 = vmatprep.subr.mxu0 0.0
    %4932 = vmatpush2.msra.mxu0 0.0
    %4933 = vmatprep.subr.mxu0 0.0
    %4934 = vmatpush2.msra.mxu0 0.0
    %4935 = vmatprep.subr.mxu0 0.0
    %4936 = vmatpush2.msra.mxu0 0.0
    %4937 = vmatprep.subr.mxu0 0.0
    %4938 = vmatpush2.msra.mxu0 0.0
    %4939 = vmatprep.mubr.f32.mxu0 0.0
    %4940 = vmatmul.mubr.f32.gmra.mxu0 %v4870
    %v4941 = vpop.f32.mrf.mxu0
    %v4942 = vadd.f32 0.0, %v4941
    %v4943 = vpop.f32.mrf.mxu0
    %4944 = vmatprep.mubr.f32.mxu0 0.0
    %4945 = vmatmul.mubr.f32.gmra.mxu0 %v4873
    %v4946 = vpop.f32.mrf.mxu0
    %v4947 = vadd.f32 0.0, %v4946
    %v4948 = vpop.f32.mrf.mxu0
    %4949 = vdwg.mxu0
    %4950 = vrot.lane.b32.xlu0 %v4414, 112
    %v4951 = vpop.permute.xlu0 %4950
    %4952 = vrot.lane.b32.xlu0 %v4419, 112
    %v4953 = vpop.permute.xlu0 %4952
    %4954 = vrot.lane.b32.xlu0 %v4538, 112
    %v4955 = vpop.permute.xlu0 %4954
    %4956 = vrot.lane.b32.xlu0 %v4543, 112
    %v4957 = vpop.permute.xlu0 %4956
    %v4958 = vsel %vm296, %v4951, 0
    %v4960 = vsel %vm296, %v4953, 0
    %v4962 = vsel %vm296, %v4955, 0
    %v4964 = vsel %vm296, %v4957, 0
    %4966 = vmatprep.subr.mxu0 0.0
    %4967 = vmatpush1.xpose.msra.mxu0 0.0
    %4968 = vmatprep.subr.mxu0 0.0
    %4969 = vmatpush1.xpose.msra.mxu0 0.0
    %4970 = vmatprep.subr.mxu0 0.0
    %4971 = vmatpush1.xpose.msra.mxu0 0.0
    %4972 = vmatprep.subr.mxu0 0.0
    %4973 = vmatpush1.xpose.msra.mxu0 0.0
    %4974 = vmatprep.subr.mxu0 0.0
    %4975 = vmatpush1.xpose.msra.mxu0 0.0
    %4976 = vmatprep.subr.mxu0 0.0
    %4977 = vmatpush1.xpose.msra.mxu0 0.0
    %4978 = vmatprep.subr.mxu0 0.0
    %4979 = vmatpush1.xpose.msra.mxu0 0.0
    %4980 = vmatprep.subr.mxu0 0.0
    %4981 = vmatpush1.xpose.msra.mxu0 0.0
    %4982 = vmatprep.subr.mxu0 0.0
    %4983 = vmatpush1.xpose.msra.mxu0 0.0
    %4984 = vmatprep.subr.mxu0 0.0
    %4985 = vmatpush1.xpose.msra.mxu0 0.0
    %4986 = vmatprep.subr.mxu0 0.0
    %4987 = vmatpush1.xpose.msra.mxu0 0.0
    %4988 = vmatprep.subr.mxu0 0.0
    %4989 = vmatpush1.xpose.msra.mxu0 0.0
    %4990 = vmatprep.subr.mxu0 0.0
    %4991 = vmatpush1.xpose.msra.mxu0 0.0
    %4992 = vmatprep.subr.mxu0 0.0
    %4993 = vmatpush1.xpose.msra.mxu0 0.0
    %4994 = vmatprep.subr.mxu0 0.0
    %4995 = vmatpush1.xpose.msra.mxu0 %v4964
    %4996 = vmatprep.subr.mxu0 0.0
    %4997 = vmatpush1.xpose.msra.mxu0 %v4962
    %4998 = vmatprep.subr.mxu0 0.0
    %4999 = vmatpush2.xpose.msra.mxu0 0.0
    %5000 = vmatprep.subr.mxu0 0.0
    %5001 = vmatpush2.xpose.msra.mxu0 0.0
    %5002 = vmatprep.subr.mxu0 0.0
    %5003 = vmatpush2.xpose.msra.mxu0 0.0
    %5004 = vmatprep.subr.mxu0 0.0
    %5005 = vmatpush2.xpose.msra.mxu0 0.0
    %5006 = vmatprep.subr.mxu0 0.0
    %5007 = vmatpush2.xpose.msra.mxu0 0.0
    %5008 = vmatprep.subr.mxu0 0.0
    %5009 = vmatpush2.xpose.msra.mxu0 0.0
    %5010 = vmatprep.subr.mxu0 0.0
    %5011 = vmatpush2.xpose.msra.mxu0 0.0
    %5012 = vmatprep.subr.mxu0 0.0
    %5013 = vmatpush2.xpose.msra.mxu0 0.0
    %5014 = vmatprep.subr.mxu0 0.0
    %5015 = vmatpush2.xpose.msra.mxu0 0.0
    %5016 = vmatprep.subr.mxu0 0.0
    %5017 = vmatpush2.xpose.msra.mxu0 0.0
    %5018 = vmatprep.subr.mxu0 0.0
    %5019 = vmatpush2.xpose.msra.mxu0 0.0
    %5020 = vmatprep.subr.mxu0 0.0
    %5021 = vmatpush2.xpose.msra.mxu0 0.0
    %5022 = vmatprep.subr.mxu0 0.0
    %5023 = vmatpush2.xpose.msra.mxu0 0.0
    %5024 = vmatprep.subr.mxu0 0.0
    %5025 = vmatpush2.xpose.msra.mxu0 0.0
    %5026 = vmatprep.subr.mxu0 0.0
    %5027 = vmatpush2.xpose.msra.mxu0 0.0
    %5028 = vmatprep.subr.mxu0 0.0
    %5029 = vmatpush2.xpose.msra.mxu0 0.0
    %5030 = vmatprep.mubr.f32.mxu0 0.0
    %5031 = vmatmul.mubr.f32.gmra.mxu0 %v4958
    %v5032 = vpop.f32.mrf.mxu0
    %v5033 = vadd.f32 0.0, %v5032
    %v5034 = vpop.f32.mrf.mxu0
    %5035 = vmatprep.mubr.f32.mxu0 0.0
    %5036 = vmatmul.mubr.f32.gmra.mxu0 %v4960
    %v5037 = vpop.f32.mrf.mxu0
    %v5038 = vadd.f32 0.0, %v5037
    %v5039 = vpop.f32.mrf.mxu0
    %5040 = vdwg.mxu0
    %v5041 = vmul.f32 %v5033, 0.35355338
    %v5042 = vmul.f32 %v5038, 0.35355338
    %v5043 = vadd.f32 %v5041, %v3207
    %v5044 = vadd.f32 %v5042, %v3208
    %v5045 = vsel %vm384, %v5043, -inf
    %5046 = vmax.xlane.f32.xlu0 %v5045
    %v5047 = vpop.xlane.xlu0 %5046
    %v5048 = vsel %vm384, %v5044, -inf
    %5049 = vmax.xlane.f32.xlu0 %v5048
    %v5050 = vpop.xlane.xlu0 %5049
    %v5051 = vsub.f32 %v5043, %v5047
    %v5052 = vsub.f32 %v5044, %v5050
    %v5053 = vmul.f32 %v5051, 1.442695
    %v5054 = vpow.pop %v5053
    %v5055 = vmul.f32 %v5052, 1.442695
    %v5056 = vpow.pop %v5055
    %v5057 = vsel %vm384, %v5054, 0.0
    %5058 = vadd.xlane.f32.xlu0 %v5057
    %v5059 = vpop.xlane.xlu0 %5058
    %v5060 = vsel %vm384, %v5056, 0.0
    %5061 = vadd.xlane.f32.xlu0 %v5060
    %v5062 = vpop.xlane.xlu0 %5061
    %v5063 = vrcp.pop %v5059
    %v5064 = vmul.f32 %v5054, %v5063
    %v5065 = vrcp.pop %v5062
    %v5066 = vmul.f32 %v5056, %v5065
    %5067 = vrot.lane.b32.xlu0 %v4538, 80
    %v5068 = vpop.permute.xlu0 %5067
    %5069 = vrot.lane.b32.xlu0 %v4543, 80
    %v5070 = vpop.permute.xlu0 %5069
    %v5074 = vsel %vm384, %v5064, 0
    %v5077 = vsel %vm384, %v5066, 0
    %5079 = vmatprep.subr.mxu0 0.0
    %5080 = vmatpush1.msra.mxu0 0.0
    %5081 = vmatprep.subr.mxu0 0.0
    %5082 = vmatpush1.msra.mxu0 0.0
    %5083 = vmatprep.subr.mxu0 0.0
    %5084 = vmatpush1.msra.mxu0 0.0
    %5085 = vmatprep.subr.mxu0 0.0
    %5086 = vmatpush1.msra.mxu0 0.0
    %5087 = vmatprep.subr.mxu0 0.0
    %5088 = vmatpush1.msra.mxu0 0.0
    %5089 = vmatprep.subr.mxu0 0.0
    %5090 = vmatpush1.msra.mxu0 0.0
    %5091 = vmatprep.subr.mxu0 0.0
    %5092 = vmatpush1.msra.mxu0 0.0
    %5093 = vmatprep.subr.mxu0 0.0
    %5094 = vmatpush1.msra.mxu0 0.0
    %5095 = vmatprep.subr.mxu0 0.0
    %5096 = vmatpush1.msra.mxu0 0.0
    %5097 = vmatprep.subr.mxu0 0.0
    %5098 = vmatpush1.msra.mxu0 0.0
    %5099 = vmatprep.subr.mxu0 0.0
    %5100 = vmatpush1.msra.mxu0 0.0
    %5101 = vmatprep.subr.mxu0 0.0
    %5102 = vmatpush1.msra.mxu0 0.0
    %5103 = vmatprep.subr.mxu0 0.0
    %5104 = vmatpush1.msra.mxu0 0.0
    %5105 = vmatprep.subr.mxu0 0.0
    %5106 = vmatpush1.msra.mxu0 0.0
    %5107 = vmatprep.subr.mxu0 0.0
    %5108 = vmatpush1.msra.mxu0 %v5070
    %5109 = vmatprep.subr.mxu0 0.0
    %5110 = vmatpush1.msra.mxu0 %v5068
    %5111 = vmatprep.subr.mxu0 0.0
    %5112 = vmatpush2.msra.mxu0 0.0
    %5113 = vmatprep.subr.mxu0 0.0
    %5114 = vmatpush2.msra.mxu0 0.0
    %5115 = vmatprep.subr.mxu0 0.0
    %5116 = vmatpush2.msra.mxu0 0.0
    %5117 = vmatprep.subr.mxu0 0.0
    %5118 = vmatpush2.msra.mxu0 0.0
    %5119 = vmatprep.subr.mxu0 0.0
    %5120 = vmatpush2.msra.mxu0 0.0
    %5121 = vmatprep.subr.mxu0 0.0
    %5122 = vmatpush2.msra.mxu0 0.0
    %5123 = vmatprep.subr.mxu0 0.0
    %5124 = vmatpush2.msra.mxu0 0.0
    %5125 = vmatprep.subr.mxu0 0.0
    %5126 = vmatpush2.msra.mxu0 0.0
    %5127 = vmatprep.subr.mxu0 0.0
    %5128 = vmatpush2.msra.mxu0 0.0
    %5129 = vmatprep.subr.mxu0 0.0
    %5130 = vmatpush2.msra.mxu0 0.0
    %5131 = vmatprep.subr.mxu0 0.0
    %5132 = vmatpush2.msra.mxu0 0.0
    %5133 = vmatprep.subr.mxu0 0.0
    %5134 = vmatpush2.msra.mxu0 0.0
    %5135 = vmatprep.subr.mxu0 0.0
    %5136 = vmatpush2.msra.mxu0 0.0
    %5137 = vmatprep.subr.mxu0 0.0
    %5138 = vmatpush2.msra.mxu0 0.0
    %5139 = vmatprep.subr.mxu0 0.0
    %5140 = vmatpush2.msra.mxu0 0.0
    %5141 = vmatprep.subr.mxu0 0.0
    %5142 = vmatpush2.msra.mxu0 0.0
    %5143 = vmatprep.mubr.f32.mxu0 0.0
    %5144 = vmatmul.mubr.f32.gmra.mxu0 %v5074
    %v5145 = vpop.f32.mrf.mxu0
    %v5146 = vadd.f32 0.0, %v5145
    %v5147 = vpop.f32.mrf.mxu0
    %5148 = vmatprep.mubr.f32.mxu0 0.0
    %5149 = vmatmul.mubr.f32.gmra.mxu0 %v5077
    %v5150 = vpop.f32.mrf.mxu0
    %v5151 = vadd.f32 0.0, %v5150
    %v5152 = vpop.f32.mrf.mxu0
    %5153 = vdwg.mxu0
    %5154 = vrot.lane.b32.xlu0 %v4414, 104
    %v5155 = vpop.permute.xlu0 %5154
    %5156 = vrot.lane.b32.xlu0 %v4419, 104
    %v5157 = vpop.permute.xlu0 %5156
    %5158 = vrot.lane.b32.xlu0 %v4538, 104
    %v5159 = vpop.permute.xlu0 %5158
    %5160 = vrot.lane.b32.xlu0 %v4543, 104
    %v5161 = vpop.permute.xlu0 %5160
    %v5162 = vsel %vm296, %v5155, 0
    %v5164 = vsel %vm296, %v5157, 0
    %v5166 = vsel %vm296, %v5159, 0
    %v5168 = vsel %vm296, %v5161, 0
    %5170 = vmatprep.subr.mxu0 0.0
    %5171 = vmatpush1.xpose.msra.mxu0 0.0
    %5172 = vmatprep.subr.mxu0 0.0
    %5173 = vmatpush1.xpose.msra.mxu0 0.0
    %5174 = vmatprep.subr.mxu0 0.0
    %5175 = vmatpush1.xpose.msra.mxu0 0.0
    %5176 = vmatprep.subr.mxu0 0.0
    %5177 = vmatpush1.xpose.msra.mxu0 0.0
    %5178 = vmatprep.subr.mxu0 0.0
    %5179 = vmatpush1.xpose.msra.mxu0 0.0
    %5180 = vmatprep.subr.mxu0 0.0
    %5181 = vmatpush1.xpose.msra.mxu0 0.0
    %5182 = vmatprep.subr.mxu0 0.0
    %5183 = vmatpush1.xpose.msra.mxu0 0.0
    %5184 = vmatprep.subr.mxu0 0.0
    %5185 = vmatpush1.xpose.msra.mxu0 0.0
    %5186 = vmatprep.subr.mxu0 0.0
    %5187 = vmatpush1.xpose.msra.mxu0 0.0
    %5188 = vmatprep.subr.mxu0 0.0
    %5189 = vmatpush1.xpose.msra.mxu0 0.0
    %5190 = vmatprep.subr.mxu0 0.0
    %5191 = vmatpush1.xpose.msra.mxu0 0.0
    %5192 = vmatprep.subr.mxu0 0.0
    %5193 = vmatpush1.xpose.msra.mxu0 0.0
    %5194 = vmatprep.subr.mxu0 0.0
    %5195 = vmatpush1.xpose.msra.mxu0 0.0
    %5196 = vmatprep.subr.mxu0 0.0
    %5197 = vmatpush1.xpose.msra.mxu0 0.0
    %5198 = vmatprep.subr.mxu0 0.0
    %5199 = vmatpush1.xpose.msra.mxu0 %v5168
    %5200 = vmatprep.subr.mxu0 0.0
    %5201 = vmatpush1.xpose.msra.mxu0 %v5166
    %5202 = vmatprep.subr.mxu0 0.0
    %5203 = vmatpush2.xpose.msra.mxu0 0.0
    %5204 = vmatprep.subr.mxu0 0.0
    %5205 = vmatpush2.xpose.msra.mxu0 0.0
    %5206 = vmatprep.subr.mxu0 0.0
    %5207 = vmatpush2.xpose.msra.mxu0 0.0
    %5208 = vmatprep.subr.mxu0 0.0
    %5209 = vmatpush2.xpose.msra.mxu0 0.0
    %5210 = vmatprep.subr.mxu0 0.0
    %5211 = vmatpush2.xpose.msra.mxu0 0.0
    %5212 = vmatprep.subr.mxu0 0.0
    %5213 = vmatpush2.xpose.msra.mxu0 0.0
    %5214 = vmatprep.subr.mxu0 0.0
    %5215 = vmatpush2.xpose.msra.mxu0 0.0
    %5216 = vmatprep.subr.mxu0 0.0
    %5217 = vmatpush2.xpose.msra.mxu0 0.0
    %5218 = vmatprep.subr.mxu0 0.0
    %5219 = vmatpush2.xpose.msra.mxu0 0.0
    %5220 = vmatprep.subr.mxu0 0.0
    %5221 = vmatpush2.xpose.msra.mxu0 0.0
    %5222 = vmatprep.subr.mxu0 0.0
    %5223 = vmatpush2.xpose.msra.mxu0 0.0
    %5224 = vmatprep.subr.mxu0 0.0
    %5225 = vmatpush2.xpose.msra.mxu0 0.0
    %5226 = vmatprep.subr.mxu0 0.0
    %5227 = vmatpush2.xpose.msra.mxu0 0.0
    %5228 = vmatprep.subr.mxu0 0.0
    %5229 = vmatpush2.xpose.msra.mxu0 0.0
    %5230 = vmatprep.subr.mxu0 0.0
    %5231 = vmatpush2.xpose.msra.mxu0 0.0
    %5232 = vmatprep.subr.mxu0 0.0
    %5233 = vmatpush2.xpose.msra.mxu0 0.0
    %5234 = vmatprep.mubr.f32.mxu0 0.0
    %5235 = vmatmul.mubr.f32.gmra.mxu0 %v5162
    %v5236 = vpop.f32.mrf.mxu0
    %v5237 = vadd.f32 0.0, %v5236
    %v5238 = vpop.f32.mrf.mxu0
    %5239 = vmatprep.mubr.f32.mxu0 0.0
    %5240 = vmatmul.mubr.f32.gmra.mxu0 %v5164
    %v5241 = vpop.f32.mrf.mxu0
    %v5242 = vadd.f32 0.0, %v5241
    %v5243 = vpop.f32.mrf.mxu0
    %5244 = vdwg.mxu0
    %v5245 = vmul.f32 %v5237, 0.35355338
    %v5246 = vmul.f32 %v5242, 0.35355338
    %v5247 = vadd.f32 %v5245, %v3207
    %v5248 = vadd.f32 %v5246, %v3208
    %v5249 = vsel %vm384, %v5247, -inf
    %5250 = vmax.xlane.f32.xlu0 %v5249
    %v5251 = vpop.xlane.xlu0 %5250
    %v5252 = vsel %vm384, %v5248, -inf
    %5253 = vmax.xlane.f32.xlu0 %v5252
    %v5254 = vpop.xlane.xlu0 %5253
    %v5255 = vsub.f32 %v5247, %v5251
    %v5256 = vsub.f32 %v5248, %v5254
    %v5257 = vmul.f32 %v5255, 1.442695
    %v5258 = vpow.pop %v5257
    %v5259 = vmul.f32 %v5256, 1.442695
    %v5260 = vpow.pop %v5259
    %v5261 = vsel %vm384, %v5258, 0.0
    %5262 = vadd.xlane.f32.xlu0 %v5261
    %v5263 = vpop.xlane.xlu0 %5262
    %v5264 = vsel %vm384, %v5260, 0.0
    %5265 = vadd.xlane.f32.xlu0 %v5264
    %v5266 = vpop.xlane.xlu0 %5265
    %v5267 = vrcp.pop %v5263
    %v5268 = vmul.f32 %v5258, %v5267
    %v5269 = vrcp.pop %v5266
    %v5270 = vmul.f32 %v5260, %v5269
    %5271 = vrot.lane.b32.xlu0 %v4538, 72
    %v5272 = vpop.permute.xlu0 %5271
    %5273 = vrot.lane.b32.xlu0 %v4543, 72
    %v5274 = vpop.permute.xlu0 %5273
    %v5278 = vsel %vm384, %v5268, 0
    %v5281 = vsel %vm384, %v5270, 0
    %5283 = vmatprep.subr.mxu0 0.0
    %5284 = vmatpush1.msra.mxu0 0.0
    %5285 = vmatprep.subr.mxu0 0.0
    %5286 = vmatpush1.msra.mxu0 0.0
    %5287 = vmatprep.subr.mxu0 0.0
    %5288 = vmatpush1.msra.mxu0 0.0
    %5289 = vmatprep.subr.mxu0 0.0
    %5290 = vmatpush1.msra.mxu0 0.0
    %5291 = vmatprep.subr.mxu0 0.0
    %5292 = vmatpush1.msra.mxu0 0.0
    %5293 = vmatprep.subr.mxu0 0.0
    %5294 = vmatpush1.msra.mxu0 0.0
    %5295 = vmatprep.subr.mxu0 0.0
    %5296 = vmatpush1.msra.mxu0 0.0
    %5297 = vmatprep.subr.mxu0 0.0
    %5298 = vmatpush1.msra.mxu0 0.0
    %5299 = vmatprep.subr.mxu0 0.0
    %5300 = vmatpush1.msra.mxu0 0.0
    %5301 = vmatprep.subr.mxu0 0.0
    %5302 = vmatpush1.msra.mxu0 0.0
    %5303 = vmatprep.subr.mxu0 0.0
    %5304 = vmatpush1.msra.mxu0 0.0
    %5305 = vmatprep.subr.mxu0 0.0
    %5306 = vmatpush1.msra.mxu0 0.0
    %5307 = vmatprep.subr.mxu0 0.0
    %5308 = vmatpush1.msra.mxu0 0.0
    %5309 = vmatprep.subr.mxu0 0.0
    %5310 = vmatpush1.msra.mxu0 0.0
    %5311 = vmatprep.subr.mxu0 0.0
    %5312 = vmatpush1.msra.mxu0 %v5274
    %5313 = vmatprep.subr.mxu0 0.0
    %5314 = vmatpush1.msra.mxu0 %v5272
    %5315 = vmatprep.subr.mxu0 0.0
    %5316 = vmatpush2.msra.mxu0 0.0
    %5317 = vmatprep.subr.mxu0 0.0
    %5318 = vmatpush2.msra.mxu0 0.0
    %5319 = vmatprep.subr.mxu0 0.0
    %5320 = vmatpush2.msra.mxu0 0.0
    %5321 = vmatprep.subr.mxu0 0.0
    %5322 = vmatpush2.msra.mxu0 0.0
    %5323 = vmatprep.subr.mxu0 0.0
    %5324 = vmatpush2.msra.mxu0 0.0
    %5325 = vmatprep.subr.mxu0 0.0
    %5326 = vmatpush2.msra.mxu0 0.0
    %5327 = vmatprep.subr.mxu0 0.0
    %5328 = vmatpush2.msra.mxu0 0.0
    %5329 = vmatprep.subr.mxu0 0.0
    %5330 = vmatpush2.msra.mxu0 0.0
    %5331 = vmatprep.subr.mxu0 0.0
    %5332 = vmatpush2.msra.mxu0 0.0
    %5333 = vmatprep.subr.mxu0 0.0
    %5334 = vmatpush2.msra.mxu0 0.0
    %5335 = vmatprep.subr.mxu0 0.0
    %5336 = vmatpush2.msra.mxu0 0.0
    %5337 = vmatprep.subr.mxu0 0.0
    %5338 = vmatpush2.msra.mxu0 0.0
    %5339 = vmatprep.subr.mxu0 0.0
    %5340 = vmatpush2.msra.mxu0 0.0
    %5341 = vmatprep.subr.mxu0 0.0
    %5342 = vmatpush2.msra.mxu0 0.0
    %5343 = vmatprep.subr.mxu0 0.0
    %5344 = vmatpush2.msra.mxu0 0.0
    %5345 = vmatprep.subr.mxu0 0.0
    %5346 = vmatpush2.msra.mxu0 0.0
    %5347 = vmatprep.mubr.f32.mxu0 0.0
    %5348 = vmatmul.mubr.f32.gmra.mxu0 %v5278
    %v5349 = vpop.f32.mrf.mxu0
    %v5350 = vadd.f32 0.0, %v5349
    %v5351 = vpop.f32.mrf.mxu0
    %5352 = vmatprep.mubr.f32.mxu0 0.0
    %5353 = vmatmul.mubr.f32.gmra.mxu0 %v5281
    %v5354 = vpop.f32.mrf.mxu0
    %v5355 = vadd.f32 0.0, %v5354
    %v5356 = vpop.f32.mrf.mxu0
    %5357 = vdwg.mxu0
    %5360 = vrot.lane.b32.xlu0 %v4942, 8
    %v5361 = vpop.permute.xlu0 %5360
    %5362 = vrot.lane.b32.xlu0 %v4947, 8
    %v5363 = vpop.permute.xlu0 %5362
    %5368 = vrot.lane.b32.xlu0 %v5146, 16
    %v5369 = vpop.permute.xlu0 %5368
    %5370 = vrot.lane.b32.xlu0 %v5151, 16
    %v5371 = vpop.permute.xlu0 %5370
    %5376 = vrot.lane.b32.xlu0 %v5350, 24
    %v5377 = vpop.permute.xlu0 %5376
    %5378 = vrot.lane.b32.xlu0 %v5355, 24
    %v5379 = vpop.permute.xlu0 %5378
    %v5382 = vsel %vm296, %v4738, %v5361
    %v5383 = vsel %vm296, %v4743, %v5363
    %v5384 = vsel %vm384, %v5382, %v5369
    %v5385 = vsel %vm384, %v5383, %v5371
    %v5386 = vsel %vm1134, %v5384, %v5377
    %v5387 = vsel %vm1134, %v5385, %v5379
    %v5388 = vld [vmem:[%s8 + $0x15] sm:$0x1]
    %v5390 = vlaneseq
    %v5391 = vshrl.u32 %v5390, 7
    %v5392 = vsub.s32 0, %v5391
    %v5393 = vrot.slane %v5388, %v5392
    %5395 = vrot.lane.b32.xlu0 %v4423, 96
    %v5396 = vpop.permute.xlu0 %5395
    %5397 = vrot.lane.b32.xlu0 %v4425, 96
    %v5398 = vpop.permute.xlu0 %5397
    %5399 = vrot.lane.b32.xlu0 %v4427, 96
    %v5400 = vpop.permute.xlu0 %5399
    %5401 = vrot.lane.b32.xlu0 %v4429, 96
    %v5402 = vpop.permute.xlu0 %5401
    %v5408 = vsel %vm208, %v5386, 0
    %v5411 = vsel %vm208, %v5387, 0
    %5413 = vmatprep.subr.mxu0 0.0
    %5414 = vmatpush1.msra.mxu0 0.0
    %5415 = vmatprep.subr.mxu0 0.0
    %5416 = vmatpush1.msra.mxu0 0.0
    %5417 = vmatprep.subr.mxu0 0.0
    %5418 = vmatpush1.msra.mxu0 0.0
    %5419 = vmatprep.subr.mxu0 0.0
    %5420 = vmatpush1.msra.mxu0 0.0
    %5421 = vmatprep.subr.mxu0 0.0
    %5422 = vmatpush1.msra.mxu0 0.0
    %5423 = vmatprep.subr.mxu0 0.0
    %5424 = vmatpush1.msra.mxu0 0.0
    %5425 = vmatprep.subr.mxu0 0.0
    %5426 = vmatpush1.msra.mxu0 0.0
    %5427 = vmatprep.subr.mxu0 0.0
    %5428 = vmatpush1.msra.mxu0 0.0
    %5429 = vmatprep.subr.mxu0 0.0
    %5430 = vmatpush1.msra.mxu0 0.0
    %5431 = vmatprep.subr.mxu0 0.0
    %5432 = vmatpush1.msra.mxu0 0.0
    %5433 = vmatprep.subr.mxu0 0.0
    %5434 = vmatpush1.msra.mxu0 0.0
    %5435 = vmatprep.subr.mxu0 0.0
    %5436 = vmatpush1.msra.mxu0 0.0
    %5437 = vmatprep.subr.mxu0 0.0
    %5438 = vmatpush1.msra.mxu0 %v5402
    %5439 = vmatprep.subr.mxu0 0.0
    %5440 = vmatpush1.msra.mxu0 %v5400
    %5441 = vmatprep.subr.mxu0 0.0
    %5442 = vmatpush1.msra.mxu0 %v5398
    %5443 = vmatprep.subr.mxu0 0.0
    %5444 = vmatpush1.msra.mxu0 %v5396
    %5445 = vmatprep.subr.mxu0 0.0
    %5446 = vmatpush2.msra.mxu0 0.0
    %5447 = vmatprep.subr.mxu0 0.0
    %5448 = vmatpush2.msra.mxu0 0.0
    %5449 = vmatprep.subr.mxu0 0.0
    %5450 = vmatpush2.msra.mxu0 0.0
    %5451 = vmatprep.subr.mxu0 0.0
    %5452 = vmatpush2.msra.mxu0 0.0
    %5453 = vmatprep.subr.mxu0 0.0
    %5454 = vmatpush2.msra.mxu0 0.0
    %5455 = vmatprep.subr.mxu0 0.0
    %5456 = vmatpush2.msra.mxu0 0.0
    %5457 = vmatprep.subr.mxu0 0.0
    %5458 = vmatpush2.msra.mxu0 0.0
    %5459 = vmatprep.subr.mxu0 0.0
    %5460 = vmatpush2.msra.mxu0 0.0
    %5461 = vmatprep.subr.mxu0 0.0
    %5462 = vmatpush2.msra.mxu0 0.0
    %5463 = vmatprep.subr.mxu0 0.0
    %5464 = vmatpush2.msra.mxu0 0.0
    %5465 = vmatprep.subr.mxu0 0.0
    %5466 = vmatpush2.msra.mxu0 0.0
    %5467 = vmatprep.subr.mxu0 0.0
    %5468 = vmatpush2.msra.mxu0 0.0
    %5469 = vmatprep.subr.mxu0 0.0
    %5470 = vmatpush2.msra.mxu0 0.0
    %5471 = vmatprep.subr.mxu0 0.0
    %5472 = vmatpush2.msra.mxu0 0.0
    %5473 = vmatprep.subr.mxu0 0.0
    %5474 = vmatpush2.msra.mxu0 0.0
    %5475 = vmatprep.subr.mxu0 0.0
    %5476 = vmatpush2.msra.mxu0 0.0
    %5477 = vmatprep.mubr.f32.mxu0 0.0
    %5478 = vmatmul.mubr.f32.gmra.mxu0 %v5408
    %v5479 = vpop.f32.mrf.mxu0
    %v5480 = vadd.f32 %v5393, %v5479
    %v5481 = vpop.f32.mrf.mxu0
    %5482 = vmatprep.mubr.f32.mxu0 0.0
    %5483 = vmatmul.mubr.f32.gmra.mxu0 %v5411
    %v5484 = vpop.f32.mrf.mxu0
    %v5485 = vadd.f32 %v5393, %v5484
    %v5486 = vpop.f32.mrf.mxu0
    %5487 = vdwg.mxu0
    %v5488 = vadd.f32 %v4332, %v5480
    %v5489 = vadd.f32 %v4333, %v5485
    %v5490 = vsel %vm208, %v5488, 0.0
    %5491 = vadd.xlane.f32.xlu0 %v5490
    %v5492 = vpop.xlane.xlu0 %5491
    %v5493 = vsel %vm208, %v5489, 0.0
    %5494 = vadd.xlane.f32.xlu0 %v5493
    %v5495 = vpop.xlane.xlu0 %5494
    %v5496 = vmul.f32 %v5492, %v1247
    %v5497 = vmul.f32 %v5495, %v1247
    %v5498 = vsub.f32 %v5488, %v5496
    %v5499 = vsub.f32 %v5489, %v5497
    %v5500 = vmul.f32 %v5498, %v5498
    %v5501 = vmul.f32 %v5499, %v5499
    %v5502 = vsel %vm208, %v5500, 0.0
    %5503 = vadd.xlane.f32.xlu0 %v5502
    %v5504 = vpop.xlane.xlu0 %5503
    %v5505 = vsel %vm208, %v5501, 0.0
    %5506 = vadd.xlane.f32.xlu0 %v5505
    %v5507 = vpop.xlane.xlu0 %5506
    %v5508 = vmul.f32 %v5504, %v1247
    %v5509 = vmul.f32 %v5507, %v1247
    %v5510 = vadd.f32 %v5508, 1e-05
    %v5511 = vadd.f32 %v5509, 1e-05
    %v5512 = vrsqrt.pop %v5510
    %v5513 = vrsqrt.pop %v5511
    %v5514 = vmul.f32 %v5498, %v5512
    %v5515 = vmul.f32 %v5499, %v5513
    %5516 = vrot.lane.b32.xlu0 %v5393, 96
    %v5517 = vpop.permute.xlu0 %5516
    %v5519 = vmul.f32 %v5514, %v5517
    %v5520 = vmul.f32 %v5515, %v5517
    %5521 = vrot.lane.b32.xlu0 %v5393, 64
    %v5522 = vpop.permute.xlu0 %5521
    %v5524 = vadd.f32 %v5519, %v5522
    %v5525 = vadd.f32 %v5520, %v5522
    %v5526 = vld [vmem:[%s8 + $0x15] sm:$0xff]
    %v5527 = vld [vmem:[%s8 + $0x1d] sm:$0xff]
    %v5528 = vld [vmem:[%s8 + $0x25] sm:$0x1]
    %v5529 = vld [vmem:[%s11] sm:$0xff]
    %v5530 = vld [vmem:[%s11 + $0x8] sm:$0xff]
    %v5531 = vld [vmem:[%s11 + $0x10] sm:$0xff]
    %v5532 = vld [vmem:[%s11 + $0x18] sm:$0xff]
    %v5533 = vld [vmem:[%s11 + $0x20] sm:$0xff]
    %v5534 = vld [vmem:[%s11 + $0x28] sm:$0xff]
    %v5535 = vld [vmem:[%s11 + $0x30] sm:$0xff]
    %v5536 = vld [vmem:[%s11 + $0x38] sm:$0xff]
    %v5537 = vld [vmem:[%s11 + $0x40] sm:$0xff]
    %v5538 = vld [vmem:[%s11 + $0x48] sm:$0xff]
    %v5539 = vld [vmem:[%s11 + $0x50] sm:$0xff]
    %v5540 = vld [vmem:[%s11 + $0x58] sm:$0xff]
    %v5541 = vld [vmem:[%s11 + $0x60] sm:$0xff]
    %v5542 = vld [vmem:[%s11 + $0x68] sm:$0xff]
    %v5543 = vld [vmem:[%s11 + $0x70] sm:$0xff]
    %v5544 = vld [vmem:[%s11 + $0x78] sm:$0xff]
    %v5545 = vld [vmem:[%s11 + $0x80] sm:$0xff]
    %v5546 = vld [vmem:[%s11 + $0x88] sm:$0xff]
    %v5547 = vld [vmem:[%s11 + $0x90] sm:$0xff]
    %v5548 = vld [vmem:[%s11 + $0x98] sm:$0xff]
    %v5549 = vld [vmem:[%s11 + $0xa0] sm:$0xff]
    %v5550 = vld [vmem:[%s11 + $0xa8] sm:$0xff]
    %v5551 = vld [vmem:[%s11 + $0xb0] sm:$0xff]
    %v5552 = vld [vmem:[%s11 + $0xb8] sm:$0xff]
    %v5553 = vld [vmem:[%s11 + $0xc0] sm:$0xff]
    %v5554 = vld [vmem:[%s11 + $0xc8] sm:$0xff]
    %v5555 = vld [vmem:[%s11 + $0xd0] sm:$0xff]
    %v5556 = vld [vmem:[%s11 + $0xd8] sm:$0xff]
    %v5557 = vld [vmem:[%s11 + $0xe0] sm:$0xff]
    %v5558 = vld [vmem:[%s11 + $0xe8] sm:$0xff]
    %v5559 = vld [vmem:[%s11 + $0xf0] sm:$0xff]
    %v5560 = vld [vmem:[%s11 + $0xf8] sm:$0xff]
    %v5561 = vld [vmem:[%s11 + $0x100] sm:$0xff]
    %v5562 = vld [vmem:[%s11 + $0x108] sm:$0xff]
    %v5563 = vld [vmem:[%s11 + $0x110] sm:$0xff]
    %v5564 = vld [vmem:[%s11 + $0x118] sm:$0xff]
    %v5565 = vld [vmem:[%s11 + $0x120] sm:$0xff]
    %v5566 = vld [vmem:[%s11 + $0x128] sm:$0xff]
    %v5567 = vld [vmem:[%s11 + $0x130] sm:$0xff]
    %v5568 = vld [vmem:[%s11 + $0x138] sm:$0xff]
    %v5569 = vld [vmem:[%s11 + $0x140] sm:$0xff]
    %v5570 = vld [vmem:[%s11 + $0x148] sm:$0xff]
    %v5571 = vld [vmem:[%s11 + $0x150] sm:$0xff]
    %v5572 = vld [vmem:[%s11 + $0x158] sm:$0xff]
    %v5573 = vld [vmem:[%s11 + $0x160] sm:$0xff]
    %v5574 = vld [vmem:[%s11 + $0x168] sm:$0xff]
    %v5575 = vld [vmem:[%s11 + $0x170] sm:$0xff]
    %v5576 = vld [vmem:[%s11 + $0x178] sm:$0xff]
    %v5577 = vld [vmem:[%s11 + $0x180] sm:$0xff]
    %v5578 = vld [vmem:[%s11 + $0x188] sm:$0xff]
    %v5579 = vld [vmem:[%s11 + $0x190] sm:$0xff]
    %v5580 = vld [vmem:[%s11 + $0x198] sm:$0xff]
    %v5581 = vld [vmem:[%s11 + $0x1a0] sm:$0xff]
    %v5582 = vld [vmem:[%s11 + $0x1a8] sm:$0xff]
    %v5583 = vld [vmem:[%s11 + $0x1b0] sm:$0xff]
    %v5584 = vld [vmem:[%s11 + $0x1b8] sm:$0xff]
    %v5585 = vld [vmem:[%s11 + $0x1c0] sm:$0xff]
    %v5586 = vld [vmem:[%s11 + $0x1c8] sm:$0xff]
    %v5587 = vld [vmem:[%s11 + $0x1d0] sm:$0xff]
    %v5588 = vld [vmem:[%s11 + $0x1d8] sm:$0xff]
    %v5589 = vld [vmem:[%s11 + $0x1e0] sm:$0xff]
    %v5590 = vld [vmem:[%s11 + $0x1e8] sm:$0xff]
    %v5591 = vld [vmem:[%s11 + $0x1f0] sm:$0xff]
    %v5592 = vld [vmem:[%s11 + $0x1f8] sm:$0xff]
    %v5596 = vlaneseq
    %v5597 = vshrl.u32 %v5596, 7
    %v5598 = vsub.s32 0, %v5597
    %v5599 = vrot.slane %v5526, %v5598
    %v5600 = vlaneseq
    %v5601 = vshrl.u32 %v5600, 7
    %v5602 = vsub.s32 1, %v5601
    %v5603 = vrot.slane %v5526, %v5602
    %v5604 = vlaneseq
    %v5605 = vshrl.u32 %v5604, 7
    %v5606 = vsub.s32 2, %v5605
    %v5607 = vrot.slane %v5526, %v5606
    %v5608 = vlaneseq
    %v5609 = vshrl.u32 %v5608, 7
    %v5610 = vsub.s32 3, %v5609
    %v5611 = vrot.slane %v5526, %v5610
    %v5612 = vlaneseq
    %v5613 = vshrl.u32 %v5612, 7
    %v5614 = vsub.s32 4, %v5613
    %v5615 = vrot.slane %v5526, %v5614
    %v5616 = vlaneseq
    %v5617 = vshrl.u32 %v5616, 7
    %v5618 = vsub.s32 5, %v5617
    %v5619 = vrot.slane %v5526, %v5618
    %v5620 = vlaneseq
    %v5621 = vshrl.u32 %v5620, 7
    %v5622 = vsub.s32 6, %v5621
    %v5623 = vrot.slane %v5526, %v5622
    %v5624 = vlaneseq
    %v5625 = vshrl.u32 %v5624, 7
    %v5626 = vsub.s32 7, %v5625
    %v5627 = vrot.slane %v5526, %v5626
    %v5628 = vlaneseq
    %v5629 = vshrl.u32 %v5628, 7
    %v5630 = vsub.s32 0, %v5629
    %v5631 = vrot.slane %v5527, %v5630
    %v5632 = vlaneseq
    %v5633 = vshrl.u32 %v5632, 7
    %v5634 = vsub.s32 1, %v5633
    %v5635 = vrot.slane %v5527, %v5634
    %v5636 = vlaneseq
    %v5637 = vshrl.u32 %v5636, 7
    %v5638 = vsub.s32 2, %v5637
    %v5639 = vrot.slane %v5527, %v5638
    %v5640 = vlaneseq
    %v5641 = vshrl.u32 %v5640, 7
    %v5642 = vsub.s32 3, %v5641
    %v5643 = vrot.slane %v5527, %v5642
    %v5644 = vlaneseq
    %v5645 = vshrl.u32 %v5644, 7
    %v5646 = vsub.s32 4, %v5645
    %v5647 = vrot.slane %v5527, %v5646
    %v5648 = vlaneseq
    %v5649 = vshrl.u32 %v5648, 7
    %v5650 = vsub.s32 5, %v5649
    %v5651 = vrot.slane %v5527, %v5650
    %v5652 = vlaneseq
    %v5653 = vshrl.u32 %v5652, 7
    %v5654 = vsub.s32 6, %v5653
    %v5655 = vrot.slane %v5527, %v5654
    %v5656 = vlaneseq
    %v5657 = vshrl.u32 %v5656, 7
    %v5658 = vsub.s32 7, %v5657
    %v5659 = vrot.slane %v5527, %v5658
    %v5660 = vlaneseq
    %v5661 = vshrl.u32 %v5660, 7
    %v5662 = vsub.s32 0, %v5661
    %v5663 = vrot.slane %v5528, %v5662
    %5664 = vrot.lane.b32.xlu0 %v5599, 32
    %v5665 = vpop.permute.xlu0 %5664
    %5666 = vrot.lane.b32.xlu0 %v5603, 32
    %v5667 = vpop.permute.xlu0 %5666
    %5668 = vrot.lane.b32.xlu0 %v5607, 32
    %v5669 = vpop.permute.xlu0 %5668
    %5670 = vrot.lane.b32.xlu0 %v5611, 32
    %v5671 = vpop.permute.xlu0 %5670
    %5672 = vrot.lane.b32.xlu0 %v5615, 32
    %v5673 = vpop.permute.xlu0 %5672
    %5674 = vrot.lane.b32.xlu0 %v5619, 32
    %v5675 = vpop.permute.xlu0 %5674
    %5676 = vrot.lane.b32.xlu0 %v5623, 32
    %v5677 = vpop.permute.xlu0 %5676
    %5678 = vrot.lane.b32.xlu0 %v5627, 32
    %v5679 = vpop.permute.xlu0 %5678
    %5680 = vrot.lane.b32.xlu0 %v5631, 32
    %v5681 = vpop.permute.xlu0 %5680
    %5682 = vrot.lane.b32.xlu0 %v5635, 32
    %v5683 = vpop.permute.xlu0 %5682
    %5684 = vrot.lane.b32.xlu0 %v5639, 32
    %v5685 = vpop.permute.xlu0 %5684
    %5686 = vrot.lane.b32.xlu0 %v5643, 32
    %v5687 = vpop.permute.xlu0 %5686
    %5688 = vrot.lane.b32.xlu0 %v5647, 32
    %v5689 = vpop.permute.xlu0 %5688
    %5690 = vrot.lane.b32.xlu0 %v5651, 32
    %v5691 = vpop.permute.xlu0 %5690
    %5692 = vrot.lane.b32.xlu0 %v5655, 32
    %v5693 = vpop.permute.xlu0 %5692
    %5694 = vrot.lane.b32.xlu0 %v5659, 32
    %v5695 = vpop.permute.xlu0 %5694
    %5696 = vrot.lane.b32.xlu0 %v5663, 32
    %v5697 = vpop.permute.xlu0 %5696
    %v5698 = vsel %vm208, %v5665, %v5667
    %v5699 = vsel %vm208, %v5667, %v5669
    %v5700 = vsel %vm208, %v5669, %v5671
    %v5701 = vsel %vm208, %v5671, %v5673
    %v5702 = vsel %vm208, %v5673, %v5675
    %v5703 = vsel %vm208, %v5675, %v5677
    %v5704 = vsel %vm208, %v5677, %v5679
    %v5705 = vsel %vm208, %v5679, %v5681
    %v5706 = vsel %vm208, %v5681, %v5683
    %v5707 = vsel %vm208, %v5683, %v5685
    %v5708 = vsel %vm208, %v5685, %v5687
    %v5709 = vsel %vm208, %v5687, %v5689
    %v5710 = vsel %vm208, %v5689, %v5691
    %v5711 = vsel %vm208, %v5691, %v5693
    %v5712 = vsel %vm208, %v5693, %v5695
    %v5713 = vsel %vm208, %v5695, %v5697
    %v5731 = vsel %vm208, %v5524, 0
    %v5734 = vsel %vm208, %v5525, 0
    %5736 = vmatprep.subr.mxu0 0.0
    %5737 = vmatpush1.msra.mxu0 0.0
    %5738 = vmatprep.subr.mxu0 0.0
    %5739 = vmatpush1.msra.mxu0 0.0
    %5740 = vmatprep.subr.mxu0 0.0
    %5741 = vmatpush1.msra.mxu0 0.0
    %5742 = vmatprep.subr.mxu0 0.0
    %5743 = vmatpush1.msra.mxu0 0.0
    %5744 = vmatprep.subr.mxu0 0.0
    %5745 = vmatpush1.msra.mxu0 0.0
    %5746 = vmatprep.subr.mxu0 0.0
    %5747 = vmatpush1.msra.mxu0 0.0
    %5748 = vmatprep.subr.mxu0 0.0
    %5749 = vmatpush1.msra.mxu0 0.0
    %5750 = vmatprep.subr.mxu0 0.0
    %5751 = vmatpush1.msra.mxu0 0.0
    %5752 = vmatprep.subr.mxu0 0.0
    %5753 = vmatpush1.msra.mxu0 0.0
    %5754 = vmatprep.subr.mxu0 0.0
    %5755 = vmatpush1.msra.mxu0 0.0
    %5756 = vmatprep.subr.mxu0 0.0
    %5757 = vmatpush1.msra.mxu0 0.0
    %5758 = vmatprep.subr.mxu0 0.0
    %5759 = vmatpush1.msra.mxu0 0.0
    %5760 = vmatprep.subr.mxu0 %v5578
    %5761 = vmatpush1.msra.mxu0 %v5577
    %5762 = vmatprep.subr.mxu0 %v5562
    %5763 = vmatpush1.msra.mxu0 %v5561
    %5764 = vmatprep.subr.mxu0 %v5546
    %5765 = vmatpush1.msra.mxu0 %v5545
    %5766 = vmatprep.subr.mxu0 %v5530
    %5767 = vmatpush1.msra.mxu0 %v5529
    %5768 = vmatprep.subr.mxu0 0.0
    %5769 = vmatpush2.msra.mxu0 0.0
    %5770 = vmatprep.subr.mxu0 0.0
    %5771 = vmatpush2.msra.mxu0 0.0
    %5772 = vmatprep.subr.mxu0 0.0
    %5773 = vmatpush2.msra.mxu0 0.0
    %5774 = vmatprep.subr.mxu0 0.0
    %5775 = vmatpush2.msra.mxu0 0.0
    %5776 = vmatprep.subr.mxu0 0.0
    %5777 = vmatpush2.msra.mxu0 0.0
    %5778 = vmatprep.subr.mxu0 0.0
    %5779 = vmatpush2.msra.mxu0 0.0
    %5780 = vmatprep.subr.mxu0 0.0
    %5781 = vmatpush2.msra.mxu0 0.0
    %5782 = vmatprep.subr.mxu0 0.0
    %5783 = vmatpush2.msra.mxu0 0.0
    %5784 = vmatprep.subr.mxu0 0.0
    %5785 = vmatpush2.msra.mxu0 0.0
    %5786 = vmatprep.subr.mxu0 0.0
    %5787 = vmatpush2.msra.mxu0 0.0
    %5788 = vmatprep.subr.mxu0 0.0
    %5789 = vmatpush2.msra.mxu0 0.0
    %5790 = vmatprep.subr.mxu0 0.0
    %5791 = vmatpush2.msra.mxu0 0.0
    %5792 = vmatprep.subr.mxu0 0.0
    %5793 = vmatpush2.msra.mxu0 0.0
    %5794 = vmatprep.subr.mxu0 0.0
    %5795 = vmatpush2.msra.mxu0 0.0
    %5796 = vmatprep.subr.mxu0 0.0
    %5797 = vmatpush2.msra.mxu0 0.0
    %5798 = vmatprep.subr.mxu0 0.0
    %5799 = vmatpush2.msra.mxu0 0.0
    %5800 = vmatprep.mubr.f32.mxu0 0.0
    %5801 = vmatmul.mubr.f32.gmra.mxu0 %v5731
    %v5802 = vpop.f32.mrf.mxu0
    %v5803 = vadd.f32 %v5698, %v5802
    %v5804 = vpop.f32.mrf.mxu0
    %v5805 = vadd.f32 %v5699, %v5804
    %5806 = vmatprep.mubr.f32.mxu0 0.0
    %5807 = vmatmul.mubr.f32.gmra.mxu0 %v5734
    %v5808 = vpop.f32.mrf.mxu0
    %v5809 = vadd.f32 %v5698, %v5808
    %v5810 = vpop.f32.mrf.mxu0
    %v5811 = vadd.f32 %v5699, %v5810
    %5812 = vdwg.mxu0
    %5813 = vmatprep.subr.mxu0 0.0
    %5814 = vmatpush1.msra.mxu0 0.0
    %5815 = vmatprep.subr.mxu0 0.0
    %5816 = vmatpush1.msra.mxu0 0.0
    %5817 = vmatprep.subr.mxu0 0.0
    %5818 = vmatpush1.msra.mxu0 0.0
    %5819 = vmatprep.subr.mxu0 0.0
    %5820 = vmatpush1.msra.mxu0 0.0
    %5821 = vmatprep.subr.mxu0 0.0
    %5822 = vmatpush1.msra.mxu0 0.0
    %5823 = vmatprep.subr.mxu0 0.0
    %5824 = vmatpush1.msra.mxu0 0.0
    %5825 = vmatprep.subr.mxu0 0.0
    %5826 = vmatpush1.msra.mxu0 0.0
    %5827 = vmatprep.subr.mxu0 0.0
    %5828 = vmatpush1.msra.mxu0 0.0
    %5829 = vmatprep.subr.mxu0 0.0
    %5830 = vmatpush1.msra.mxu0 0.0
    %5831 = vmatprep.subr.mxu0 0.0
    %5832 = vmatpush1.msra.mxu0 0.0
    %5833 = vmatprep.subr.mxu0 0.0
    %5834 = vmatpush1.msra.mxu0 0.0
    %5835 = vmatprep.subr.mxu0 0.0
    %5836 = vmatpush1.msra.mxu0 0.0
    %5837 = vmatprep.subr.mxu0 %v5580
    %5838 = vmatpush1.msra.mxu0 %v5579
    %5839 = vmatprep.subr.mxu0 %v5564
    %5840 = vmatpush1.msra.mxu0 %v5563
    %5841 = vmatprep.subr.mxu0 %v5548
    %5842 = vmatpush1.msra.mxu0 %v5547
    %5843 = vmatprep.subr.mxu0 %v5532
    %5844 = vmatpush1.msra.mxu0 %v5531
    %5845 = vmatprep.subr.mxu0 0.0
    %5846 = vmatpush2.msra.mxu0 0.0
    %5847 = vmatprep.subr.mxu0 0.0
    %5848 = vmatpush2.msra.mxu0 0.0
    %5849 = vmatprep.subr.mxu0 0.0
    %5850 = vmatpush2.msra.mxu0 0.0
    %5851 = vmatprep.subr.mxu0 0.0
    %5852 = vmatpush2.msra.mxu0 0.0
    %5853 = vmatprep.subr.mxu0 0.0
    %5854 = vmatpush2.msra.mxu0 0.0
    %5855 = vmatprep.subr.mxu0 0.0
    %5856 = vmatpush2.msra.mxu0 0.0
    %5857 = vmatprep.subr.mxu0 0.0
    %5858 = vmatpush2.msra.mxu0 0.0
    %5859 = vmatprep.subr.mxu0 0.0
    %5860 = vmatpush2.msra.mxu0 0.0
    %5861 = vmatprep.subr.mxu0 0.0
    %5862 = vmatpush2.msra.mxu0 0.0
    %5863 = vmatprep.subr.mxu0 0.0
    %5864 = vmatpush2.msra.mxu0 0.0
    %5865 = vmatprep.subr.mxu0 0.0
    %5866 = vmatpush2.msra.mxu0 0.0
    %5867 = vmatprep.subr.mxu0 0.0
    %5868 = vmatpush2.msra.mxu0 0.0
    %5869 = vmatprep.subr.mxu0 0.0
    %5870 = vmatpush2.msra.mxu0 0.0
    %5871 = vmatprep.subr.mxu0 0.0
    %5872 = vmatpush2.msra.mxu0 0.0
    %5873 = vmatprep.subr.mxu0 0.0
    %5874 = vmatpush2.msra.mxu0 0.0
    %5875 = vmatprep.subr.mxu0 0.0
    %5876 = vmatpush2.msra.mxu0 0.0
    %5877 = vmatprep.mubr.f32.mxu0 0.0
    %5878 = vmatmul.mubr.f32.gmra.mxu0 %v5731
    %v5879 = vpop.f32.mrf.mxu0
    %v5880 = vadd.f32 %v5700, %v5879
    %v5881 = vpop.f32.mrf.mxu0
    %v5882 = vadd.f32 %v5701, %v5881
    %5883 = vmatprep.mubr.f32.mxu0 0.0
    %5884 = vmatmul.mubr.f32.gmra.mxu0 %v5734
    %v5885 = vpop.f32.mrf.mxu0
    %v5886 = vadd.f32 %v5700, %v5885
    %v5887 = vpop.f32.mrf.mxu0
    %v5888 = vadd.f32 %v5701, %v5887
    %5889 = vdwg.mxu0
    %5890 = vmatprep.subr.mxu0 0.0
    %5891 = vmatpush1.msra.mxu0 0.0
    %5892 = vmatprep.subr.mxu0 0.0
    %5893 = vmatpush1.msra.mxu0 0.0
    %5894 = vmatprep.subr.mxu0 0.0
    %5895 = vmatpush1.msra.mxu0 0.0
    %5896 = vmatprep.subr.mxu0 0.0
    %5897 = vmatpush1.msra.mxu0 0.0
    %5898 = vmatprep.subr.mxu0 0.0
    %5899 = vmatpush1.msra.mxu0 0.0
    %5900 = vmatprep.subr.mxu0 0.0
    %5901 = vmatpush1.msra.mxu0 0.0
    %5902 = vmatprep.subr.mxu0 0.0
    %5903 = vmatpush1.msra.mxu0 0.0
    %5904 = vmatprep.subr.mxu0 0.0
    %5905 = vmatpush1.msra.mxu0 0.0
    %5906 = vmatprep.subr.mxu0 0.0
    %5907 = vmatpush1.msra.mxu0 0.0
    %5908 = vmatprep.subr.mxu0 0.0
    %5909 = vmatpush1.msra.mxu0 0.0
    %5910 = vmatprep.subr.mxu0 0.0
    %5911 = vmatpush1.msra.mxu0 0.0
    %5912 = vmatprep.subr.mxu0 0.0
    %5913 = vmatpush1.msra.mxu0 0.0
    %5914 = vmatprep.subr.mxu0 %v5582
    %5915 = vmatpush1.msra.mxu0 %v5581
    %5916 = vmatprep.subr.mxu0 %v5566
    %5917 = vmatpush1.msra.mxu0 %v5565
    %5918 = vmatprep.subr.mxu0 %v5550
    %5919 = vmatpush1.msra.mxu0 %v5549
    %5920 = vmatprep.subr.mxu0 %v5534
    %5921 = vmatpush1.msra.mxu0 %v5533
    %5922 = vmatprep.subr.mxu0 0.0
    %5923 = vmatpush2.msra.mxu0 0.0
    %5924 = vmatprep.subr.mxu0 0.0
    %5925 = vmatpush2.msra.mxu0 0.0
    %5926 = vmatprep.subr.mxu0 0.0
    %5927 = vmatpush2.msra.mxu0 0.0
    %5928 = vmatprep.subr.mxu0 0.0
    %5929 = vmatpush2.msra.mxu0 0.0
    %5930 = vmatprep.subr.mxu0 0.0
    %5931 = vmatpush2.msra.mxu0 0.0
    %5932 = vmatprep.subr.mxu0 0.0
    %5933 = vmatpush2.msra.mxu0 0.0
    %5934 = vmatprep.subr.mxu0 0.0
    %5935 = vmatpush2.msra.mxu0 0.0
    %5936 = vmatprep.subr.mxu0 0.0
    %5937 = vmatpush2.msra.mxu0 0.0
    %5938 = vmatprep.subr.mxu0 0.0
    %5939 = vmatpush2.msra.mxu0 0.0
    %5940 = vmatprep.subr.mxu0 0.0
    %5941 = vmatpush2.msra.mxu0 0.0
    %5942 = vmatprep.subr.mxu0 0.0
    %5943 = vmatpush2.msra.mxu0 0.0
    %5944 = vmatprep.subr.mxu0 0.0
    %5945 = vmatpush2.msra.mxu0 0.0
    %5946 = vmatprep.subr.mxu0 0.0
    %5947 = vmatpush2.msra.mxu0 0.0
    %5948 = vmatprep.subr.mxu0 0.0
    %5949 = vmatpush2.msra.mxu0 0.0
    %5950 = vmatprep.subr.mxu0 0.0
    %5951 = vmatpush2.msra.mxu0 0.0
    %5952 = vmatprep.subr.mxu0 0.0
    %5953 = vmatpush2.msra.mxu0 0.0
    %5954 = vmatprep.mubr.f32.mxu0 0.0
    %5955 = vmatmul.mubr.f32.gmra.mxu0 %v5731
    %v5956 = vpop.f32.mrf.mxu0
    %v5957 = vadd.f32 %v5702, %v5956
    %v5958 = vpop.f32.mrf.mxu0
    %v5959 = vadd.f32 %v5703, %v5958
    %5960 = vmatprep.mubr.f32.mxu0 0.0
    %5961 = vmatmul.mubr.f32.gmra.mxu0 %v5734
    %v5962 = vpop.f32.mrf.mxu0
    %v5963 = vadd.f32 %v5702, %v5962
    %v5964 = vpop.f32.mrf.mxu0
    %v5965 = vadd.f32 %v5703, %v5964
    %5966 = vdwg.mxu0
    %5967 = vmatprep.subr.mxu0 0.0
    %5968 = vmatpush1.msra.mxu0 0.0
    %5969 = vmatprep.subr.mxu0 0.0
    %5970 = vmatpush1.msra.mxu0 0.0
    %5971 = vmatprep.subr.mxu0 0.0
    %5972 = vmatpush1.msra.mxu0 0.0
    %5973 = vmatprep.subr.mxu0 0.0
    %5974 = vmatpush1.msra.mxu0 0.0
    %5975 = vmatprep.subr.mxu0 0.0
    %5976 = vmatpush1.msra.mxu0 0.0
    %5977 = vmatprep.subr.mxu0 0.0
    %5978 = vmatpush1.msra.mxu0 0.0
    %5979 = vmatprep.subr.mxu0 0.0
    %5980 = vmatpush1.msra.mxu0 0.0
    %5981 = vmatprep.subr.mxu0 0.0
    %5982 = vmatpush1.msra.mxu0 0.0
    %5983 = vmatprep.subr.mxu0 0.0
    %5984 = vmatpush1.msra.mxu0 0.0
    %5985 = vmatprep.subr.mxu0 0.0
    %5986 = vmatpush1.msra.mxu0 0.0
    %5987 = vmatprep.subr.mxu0 0.0
    %5988 = vmatpush1.msra.mxu0 0.0
    %5989 = vmatprep.subr.mxu0 0.0
    %5990 = vmatpush1.msra.mxu0 0.0
    %5991 = vmatprep.subr.mxu0 %v5584
    %5992 = vmatpush1.msra.mxu0 %v5583
    %5993 = vmatprep.subr.mxu0 %v5568
    %5994 = vmatpush1.msra.mxu0 %v5567
    %5995 = vmatprep.subr.mxu0 %v5552
    %5996 = vmatpush1.msra.mxu0 %v5551
    %5997 = vmatprep.subr.mxu0 %v5536
    %5998 = vmatpush1.msra.mxu0 %v5535
    %5999 = vmatprep.subr.mxu0 0.0
    %6000 = vmatpush2.msra.mxu0 0.0
    %6001 = vmatprep.subr.mxu0 0.0
    %6002 = vmatpush2.msra.mxu0 0.0
    %6003 = vmatprep.subr.mxu0 0.0
    %6004 = vmatpush2.msra.mxu0 0.0
    %6005 = vmatprep.subr.mxu0 0.0
    %6006 = vmatpush2.msra.mxu0 0.0
    %6007 = vmatprep.subr.mxu0 0.0
    %6008 = vmatpush2.msra.mxu0 0.0
    %6009 = vmatprep.subr.mxu0 0.0
    %6010 = vmatpush2.msra.mxu0 0.0
    %6011 = vmatprep.subr.mxu0 0.0
    %6012 = vmatpush2.msra.mxu0 0.0
    %6013 = vmatprep.subr.mxu0 0.0
    %6014 = vmatpush2.msra.mxu0 0.0
    %6015 = vmatprep.subr.mxu0 0.0
    %6016 = vmatpush2.msra.mxu0 0.0
    %6017 = vmatprep.subr.mxu0 0.0
    %6018 = vmatpush2.msra.mxu0 0.0
    %6019 = vmatprep.subr.mxu0 0.0
    %6020 = vmatpush2.msra.mxu0 0.0
    %6021 = vmatprep.subr.mxu0 0.0
    %6022 = vmatpush2.msra.mxu0 0.0
    %6023 = vmatprep.subr.mxu0 0.0
    %6024 = vmatpush2.msra.mxu0 0.0
    %6025 = vmatprep.subr.mxu0 0.0
    %6026 = vmatpush2.msra.mxu0 0.0
    %6027 = vmatprep.subr.mxu0 0.0
    %6028 = vmatpush2.msra.mxu0 0.0
    %6029 = vmatprep.subr.mxu0 0.0
    %6030 = vmatpush2.msra.mxu0 0.0
    %6031 = vmatprep.mubr.f32.mxu0 0.0
    %6032 = vmatmul.mubr.f32.gmra.mxu0 %v5731
    %v6033 = vpop.f32.mrf.mxu0
    %v6034 = vadd.f32 %v5704, %v6033
    %v6035 = vpop.f32.mrf.mxu0
    %v6036 = vadd.f32 %v5705, %v6035
    %6037 = vmatprep.mubr.f32.mxu0 0.0
    %6038 = vmatmul.mubr.f32.gmra.mxu0 %v5734
    %v6039 = vpop.f32.mrf.mxu0
    %v6040 = vadd.f32 %v5704, %v6039
    %v6041 = vpop.f32.mrf.mxu0
    %v6042 = vadd.f32 %v5705, %v6041
    %6043 = vdwg.mxu0
    %6044 = vmatprep.subr.mxu0 0.0
    %6045 = vmatpush1.msra.mxu0 0.0
    %6046 = vmatprep.subr.mxu0 0.0
    %6047 = vmatpush1.msra.mxu0 0.0
    %6048 = vmatprep.subr.mxu0 0.0
    %6049 = vmatpush1.msra.mxu0 0.0
    %6050 = vmatprep.subr.mxu0 0.0
    %6051 = vmatpush1.msra.mxu0 0.0
    %6052 = vmatprep.subr.mxu0 0.0
    %6053 = vmatpush1.msra.mxu0 0.0
    %6054 = vmatprep.subr.mxu0 0.0
    %6055 = vmatpush1.msra.mxu0 0.0
    %6056 = vmatprep.subr.mxu0 0.0
    %6057 = vmatpush1.msra.mxu0 0.0
    %6058 = vmatprep.subr.mxu0 0.0
    %6059 = vmatpush1.msra.mxu0 0.0
    %6060 = vmatprep.subr.mxu0 0.0
    %6061 = vmatpush1.msra.mxu0 0.0
    %6062 = vmatprep.subr.mxu0 0.0
    %6063 = vmatpush1.msra.mxu0 0.0
    %6064 = vmatprep.subr.mxu0 0.0
    %6065 = vmatpush1.msra.mxu0 0.0
    %6066 = vmatprep.subr.mxu0 0.0
    %6067 = vmatpush1.msra.mxu0 0.0
    %6068 = vmatprep.subr.mxu0 %v5586
    %6069 = vmatpush1.msra.mxu0 %v5585
    %6070 = vmatprep.subr.mxu0 %v5570
    %6071 = vmatpush1.msra.mxu0 %v5569
    %6072 = vmatprep.subr.mxu0 %v5554
    %6073 = vmatpush1.msra.mxu0 %v5553
    %6074 = vmatprep.subr.mxu0 %v5538
    %6075 = vmatpush1.msra.mxu0 %v5537
    %6076 = vmatprep.subr.mxu0 0.0
    %6077 = vmatpush2.msra.mxu0 0.0
    %6078 = vmatprep.subr.mxu0 0.0
    %6079 = vmatpush2.msra.mxu0 0.0
    %6080 = vmatprep.subr.mxu0 0.0
    %6081 = vmatpush2.msra.mxu0 0.0
    %6082 = vmatprep.subr.mxu0 0.0
    %6083 = vmatpush2.msra.mxu0 0.0
    %6084 = vmatprep.subr.mxu0 0.0
    %6085 = vmatpush2.msra.mxu0 0.0
    %6086 = vmatprep.subr.mxu0 0.0
    %6087 = vmatpush2.msra.mxu0 0.0
    %6088 = vmatprep.subr.mxu0 0.0
    %6089 = vmatpush2.msra.mxu0 0.0
    %6090 = vmatprep.subr.mxu0 0.0
    %6091 = vmatpush2.msra.mxu0 0.0
    %6092 = vmatprep.subr.mxu0 0.0
    %6093 = vmatpush2.msra.mxu0 0.0
    %6094 = vmatprep.subr.mxu0 0.0
    %6095 = vmatpush2.msra.mxu0 0.0
    %6096 = vmatprep.subr.mxu0 0.0
    %6097 = vmatpush2.msra.mxu0 0.0
    %6098 = vmatprep.subr.mxu0 0.0
    %6099 = vmatpush2.msra.mxu0 0.0
    %6100 = vmatprep.subr.mxu0 0.0
    %6101 = vmatpush2.msra.mxu0 0.0
    %6102 = vmatprep.subr.mxu0 0.0
    %6103 = vmatpush2.msra.mxu0 0.0
    %6104 = vmatprep.subr.mxu0 0.0
    %6105 = vmatpush2.msra.mxu0 0.0
    %6106 = vmatprep.subr.mxu0 0.0
    %6107 = vmatpush2.msra.mxu0 0.0
    %6108 = vmatprep.mubr.f32.mxu0 0.0
    %6109 = vmatmul.mubr.f32.gmra.mxu0 %v5731
    %v6110 = vpop.f32.mrf.mxu0
    %v6111 = vadd.f32 %v5706, %v6110
    %v6112 = vpop.f32.mrf.mxu0
    %v6113 = vadd.f32 %v5707, %v6112
    %6114 = vmatprep.mubr.f32.mxu0 0.0
    %6115 = vmatmul.mubr.f32.gmra.mxu0 %v5734
    %v6116 = vpop.f32.mrf.mxu0
    %v6117 = vadd.f32 %v5706, %v6116
    %v6118 = vpop.f32.mrf.mxu0
    %v6119 = vadd.f32 %v5707, %v6118
    %6120 = vdwg.mxu0
    %6121 = vmatprep.subr.mxu0 0.0
    %6122 = vmatpush1.msra.mxu0 0.0
    %6123 = vmatprep.subr.mxu0 0.0
    %6124 = vmatpush1.msra.mxu0 0.0
    %6125 = vmatprep.subr.mxu0 0.0
    %6126 = vmatpush1.msra.mxu0 0.0
    %6127 = vmatprep.subr.mxu0 0.0
    %6128 = vmatpush1.msra.mxu0 0.0
    %6129 = vmatprep.subr.mxu0 0.0
    %6130 = vmatpush1.msra.mxu0 0.0
    %6131 = vmatprep.subr.mxu0 0.0
    %6132 = vmatpush1.msra.mxu0 0.0
    %6133 = vmatprep.subr.mxu0 0.0
    %6134 = vmatpush1.msra.mxu0 0.0
    %6135 = vmatprep.subr.mxu0 0.0
    %6136 = vmatpush1.msra.mxu0 0.0
    %6137 = vmatprep.subr.mxu0 0.0
    %6138 = vmatpush1.msra.mxu0 0.0
    %6139 = vmatprep.subr.mxu0 0.0
    %6140 = vmatpush1.msra.mxu0 0.0
    %6141 = vmatprep.subr.mxu0 0.0
    %6142 = vmatpush1.msra.mxu0 0.0
    %6143 = vmatprep.subr.mxu0 0.0
    %6144 = vmatpush1.msra.mxu0 0.0
    %6145 = vmatprep.subr.mxu0 %v5588
    %6146 = vmatpush1.msra.mxu0 %v5587
    %6147 = vmatprep.subr.mxu0 %v5572
    %6148 = vmatpush1.msra.mxu0 %v5571
    %6149 = vmatprep.subr.mxu0 %v5556
    %6150 = vmatpush1.msra.mxu0 %v5555
    %6151 = vmatprep.subr.mxu0 %v5540
    %6152 = vmatpush1.msra.mxu0 %v5539
    %6153 = vmatprep.subr.mxu0 0.0
    %6154 = vmatpush2.msra.mxu0 0.0
    %6155 = vmatprep.subr.mxu0 0.0
    %6156 = vmatpush2.msra.mxu0 0.0
    %6157 = vmatprep.subr.mxu0 0.0
    %6158 = vmatpush2.msra.mxu0 0.0
    %6159 = vmatprep.subr.mxu0 0.0
    %6160 = vmatpush2.msra.mxu0 0.0
    %6161 = vmatprep.subr.mxu0 0.0
    %6162 = vmatpush2.msra.mxu0 0.0
    %6163 = vmatprep.subr.mxu0 0.0
    %6164 = vmatpush2.msra.mxu0 0.0
    %6165 = vmatprep.subr.mxu0 0.0
    %6166 = vmatpush2.msra.mxu0 0.0
    %6167 = vmatprep.subr.mxu0 0.0
    %6168 = vmatpush2.msra.mxu0 0.0
    %6169 = vmatprep.subr.mxu0 0.0
    %6170 = vmatpush2.msra.mxu0 0.0
    %6171 = vmatprep.subr.mxu0 0.0
    %6172 = vmatpush2.msra.mxu0 0.0
    %6173 = vmatprep.subr.mxu0 0.0
    %6174 = vmatpush2.msra.mxu0 0.0
    %6175 = vmatprep.subr.mxu0 0.0
    %6176 = vmatpush2.msra.mxu0 0.0
    %6177 = vmatprep.subr.mxu0 0.0
    %6178 = vmatpush2.msra.mxu0 0.0
    %6179 = vmatprep.subr.mxu0 0.0
    %6180 = vmatpush2.msra.mxu0 0.0
    %6181 = vmatprep.subr.mxu0 0.0
    %6182 = vmatpush2.msra.mxu0 0.0
    %6183 = vmatprep.subr.mxu0 0.0
    %6184 = vmatpush2.msra.mxu0 0.0
    %6185 = vmatprep.mubr.f32.mxu0 0.0
    %6186 = vmatmul.mubr.f32.gmra.mxu0 %v5731
    %v6187 = vpop.f32.mrf.mxu0
    %v6188 = vadd.f32 %v5708, %v6187
    %v6189 = vpop.f32.mrf.mxu0
    %v6190 = vadd.f32 %v5709, %v6189
    %6191 = vmatprep.mubr.f32.mxu0 0.0
    %6192 = vmatmul.mubr.f32.gmra.mxu0 %v5734
    %v6193 = vpop.f32.mrf.mxu0
    %v6194 = vadd.f32 %v5708, %v6193
    %v6195 = vpop.f32.mrf.mxu0
    %v6196 = vadd.f32 %v5709, %v6195
    %6197 = vdwg.mxu0
    %6198 = vmatprep.subr.mxu0 0.0
    %6199 = vmatpush1.msra.mxu0 0.0
    %6200 = vmatprep.subr.mxu0 0.0
    %6201 = vmatpush1.msra.mxu0 0.0
    %6202 = vmatprep.subr.mxu0 0.0
    %6203 = vmatpush1.msra.mxu0 0.0
    %6204 = vmatprep.subr.mxu0 0.0
    %6205 = vmatpush1.msra.mxu0 0.0
    %6206 = vmatprep.subr.mxu0 0.0
    %6207 = vmatpush1.msra.mxu0 0.0
    %6208 = vmatprep.subr.mxu0 0.0
    %6209 = vmatpush1.msra.mxu0 0.0
    %6210 = vmatprep.subr.mxu0 0.0
    %6211 = vmatpush1.msra.mxu0 0.0
    %6212 = vmatprep.subr.mxu0 0.0
    %6213 = vmatpush1.msra.mxu0 0.0
    %6214 = vmatprep.subr.mxu0 0.0
    %6215 = vmatpush1.msra.mxu0 0.0
    %6216 = vmatprep.subr.mxu0 0.0
    %6217 = vmatpush1.msra.mxu0 0.0
    %6218 = vmatprep.subr.mxu0 0.0
    %6219 = vmatpush1.msra.mxu0 0.0
    %6220 = vmatprep.subr.mxu0 0.0
    %6221 = vmatpush1.msra.mxu0 0.0
    %6222 = vmatprep.subr.mxu0 %v5590
    %6223 = vmatpush1.msra.mxu0 %v5589
    %6224 = vmatprep.subr.mxu0 %v5574
    %6225 = vmatpush1.msra.mxu0 %v5573
    %6226 = vmatprep.subr.mxu0 %v5558
    %6227 = vmatpush1.msra.mxu0 %v5557
    %6228 = vmatprep.subr.mxu0 %v5542
    %6229 = vmatpush1.msra.mxu0 %v5541
    %6230 = vmatprep.subr.mxu0 0.0
    %6231 = vmatpush2.msra.mxu0 0.0
    %6232 = vmatprep.subr.mxu0 0.0
    %6233 = vmatpush2.msra.mxu0 0.0
    %6234 = vmatprep.subr.mxu0 0.0
    %6235 = vmatpush2.msra.mxu0 0.0
    %6236 = vmatprep.subr.mxu0 0.0
    %6237 = vmatpush2.msra.mxu0 0.0
    %6238 = vmatprep.subr.mxu0 0.0
    %6239 = vmatpush2.msra.mxu0 0.0
    %6240 = vmatprep.subr.mxu0 0.0
    %6241 = vmatpush2.msra.mxu0 0.0
    %6242 = vmatprep.subr.mxu0 0.0
    %6243 = vmatpush2.msra.mxu0 0.0
    %6244 = vmatprep.subr.mxu0 0.0
    %6245 = vmatpush2.msra.mxu0 0.0
    %6246 = vmatprep.subr.mxu0 0.0
    %6247 = vmatpush2.msra.mxu0 0.0
    %6248 = vmatprep.subr.mxu0 0.0
    %6249 = vmatpush2.msra.mxu0 0.0
    %6250 = vmatprep.subr.mxu0 0.0
    %6251 = vmatpush2.msra.mxu0 0.0
    %6252 = vmatprep.subr.mxu0 0.0
    %6253 = vmatpush2.msra.mxu0 0.0
    %6254 = vmatprep.subr.mxu0 0.0
    %6255 = vmatpush2.msra.mxu0 0.0
    %6256 = vmatprep.subr.mxu0 0.0
    %6257 = vmatpush2.msra.mxu0 0.0
    %6258 = vmatprep.subr.mxu0 0.0
    %6259 = vmatpush2.msra.mxu0 0.0
    %6260 = vmatprep.subr.mxu0 0.0
    %6261 = vmatpush2.msra.mxu0 0.0
    %6262 = vmatprep.mubr.f32.mxu0 0.0
    %6263 = vmatmul.mubr.f32.gmra.mxu0 %v5731
    %v6264 = vpop.f32.mrf.mxu0
    %v6265 = vadd.f32 %v5710, %v6264
    %v6266 = vpop.f32.mrf.mxu0
    %v6267 = vadd.f32 %v5711, %v6266
    %6268 = vmatprep.mubr.f32.mxu0 0.0
    %6269 = vmatmul.mubr.f32.gmra.mxu0 %v5734
    %v6270 = vpop.f32.mrf.mxu0
    %v6271 = vadd.f32 %v5710, %v6270
    %v6272 = vpop.f32.mrf.mxu0
    %v6273 = vadd.f32 %v5711, %v6272
    %6274 = vdwg.mxu0
    %6275 = vmatprep.subr.mxu0 0.0
    %6276 = vmatpush1.msra.mxu0 0.0
    %6277 = vmatprep.subr.mxu0 0.0
    %6278 = vmatpush1.msra.mxu0 0.0
    %6279 = vmatprep.subr.mxu0 0.0
    %6280 = vmatpush1.msra.mxu0 0.0
    %6281 = vmatprep.subr.mxu0 0.0
    %6282 = vmatpush1.msra.mxu0 0.0
    %6283 = vmatprep.subr.mxu0 0.0
    %6284 = vmatpush1.msra.mxu0 0.0
    %6285 = vmatprep.subr.mxu0 0.0
    %6286 = vmatpush1.msra.mxu0 0.0
    %6287 = vmatprep.subr.mxu0 0.0
    %6288 = vmatpush1.msra.mxu0 0.0
    %6289 = vmatprep.subr.mxu0 0.0
    %6290 = vmatpush1.msra.mxu0 0.0
    %6291 = vmatprep.subr.mxu0 0.0
    %6292 = vmatpush1.msra.mxu0 0.0
    %6293 = vmatprep.subr.mxu0 0.0
    %6294 = vmatpush1.msra.mxu0 0.0
    %6295 = vmatprep.subr.mxu0 0.0
    %6296 = vmatpush1.msra.mxu0 0.0
    %6297 = vmatprep.subr.mxu0 0.0
    %6298 = vmatpush1.msra.mxu0 0.0
    %6299 = vmatprep.subr.mxu0 %v5592
    %6300 = vmatpush1.msra.mxu0 %v5591
    %6301 = vmatprep.subr.mxu0 %v5576
    %6302 = vmatpush1.msra.mxu0 %v5575
    %6303 = vmatprep.subr.mxu0 %v5560
    %6304 = vmatpush1.msra.mxu0 %v5559
    %6305 = vmatprep.subr.mxu0 %v5544
    %6306 = vmatpush1.msra.mxu0 %v5543
    %6307 = vmatprep.subr.mxu0 0.0
    %6308 = vmatpush2.msra.mxu0 0.0
    %6309 = vmatprep.subr.mxu0 0.0
    %6310 = vmatpush2.msra.mxu0 0.0
    %6311 = vmatprep.subr.mxu0 0.0
    %6312 = vmatpush2.msra.mxu0 0.0
    %6313 = vmatprep.subr.mxu0 0.0
    %6314 = vmatpush2.msra.mxu0 0.0
    %6315 = vmatprep.subr.mxu0 0.0
    %6316 = vmatpush2.msra.mxu0 0.0
    %6317 = vmatprep.subr.mxu0 0.0
    %6318 = vmatpush2.msra.mxu0 0.0
    %6319 = vmatprep.subr.mxu0 0.0
    %6320 = vmatpush2.msra.mxu0 0.0
    %6321 = vmatprep.subr.mxu0 0.0
    %6322 = vmatpush2.msra.mxu0 0.0
    %6323 = vmatprep.subr.mxu0 0.0
    %6324 = vmatpush2.msra.mxu0 0.0
    %6325 = vmatprep.subr.mxu0 0.0
    %6326 = vmatpush2.msra.mxu0 0.0
    %6327 = vmatprep.subr.mxu0 0.0
    %6328 = vmatpush2.msra.mxu0 0.0
    %6329 = vmatprep.subr.mxu0 0.0
    %6330 = vmatpush2.msra.mxu0 0.0
    %6331 = vmatprep.subr.mxu0 0.0
    %6332 = vmatpush2.msra.mxu0 0.0
    %6333 = vmatprep.subr.mxu0 0.0
    %6334 = vmatpush2.msra.mxu0 0.0
    %6335 = vmatprep.subr.mxu0 0.0
    %6336 = vmatpush2.msra.mxu0 0.0
    %6337 = vmatprep.subr.mxu0 0.0
    %6338 = vmatpush2.msra.mxu0 0.0
    %6339 = vmatprep.mubr.f32.mxu0 0.0
    %6340 = vmatmul.mubr.f32.gmra.mxu0 %v5731
    %v6341 = vpop.f32.mrf.mxu0
    %v6342 = vadd.f32 %v5712, %v6341
    %v6343 = vpop.f32.mrf.mxu0
    %v6344 = vadd.f32 %v5713, %v6343
    %6345 = vmatprep.mubr.f32.mxu0 0.0
    %6346 = vmatmul.mubr.f32.gmra.mxu0 %v5734
    %v6347 = vpop.f32.mrf.mxu0
    %v6348 = vadd.f32 %v5712, %v6347
    %v6349 = vpop.f32.mrf.mxu0
    %v6350 = vadd.f32 %v5713, %v6349
    %6351 = vdwg.mxu0
    %v6352 = vmul.f32 %v5803, 0.5
    %v6353 = vmul.f32 %v5805, 0.5
    %v6354 = vmul.f32 %v5880, 0.5
    %v6355 = vmul.f32 %v5882, 0.5
    %v6356 = vmul.f32 %v5957, 0.5
    %v6357 = vmul.f32 %v5959, 0.5
    %v6358 = vmul.f32 %v6034, 0.5
    %v6359 = vmul.f32 %v6036, 0.5
    %v6360 = vmul.f32 %v6111, 0.5
    %v6361 = vmul.f32 %v6113, 0.5
    %v6362 = vmul.f32 %v6188, 0.5
    %v6363 = vmul.f32 %v6190, 0.5
    %v6364 = vmul.f32 %v6265, 0.5
    %v6365 = vmul.f32 %v6267, 0.5
    %v6366 = vmul.f32 %v6342, 0.5
    %v6367 = vmul.f32 %v6344, 0.5
    %v6368 = vmul.f32 %v5809, 0.5
    %v6369 = vmul.f32 %v5811, 0.5
    %v6370 = vmul.f32 %v5886, 0.5
    %v6371 = vmul.f32 %v5888, 0.5
    %v6372 = vmul.f32 %v5963, 0.5
    %v6373 = vmul.f32 %v5965, 0.5
    %v6374 = vmul.f32 %v6040, 0.5
    %v6375 = vmul.f32 %v6042, 0.5
    %v6376 = vmul.f32 %v6117, 0.5
    %v6377 = vmul.f32 %v6119, 0.5
    %v6378 = vmul.f32 %v6194, 0.5
    %v6379 = vmul.f32 %v6196, 0.5
    %v6380 = vmul.f32 %v6271, 0.5
    %v6381 = vmul.f32 %v6273, 0.5
    %v6382 = vmul.f32 %v6348, 0.5
    %v6383 = vmul.f32 %v6350, 0.5
    %v6384 = vmul.f32 %v5803, 0.70710677
    %v6385 = vmul.f32 %v5805, 0.70710677
    %v6386 = vmul.f32 %v5880, 0.70710677
    %v6387 = vmul.f32 %v5882, 0.70710677
    %v6388 = vmul.f32 %v5957, 0.70710677
    %v6389 = vmul.f32 %v5959, 0.70710677
    %v6390 = vmul.f32 %v6034, 0.70710677
    %v6391 = vmul.f32 %v6036, 0.70710677
    %v6392 = vmul.f32 %v6111, 0.70710677
    %v6393 = vmul.f32 %v6113, 0.70710677
    %v6394 = vmul.f32 %v6188, 0.70710677
    %v6395 = vmul.f32 %v6190, 0.70710677
    %v6396 = vmul.f32 %v6265, 0.70710677
    %v6397 = vmul.f32 %v6267, 0.70710677
    %v6398 = vmul.f32 %v6342, 0.70710677
    %v6399 = vmul.f32 %v6344, 0.70710677
    %v6400 = vmul.f32 %v5809, 0.70710677
    %v6401 = vmul.f32 %v5811, 0.70710677
    %v6402 = vmul.f32 %v5886, 0.70710677
    %v6403 = vmul.f32 %v5888, 0.70710677
    %v6404 = vmul.f32 %v5963, 0.70710677
    %v6405 = vmul.f32 %v5965, 0.70710677
    %v6406 = vmul.f32 %v6040, 0.70710677
    %v6407 = vmul.f32 %v6042, 0.70710677
    %v6408 = vmul.f32 %v6117, 0.70710677
    %v6409 = vmul.f32 %v6119, 0.70710677
    %v6410 = vmul.f32 %v6194, 0.70710677
    %v6411 = vmul.f32 %v6196, 0.70710677
    %v6412 = vmul.f32 %v6271, 0.70710677
    %v6413 = vmul.f32 %v6273, 0.70710677
    %v6414 = vmul.f32 %v6348, 0.70710677
    %v6415 = vmul.f32 %v6350, 0.70710677
    %v6416 = verf.f32.pop %v6384
    %v6417 = verf.f32.pop %v6385
    %v6418 = verf.f32.pop %v6386
    %v6419 = verf.f32.pop %v6387
    %v6420 = verf.f32.pop %v6388
    %v6421 = verf.f32.pop %v6389
    %v6422 = verf.f32.pop %v6390
    %v6423 = verf.f32.pop %v6391
    %v6424 = verf.f32.pop %v6392
    %v6425 = verf.f32.pop %v6393
    %v6426 = verf.f32.pop %v6394
    %v6427 = verf.f32.pop %v6395
    %v6428 = verf.f32.pop %v6396
    %v6429 = verf.f32.pop %v6397
    %v6430 = verf.f32.pop %v6398
    %v6431 = verf.f32.pop %v6399
    %v6432 = verf.f32.pop %v6400
    %v6433 = verf.f32.pop %v6401
    %v6434 = verf.f32.pop %v6402
    %v6435 = verf.f32.pop %v6403
    %v6436 = verf.f32.pop %v6404
    %v6437 = verf.f32.pop %v6405
    %v6438 = verf.f32.pop %v6406
    %v6439 = verf.f32.pop %v6407
    %v6440 = verf.f32.pop %v6408
    %v6441 = verf.f32.pop %v6409
    %v6442 = verf.f32.pop %v6410
    %v6443 = verf.f32.pop %v6411
    %v6444 = verf.f32.pop %v6412
    %v6445 = verf.f32.pop %v6413
    %v6446 = verf.f32.pop %v6414
    %v6447 = verf.f32.pop %v6415
    %v6448 = vadd.f32 %v6416, 1.0
    %v6449 = vadd.f32 %v6417, 1.0
    %v6450 = vadd.f32 %v6418, 1.0
    %v6451 = vadd.f32 %v6419, 1.0
    %v6452 = vadd.f32 %v6420, 1.0
    %v6453 = vadd.f32 %v6421, 1.0
    %v6454 = vadd.f32 %v6422, 1.0
    %v6455 = vadd.f32 %v6423, 1.0
    %v6456 = vadd.f32 %v6424, 1.0
    %v6457 = vadd.f32 %v6425, 1.0
    %v6458 = vadd.f32 %v6426, 1.0
    %v6459 = vadd.f32 %v6427, 1.0
    %v6460 = vadd.f32 %v6428, 1.0
    %v6461 = vadd.f32 %v6429, 1.0
    %v6462 = vadd.f32 %v6430, 1.0
    %v6463 = vadd.f32 %v6431, 1.0
    %v6464 = vadd.f32 %v6432, 1.0
    %v6465 = vadd.f32 %v6433, 1.0
    %v6466 = vadd.f32 %v6434, 1.0
    %v6467 = vadd.f32 %v6435, 1.0
    %v6468 = vadd.f32 %v6436, 1.0
    %v6469 = vadd.f32 %v6437, 1.0
    %v6470 = vadd.f32 %v6438, 1.0
    %v6471 = vadd.f32 %v6439, 1.0
    %v6472 = vadd.f32 %v6440, 1.0
    %v6473 = vadd.f32 %v6441, 1.0
    %v6474 = vadd.f32 %v6442, 1.0
    %v6475 = vadd.f32 %v6443, 1.0
    %v6476 = vadd.f32 %v6444, 1.0
    %v6477 = vadd.f32 %v6445, 1.0
    %v6478 = vadd.f32 %v6446, 1.0
    %v6479 = vadd.f32 %v6447, 1.0
    %v6480 = vmul.f32 %v6352, %v6448
    %v6481 = vmul.f32 %v6353, %v6449
    %v6482 = vmul.f32 %v6354, %v6450
    %v6483 = vmul.f32 %v6355, %v6451
    %v6484 = vmul.f32 %v6356, %v6452
    %v6485 = vmul.f32 %v6357, %v6453
    %v6486 = vmul.f32 %v6358, %v6454
    %v6487 = vmul.f32 %v6359, %v6455
    %v6488 = vmul.f32 %v6360, %v6456
    %v6489 = vmul.f32 %v6361, %v6457
    %v6490 = vmul.f32 %v6362, %v6458
    %v6491 = vmul.f32 %v6363, %v6459
    %v6492 = vmul.f32 %v6364, %v6460
    %v6493 = vmul.f32 %v6365, %v6461
    %v6494 = vmul.f32 %v6366, %v6462
    %v6495 = vmul.f32 %v6367, %v6463
    %v6496 = vmul.f32 %v6368, %v6464
    %v6497 = vmul.f32 %v6369, %v6465
    %v6498 = vmul.f32 %v6370, %v6466
    %v6499 = vmul.f32 %v6371, %v6467
    %v6500 = vmul.f32 %v6372, %v6468
    %v6501 = vmul.f32 %v6373, %v6469
    %v6502 = vmul.f32 %v6374, %v6470
    %v6503 = vmul.f32 %v6375, %v6471
    %v6504 = vmul.f32 %v6376, %v6472
    %v6505 = vmul.f32 %v6377, %v6473
    %v6506 = vmul.f32 %v6378, %v6474
    %v6507 = vmul.f32 %v6379, %v6475
    %v6508 = vmul.f32 %v6380, %v6476
    %v6509 = vmul.f32 %v6381, %v6477
    %v6510 = vmul.f32 %v6382, %v6478
    %v6511 = vmul.f32 %v6383, %v6479
    %v6512 = vld [vmem:[%s12] sm:$0xff]
    %v6513 = vld [vmem:[%s12 + $0x8] sm:$0xff]
    %v6514 = vld [vmem:[%s12 + $0x10] sm:$0xff]
    %v6515 = vld [vmem:[%s12 + $0x18] sm:$0xff]
    %v6516 = vld [vmem:[%s12 + $0x20] sm:$0xff]
    %v6517 = vld [vmem:[%s12 + $0x28] sm:$0xff]
    %v6518 = vld [vmem:[%s12 + $0x30] sm:$0xff]
    %v6519 = vld [vmem:[%s12 + $0x38] sm:$0xff]
    %v6520 = vld [vmem:[%s12 + $0x40] sm:$0xff]
    %v6521 = vld [vmem:[%s12 + $0x48] sm:$0xff]
    %v6522 = vld [vmem:[%s12 + $0x50] sm:$0xff]
    %v6523 = vld [vmem:[%s12 + $0x58] sm:$0xff]
    %v6524 = vld [vmem:[%s12 + $0x60] sm:$0xff]
    %v6525 = vld [vmem:[%s12 + $0x68] sm:$0xff]
    %v6526 = vld [vmem:[%s12 + $0x70] sm:$0xff]
    %v6527 = vld [vmem:[%s12 + $0x78] sm:$0xff]
    %v6528 = vld [vmem:[%s12 + $0x80] sm:$0xff]
    %v6529 = vld [vmem:[%s12 + $0x88] sm:$0xff]
    %v6530 = vld [vmem:[%s12 + $0x90] sm:$0xff]
    %v6531 = vld [vmem:[%s12 + $0x98] sm:$0xff]
    %v6532 = vld [vmem:[%s12 + $0xa0] sm:$0xff]
    %v6533 = vld [vmem:[%s12 + $0xa8] sm:$0xff]
    %v6534 = vld [vmem:[%s12 + $0xb0] sm:$0xff]
    %v6535 = vld [vmem:[%s12 + $0xb8] sm:$0xff]
    %v6536 = vld [vmem:[%s12 + $0xc0] sm:$0xff]
    %v6537 = vld [vmem:[%s12 + $0xc8] sm:$0xff]
    %v6538 = vld [vmem:[%s12 + $0xd0] sm:$0xff]
    %v6539 = vld [vmem:[%s12 + $0xd8] sm:$0xff]
    %v6540 = vld [vmem:[%s12 + $0xe0] sm:$0xff]
    %v6541 = vld [vmem:[%s12 + $0xe8] sm:$0xff]
    %v6542 = vld [vmem:[%s12 + $0xf0] sm:$0xff]
    %v6543 = vld [vmem:[%s12 + $0xf8] sm:$0xff]
    %v6544 = vld [vmem:[%s12 + $0x100] sm:$0xff]
    %v6545 = vld [vmem:[%s12 + $0x108] sm:$0xff]
    %v6546 = vld [vmem:[%s12 + $0x110] sm:$0xff]
    %v6547 = vld [vmem:[%s12 + $0x118] sm:$0xff]
    %v6548 = vld [vmem:[%s12 + $0x120] sm:$0xff]
    %v6549 = vld [vmem:[%s12 + $0x128] sm:$0xff]
    %v6550 = vld [vmem:[%s12 + $0x130] sm:$0xff]
    %v6551 = vld [vmem:[%s12 + $0x138] sm:$0xff]
    %v6552 = vld [vmem:[%s12 + $0x140] sm:$0xff]
    %v6553 = vld [vmem:[%s12 + $0x148] sm:$0xff]
    %v6554 = vld [vmem:[%s12 + $0x150] sm:$0xff]
    %v6555 = vld [vmem:[%s12 + $0x158] sm:$0xff]
    %v6556 = vld [vmem:[%s12 + $0x160] sm:$0xff]
    %v6557 = vld [vmem:[%s12 + $0x168] sm:$0xff]
    %v6558 = vld [vmem:[%s12 + $0x170] sm:$0xff]
    %v6559 = vld [vmem:[%s12 + $0x178] sm:$0xff]
    %v6560 = vld [vmem:[%s12 + $0x180] sm:$0xff]
    %v6561 = vld [vmem:[%s12 + $0x188] sm:$0xff]
    %v6562 = vld [vmem:[%s12 + $0x190] sm:$0xff]
    %v6563 = vld [vmem:[%s12 + $0x198] sm:$0xff]
    %v6564 = vld [vmem:[%s12 + $0x1a0] sm:$0xff]
    %v6565 = vld [vmem:[%s12 + $0x1a8] sm:$0xff]
    %v6566 = vld [vmem:[%s12 + $0x1b0] sm:$0xff]
    %v6567 = vld [vmem:[%s12 + $0x1b8] sm:$0xff]
    %v6568 = vld [vmem:[%s12 + $0x1c0] sm:$0xff]
    %v6569 = vld [vmem:[%s12 + $0x1c8] sm:$0xff]
    %v6570 = vld [vmem:[%s12 + $0x1d0] sm:$0xff]
    %v6571 = vld [vmem:[%s12 + $0x1d8] sm:$0xff]
    %v6572 = vld [vmem:[%s12 + $0x1e0] sm:$0xff]
    %v6573 = vld [vmem:[%s12 + $0x1e8] sm:$0xff]
    %v6574 = vld [vmem:[%s12 + $0x1f0] sm:$0xff]
    %v6575 = vld [vmem:[%s12 + $0x1f8] sm:$0xff]
    %v6576 = vld [vmem:[%s12 + $0x200] sm:$0xff]
    %v6577 = vld [vmem:[%s12 + $0x208] sm:$0xff]
    %v6578 = vld [vmem:[%s12 + $0x210] sm:$0xff]
    %v6579 = vld [vmem:[%s12 + $0x218] sm:$0xff]
    %v6580 = vld [vmem:[%s12 + $0x220] sm:$0xff]
    %v6581 = vld [vmem:[%s12 + $0x228] sm:$0xff]
    %v6582 = vld [vmem:[%s12 + $0x230] sm:$0xff]
    %v6583 = vld [vmem:[%s12 + $0x238] sm:$0xff]
    %v6584 = vld [vmem:[%s12 + $0x240] sm:$0xff]
    %v6585 = vld [vmem:[%s12 + $0x248] sm:$0xff]
    %v6586 = vld [vmem:[%s12 + $0x250] sm:$0xff]
    %v6587 = vld [vmem:[%s12 + $0x258] sm:$0xff]
    %v6588 = vld [vmem:[%s12 + $0x260] sm:$0xff]
    %v6589 = vld [vmem:[%s12 + $0x268] sm:$0xff]
    %v6590 = vld [vmem:[%s12 + $0x270] sm:$0xff]
    %v6591 = vld [vmem:[%s12 + $0x278] sm:$0xff]
    %v6592 = vld [vmem:[%s12 + $0x280] sm:$0xff]
    %v6593 = vld [vmem:[%s12 + $0x288] sm:$0xff]
    %v6594 = vld [vmem:[%s12 + $0x290] sm:$0xff]
    %v6595 = vld [vmem:[%s12 + $0x298] sm:$0xff]
    %v6596 = vld [vmem:[%s12 + $0x2a0] sm:$0xff]
    %v6597 = vld [vmem:[%s12 + $0x2a8] sm:$0xff]
    %v6598 = vld [vmem:[%s12 + $0x2b0] sm:$0xff]
    %v6599 = vld [vmem:[%s12 + $0x2b8] sm:$0xff]
    %v6600 = vld [vmem:[%s12 + $0x2c0] sm:$0xff]
    %v6601 = vld [vmem:[%s12 + $0x2c8] sm:$0xff]
    %v6602 = vld [vmem:[%s12 + $0x2d0] sm:$0xff]
    %v6603 = vld [vmem:[%s12 + $0x2d8] sm:$0xff]
    %v6604 = vld [vmem:[%s12 + $0x2e0] sm:$0xff]
    %v6605 = vld [vmem:[%s12 + $0x2e8] sm:$0xff]
    %v6606 = vld [vmem:[%s12 + $0x2f0] sm:$0xff]
    %v6607 = vld [vmem:[%s12 + $0x2f8] sm:$0xff]
    %v6608 = vld [vmem:[%s12 + $0x300] sm:$0xff]
    %v6609 = vld [vmem:[%s12 + $0x308] sm:$0xff]
    %v6610 = vld [vmem:[%s12 + $0x310] sm:$0xff]
    %v6611 = vld [vmem:[%s12 + $0x318] sm:$0xff]
    %v6612 = vld [vmem:[%s12 + $0x320] sm:$0xff]
    %v6613 = vld [vmem:[%s12 + $0x328] sm:$0xff]
    %v6614 = vld [vmem:[%s12 + $0x330] sm:$0xff]
    %v6615 = vld [vmem:[%s12 + $0x338] sm:$0xff]
    %v6616 = vld [vmem:[%s12 + $0x340] sm:$0xff]
    %v6617 = vld [vmem:[%s12 + $0x348] sm:$0xff]
    %v6618 = vld [vmem:[%s12 + $0x350] sm:$0xff]
    %v6619 = vld [vmem:[%s12 + $0x358] sm:$0xff]
    %v6620 = vld [vmem:[%s12 + $0x360] sm:$0xff]
    %v6621 = vld [vmem:[%s12 + $0x368] sm:$0xff]
    %v6622 = vld [vmem:[%s12 + $0x370] sm:$0xff]
    %v6623 = vld [vmem:[%s12 + $0x378] sm:$0xff]
    %v6624 = vld [vmem:[%s12 + $0x380] sm:$0xff]
    %v6625 = vld [vmem:[%s12 + $0x388] sm:$0xff]
    %v6626 = vld [vmem:[%s12 + $0x390] sm:$0xff]
    %v6627 = vld [vmem:[%s12 + $0x398] sm:$0xff]
    %v6628 = vld [vmem:[%s12 + $0x3a0] sm:$0xff]
    %v6629 = vld [vmem:[%s12 + $0x3a8] sm:$0xff]
    %v6630 = vld [vmem:[%s12 + $0x3b0] sm:$0xff]
    %v6631 = vld [vmem:[%s12 + $0x3b8] sm:$0xff]
    %v6632 = vld [vmem:[%s12 + $0x3c0] sm:$0xff]
    %v6633 = vld [vmem:[%s12 + $0x3c8] sm:$0xff]
    %v6634 = vld [vmem:[%s12 + $0x3d0] sm:$0xff]
    %v6635 = vld [vmem:[%s12 + $0x3d8] sm:$0xff]
    %v6636 = vld [vmem:[%s12 + $0x3e0] sm:$0xff]
    %v6637 = vld [vmem:[%s12 + $0x3e8] sm:$0xff]
    %v6638 = vld [vmem:[%s12 + $0x3f0] sm:$0xff]
    %v6639 = vld [vmem:[%s12 + $0x3f8] sm:$0xff]
    %v6640 = vld [vmem:[%s12 + $0x400] sm:$0xff]
    %v6641 = vld [vmem:[%s12 + $0x408] sm:$0xff]
    %v6642 = vld [vmem:[%s12 + $0x410] sm:$0xff]
    %v6643 = vld [vmem:[%s12 + $0x418] sm:$0xff]
    %v6644 = vld [vmem:[%s12 + $0x420] sm:$0xff]
    %v6645 = vld [vmem:[%s12 + $0x428] sm:$0xff]
    %v6646 = vld [vmem:[%s12 + $0x430] sm:$0xff]
    %v6647 = vld [vmem:[%s12 + $0x438] sm:$0xff]
    %v6648 = vld [vmem:[%s12 + $0x440] sm:$0xff]
    %v6649 = vld [vmem:[%s12 + $0x448] sm:$0xff]
    %v6650 = vld [vmem:[%s12 + $0x450] sm:$0xff]
    %v6651 = vld [vmem:[%s12 + $0x458] sm:$0xff]
    %v6652 = vld [vmem:[%s12 + $0x460] sm:$0xff]
    %v6653 = vld [vmem:[%s12 + $0x468] sm:$0xff]
    %v6654 = vld [vmem:[%s12 + $0x470] sm:$0xff]
    %v6655 = vld [vmem:[%s12 + $0x478] sm:$0xff]
    %v6656 = vld [vmem:[%s12 + $0x480] sm:$0xff]
    %v6657 = vld [vmem:[%s12 + $0x488] sm:$0xff]
    %v6658 = vld [vmem:[%s12 + $0x490] sm:$0xff]
    %v6659 = vld [vmem:[%s12 + $0x498] sm:$0xff]
    %v6660 = vld [vmem:[%s12 + $0x4a0] sm:$0xff]
    %v6661 = vld [vmem:[%s12 + $0x4a8] sm:$0xff]
    %v6662 = vld [vmem:[%s12 + $0x4b0] sm:$0xff]
    %v6663 = vld [vmem:[%s12 + $0x4b8] sm:$0xff]
    %v6664 = vld [vmem:[%s12 + $0x4c0] sm:$0xff]
    %v6665 = vld [vmem:[%s12 + $0x4c8] sm:$0xff]
    %v6666 = vld [vmem:[%s12 + $0x4d0] sm:$0xff]
    %v6667 = vld [vmem:[%s12 + $0x4d8] sm:$0xff]
    %v6668 = vld [vmem:[%s12 + $0x4e0] sm:$0xff]
    %v6669 = vld [vmem:[%s12 + $0x4e8] sm:$0xff]
    %v6670 = vld [vmem:[%s12 + $0x4f0] sm:$0xff]
    %v6671 = vld [vmem:[%s12 + $0x4f8] sm:$0xff]
    %v6672 = vld [vmem:[%s12 + $0x500] sm:$0xff]
    %v6673 = vld [vmem:[%s12 + $0x508] sm:$0xff]
    %v6674 = vld [vmem:[%s12 + $0x510] sm:$0xff]
    %v6675 = vld [vmem:[%s12 + $0x518] sm:$0xff]
    %v6676 = vld [vmem:[%s12 + $0x520] sm:$0xff]
    %v6677 = vld [vmem:[%s12 + $0x528] sm:$0xff]
    %v6678 = vld [vmem:[%s12 + $0x530] sm:$0xff]
    %v6679 = vld [vmem:[%s12 + $0x538] sm:$0xff]
    %v6680 = vld [vmem:[%s12 + $0x540] sm:$0xff]
    %v6681 = vld [vmem:[%s12 + $0x548] sm:$0xff]
    %v6682 = vld [vmem:[%s12 + $0x550] sm:$0xff]
    %v6683 = vld [vmem:[%s12 + $0x558] sm:$0xff]
    %v6684 = vld [vmem:[%s12 + $0x560] sm:$0xff]
    %v6685 = vld [vmem:[%s12 + $0x568] sm:$0xff]
    %v6686 = vld [vmem:[%s12 + $0x570] sm:$0xff]
    %v6687 = vld [vmem:[%s12 + $0x578] sm:$0xff]
    %v6688 = vld [vmem:[%s12 + $0x580] sm:$0xff]
    %v6689 = vld [vmem:[%s12 + $0x588] sm:$0xff]
    %v6690 = vld [vmem:[%s12 + $0x590] sm:$0xff]
    %v6691 = vld [vmem:[%s12 + $0x598] sm:$0xff]
    %v6692 = vld [vmem:[%s12 + $0x5a0] sm:$0xff]
    %v6693 = vld [vmem:[%s12 + $0x5a8] sm:$0xff]
    %v6694 = vld [vmem:[%s12 + $0x5b0] sm:$0xff]
    %v6695 = vld [vmem:[%s12 + $0x5b8] sm:$0xff]
    %v6696 = vld [vmem:[%s12 + $0x5c0] sm:$0xff]
    %v6697 = vld [vmem:[%s12 + $0x5c8] sm:$0xff]
    %v6698 = vld [vmem:[%s12 + $0x5d0] sm:$0xff]
    %v6699 = vld [vmem:[%s12 + $0x5d8] sm:$0xff]
    %v6700 = vld [vmem:[%s12 + $0x5e0] sm:$0xff]
    %v6701 = vld [vmem:[%s12 + $0x5e8] sm:$0xff]
    %v6702 = vld [vmem:[%s12 + $0x5f0] sm:$0xff]
    %v6703 = vld [vmem:[%s12 + $0x5f8] sm:$0xff]
    %v6704 = vld [vmem:[%s12 + $0x600] sm:$0xff]
    %v6705 = vld [vmem:[%s12 + $0x608] sm:$0xff]
    %v6706 = vld [vmem:[%s12 + $0x610] sm:$0xff]
    %v6707 = vld [vmem:[%s12 + $0x618] sm:$0xff]
    %v6708 = vld [vmem:[%s12 + $0x620] sm:$0xff]
    %v6709 = vld [vmem:[%s12 + $0x628] sm:$0xff]
    %v6710 = vld [vmem:[%s12 + $0x630] sm:$0xff]
    %v6711 = vld [vmem:[%s12 + $0x638] sm:$0xff]
    %v6712 = vld [vmem:[%s12 + $0x640] sm:$0xff]
    %v6713 = vld [vmem:[%s12 + $0x648] sm:$0xff]
    %v6714 = vld [vmem:[%s12 + $0x650] sm:$0xff]
    %v6715 = vld [vmem:[%s12 + $0x658] sm:$0xff]
    %v6716 = vld [vmem:[%s12 + $0x660] sm:$0xff]
    %v6717 = vld [vmem:[%s12 + $0x668] sm:$0xff]
    %v6718 = vld [vmem:[%s12 + $0x670] sm:$0xff]
    %v6719 = vld [vmem:[%s12 + $0x678] sm:$0xff]
    %v6720 = vld [vmem:[%s12 + $0x680] sm:$0xff]
    %v6721 = vld [vmem:[%s12 + $0x688] sm:$0xff]
    %v6722 = vld [vmem:[%s12 + $0x690] sm:$0xff]
    %v6723 = vld [vmem:[%s12 + $0x698] sm:$0xff]
    %v6724 = vld [vmem:[%s12 + $0x6a0] sm:$0xff]
    %v6725 = vld [vmem:[%s12 + $0x6a8] sm:$0xff]
    %v6726 = vld [vmem:[%s12 + $0x6b0] sm:$0xff]
    %v6727 = vld [vmem:[%s12 + $0x6b8] sm:$0xff]
    %v6728 = vld [vmem:[%s12 + $0x6c0] sm:$0xff]
    %v6729 = vld [vmem:[%s12 + $0x6c8] sm:$0xff]
    %v6730 = vld [vmem:[%s12 + $0x6d0] sm:$0xff]
    %v6731 = vld [vmem:[%s12 + $0x6d8] sm:$0xff]
    %v6732 = vld [vmem:[%s12 + $0x6e0] sm:$0xff]
    %v6733 = vld [vmem:[%s12 + $0x6e8] sm:$0xff]
    %v6734 = vld [vmem:[%s12 + $0x6f0] sm:$0xff]
    %v6735 = vld [vmem:[%s12 + $0x6f8] sm:$0xff]
    %v6736 = vld [vmem:[%s12 + $0x700] sm:$0xff]
    %v6737 = vld [vmem:[%s12 + $0x708] sm:$0xff]
    %v6738 = vld [vmem:[%s12 + $0x710] sm:$0xff]
    %v6739 = vld [vmem:[%s12 + $0x718] sm:$0xff]
    %v6740 = vld [vmem:[%s12 + $0x720] sm:$0xff]
    %v6741 = vld [vmem:[%s12 + $0x728] sm:$0xff]
    %v6742 = vld [vmem:[%s12 + $0x730] sm:$0xff]
    %v6743 = vld [vmem:[%s12 + $0x738] sm:$0xff]
    %v6744 = vld [vmem:[%s12 + $0x740] sm:$0xff]
    %v6745 = vld [vmem:[%s12 + $0x748] sm:$0xff]
    %v6746 = vld [vmem:[%s12 + $0x750] sm:$0xff]
    %v6747 = vld [vmem:[%s12 + $0x758] sm:$0xff]
    %v6748 = vld [vmem:[%s12 + $0x760] sm:$0xff]
    %v6749 = vld [vmem:[%s12 + $0x768] sm:$0xff]
    %v6750 = vld [vmem:[%s12 + $0x770] sm:$0xff]
    %v6751 = vld [vmem:[%s12 + $0x778] sm:$0xff]
    %v6752 = vld [vmem:[%s12 + $0x780] sm:$0xff]
    %v6753 = vld [vmem:[%s12 + $0x788] sm:$0xff]
    %v6754 = vld [vmem:[%s12 + $0x790] sm:$0xff]
    %v6755 = vld [vmem:[%s12 + $0x798] sm:$0xff]
    %v6756 = vld [vmem:[%s12 + $0x7a0] sm:$0xff]
    %v6757 = vld [vmem:[%s12 + $0x7a8] sm:$0xff]
    %v6758 = vld [vmem:[%s12 + $0x7b0] sm:$0xff]
    %v6759 = vld [vmem:[%s12 + $0x7b8] sm:$0xff]
    %v6760 = vld [vmem:[%s12 + $0x7c0] sm:$0xff]
    %v6761 = vld [vmem:[%s12 + $0x7c8] sm:$0xff]
    %v6762 = vld [vmem:[%s12 + $0x7d0] sm:$0xff]
    %v6763 = vld [vmem:[%s12 + $0x7d8] sm:$0xff]
    %v6764 = vld [vmem:[%s12 + $0x7e0] sm:$0xff]
    %v6765 = vld [vmem:[%s12 + $0x7e8] sm:$0xff]
    %v6766 = vld [vmem:[%s12 + $0x7f0] sm:$0xff]
    %v6767 = vld [vmem:[%s12 + $0x7f8] sm:$0xff]
    %6769 = vmatprep.subr.mxu0 0.0
    %6770 = vmatpush1.msra.mxu0 %v6527
    %6771 = vmatprep.subr.mxu0 0.0
    %6772 = vmatpush1.msra.mxu0 %v6526
    %6773 = vmatprep.subr.mxu0 0.0
    %6774 = vmatpush1.msra.mxu0 %v6525
    %6775 = vmatprep.subr.mxu0 0.0
    %6776 = vmatpush1.msra.mxu0 %v6524
    %6777 = vmatprep.subr.mxu0 0.0
    %6778 = vmatpush1.msra.mxu0 %v6523
    %6779 = vmatprep.subr.mxu0 0.0
    %6780 = vmatpush1.msra.mxu0 %v6522
    %6781 = vmatprep.subr.mxu0 0.0
    %6782 = vmatpush1.msra.mxu0 %v6521
    %6783 = vmatprep.subr.mxu0 0.0
    %6784 = vmatpush1.msra.mxu0 %v6520
    %6785 = vmatprep.subr.mxu0 0.0
    %6786 = vmatpush1.msra.mxu0 %v6519
    %6787 = vmatprep.subr.mxu0 0.0
    %6788 = vmatpush1.msra.mxu0 %v6518
    %6789 = vmatprep.subr.mxu0 0.0
    %6790 = vmatpush1.msra.mxu0 %v6517
    %6791 = vmatprep.subr.mxu0 0.0
    %6792 = vmatpush1.msra.mxu0 %v6516
    %6793 = vmatprep.subr.mxu0 0.0
    %6794 = vmatpush1.msra.mxu0 %v6515
    %6795 = vmatprep.subr.mxu0 0.0
    %6796 = vmatpush1.msra.mxu0 %v6514
    %6797 = vmatprep.subr.mxu0 0.0
    %6798 = vmatpush1.msra.mxu0 %v6513
    %6799 = vmatprep.subr.mxu0 0.0
    %6800 = vmatpush1.msra.mxu0 %v6512
    %6801 = vmatprep.subr.mxu0 0.0
    %6802 = vmatpush2.msra.mxu0 %v6543
    %6803 = vmatprep.subr.mxu0 0.0
    %6804 = vmatpush2.msra.mxu0 %v6542
    %6805 = vmatprep.subr.mxu0 0.0
    %6806 = vmatpush2.msra.mxu0 %v6541
    %6807 = vmatprep.subr.mxu0 0.0
    %6808 = vmatpush2.msra.mxu0 %v6540
    %6809 = vmatprep.subr.mxu0 0.0
    %6810 = vmatpush2.msra.mxu0 %v6539
    %6811 = vmatprep.subr.mxu0 0.0
    %6812 = vmatpush2.msra.mxu0 %v6538
    %6813 = vmatprep.subr.mxu0 0.0
    %6814 = vmatpush2.msra.mxu0 %v6537
    %6815 = vmatprep.subr.mxu0 0.0
    %6816 = vmatpush2.msra.mxu0 %v6536
    %6817 = vmatprep.subr.mxu0 0.0
    %6818 = vmatpush2.msra.mxu0 %v6535
    %6819 = vmatprep.subr.mxu0 0.0
    %6820 = vmatpush2.msra.mxu0 %v6534
    %6821 = vmatprep.subr.mxu0 0.0
    %6822 = vmatpush2.msra.mxu0 %v6533
    %6823 = vmatprep.subr.mxu0 0.0
    %6824 = vmatpush2.msra.mxu0 %v6532
    %6825 = vmatprep.subr.mxu0 0.0
    %6826 = vmatpush2.msra.mxu0 %v6531
    %6827 = vmatprep.subr.mxu0 0.0
    %6828 = vmatpush2.msra.mxu0 %v6530
    %6829 = vmatprep.subr.mxu0 0.0
    %6830 = vmatpush2.msra.mxu0 %v6529
    %6831 = vmatprep.subr.mxu0 0.0
    %6832 = vmatpush2.msra.mxu0 %v6528
    %6833 = vmatprep.mubr.f32.mxu0 %v6481
    %6834 = vmatmul.mubr.f32.gmra.mxu0 %v6480
    %v6835 = vpop.f32.mrf.mxu0
    %v6836 = vadd.f32 %v5697, %v6835
    %v6837 = vpop.f32.mrf.mxu0
    %6838 = vmatprep.mubr.f32.mxu0 %v6497
    %6839 = vmatmul.mubr.f32.gmra.mxu0 %v6496
    %v6840 = vpop.f32.mrf.mxu0
    %v6841 = vadd.f32 %v5697, %v6840
    %v6842 = vpop.f32.mrf.mxu0
    %6843 = vdwg.mxu0
    %6844 = vmatprep.subr.mxu0 0.0
    %6845 = vmatpush1.msra.mxu0 %v6559
    %6846 = vmatprep.subr.mxu0 0.0
    %6847 = vmatpush1.msra.mxu0 %v6558
    %6848 = vmatprep.subr.mxu0 0.0
    %6849 = vmatpush1.msra.mxu0 %v6557
    %6850 = vmatprep.subr.mxu0 0.0
    %6851 = vmatpush1.msra.mxu0 %v6556
    %6852 = vmatprep.subr.mxu0 0.0
    %6853 = vmatpush1.msra.mxu0 %v6555
    %6854 = vmatprep.subr.mxu0 0.0
    %6855 = vmatpush1.msra.mxu0 %v6554
    %6856 = vmatprep.subr.mxu0 0.0
    %6857 = vmatpush1.msra.mxu0 %v6553
    %6858 = vmatprep.subr.mxu0 0.0
    %6859 = vmatpush1.msra.mxu0 %v6552
    %6860 = vmatprep.subr.mxu0 0.0
    %6861 = vmatpush1.msra.mxu0 %v6551
    %6862 = vmatprep.subr.mxu0 0.0
    %6863 = vmatpush1.msra.mxu0 %v6550
    %6864 = vmatprep.subr.mxu0 0.0
    %6865 = vmatpush1.msra.mxu0 %v6549
    %6866 = vmatprep.subr.mxu0 0.0
    %6867 = vmatpush1.msra.mxu0 %v6548
    %6868 = vmatprep.subr.mxu0 0.0
    %6869 = vmatpush1.msra.mxu0 %v6547
    %6870 = vmatprep.subr.mxu0 0.0
    %6871 = vmatpush1.msra.mxu0 %v6546
    %6872 = vmatprep.subr.mxu0 0.0
    %6873 = vmatpush1.msra.mxu0 %v6545
    %6874 = vmatprep.subr.mxu0 0.0
    %6875 = vmatpush1.msra.mxu0 %v6544
    %6876 = vmatprep.subr.mxu0 0.0
    %6877 = vmatpush2.msra.mxu0 %v6575
    %6878 = vmatprep.subr.mxu0 0.0
    %6879 = vmatpush2.msra.mxu0 %v6574
    %6880 = vmatprep.subr.mxu0 0.0
    %6881 = vmatpush2.msra.mxu0 %v6573
    %6882 = vmatprep.subr.mxu0 0.0
    %6883 = vmatpush2.msra.mxu0 %v6572
    %6884 = vmatprep.subr.mxu0 0.0
    %6885 = vmatpush2.msra.mxu0 %v6571
    %6886 = vmatprep.subr.mxu0 0.0
    %6887 = vmatpush2.msra.mxu0 %v6570
    %6888 = vmatprep.subr.mxu0 0.0
    %6889 = vmatpush2.msra.mxu0 %v6569
    %6890 = vmatprep.subr.mxu0 0.0
    %6891 = vmatpush2.msra.mxu0 %v6568
    %6892 = vmatprep.subr.mxu0 0.0
    %6893 = vmatpush2.msra.mxu0 %v6567
    %6894 = vmatprep.subr.mxu0 0.0
    %6895 = vmatpush2.msra.mxu0 %v6566
    %6896 = vmatprep.subr.mxu0 0.0
    %6897 = vmatpush2.msra.mxu0 %v6565
    %6898 = vmatprep.subr.mxu0 0.0
    %6899 = vmatpush2.msra.mxu0 %v6564
    %6900 = vmatprep.subr.mxu0 0.0
    %6901 = vmatpush2.msra.mxu0 %v6563
    %6902 = vmatprep.subr.mxu0 0.0
    %6903 = vmatpush2.msra.mxu0 %v6562
    %6904 = vmatprep.subr.mxu0 0.0
    %6905 = vmatpush2.msra.mxu0 %v6561
    %6906 = vmatprep.subr.mxu0 0.0
    %6907 = vmatpush2.msra.mxu0 %v6560
    %6908 = vmatprep.mubr.f32.mxu0 %v6483
    %6909 = vmatmul.mubr.f32.gmra.mxu0 %v6482
    %v6910 = vpop.f32.mrf.mxu0
    %v6911 = vadd.f32 %v6836, %v6910
    %v6912 = vpop.f32.mrf.mxu0
    %6913 = vmatprep.mubr.f32.mxu0 %v6499
    %6914 = vmatmul.mubr.f32.gmra.mxu0 %v6498
    %v6915 = vpop.f32.mrf.mxu0
    %v6916 = vadd.f32 %v6841, %v6915
    %v6917 = vpop.f32.mrf.mxu0
    %6918 = vdwg.mxu0
    %6919 = vmatprep.subr.mxu0 0.0
    %6920 = vmatpush1.msra.mxu0 %v6591
    %6921 = vmatprep.subr.mxu0 0.0
    %6922 = vmatpush1.msra.mxu0 %v6590
    %6923 = vmatprep.subr.mxu0 0.0
    %6924 = vmatpush1.msra.mxu0 %v6589
    %6925 = vmatprep.subr.mxu0 0.0
    %6926 = vmatpush1.msra.mxu0 %v6588
    %6927 = vmatprep.subr.mxu0 0.0
    %6928 = vmatpush1.msra.mxu0 %v6587
    %6929 = vmatprep.subr.mxu0 0.0
    %6930 = vmatpush1.msra.mxu0 %v6586
    %6931 = vmatprep.subr.mxu0 0.0
    %6932 = vmatpush1.msra.mxu0 %v6585
    %6933 = vmatprep.subr.mxu0 0.0
    %6934 = vmatpush1.msra.mxu0 %v6584
    %6935 = vmatprep.subr.mxu0 0.0
    %6936 = vmatpush1.msra.mxu0 %v6583
    %6937 = vmatprep.subr.mxu0 0.0
    %6938 = vmatpush1.msra.mxu0 %v6582
    %6939 = vmatprep.subr.mxu0 0.0
    %6940 = vmatpush1.msra.mxu0 %v6581
    %6941 = vmatprep.subr.mxu0 0.0
    %6942 = vmatpush1.msra.mxu0 %v6580
    %6943 = vmatprep.subr.mxu0 0.0
    %6944 = vmatpush1.msra.mxu0 %v6579
    %6945 = vmatprep.subr.mxu0 0.0
    %6946 = vmatpush1.msra.mxu0 %v6578
    %6947 = vmatprep.subr.mxu0 0.0
    %6948 = vmatpush1.msra.mxu0 %v6577
    %6949 = vmatprep.subr.mxu0 0.0
    %6950 = vmatpush1.msra.mxu0 %v6576
    %6951 = vmatprep.subr.mxu0 0.0
    %6952 = vmatpush2.msra.mxu0 %v6607
    %6953 = vmatprep.subr.mxu0 0.0
    %6954 = vmatpush2.msra.mxu0 %v6606
    %6955 = vmatprep.subr.mxu0 0.0
    %6956 = vmatpush2.msra.mxu0 %v6605
    %6957 = vmatprep.subr.mxu0 0.0
    %6958 = vmatpush2.msra.mxu0 %v6604
    %6959 = vmatprep.subr.mxu0 0.0
    %6960 = vmatpush2.msra.mxu0 %v6603
    %6961 = vmatprep.subr.mxu0 0.0
    %6962 = vmatpush2.msra.mxu0 %v6602
    %6963 = vmatprep.subr.mxu0 0.0
    %6964 = vmatpush2.msra.mxu0 %v6601
    %6965 = vmatprep.subr.mxu0 0.0
    %6966 = vmatpush2.msra.mxu0 %v6600
    %6967 = vmatprep.subr.mxu0 0.0
    %6968 = vmatpush2.msra.mxu0 %v6599
    %6969 = vmatprep.subr.mxu0 0.0
    %6970 = vmatpush2.msra.mxu0 %v6598
    %6971 = vmatprep.subr.mxu0 0.0
    %6972 = vmatpush2.msra.mxu0 %v6597
    %6973 = vmatprep.subr.mxu0 0.0
    %6974 = vmatpush2.msra.mxu0 %v6596
    %6975 = vmatprep.subr.mxu0 0.0
    %6976 = vmatpush2.msra.mxu0 %v6595
    %6977 = vmatprep.subr.mxu0 0.0
    %6978 = vmatpush2.msra.mxu0 %v6594
    %6979 = vmatprep.subr.mxu0 0.0
    %6980 = vmatpush2.msra.mxu0 %v6593
    %6981 = vmatprep.subr.mxu0 0.0
    %6982 = vmatpush2.msra.mxu0 %v6592
    %6983 = vmatprep.mubr.f32.mxu0 %v6485
    %6984 = vmatmul.mubr.f32.gmra.mxu0 %v6484
    %v6985 = vpop.f32.mrf.mxu0
    %v6986 = vadd.f32 %v6911, %v6985
    %v6987 = vpop.f32.mrf.mxu0
    %6988 = vmatprep.mubr.f32.mxu0 %v6501
    %6989 = vmatmul.mubr.f32.gmra.mxu0 %v6500
    %v6990 = vpop.f32.mrf.mxu0
    %v6991 = vadd.f32 %v6916, %v6990
    %v6992 = vpop.f32.mrf.mxu0
    %6993 = vdwg.mxu0
    %6994 = vmatprep.subr.mxu0 0.0
    %6995 = vmatpush1.msra.mxu0 %v6623
    %6996 = vmatprep.subr.mxu0 0.0
    %6997 = vmatpush1.msra.mxu0 %v6622
    %6998 = vmatprep.subr.mxu0 0.0
    %6999 = vmatpush1.msra.mxu0 %v6621
    %7000 = vmatprep.subr.mxu0 0.0
    %7001 = vmatpush1.msra.mxu0 %v6620
    %7002 = vmatprep.subr.mxu0 0.0
    %7003 = vmatpush1.msra.mxu0 %v6619
    %7004 = vmatprep.subr.mxu0 0.0
    %7005 = vmatpush1.msra.mxu0 %v6618
    %7006 = vmatprep.subr.mxu0 0.0
    %7007 = vmatpush1.msra.mxu0 %v6617
    %7008 = vmatprep.subr.mxu0 0.0
    %7009 = vmatpush1.msra.mxu0 %v6616
    %7010 = vmatprep.subr.mxu0 0.0
    %7011 = vmatpush1.msra.mxu0 %v6615
    %7012 = vmatprep.subr.mxu0 0.0
    %7013 = vmatpush1.msra.mxu0 %v6614
    %7014 = vmatprep.subr.mxu0 0.0
    %7015 = vmatpush1.msra.mxu0 %v6613
    %7016 = vmatprep.subr.mxu0 0.0
    %7017 = vmatpush1.msra.mxu0 %v6612
    %7018 = vmatprep.subr.mxu0 0.0
    %7019 = vmatpush1.msra.mxu0 %v6611
    %7020 = vmatprep.subr.mxu0 0.0
    %7021 = vmatpush1.msra.mxu0 %v6610
    %7022 = vmatprep.subr.mxu0 0.0
    %7023 = vmatpush1.msra.mxu0 %v6609
    %7024 = vmatprep.subr.mxu0 0.0
    %7025 = vmatpush1.msra.mxu0 %v6608
    %7026 = vmatprep.subr.mxu0 0.0
    %7027 = vmatpush2.msra.mxu0 %v6639
    %7028 = vmatprep.subr.mxu0 0.0
    %7029 = vmatpush2.msra.mxu0 %v6638
    %7030 = vmatprep.subr.mxu0 0.0
    %7031 = vmatpush2.msra.mxu0 %v6637
    %7032 = vmatprep.subr.mxu0 0.0
    %7033 = vmatpush2.msra.mxu0 %v6636
    %7034 = vmatprep.subr.mxu0 0.0
    %7035 = vmatpush2.msra.mxu0 %v6635
    %7036 = vmatprep.subr.mxu0 0.0
    %7037 = vmatpush2.msra.mxu0 %v6634
    %7038 = vmatprep.subr.mxu0 0.0
    %7039 = vmatpush2.msra.mxu0 %v6633
    %7040 = vmatprep.subr.mxu0 0.0
    %7041 = vmatpush2.msra.mxu0 %v6632
    %7042 = vmatprep.subr.mxu0 0.0
    %7043 = vmatpush2.msra.mxu0 %v6631
    %7044 = vmatprep.subr.mxu0 0.0
    %7045 = vmatpush2.msra.mxu0 %v6630
    %7046 = vmatprep.subr.mxu0 0.0
    %7047 = vmatpush2.msra.mxu0 %v6629
    %7048 = vmatprep.subr.mxu0 0.0
    %7049 = vmatpush2.msra.mxu0 %v6628
    %7050 = vmatprep.subr.mxu0 0.0
    %7051 = vmatpush2.msra.mxu0 %v6627
    %7052 = vmatprep.subr.mxu0 0.0
    %7053 = vmatpush2.msra.mxu0 %v6626
    %7054 = vmatprep.subr.mxu0 0.0
    %7055 = vmatpush2.msra.mxu0 %v6625
    %7056 = vmatprep.subr.mxu0 0.0
    %7057 = vmatpush2.msra.mxu0 %v6624
    %7058 = vmatprep.mubr.f32.mxu0 %v6487
    %7059 = vmatmul.mubr.f32.gmra.mxu0 %v6486
    %v7060 = vpop.f32.mrf.mxu0
    %v7061 = vadd.f32 %v6986, %v7060
    %v7062 = vpop.f32.mrf.mxu0
    %7063 = vmatprep.mubr.f32.mxu0 %v6503
    %7064 = vmatmul.mubr.f32.gmra.mxu0 %v6502
    %v7065 = vpop.f32.mrf.mxu0
    %v7066 = vadd.f32 %v6991, %v7065
    %v7067 = vpop.f32.mrf.mxu0
    %7068 = vdwg.mxu0
    %7069 = vmatprep.subr.mxu0 0.0
    %7070 = vmatpush1.msra.mxu0 %v6655
    %7071 = vmatprep.subr.mxu0 0.0
    %7072 = vmatpush1.msra.mxu0 %v6654
    %7073 = vmatprep.subr.mxu0 0.0
    %7074 = vmatpush1.msra.mxu0 %v6653
    %7075 = vmatprep.subr.mxu0 0.0
    %7076 = vmatpush1.msra.mxu0 %v6652
    %7077 = vmatprep.subr.mxu0 0.0
    %7078 = vmatpush1.msra.mxu0 %v6651
    %7079 = vmatprep.subr.mxu0 0.0
    %7080 = vmatpush1.msra.mxu0 %v6650
    %7081 = vmatprep.subr.mxu0 0.0
    %7082 = vmatpush1.msra.mxu0 %v6649
    %7083 = vmatprep.subr.mxu0 0.0
    %7084 = vmatpush1.msra.mxu0 %v6648
    %7085 = vmatprep.subr.mxu0 0.0
    %7086 = vmatpush1.msra.mxu0 %v6647
    %7087 = vmatprep.subr.mxu0 0.0
    %7088 = vmatpush1.msra.mxu0 %v6646
    %7089 = vmatprep.subr.mxu0 0.0
    %7090 = vmatpush1.msra.mxu0 %v6645
    %7091 = vmatprep.subr.mxu0 0.0
    %7092 = vmatpush1.msra.mxu0 %v6644
    %7093 = vmatprep.subr.mxu0 0.0
    %7094 = vmatpush1.msra.mxu0 %v6643
    %7095 = vmatprep.subr.mxu0 0.0
    %7096 = vmatpush1.msra.mxu0 %v6642
    %7097 = vmatprep.subr.mxu0 0.0
    %7098 = vmatpush1.msra.mxu0 %v6641
    %7099 = vmatprep.subr.mxu0 0.0
    %7100 = vmatpush1.msra.mxu0 %v6640
    %7101 = vmatprep.subr.mxu0 0.0
    %7102 = vmatpush2.msra.mxu0 %v6671
    %7103 = vmatprep.subr.mxu0 0.0
    %7104 = vmatpush2.msra.mxu0 %v6670
    %7105 = vmatprep.subr.mxu0 0.0
    %7106 = vmatpush2.msra.mxu0 %v6669
    %7107 = vmatprep.subr.mxu0 0.0
    %7108 = vmatpush2.msra.mxu0 %v6668
    %7109 = vmatprep.subr.mxu0 0.0
    %7110 = vmatpush2.msra.mxu0 %v6667
    %7111 = vmatprep.subr.mxu0 0.0
    %7112 = vmatpush2.msra.mxu0 %v6666
    %7113 = vmatprep.subr.mxu0 0.0
    %7114 = vmatpush2.msra.mxu0 %v6665
    %7115 = vmatprep.subr.mxu0 0.0
    %7116 = vmatpush2.msra.mxu0 %v6664
    %7117 = vmatprep.subr.mxu0 0.0
    %7118 = vmatpush2.msra.mxu0 %v6663
    %7119 = vmatprep.subr.mxu0 0.0
    %7120 = vmatpush2.msra.mxu0 %v6662
    %7121 = vmatprep.subr.mxu0 0.0
    %7122 = vmatpush2.msra.mxu0 %v6661
    %7123 = vmatprep.subr.mxu0 0.0
    %7124 = vmatpush2.msra.mxu0 %v6660
    %7125 = vmatprep.subr.mxu0 0.0
    %7126 = vmatpush2.msra.mxu0 %v6659
    %7127 = vmatprep.subr.mxu0 0.0
    %7128 = vmatpush2.msra.mxu0 %v6658
    %7129 = vmatprep.subr.mxu0 0.0
    %7130 = vmatpush2.msra.mxu0 %v6657
    %7131 = vmatprep.subr.mxu0 0.0
    %7132 = vmatpush2.msra.mxu0 %v6656
    %7133 = vmatprep.mubr.f32.mxu0 %v6489
    %7134 = vmatmul.mubr.f32.gmra.mxu0 %v6488
    %v7135 = vpop.f32.mrf.mxu0
    %v7136 = vadd.f32 %v7061, %v7135
    %v7137 = vpop.f32.mrf.mxu0
    %7138 = vmatprep.mubr.f32.mxu0 %v6505
    %7139 = vmatmul.mubr.f32.gmra.mxu0 %v6504
    %v7140 = vpop.f32.mrf.mxu0
    %v7141 = vadd.f32 %v7066, %v7140
    %v7142 = vpop.f32.mrf.mxu0
    %7143 = vdwg.mxu0
    %7144 = vmatprep.subr.mxu0 0.0
    %7145 = vmatpush1.msra.mxu0 %v6687
    %7146 = vmatprep.subr.mxu0 0.0
    %7147 = vmatpush1.msra.mxu0 %v6686
    %7148 = vmatprep.subr.mxu0 0.0
    %7149 = vmatpush1.msra.mxu0 %v6685
    %7150 = vmatprep.subr.mxu0 0.0
    %7151 = vmatpush1.msra.mxu0 %v6684
    %7152 = vmatprep.subr.mxu0 0.0
    %7153 = vmatpush1.msra.mxu0 %v6683
    %7154 = vmatprep.subr.mxu0 0.0
    %7155 = vmatpush1.msra.mxu0 %v6682
    %7156 = vmatprep.subr.mxu0 0.0
    %7157 = vmatpush1.msra.mxu0 %v6681
    %7158 = vmatprep.subr.mxu0 0.0
    %7159 = vmatpush1.msra.mxu0 %v6680
    %7160 = vmatprep.subr.mxu0 0.0
    %7161 = vmatpush1.msra.mxu0 %v6679
    %7162 = vmatprep.subr.mxu0 0.0
    %7163 = vmatpush1.msra.mxu0 %v6678
    %7164 = vmatprep.subr.mxu0 0.0
    %7165 = vmatpush1.msra.mxu0 %v6677
    %7166 = vmatprep.subr.mxu0 0.0
    %7167 = vmatpush1.msra.mxu0 %v6676
    %7168 = vmatprep.subr.mxu0 0.0
    %7169 = vmatpush1.msra.mxu0 %v6675
    %7170 = vmatprep.subr.mxu0 0.0
    %7171 = vmatpush1.msra.mxu0 %v6674
    %7172 = vmatprep.subr.mxu0 0.0
    %7173 = vmatpush1.msra.mxu0 %v6673
    %7174 = vmatprep.subr.mxu0 0.0
    %7175 = vmatpush1.msra.mxu0 %v6672
    %7176 = vmatprep.subr.mxu0 0.0
    %7177 = vmatpush2.msra.mxu0 %v6703
    %7178 = vmatprep.subr.mxu0 0.0
    %7179 = vmatpush2.msra.mxu0 %v6702
    %7180 = vmatprep.subr.mxu0 0.0
    %7181 = vmatpush2.msra.mxu0 %v6701
    %7182 = vmatprep.subr.mxu0 0.0
    %7183 = vmatpush2.msra.mxu0 %v6700
    %7184 = vmatprep.subr.mxu0 0.0
    %7185 = vmatpush2.msra.mxu0 %v6699
    %7186 = vmatprep.subr.mxu0 0.0
    %7187 = vmatpush2.msra.mxu0 %v6698
    %7188 = vmatprep.subr.mxu0 0.0
    %7189 = vmatpush2.msra.mxu0 %v6697
    %7190 = vmatprep.subr.mxu0 0.0
    %7191 = vmatpush2.msra.mxu0 %v6696
    %7192 = vmatprep.subr.mxu0 0.0
    %7193 = vmatpush2.msra.mxu0 %v6695
    %7194 = vmatprep.subr.mxu0 0.0
    %7195 = vmatpush2.msra.mxu0 %v6694
    %7196 = vmatprep.subr.mxu0 0.0
    %7197 = vmatpush2.msra.mxu0 %v6693
    %7198 = vmatprep.subr.mxu0 0.0
    %7199 = vmatpush2.msra.mxu0 %v6692
    %7200 = vmatprep.subr.mxu0 0.0
    %7201 = vmatpush2.msra.mxu0 %v6691
    %7202 = vmatprep.subr.mxu0 0.0
    %7203 = vmatpush2.msra.mxu0 %v6690
    %7204 = vmatprep.subr.mxu0 0.0
    %7205 = vmatpush2.msra.mxu0 %v6689
    %7206 = vmatprep.subr.mxu0 0.0
    %7207 = vmatpush2.msra.mxu0 %v6688
    %7208 = vmatprep.mubr.f32.mxu0 %v6491
    %7209 = vmatmul.mubr.f32.gmra.mxu0 %v6490
    %v7210 = vpop.f32.mrf.mxu0
    %v7211 = vadd.f32 %v7136, %v7210
    %v7212 = vpop.f32.mrf.mxu0
    %7213 = vmatprep.mubr.f32.mxu0 %v6507
    %7214 = vmatmul.mubr.f32.gmra.mxu0 %v6506
    %v7215 = vpop.f32.mrf.mxu0
    %v7216 = vadd.f32 %v7141, %v7215
    %v7217 = vpop.f32.mrf.mxu0
    %7218 = vdwg.mxu0
    %7219 = vmatprep.subr.mxu0 0.0
    %7220 = vmatpush1.msra.mxu0 %v6719
    %7221 = vmatprep.subr.mxu0 0.0
    %7222 = vmatpush1.msra.mxu0 %v6718
    %7223 = vmatprep.subr.mxu0 0.0
    %7224 = vmatpush1.msra.mxu0 %v6717
    %7225 = vmatprep.subr.mxu0 0.0
    %7226 = vmatpush1.msra.mxu0 %v6716
    %7227 = vmatprep.subr.mxu0 0.0
    %7228 = vmatpush1.msra.mxu0 %v6715
    %7229 = vmatprep.subr.mxu0 0.0
    %7230 = vmatpush1.msra.mxu0 %v6714
    %7231 = vmatprep.subr.mxu0 0.0
    %7232 = vmatpush1.msra.mxu0 %v6713
    %7233 = vmatprep.subr.mxu0 0.0
    %7234 = vmatpush1.msra.mxu0 %v6712
    %7235 = vmatprep.subr.mxu0 0.0
    %7236 = vmatpush1.msra.mxu0 %v6711
    %7237 = vmatprep.subr.mxu0 0.0
    %7238 = vmatpush1.msra.mxu0 %v6710
    %7239 = vmatprep.subr.mxu0 0.0
    %7240 = vmatpush1.msra.mxu0 %v6709
    %7241 = vmatprep.subr.mxu0 0.0
    %7242 = vmatpush1.msra.mxu0 %v6708
    %7243 = vmatprep.subr.mxu0 0.0
    %7244 = vmatpush1.msra.mxu0 %v6707
    %7245 = vmatprep.subr.mxu0 0.0
    %7246 = vmatpush1.msra.mxu0 %v6706
    %7247 = vmatprep.subr.mxu0 0.0
    %7248 = vmatpush1.msra.mxu0 %v6705
    %7249 = vmatprep.subr.mxu0 0.0
    %7250 = vmatpush1.msra.mxu0 %v6704
    %7251 = vmatprep.subr.mxu0 0.0
    %7252 = vmatpush2.msra.mxu0 %v6735
    %7253 = vmatprep.subr.mxu0 0.0
    %7254 = vmatpush2.msra.mxu0 %v6734
    %7255 = vmatprep.subr.mxu0 0.0
    %7256 = vmatpush2.msra.mxu0 %v6733
    %7257 = vmatprep.subr.mxu0 0.0
    %7258 = vmatpush2.msra.mxu0 %v6732
    %7259 = vmatprep.subr.mxu0 0.0
    %7260 = vmatpush2.msra.mxu0 %v6731
    %7261 = vmatprep.subr.mxu0 0.0
    %7262 = vmatpush2.msra.mxu0 %v6730
    %7263 = vmatprep.subr.mxu0 0.0
    %7264 = vmatpush2.msra.mxu0 %v6729
    %7265 = vmatprep.subr.mxu0 0.0
    %7266 = vmatpush2.msra.mxu0 %v6728
    %7267 = vmatprep.subr.mxu0 0.0
    %7268 = vmatpush2.msra.mxu0 %v6727
    %7269 = vmatprep.subr.mxu0 0.0
    %7270 = vmatpush2.msra.mxu0 %v6726
    %7271 = vmatprep.subr.mxu0 0.0
    %7272 = vmatpush2.msra.mxu0 %v6725
    %7273 = vmatprep.subr.mxu0 0.0
    %7274 = vmatpush2.msra.mxu0 %v6724
    %7275 = vmatprep.subr.mxu0 0.0
    %7276 = vmatpush2.msra.mxu0 %v6723
    %7277 = vmatprep.subr.mxu0 0.0
    %7278 = vmatpush2.msra.mxu0 %v6722
    %7279 = vmatprep.subr.mxu0 0.0
    %7280 = vmatpush2.msra.mxu0 %v6721
    %7281 = vmatprep.subr.mxu0 0.0
    %7282 = vmatpush2.msra.mxu0 %v6720
    %7283 = vmatprep.mubr.f32.mxu0 %v6493
    %7284 = vmatmul.mubr.f32.gmra.mxu0 %v6492
    %v7285 = vpop.f32.mrf.mxu0
    %v7286 = vadd.f32 %v7211, %v7285
    %v7287 = vpop.f32.mrf.mxu0
    %7288 = vmatprep.mubr.f32.mxu0 %v6509
    %7289 = vmatmul.mubr.f32.gmra.mxu0 %v6508
    %v7290 = vpop.f32.mrf.mxu0
    %v7291 = vadd.f32 %v7216, %v7290
    %v7292 = vpop.f32.mrf.mxu0
    %7293 = vdwg.mxu0
    %7294 = vmatprep.subr.mxu0 0.0
    %7295 = vmatpush1.msra.mxu0 %v6751
    %7296 = vmatprep.subr.mxu0 0.0
    %7297 = vmatpush1.msra.mxu0 %v6750
    %7298 = vmatprep.subr.mxu0 0.0
    %7299 = vmatpush1.msra.mxu0 %v6749
    %7300 = vmatprep.subr.mxu0 0.0
    %7301 = vmatpush1.msra.mxu0 %v6748
    %7302 = vmatprep.subr.mxu0 0.0
    %7303 = vmatpush1.msra.mxu0 %v6747
    %7304 = vmatprep.subr.mxu0 0.0
    %7305 = vmatpush1.msra.mxu0 %v6746
    %7306 = vmatprep.subr.mxu0 0.0
    %7307 = vmatpush1.msra.mxu0 %v6745
    %7308 = vmatprep.subr.mxu0 0.0
    %7309 = vmatpush1.msra.mxu0 %v6744
    %7310 = vmatprep.subr.mxu0 0.0
    %7311 = vmatpush1.msra.mxu0 %v6743
    %7312 = vmatprep.subr.mxu0 0.0
    %7313 = vmatpush1.msra.mxu0 %v6742
    %7314 = vmatprep.subr.mxu0 0.0
    %7315 = vmatpush1.msra.mxu0 %v6741
    %7316 = vmatprep.subr.mxu0 0.0
    %7317 = vmatpush1.msra.mxu0 %v6740
    %7318 = vmatprep.subr.mxu0 0.0
    %7319 = vmatpush1.msra.mxu0 %v6739
    %7320 = vmatprep.subr.mxu0 0.0
    %7321 = vmatpush1.msra.mxu0 %v6738
    %7322 = vmatprep.subr.mxu0 0.0
    %7323 = vmatpush1.msra.mxu0 %v6737
    %7324 = vmatprep.subr.mxu0 0.0
    %7325 = vmatpush1.msra.mxu0 %v6736
    %7326 = vmatprep.subr.mxu0 0.0
    %7327 = vmatpush2.msra.mxu0 %v6767
    %7328 = vmatprep.subr.mxu0 0.0
    %7329 = vmatpush2.msra.mxu0 %v6766
    %7330 = vmatprep.subr.mxu0 0.0
    %7331 = vmatpush2.msra.mxu0 %v6765
    %7332 = vmatprep.subr.mxu0 0.0
    %7333 = vmatpush2.msra.mxu0 %v6764
    %7334 = vmatprep.subr.mxu0 0.0
    %7335 = vmatpush2.msra.mxu0 %v6763
    %7336 = vmatprep.subr.mxu0 0.0
    %7337 = vmatpush2.msra.mxu0 %v6762
    %7338 = vmatprep.subr.mxu0 0.0
    %7339 = vmatpush2.msra.mxu0 %v6761
    %7340 = vmatprep.subr.mxu0 0.0
    %7341 = vmatpush2.msra.mxu0 %v6760
    %7342 = vmatprep.subr.mxu0 0.0
    %7343 = vmatpush2.msra.mxu0 %v6759
    %7344 = vmatprep.subr.mxu0 0.0
    %7345 = vmatpush2.msra.mxu0 %v6758
    %7346 = vmatprep.subr.mxu0 0.0
    %7347 = vmatpush2.msra.mxu0 %v6757
    %7348 = vmatprep.subr.mxu0 0.0
    %7349 = vmatpush2.msra.mxu0 %v6756
    %7350 = vmatprep.subr.mxu0 0.0
    %7351 = vmatpush2.msra.mxu0 %v6755
    %7352 = vmatprep.subr.mxu0 0.0
    %7353 = vmatpush2.msra.mxu0 %v6754
    %7354 = vmatprep.subr.mxu0 0.0
    %7355 = vmatpush2.msra.mxu0 %v6753
    %7356 = vmatprep.subr.mxu0 0.0
    %7357 = vmatpush2.msra.mxu0 %v6752
    %7358 = vmatprep.mubr.f32.mxu0 %v6495
    %7359 = vmatmul.mubr.f32.gmra.mxu0 %v6494
    %v7360 = vpop.f32.mrf.mxu0
    %v7361 = vadd.f32 %v7286, %v7360
    %v7362 = vpop.f32.mrf.mxu0
    %7363 = vmatprep.mubr.f32.mxu0 %v6511
    %7364 = vmatmul.mubr.f32.gmra.mxu0 %v6510
    %v7365 = vpop.f32.mrf.mxu0
    %v7366 = vadd.f32 %v7291, %v7365
    %v7367 = vpop.f32.mrf.mxu0
    %7368 = vdwg.mxu0
    %v7369 = vadd.f32 %v5524, %v7361
    %v7370 = vadd.f32 %v5525, %v7366
    %v7371 = vld [vmem:[%s8 + $0x26] sm:$0x1]
    %v7372 = vsel %vm208, %v7369, 0.0
    %7373 = vadd.xlane.f32.xlu0 %v7372
    %v7374 = vpop.xlane.xlu0 %7373
    %v7375 = vsel %vm208, %v7370, 0.0
    %7376 = vadd.xlane.f32.xlu0 %v7375
    %v7377 = vpop.xlane.xlu0 %7376
    %v7378 = vmul.f32 %v7374, %v1247
    %v7379 = vmul.f32 %v7377, %v1247
    %v7380 = vsub.f32 %v7369, %v7378
    %v7381 = vsub.f32 %v7370, %v7379
    %v7382 = vmul.f32 %v7380, %v7380
    %v7383 = vmul.f32 %v7381, %v7381
    %v7384 = vsel %vm208, %v7382, 0.0
    %7385 = vadd.xlane.f32.xlu0 %v7384
    %v7386 = vpop.xlane.xlu0 %7385
    %v7387 = vsel %vm208, %v7383, 0.0
    %7388 = vadd.xlane.f32.xlu0 %v7387
    %v7389 = vpop.xlane.xlu0 %7388
    %v7390 = vmul.f32 %v7386, %v1247
    %v7391 = vmul.f32 %v7389, %v1247
    %v7392 = vadd.f32 %v7390, 1e-05
    %v7393 = vadd.f32 %v7391, 1e-05
    %v7394 = vrsqrt.pop %v7392
    %v7395 = vrsqrt.pop %v7393
    %v7396 = vmul.f32 %v7380, %v7394
    %v7397 = vmul.f32 %v7381, %v7395
    %v7399 = vlaneseq
    %v7400 = vshrl.u32 %v7399, 7
    %v7401 = vsub.s32 0, %v7400
    %v7402 = vrot.slane %v7371, %v7401
    %v7404 = vmul.f32 %v7396, %v7402
    %v7405 = vmul.f32 %v7397, %v7402
    %7406 = vrot.lane.b32.xlu0 %v7402, 96
    %v7407 = vpop.permute.xlu0 %7406
    %v7409 = vadd.f32 %v7404, %v7407
    %v7410 = vadd.f32 %v7405, %v7407
    %7411 = vst.msk [vmem:[#allocation2] sm:$0xff] %vm208, %v7409
    %7412 = vst.msk [vmem:[#allocation2 + $0x8] sm:$0xff] %vm208, %v7410
    %v7413 = vld [vmem:[%s7 + $0x18] sm:$0xff]
    %v7414 = vld [vmem:[%s7 + $0x40] sm:$0xff]
    %v7415 = vld [vmem:[%s7 + $0x68] sm:$0xff]
    %v7416 = vld [vmem:[%s7 + $0x90] sm:$0xff]
    %v7417 = vld [vmem:[%s8 + $0x26] sm:$0x1]
    %v7419 = vlaneseq
    %v7420 = vshrl.u32 %v7419, 7
    %v7421 = vsub.s32 0, %v7420
    %v7422 = vrot.slane %v7417, %v7421
    %7427 = vrot.lane.b32.xlu0 %v7413, 64
    %v7428 = vpop.permute.xlu0 %7427
    %7429 = vrot.lane.b32.xlu0 %v7414, 64
    %v7430 = vpop.permute.xlu0 %7429
    %7431 = vrot.lane.b32.xlu0 %v7415, 64
    %v7432 = vpop.permute.xlu0 %7431
    %7433 = vrot.lane.b32.xlu0 %v7416, 64
    %v7434 = vpop.permute.xlu0 %7433
    %7439 = vrot.lane.b32.xlu0 %v7422, 64
    %v7440 = vpop.permute.xlu0 %7439
    %v7443 = vsel %vm208, %v7409, 0
    %v7446 = vsel %vm208, %v7410, 0
    %7448 = vmatprep.subr.mxu0 0.0
    %7449 = vmatpush1.msra.mxu0 0.0
    %7450 = vmatprep.subr.mxu0 0.0
    %7451 = vmatpush1.msra.mxu0 0.0
    %7452 = vmatprep.subr.mxu0 0.0
    %7453 = vmatpush1.msra.mxu0 0.0
    %7454 = vmatprep.subr.mxu0 0.0
    %7455 = vmatpush1.msra.mxu0 0.0
    %7456 = vmatprep.subr.mxu0 0.0
    %7457 = vmatpush1.msra.mxu0 0.0
    %7458 = vmatprep.subr.mxu0 0.0
    %7459 = vmatpush1.msra.mxu0 0.0
    %7460 = vmatprep.subr.mxu0 0.0
    %7461 = vmatpush1.msra.mxu0 0.0
    %7462 = vmatprep.subr.mxu0 0.0
    %7463 = vmatpush1.msra.mxu0 0.0
    %7464 = vmatprep.subr.mxu0 0.0
    %7465 = vmatpush1.msra.mxu0 0.0
    %7466 = vmatprep.subr.mxu0 0.0
    %7467 = vmatpush1.msra.mxu0 0.0
    %7468 = vmatprep.subr.mxu0 0.0
    %7469 = vmatpush1.msra.mxu0 0.0
    %7470 = vmatprep.subr.mxu0 0.0
    %7471 = vmatpush1.msra.mxu0 0.0
    %7472 = vmatprep.subr.mxu0 0.0
    %7473 = vmatpush1.msra.mxu0 %v7434
    %7474 = vmatprep.subr.mxu0 0.0
    %7475 = vmatpush1.msra.mxu0 %v7432
    %7476 = vmatprep.subr.mxu0 0.0
    %7477 = vmatpush1.msra.mxu0 %v7430
    %7478 = vmatprep.subr.mxu0 0.0
    %7479 = vmatpush1.msra.mxu0 %v7428
    %7480 = vmatprep.subr.mxu0 0.0
    %7481 = vmatpush2.msra.mxu0 0.0
    %7482 = vmatprep.subr.mxu0 0.0
    %7483 = vmatpush2.msra.mxu0 0.0
    %7484 = vmatprep.subr.mxu0 0.0
    %7485 = vmatpush2.msra.mxu0 0.0
    %7486 = vmatprep.subr.mxu0 0.0
    %7487 = vmatpush2.msra.mxu0 0.0
    %7488 = vmatprep.subr.mxu0 0.0
    %7489 = vmatpush2.msra.mxu0 0.0
    %7490 = vmatprep.subr.mxu0 0.0
    %7491 = vmatpush2.msra.mxu0 0.0
    %7492 = vmatprep.subr.mxu0 0.0
    %7493 = vmatpush2.msra.mxu0 0.0
    %7494 = vmatprep.subr.mxu0 0.0
    %7495 = vmatpush2.msra.mxu0 0.0
    %7496 = vmatprep.subr.mxu0 0.0
    %7497 = vmatpush2.msra.mxu0 0.0
    %7498 = vmatprep.subr.mxu0 0.0
    %7499 = vmatpush2.msra.mxu0 0.0
    %7500 = vmatprep.subr.mxu0 0.0
    %7501 = vmatpush2.msra.mxu0 0.0
    %7502 = vmatprep.subr.mxu0 0.0
    %7503 = vmatpush2.msra.mxu0 0.0
    %7504 = vmatprep.subr.mxu0 0.0
    %7505 = vmatpush2.msra.mxu0 0.0
    %7506 = vmatprep.subr.mxu0 0.0
    %7507 = vmatpush2.msra.mxu0 0.0
    %7508 = vmatprep.subr.mxu0 0.0
    %7509 = vmatpush2.msra.mxu0 0.0
    %7510 = vmatprep.subr.mxu0 0.0
    %7511 = vmatpush2.msra.mxu0 0.0
    %7512 = vmatprep.mubr.f32.mxu0 0.0
    %7513 = vmatmul.mubr.f32.gmra.mxu0 %v7443
    %v7514 = vpop.f32.mrf.mxu0
    %v7515 = vadd.f32 %v7440, %v7514
    %v7516 = vpop.f32.mrf.mxu0
    %7517 = vmatprep.mubr.f32.mxu0 0.0
    %7518 = vmatmul.mubr.f32.gmra.mxu0 %v7446
    %v7519 = vpop.f32.mrf.mxu0
    %v7520 = vadd.f32 %v7440, %v7519
    %v7521 = vpop.f32.mrf.mxu0
    %7522 = vdwg.mxu0
    %vm7523 = vcmp.gt.f32.partialorder %v7515, 0.0
    %vm7524 = vcmp.gt.f32.partialorder %v7520, 0.0
    %v7525 = vmin.f32 %v7515, 0.0
    %v7526 = vmin.f32 %v7520, 0.0
    %v7527 = vmul.f32 %v7525, 1.442695
    %v7528 = vpow.pop %v7527
    %v7529 = vmul.f32 %v7526, 1.442695
    %v7530 = vpow.pop %v7529
    %v7531 = vsub.f32 %v7528, 1.0
    %v7532 = vsub.f32 %v7530, 1.0
    %v7533 = vsel %vm7523, %v7515, %v7531
    %v7534 = vsel %vm7524, %v7520, %v7532
    %v7535 = vld [vmem:[%s7 + $0x90] sm:$0x3f]
    %7537 = vrot.lane.b32.xlu0 %v7413, 34
    %v7538 = vpop.permute.xlu0 %7537
    %7539 = vrot.lane.b32.xlu0 %v7414, 34
    %v7540 = vpop.permute.xlu0 %7539
    %7541 = vrot.lane.b32.xlu0 %v7415, 34
    %v7542 = vpop.permute.xlu0 %7541
    %7543 = vrot.lane.b32.xlu0 %v7535, 34
    %v7544 = vpop.permute.xlu0 %7543
    %7548 = vrot.lane.b32.xlu0 %v7422, 34
    %v7549 = vpop.permute.xlu0 %7548
    %vm7551 = vcmask 244736
    %v7553 = vsel %vm7551, %v7533, 0
    %v7556 = vsel %vm7551, %v7534, 0
    %vm7558 = vcmask 1045504
    %v7559 = vsel %vm7558, %v7544, 0
    %7561 = vmatprep.subr.mxu0 0.0
    %7562 = vmatpush1.msra.mxu0 0.0
    %7563 = vmatprep.subr.mxu0 0.0
    %7564 = vmatpush1.msra.mxu0 0.0
    %7565 = vmatprep.subr.mxu0 0.0
    %7566 = vmatpush1.msra.mxu0 0.0
    %7567 = vmatprep.subr.mxu0 0.0
    %7568 = vmatpush1.msra.mxu0 0.0
    %7569 = vmatprep.subr.mxu0 0.0
    %7570 = vmatpush1.msra.mxu0 0.0
    %7571 = vmatprep.subr.mxu0 0.0
    %7572 = vmatpush1.msra.mxu0 0.0
    %7573 = vmatprep.subr.mxu0 0.0
    %7574 = vmatpush1.msra.mxu0 0.0
    %7575 = vmatprep.subr.mxu0 0.0
    %7576 = vmatpush1.msra.mxu0 0.0
    %7577 = vmatprep.subr.mxu0 0.0
    %7578 = vmatpush1.msra.mxu0 0.0
    %7579 = vmatprep.subr.mxu0 0.0
    %7580 = vmatpush1.msra.mxu0 0.0
    %7581 = vmatprep.subr.mxu0 0.0
    %7582 = vmatpush1.msra.mxu0 0.0
    %7583 = vmatprep.subr.mxu0 0.0
    %7584 = vmatpush1.msra.mxu0 0.0
    %7585 = vmatprep.subr.mxu0 0.0
    %7586 = vmatpush1.msra.mxu0 %v7559
    %7587 = vmatprep.subr.mxu0 0.0
    %7588 = vmatpush1.msra.mxu0 %v7542
    %7589 = vmatprep.subr.mxu0 0.0
    %7590 = vmatpush1.msra.mxu0 %v7540
    %7591 = vmatprep.subr.mxu0 0.0
    %7592 = vmatpush1.msra.mxu0 %v7538
    %7593 = vmatprep.subr.mxu0 0.0
    %7594 = vmatpush2.msra.mxu0 0.0
    %7595 = vmatprep.subr.mxu0 0.0
    %7596 = vmatpush2.msra.mxu0 0.0
    %7597 = vmatprep.subr.mxu0 0.0
    %7598 = vmatpush2.msra.mxu0 0.0
    %7599 = vmatprep.subr.mxu0 0.0
    %7600 = vmatpush2.msra.mxu0 0.0
    %7601 = vmatprep.subr.mxu0 0.0
    %7602 = vmatpush2.msra.mxu0 0.0
    %7603 = vmatprep.subr.mxu0 0.0
    %7604 = vmatpush2.msra.mxu0 0.0
    %7605 = vmatprep.subr.mxu0 0.0
    %7606 = vmatpush2.msra.mxu0 0.0
    %7607 = vmatprep.subr.mxu0 0.0
    %7608 = vmatpush2.msra.mxu0 0.0
    %7609 = vmatprep.subr.mxu0 0.0
    %7610 = vmatpush2.msra.mxu0 0.0
    %7611 = vmatprep.subr.mxu0 0.0
    %7612 = vmatpush2.msra.mxu0 0.0
    %7613 = vmatprep.subr.mxu0 0.0
    %7614 = vmatpush2.msra.mxu0 0.0
    %7615 = vmatprep.subr.mxu0 0.0
    %7616 = vmatpush2.msra.mxu0 0.0
    %7617 = vmatprep.subr.mxu0 0.0
    %7618 = vmatpush2.msra.mxu0 0.0
    %7619 = vmatprep.subr.mxu0 0.0
    %7620 = vmatpush2.msra.mxu0 0.0
    %7621 = vmatprep.subr.mxu0 0.0
    %7622 = vmatpush2.msra.mxu0 0.0
    %7623 = vmatprep.subr.mxu0 0.0
    %7624 = vmatpush2.msra.mxu0 0.0
    %7625 = vmatprep.mubr.f32.mxu0 0.0
    %7626 = vmatmul.mubr.f32.gmra.mxu0 %v7553
    %v7627 = vpop.f32.mrf.mxu0
    %v7628 = vadd.f32 %v7549, %v7627
    %v7629 = vpop.f32.mrf.mxu0
    %7630 = vmatprep.mubr.f32.mxu0 0.0
    %7631 = vmatmul.mubr.f32.gmra.mxu0 %v7556
    %v7632 = vpop.f32.mrf.mxu0
    %v7633 = vadd.f32 %v7549, %v7632
    %v7634 = vpop.f32.mrf.mxu0
    %7635 = vdwg.mxu0
    %vm7636 = vcmp.gt.f32.partialorder %v7628, 0.0
    %vm7637 = vcmp.gt.f32.partialorder %v7633, 0.0
    %v7638 = vmin.f32 %v7628, 0.0
    %v7639 = vmin.f32 %v7633, 0.0
    %v7640 = vmul.f32 %v7638, 1.442695
    %v7641 = vpow.pop %v7640
    %v7642 = vmul.f32 %v7639, 1.442695
    %v7643 = vpow.pop %v7642
    %v7644 = vsub.f32 %v7641, 1.0
    %v7645 = vsub.f32 %v7643, 1.0
    %v7646 = vsel %vm7636, %v7628, %v7644
    %v7647 = vsel %vm7637, %v7633, %v7645
    %v7648 = vld [vmem:[%s7 + $0x18] sm:$0xff]
    %v7649 = vld [vmem:[%s7 + $0x40] sm:$0x7f]
    %7652 = vrot.lane.b32.xlu0 %v7648, 19
    %v7653 = vpop.permute.xlu0 %7652
    %7654 = vrot.lane.b32.xlu0 %v7649, 19
    %v7655 = vpop.permute.xlu0 %7654
    %7657 = vrot.lane.b32.xlu0 %v7422, 19
    %v7658 = vpop.permute.xlu0 %7657
    %vm7660 = vcmask 121856
    %v7662 = vsel %vm7660, %v7646, 0
    %v7665 = vsel %vm7660, %v7647, 0
    %vm7667 = vcmask 1046528
    %v7668 = vsel %vm7667, %v7655, 0
    %7670 = vmatprep.subr.mxu0 0.0
    %7671 = vmatpush1.msra.mxu0 0.0
    %7672 = vmatprep.subr.mxu0 0.0
    %7673 = vmatpush1.msra.mxu0 0.0
    %7674 = vmatprep.subr.mxu0 0.0
    %7675 = vmatpush1.msra.mxu0 0.0
    %7676 = vmatprep.subr.mxu0 0.0
    %7677 = vmatpush1.msra.mxu0 0.0
    %7678 = vmatprep.subr.mxu0 0.0
    %7679 = vmatpush1.msra.mxu0 0.0
    %7680 = vmatprep.subr.mxu0 0.0
    %7681 = vmatpush1.msra.mxu0 0.0
    %7682 = vmatprep.subr.mxu0 0.0
    %7683 = vmatpush1.msra.mxu0 0.0
    %7684 = vmatprep.subr.mxu0 0.0
    %7685 = vmatpush1.msra.mxu0 0.0
    %7686 = vmatprep.subr.mxu0 0.0
    %7687 = vmatpush1.msra.mxu0 0.0
    %7688 = vmatprep.subr.mxu0 0.0
    %7689 = vmatpush1.msra.mxu0 0.0
    %7690 = vmatprep.subr.mxu0 0.0
    %7691 = vmatpush1.msra.mxu0 0.0
    %7692 = vmatprep.subr.mxu0 0.0
    %7693 = vmatpush1.msra.mxu0 0.0
    %7694 = vmatprep.subr.mxu0 0.0
    %7695 = vmatpush1.msra.mxu0 0.0
    %7696 = vmatprep.subr.mxu0 0.0
    %7697 = vmatpush1.msra.mxu0 0.0
    %7698 = vmatprep.subr.mxu0 0.0
    %7699 = vmatpush1.msra.mxu0 %v7668
    %7700 = vmatprep.subr.mxu0 0.0
    %7701 = vmatpush1.msra.mxu0 %v7653
    %7702 = vmatprep.subr.mxu0 0.0
    %7703 = vmatpush2.msra.mxu0 0.0
    %7704 = vmatprep.subr.mxu0 0.0
    %7705 = vmatpush2.msra.mxu0 0.0
    %7706 = vmatprep.subr.mxu0 0.0
    %7707 = vmatpush2.msra.mxu0 0.0
    %7708 = vmatprep.subr.mxu0 0.0
    %7709 = vmatpush2.msra.mxu0 0.0
    %7710 = vmatprep.subr.mxu0 0.0
    %7711 = vmatpush2.msra.mxu0 0.0
    %7712 = vmatprep.subr.mxu0 0.0
    %7713 = vmatpush2.msra.mxu0 0.0
    %7714 = vmatprep.subr.mxu0 0.0
    %7715 = vmatpush2.msra.mxu0 0.0
    %7716 = vmatprep.subr.mxu0 0.0
    %7717 = vmatpush2.msra.mxu0 0.0
    %7718 = vmatprep.subr.mxu0 0.0
    %7719 = vmatpush2.msra.mxu0 0.0
    %7720 = vmatprep.subr.mxu0 0.0
    %7721 = vmatpush2.msra.mxu0 0.0
    %7722 = vmatprep.subr.mxu0 0.0
    %7723 = vmatpush2.msra.mxu0 0.0
    %7724 = vmatprep.subr.mxu0 0.0
    %7725 = vmatpush2.msra.mxu0 0.0
    %7726 = vmatprep.subr.mxu0 0.0
    %7727 = vmatpush2.msra.mxu0 0.0
    %7728 = vmatprep.subr.mxu0 0.0
    %7729 = vmatpush2.msra.mxu0 0.0
    %7730 = vmatprep.subr.mxu0 0.0
    %7731 = vmatpush2.msra.mxu0 0.0
    %7732 = vmatprep.subr.mxu0 0.0
    %7733 = vmatpush2.msra.mxu0 0.0
    %7734 = vmatprep.mubr.f32.mxu0 0.0
    %7735 = vmatmul.mubr.f32.gmra.mxu0 %v7662
    %v7736 = vpop.f32.mrf.mxu0
    %v7737 = vadd.f32 %v7658, %v7736
    %v7738 = vpop.f32.mrf.mxu0
    %7739 = vmatprep.mubr.f32.mxu0 0.0
    %7740 = vmatmul.mubr.f32.gmra.mxu0 %v7665
    %v7741 = vpop.f32.mrf.mxu0
    %v7742 = vadd.f32 %v7658, %v7741
    %v7743 = vpop.f32.mrf.mxu0
    %7744 = vdwg.mxu0
    %vm7745 = vcmp.gt.f32.partialorder %v7737, 0.0
    %vm7746 = vcmp.gt.f32.partialorder %v7742, 0.0
    %v7747 = vmin.f32 %v7737, 0.0
    %v7748 = vmin.f32 %v7742, 0.0
    %v7749 = vmul.f32 %v7747, 1.442695
    %v7750 = vpow.pop %v7749
    %v7751 = vmul.f32 %v7748, 1.442695
    %v7752 = vpow.pop %v7751
    %v7753 = vsub.f32 %v7750, 1.0
    %v7754 = vsub.f32 %v7752, 1.0
    %v7755 = vsel %vm7745, %v7737, %v7753
    %v7756 = vsel %vm7746, %v7742, %v7754
    %v7757 = vld [vmem:[%s7 + $0x18] sm:$0x3f]
    %v7758 = vld [vmem:[%s7 + $0x20] sm:$0x3f]
    %v7759 = vld [vmem:[%s8 + $0x26] sm:$0x3]
    %v7761 = vlaneseq
    %v7762 = vshrl.u32 %v7761, 7
    %v7763 = vsub.s32 0, %v7762
    %v7764 = vrot.slane %v7759, %v7763
    %v7765 = vlaneseq
    %v7766 = vshrl.u32 %v7765, 7
    %v7767 = vsub.s32 1, %v7766
    %v7768 = vrot.slane %v7759, %v7767
    %7771 = vrot.lane.b32.xlu0 %v7757, 13
    %v7772 = vpop.permute.xlu0 %7771
    %7773 = vrot.lane.b32.xlu0 %v7758, 13
    %v7774 = vpop.permute.xlu0 %7773
    %vm7775 = vcmask 105472
    %v7776 = vsel %vm7775, %v7772, %v7774
    %7777 = vrot.lane.b32.xlu0 %v7764, 13
    %v7778 = vpop.permute.xlu0 %7777
    %7779 = vrot.lane.b32.xlu0 %v7768, 13
    %v7780 = vpop.permute.xlu0 %7779
    %v7781 = vsel %vm7775, %v7778, %v7780
    %vm7783 = vcmask 48128
    %v7785 = vsel %vm7783, %v7755, 0
    %v7788 = vsel %vm7783, %v7756, 0
    %v7790 = vsel %vm7558, %v7776, 0
    %7792 = vmatprep.subr.mxu0 0.0
    %7793 = vmatpush1.msra.mxu0 0.0
    %7794 = vmatprep.subr.mxu0 0.0
    %7795 = vmatpush1.msra.mxu0 0.0
    %7796 = vmatprep.subr.mxu0 0.0
    %7797 = vmatpush1.msra.mxu0 0.0
    %7798 = vmatprep.subr.mxu0 0.0
    %7799 = vmatpush1.msra.mxu0 0.0
    %7800 = vmatprep.subr.mxu0 0.0
    %7801 = vmatpush1.msra.mxu0 0.0
    %7802 = vmatprep.subr.mxu0 0.0
    %7803 = vmatpush1.msra.mxu0 0.0
    %7804 = vmatprep.subr.mxu0 0.0
    %7805 = vmatpush1.msra.mxu0 0.0
    %7806 = vmatprep.subr.mxu0 0.0
    %7807 = vmatpush1.msra.mxu0 0.0
    %7808 = vmatprep.subr.mxu0 0.0
    %7809 = vmatpush1.msra.mxu0 0.0
    %7810 = vmatprep.subr.mxu0 0.0
    %7811 = vmatpush1.msra.mxu0 0.0
    %7812 = vmatprep.subr.mxu0 0.0
    %7813 = vmatpush1.msra.mxu0 0.0
    %7814 = vmatprep.subr.mxu0 0.0
    %7815 = vmatpush1.msra.mxu0 0.0
    %7816 = vmatprep.subr.mxu0 0.0
    %7817 = vmatpush1.msra.mxu0 0.0
    %7818 = vmatprep.subr.mxu0 0.0
    %7819 = vmatpush1.msra.mxu0 0.0
    %7820 = vmatprep.subr.mxu0 0.0
    %7821 = vmatpush1.msra.mxu0 0.0
    %7822 = vmatprep.subr.mxu0 0.0
    %7823 = vmatpush1.msra.mxu0 %v7790
    %7824 = vmatprep.subr.mxu0 0.0
    %7825 = vmatpush2.msra.mxu0 0.0
    %7826 = vmatprep.subr.mxu0 0.0
    %7827 = vmatpush2.msra.mxu0 0.0
    %7828 = vmatprep.subr.mxu0 0.0
    %7829 = vmatpush2.msra.mxu0 0.0
    %7830 = vmatprep.subr.mxu0 0.0
    %7831 = vmatpush2.msra.mxu0 0.0
    %7832 = vmatprep.subr.mxu0 0.0
    %7833 = vmatpush2.msra.mxu0 0.0
    %7834 = vmatprep.subr.mxu0 0.0
    %7835 = vmatpush2.msra.mxu0 0.0
    %7836 = vmatprep.subr.mxu0 0.0
    %7837 = vmatpush2.msra.mxu0 0.0
    %7838 = vmatprep.subr.mxu0 0.0
    %7839 = vmatpush2.msra.mxu0 0.0
    %7840 = vmatprep.subr.mxu0 0.0
    %7841 = vmatpush2.msra.mxu0 0.0
    %7842 = vmatprep.subr.mxu0 0.0
    %7843 = vmatpush2.msra.mxu0 0.0
    %7844 = vmatprep.subr.mxu0 0.0
    %7845 = vmatpush2.msra.mxu0 0.0
    %7846 = vmatprep.subr.mxu0 0.0
    %7847 = vmatpush2.msra.mxu0 0.0
    %7848 = vmatprep.subr.mxu0 0.0
    %7849 = vmatpush2.msra.mxu0 0.0
    %7850 = vmatprep.subr.mxu0 0.0
    %7851 = vmatpush2.msra.mxu0 0.0
    %7852 = vmatprep.subr.mxu0 0.0
    %7853 = vmatpush2.msra.mxu0 0.0
    %7854 = vmatprep.subr.mxu0 0.0
    %7855 = vmatpush2.msra.mxu0 0.0
    %7856 = vmatprep.mubr.f32.mxu0 0.0
    %7857 = vmatmul.mubr.f32.gmra.mxu0 %v7785
    %v7858 = vpop.f32.mrf.mxu0
    %v7859 = vadd.f32 %v7781, %v7858
    %v7860 = vpop.f32.mrf.mxu0
    %7861 = vmatprep.mubr.f32.mxu0 0.0
    %7862 = vmatmul.mubr.f32.gmra.mxu0 %v7788
    %v7863 = vpop.f32.mrf.mxu0
    %v7864 = vadd.f32 %v7781, %v7863
    %v7865 = vpop.f32.mrf.mxu0
    %7866 = vdwg.mxu0
    %vm7867 = vcmask 39936
    %v7868 = vsel %vm7867, %v7859, -inf
    %7869 = vmax.xlane.f32.xlu0 %v7868
    %v7870 = vpop.xlane.xlu0 %7869
    %v7871 = vsel %vm7867, %v7864, -inf
    %7872 = vmax.xlane.f32.xlu0 %v7871
    %v7873 = vpop.xlane.xlu0 %7872
    %v7874 = vsub.f32 %v7859, %v7870
    %v7875 = vsub.f32 %v7864, %v7873
    %v7876 = vmul.f32 %v7874, 1.442695
    %v7877 = vpow.pop %v7876
    %v7878 = vmul.f32 %v7875, 1.442695
    %v7879 = vpow.pop %v7878
    %v7880 = vsel %vm7867, %v7877, 0.0
    %7881 = vadd.xlane.f32.xlu0 %v7880
    %v7882 = vpop.xlane.xlu0 %7881
    %v7883 = vsel %vm7867, %v7879, 0.0
    %7884 = vadd.xlane.f32.xlu0 %v7883
    %v7885 = vpop.xlane.xlu0 %7884
    %v7886 = vrcp.pop %v7882
    %v7887 = vmul.f32 %v7877, %v7886
    %v7888 = vrcp.pop %v7885
    %v7889 = vmul.f32 %v7879, %v7888
    %v7890 = vmul.f32 %v7859, 1.442695
    %v7891 = vpow.pop %v7890
    %v7892 = vmul.f32 %v7864, 1.442695
    %v7893 = vpow.pop %v7892
    %v7894 = vsel %vm7867, %v7887, %v7891
    %v7895 = vsel %vm7867, %v7889, %v7893
    %v7896 = vsel %vm7660, %v7894, %v7859
    %v7897 = vsel %vm7660, %v7895, %v7864
    %vm7898 = vcmask 203776
    %7899 = vst.msk [vmem:[%s14] sm:$0xff] %vm7898, %v7896
    %7900 = vst.msk [vmem:[%s14 + $0x8] sm:$0xff] %vm7898, %v7897
    // Predicated region
    $region54: #{attention_gmm_forward.1} parent=1 // pred_check
      _
    $region55: #{attention_gmm_forward.1} parent=1 // pred_check_branch
      %7902 = sbr.rel (0) target = $region57
    $region56: #{attention_gmm_forward.1} parent=1 // pred_region
      %s7904 = ssub.s32 256, 256
      %7905 = vsyncadd [#allocation3], %s7904
      %s7906 = sshll.u32 [#allocation2], 4
      %s7907 = int_to_ptr.vmem [resolvable:$true] %s7906
      %7912 = dma.vmem_to_hbm [thread:$0]  %s7907, 256, %s13, [#allocation3], 128, 128, 8
    $region57: #{attention_gmm_forward.1} parent=1 // pred_fallthru
      _
    // Predicated region
    $region58: #{attention_gmm_forward.1} parent=1 // pred_check
      _
    $region59: #{attention_gmm_forward.1} parent=1 // pred_check_branch
      %7914 = sbr.rel (0) target = $region61
    $region60: #{attention_gmm_forward.1} parent=1 // pred_region
      _
    $region61: #{attention_gmm_forward.1} parent=1 // pred_fallthru
      _
    // Predicated region
    $region62: #{attention_gmm_forward.1} parent=1 // pred_check
      _
    $region63: #{attention_gmm_forward.1} parent=1 // pred_check_branch
      %7916 = sbr.rel (0) target = $region65
    $region64: #{attention_gmm_forward.1} parent=1 // pred_region
      %7917 = dma.done [#allocation3], 256
    $region65: #{attention_gmm_forward.1} parent=1 // pred_fallthru
      _
    // Predicated region
    $region66: #{attention_gmm_forward.1} parent=1 // pred_check
      _
    $region67: #{attention_gmm_forward.1} parent=1 // pred_check_branch
      %7919 = sbr.rel (0) target = $region69
    $region68: #{attention_gmm_forward.1} parent=1 // pred_region
      _
    $region69: #{attention_gmm_forward.1} parent=1 // pred_fallthru
      _
    %7920 = vsyncpa [#allocation3], 1

</llo_original>
